<compile_context>
chip_gen: v7x
topology: tpu7x:2x2x1
jax: 0.10.0
libtpu: 0.0.40
codegen_flags: <defaults>
</compile_context>

<pallas_src>
import math

import jax
import jax.numpy as jnp
from jax import lax
from jax.experimental import pallas as pl
from jax.experimental.pallas import tpu as pltpu

# ---------------- config (small, CLIP-text-like) ----------------
B, L, D, H, E = 2, 8, 32, 4, 16      # batch, context length, width, heads, embed dim
HD = D // H                          # head dim
FF = 4 * D                           # MLP hidden
VOCAB = 64
N_LAYERS = 2
EPS = 1e-5


def _layer_norm(x, g, b):
    mu = jnp.mean(x, axis=-1, keepdims=True)
    var = jnp.mean(jnp.square(x - mu), axis=-1, keepdims=True)
    return (x - mu) * lax.rsqrt(var + EPS) * g + b


# ---------------- the single fused kernel ----------------
def _clip_text_kernel(eot_ref,                      # SMEM: [B] int32 EOT indices
                      tok_ref, pos_ref,             # [B,L,D], [L,D]
                      small_ref,                    # [N,6,D]  ln1_g,ln1_b,ln2_g,ln2_b,bo,bpr
                      bqkv_ref,                     # [N,3H,1,HD] per-head q/k/v biases (q pre-scaled)
                      bfc_ref,                      # [N,1,FF]
                      wqkv_ref,                     # [N,3H,D,HD] per-head q/k/v weights (q pre-scaled)
                      wo_ref,                       # [N,H,HD,D]
                      wfc_ref, wpr_ref,             # [N,D,FF], [N,FF,D]
                      lnf_ref, proj_ref,            # [2,D], [D,E]
                      o_ref,                        # out: [B,E]
                      xs_ref):                      # scratch: [L,D] f32
    # Loop-invariant causal additive mask, hoisted out of all loops.
    row = lax.broadcasted_iota(jnp.int32, (L, L), 0)
    col = lax.broadcasted_iota(jnp.int32, (L, L), 1)
    neg_mask = jnp.where(col <= row, 0.0, -1e30).astype(jnp.float32)

    pos = pos_ref[...]
    lnf_g, lnf_b = lnf_ref[0:1, :], lnf_ref[1:2, :]
    proj = proj_ref[...]

    for b in range(B):                               # static unroll; one grid step total
        x = tok_ref[b] + pos                         # [L, D]

        for li in range(N_LAYERS):                   # static unroll
            small = small_ref[li]                    # [6, D]
            ln1_g, ln1_b = small[0:1], small[1:2]
            ln2_g, ln2_b = small[2:3], small[3:4]
            bo, bpr = small[4:5], small[5:6]

            # ---- multi-head causal self-attention ----
            h = _layer_norm(x, ln1_g, ln1_b)

            # Per-head projections via wrapper-split weights: NN dots only,
            # no lane slicing of activations, no transposes. 1/sqrt(HD) is
            # folded into the Q weights/bias in the wrapper.
            q = jnp.stack([jnp.dot(h, wqkv_ref[li, hh],
                                   preferred_element_type=jnp.float32)
                           for hh in range(H)], axis=0) + bqkv_ref[li, 0:H]          # [H,L,HD]
            k = jnp.stack([jnp.dot(h, wqkv_ref[li, H + hh],
                                   preferred_element_type=jnp.float32)
                           for hh in range(H)], axis=0) + bqkv_ref[li, H:2 * H]      # [H,L,HD]
            v = jnp.stack([jnp.dot(h, wqkv_ref[li, 2 * H + hh],
                                   preferred_element_type=jnp.float32)
                           for hh in range(H)], axis=0) + bqkv_ref[li, 2 * H:3 * H]  # [H,L,HD]

            # Scores for all heads in one batched dot ('hqd,hkd->hqk').
            s = lax.dot_general(q, k, (((2,), (2,)), ((0,), (0,))),
                                preferred_element_type=jnp.float32) + neg_mask       # [H,L,L]

            # Softmax batched across all heads.
            s = s - jnp.max(s, axis=-1, keepdims=True)
            p = jnp.exp(s)
            denom = jnp.sum(p, axis=-1, keepdims=True)
            r = pl.reciprocal(denom, approx=True)
            r = r * (2.0 - denom * r)                # one Newton step -> ~exact
            p = p * r

            # Context ('hqk,hkd->hqd') and a single batched out-projection.
            ctx = lax.dot_general(p, v, (((2,), (1,)), ((0,), (0,))),
                                  preferred_element_type=jnp.float32)                # [H,L,HD]
            attn = jnp.sum(
                lax.dot_general(ctx, wo_ref[li], (((2,), (1,)), ((0,), (0,))),
                                preferred_element_type=jnp.float32), axis=0)         # [L,D]
            x = x + attn + bo

            # ---- MLP with QuickGELU (x * sigmoid(1.702 x), as in CLIP) ----
            h2 = _layer_norm(x, ln2_g, ln2_b)
            f = jnp.dot(h2, wfc_ref[li], preferred_element_type=jnp.float32) + bfc_ref[li]
            f = f * jax.nn.sigmoid(1.702 * f)
            x = x + jnp.dot(f, wpr_ref[li], preferred_element_type=jnp.float32) + bpr

        # ---- EOT token row (dynamic sublane slice via scratch), ln_final, proj ----
        xs_ref[...] = x
        idx = eot_ref[b]
        x_eot = xs_ref[pl.ds(idx, 1), :]             # [1, D]
        hf = _layer_norm(x_eot, lnf_g, lnf_b)
        # NOTE: E=16 -> masked partial store; negligible here, keep E a
        # multiple of 128 (or pad) at real sizes.
        o_ref[b:b + 1, :] = jnp.dot(hf, proj, preferred_element_type=jnp.float32)


# ---------------- wrapper ----------------
def _pack_params(params):
    """Trace-time repacking: per-head weight layout + packed small params."""
    lw = params['layers']
    scale = 1.0 / math.sqrt(HD)

    def per_head_w(w):                               # [N,D,D] -> [N,H,D,HD]
        return w.reshape(N_LAYERS, D, H, HD).transpose(0, 2, 1, 3)

    wq = lw['wqkv'][:, :, :D]
    wk = lw['wqkv'][:, :, D:2 * D]
    wv = lw['wqkv'][:, :, 2 * D:]
    wqkv_h = jnp.concatenate(
        [per_head_w(wq) * scale, per_head_w(wk), per_head_w(wv)], axis=1)   # [N,3H,D,HD]

    def per_head_b(bias):                            # [N,D] -> [N,H,1,HD]
        return bias.reshape(N_LAYERS, H, 1, HD)

    bq = lw['bqkv'][:, :D]
    bk = lw['bqkv'][:, D:2 * D]
    bv = lw['bqkv'][:, 2 * D:]
    bqkv_h = jnp.concatenate(
        [per_head_b(bq) * scale, per_head_b(bk), per_head_b(bv)], axis=1)   # [N,3H,1,HD]

    wo_h = lw['wo'].reshape(N_LAYERS, H, HD, D)                             # [N,H,HD,D]
    small = jnp.stack([lw['ln1_g'], lw['ln1_b'], lw['ln2_g'], lw['ln2_b'],
                       lw['bo'], lw['bpr']], axis=1)                        # [N,6,D]
    bfc = lw['bfc'][:, None, :]                                             # [N,1,FF]
    lnf = jnp.stack([params['ln_final_g'], params['ln_final_b']], axis=0)   # [2,D]
    return wqkv_h, bqkv_h, wo_h, small, bfc, lnf


@jax.jit
def clip_text_forward(params, text):
    # Token-embedding row gather + EOT index: plain-JAX glue (data-dependent).
    tok = jnp.take(params['token_embedding'], text, axis=0)                 # [B,L,D]
    eot = jnp.argmax(text, axis=-1).astype(jnp.int32)                       # [B]

    wqkv_h, bqkv_h, wo_h, small, bfc, lnf = _pack_params(params)
    lw = params['layers']

    vmem = pl.BlockSpec(memory_space=pltpu.MemorySpace.VMEM)
    smem = pl.BlockSpec(memory_space=pltpu.MemorySpace.SMEM)

    out = pl.pallas_call(
        _clip_text_kernel,
        out_shape=jax.ShapeDtypeStruct((B, E), jnp.float32),
        in_specs=[smem] + [vmem] * 11,
        out_specs=vmem,
        scratch_shapes=[pltpu.VMEM((L, D), jnp.float32)],
    )(eot, tok, params['positional_embedding'],
      small, bqkv_h, bfc, wqkv_h, wo_h,
      lw['wfc'], lw['wpr'], lnf, params['text_projection'])
    return out


# ---------------- parameters (deterministic, synthetic, layer-stacked) ----------------
def init_params(key):
    kit = iter(jax.random.split(key, 32))

    def normal(shape, scale=0.02):
        return (scale * jax.random.normal(next(kit), shape)).astype(jnp.float32)

    return {
        'token_embedding': normal((VOCAB, D)),
        'positional_embedding': normal((L, D), 0.01),
        'ln_final_g': 1.0 + normal((D,), 0.01),
        'ln_final_b': normal((D,), 0.01),
        'text_projection': normal((D, E)),
        'layers': {
            'ln1_g': 1.0 + normal((N_LAYERS, D), 0.01),
            'ln1_b': normal((N_LAYERS, D), 0.01),
            'wqkv': normal((N_LAYERS, D, 3 * D)),
            'bqkv': normal((N_LAYERS, 3 * D), 0.01),
            'wo': normal((N_LAYERS, D, D)),
            'bo': normal((N_LAYERS, D), 0.01),
            'ln2_g': 1.0 + normal((N_LAYERS, D), 0.01),
            'ln2_b': normal((N_LAYERS, D), 0.01),
            'wfc': normal((N_LAYERS, D, FF)),
            'bfc': normal((N_LAYERS, FF), 0.01),
            'wpr': normal((N_LAYERS, FF, D)),
            'bpr': normal((N_LAYERS, D), 0.01),
        },
    }


# ---------------- pure-JAX reference ----------------
def reference_forward(params, text):
    def ln(x, g, b):
        mu = x.mean(-1, keepdims=True)
        var = ((x - mu) ** 2).mean(-1, keepdims=True)
        return (x - mu) / jnp.sqrt(var + EPS) * g + b

    lw = params['layers']
    x = jnp.take(params['token_embedding'], text, axis=0) + params['positional_embedding']
    causal = jnp.tril(jnp.ones((L, L), bool))
    for li in range(N_LAYERS):
        h = ln(x, lw['ln1_g'][li], lw['ln1_b'][li])
        qkv = h @ lw['wqkv'][li] + lw['bqkv'][li]
        q, k, v = jnp.split(qkv, 3, axis=-1)
        q = q.reshape(B, L, H, HD).transpose(0, 2, 1, 3) / math.sqrt(HD)
        k = k.reshape(B, L, H, HD).transpose(0, 2, 1, 3)
        v = v.reshape(B, L, H, HD).transpose(0, 2, 1, 3)
        s = q @ jnp.swapaxes(k, -1, -2)
        s = jnp.where(causal, s, -1e30)
        a = jax.nn.softmax(s, axis=-1) @ v
        a = a.transpose(0, 2, 1, 3).reshape(B, L, D)
        x = x + a @ lw['wo'][li] + lw['bo'][li]
        h2 = ln(x, lw['ln2_g'][li], lw['ln2_b'][li])
        f = h2 @ lw['wfc'][li] + lw['bfc'][li]
        f = f * jax.nn.sigmoid(1.702 * f)
        x = x + f @ lw['wpr'][li] + lw['bpr'][li]
    x = ln(x, params['ln_final_g'], params['ln_final_b'])
    eot = jnp.argmax(text, axis=-1)
    return x[jnp.arange(B), eot] @ params['text_projection']


if __name__ == "__main__":
    key = jax.random.PRNGKey(0)
    pkey, tkey = jax.random.split(key)
    params = init_params(pkey)
    text = jax.random.randint(tkey, (B, L), 0, VOCAB, dtype=jnp.int32)

    out = clip_text_forward(params, text)
    out = jax.block_until_ready(out)

    ref = reference_forward(params, text)
    assert out.shape == (B, E), out.shape
    assert jnp.allclose(out, ref, atol=5e-4, rtol=5e-3), float(jnp.abs(out - ref).max())
    print("KERNEL_OK")
</pallas_src>

<mosaic_0001>
module attributes {stable_mosaic.version = 11 : i64} {
  func.func @_clip_text_kernel(%arg0: memref<2xi32, #tpu.memory_space<smem>>, %arg1: memref<2x8x32xf32, #tpu.memory_space<vmem>>, %arg2: memref<8x32xf32, #tpu.memory_space<vmem>>, %arg3: memref<2x6x32xf32, #tpu.memory_space<vmem>>, %arg4: memref<2x12x1x8xf32, #tpu.memory_space<vmem>>, %arg5: memref<2x1x128xf32, #tpu.memory_space<vmem>>, %arg6: memref<2x12x32x8xf32, #tpu.memory_space<vmem>>, %arg7: memref<2x4x8x32xf32, #tpu.memory_space<vmem>>, %arg8: memref<2x32x128xf32, #tpu.memory_space<vmem>>, %arg9: memref<2x128x32xf32, #tpu.memory_space<vmem>>, %arg10: memref<2x32xf32, #tpu.memory_space<vmem>>, %arg11: memref<32x16xf32, #tpu.memory_space<vmem>>, %arg12: memref<2x16xf32, #tpu.memory_space<vmem>>, %arg13: memref<8x32xf32, #tpu.memory_space<vmem>>) attributes {dimension_semantics = [], scalar_prefetch = 0 : i64, scratch_operands = 1 : i64, tpu.core_type = #tpu.core_type<tc>} {
    %0 = tpu.iota {dimensions = array<i32: 0>} : vector<8x8xi32>
    %1 = tpu.iota {dimensions = array<i32: 1>} : vector<8x8xi32>
    %2 = arith.cmpi sle, %1, %0 : vector<8x8xi32>
    %cst = arith.constant 0.000000e+00 : f32
    %cst_0 = arith.constant -1.000000e+30 : f32
    %3 = vector.broadcast %cst : f32 to vector<8x8xf32>
    %4 = vector.broadcast %cst_0 : f32 to vector<8x8xf32>
    %5 = arith.select %2, %3, %4 : vector<8x8xi1>, vector<8x8xf32>
    %c0 = arith.constant 0 : index
    %c0_1 = arith.constant 0 : index
    %6 = vector.load %arg2[%c0, %c0_1] : memref<8x32xf32, #tpu.memory_space<vmem>>, vector<8x32xf32>
    %c0_2 = arith.constant 0 : index
    %c0_3 = arith.constant 0 : index
    %7 = vector.load %arg10[%c0_2, %c0_3] : memref<2x32xf32, #tpu.memory_space<vmem>>, vector<1x32xf32>
    %c1 = arith.constant 1 : index
    %c0_4 = arith.constant 0 : index
    %8 = vector.load %arg10[%c1, %c0_4] : memref<2x32xf32, #tpu.memory_space<vmem>>, vector<1x32xf32>
    %c0_5 = arith.constant 0 : index
    %c0_6 = arith.constant 0 : index
    %9 = vector.load %arg11[%c0_5, %c0_6] : memref<32x16xf32, #tpu.memory_space<vmem>>, vector<32x16xf32>
    %c0_7 = arith.constant 0 : index
    %c0_8 = arith.constant 0 : index
    %c0_9 = arith.constant 0 : index
    %10 = vector.load %arg1[%c0_7, %c0_8, %c0_9] : memref<2x8x32xf32, #tpu.memory_space<vmem>>, vector<1x8x32xf32>
    %11 = vector.shape_cast %10 : vector<1x8x32xf32> to vector<8x32xf32>
    %12 = arith.addf %11, %6 : vector<8x32xf32>
    %c0_10 = arith.constant 0 : index
    %c0_11 = arith.constant 0 : index
    %c0_12 = arith.constant 0 : index
    %13 = vector.load %arg3[%c0_10, %c0_11, %c0_12] : memref<2x6x32xf32, #tpu.memory_space<vmem>>, vector<1x6x32xf32>
    %14 = vector.shape_cast %13 : vector<1x6x32xf32> to vector<6x32xf32>
    %15 = vector.extract_strided_slice %14 {offsets = [0, 0], sizes = [1, 32], strides = [1, 1]} : vector<6x32xf32> to vector<1x32xf32>
    %16 = vector.extract_strided_slice %14 {offsets = [1, 0], sizes = [1, 32], strides = [1, 1]} : vector<6x32xf32> to vector<1x32xf32>
    %17 = vector.extract_strided_slice %14 {offsets = [2, 0], sizes = [1, 32], strides = [1, 1]} : vector<6x32xf32> to vector<1x32xf32>
    %18 = vector.extract_strided_slice %14 {offsets = [3, 0], sizes = [1, 32], strides = [1, 1]} : vector<6x32xf32> to vector<1x32xf32>
    %19 = vector.extract_strided_slice %14 {offsets = [4, 0], sizes = [1, 32], strides = [1, 1]} : vector<6x32xf32> to vector<1x32xf32>
    %20 = vector.extract_strided_slice %14 {offsets = [5, 0], sizes = [1, 32], strides = [1, 1]} : vector<6x32xf32> to vector<1x32xf32>
    %cst_13 = arith.constant dense<0.000000e+00> : vector<8xf32>
    %21 = vector.multi_reduction <add>, %12, %cst_13 [1] : vector<8x32xf32> to vector<8xf32>
    %22 = vector.shape_cast %21 : vector<8xf32> to vector<8x1xf32>
    %cst_14 = arith.constant 3.200000e+01 : f32
    %23 = vector.broadcast %cst_14 : f32 to vector<8x1xf32>
    %24 = arith.divf %22, %23 : vector<8x1xf32>
    %25 = vector.broadcast %24 : vector<8x1xf32> to vector<8x32xf32>
    %26 = arith.subf %12, %25 : vector<8x32xf32>
    %27 = arith.mulf %26, %26 : vector<8x32xf32>
    %cst_15 = arith.constant dense<0.000000e+00> : vector<8xf32>
    %28 = vector.multi_reduction <add>, %27, %cst_15 [1] : vector<8x32xf32> to vector<8xf32>
    %29 = vector.shape_cast %28 : vector<8xf32> to vector<8x1xf32>
    %cst_16 = arith.constant 3.200000e+01 : f32
    %30 = vector.broadcast %cst_16 : f32 to vector<8x1xf32>
    %31 = arith.divf %29, %30 : vector<8x1xf32>
    %32 = vector.broadcast %24 : vector<8x1xf32> to vector<8x32xf32>
    %33 = arith.subf %12, %32 : vector<8x32xf32>
    %cst_17 = arith.constant 9.99999974E-6 : f32
    %34 = vector.broadcast %cst_17 : f32 to vector<8x1xf32>
    %35 = arith.addf %31, %34 : vector<8x1xf32>
    %36 = math.rsqrt %35 : vector<8x1xf32>
    %37 = vector.broadcast %36 : vector<8x1xf32> to vector<8x32xf32>
    %38 = arith.mulf %33, %37 : vector<8x32xf32>
    %39 = vector.broadcast %15 : vector<1x32xf32> to vector<8x32xf32>
    %40 = arith.mulf %38, %39 : vector<8x32xf32>
    %41 = vector.broadcast %16 : vector<1x32xf32> to vector<8x32xf32>
    %42 = arith.addf %40, %41 : vector<8x32xf32>
    %c0_18 = arith.constant 0 : index
    %c0_19 = arith.constant 0 : index
    %c0_20 = arith.constant 0 : index
    %c0_21 = arith.constant 0 : index
    %43 = vector.load %arg6[%c0_18, %c0_19, %c0_20, %c0_21] : memref<2x12x32x8xf32, #tpu.memory_space<vmem>>, vector<1x1x32x8xf32>
    %44 = vector.shape_cast %43 : vector<1x1x32x8xf32> to vector<32x8xf32>
    %cst_22 = arith.constant dense<0.000000e+00> : vector<8x8xf32>
    %45 = tpu.matmul %42, %44, %cst_22 {dimension_numbers = #tpu.dot_dimension_numbers<[1], [0], [0], [1], [0, 0, 1, 1], [], []>} : vector<8x32xf32>, vector<32x8xf32>, vector<8x8xf32> -> vector<8x8xf32>
    %c0_23 = arith.constant 0 : index
    %c1_24 = arith.constant 1 : index
    %c0_25 = arith.constant 0 : index
    %c0_26 = arith.constant 0 : index
    %46 = vector.load %arg6[%c0_23, %c1_24, %c0_25, %c0_26] : memref<2x12x32x8xf32, #tpu.memory_space<vmem>>, vector<1x1x32x8xf32>
    %47 = vector.shape_cast %46 : vector<1x1x32x8xf32> to vector<32x8xf32>
    %cst_27 = arith.constant dense<0.000000e+00> : vector<8x8xf32>
    %48 = tpu.matmul %42, %47, %cst_27 {dimension_numbers = #tpu.dot_dimension_numbers<[1], [0], [0], [1], [0, 0, 1, 1], [], []>} : vector<8x32xf32>, vector<32x8xf32>, vector<8x8xf32> -> vector<8x8xf32>
    %c0_28 = arith.constant 0 : index
    %c2 = arith.constant 2 : index
    %c0_29 = arith.constant 0 : index
    %c0_30 = arith.constant 0 : index
    %49 = vector.load %arg6[%c0_28, %c2, %c0_29, %c0_30] : memref<2x12x32x8xf32, #tpu.memory_space<vmem>>, vector<1x1x32x8xf32>
    %50 = vector.shape_cast %49 : vector<1x1x32x8xf32> to vector<32x8xf32>
    %cst_31 = arith.constant dense<0.000000e+00> : vector<8x8xf32>
    %51 = tpu.matmul %42, %50, %cst_31 {dimension_numbers = #tpu.dot_dimension_numbers<[1], [0], [0], [1], [0, 0, 1, 1], [], []>} : vector<8x32xf32>, vector<32x8xf32>, vector<8x8xf32> -> vector<8x8xf32>
    %c0_32 = arith.constant 0 : index
    %c3 = arith.constant 3 : index
    %c0_33 = arith.constant 0 : index
    %c0_34 = arith.constant 0 : index
    %52 = vector.load %arg6[%c0_32, %c3, %c0_33, %c0_34] : memref<2x12x32x8xf32, #tpu.memory_space<vmem>>, vector<1x1x32x8xf32>
    %53 = vector.shape_cast %52 : vector<1x1x32x8xf32> to vector<32x8xf32>
    %cst_35 = arith.constant dense<0.000000e+00> : vector<8x8xf32>
    %54 = tpu.matmul %42, %53, %cst_35 {dimension_numbers = #tpu.dot_dimension_numbers<[1], [0], [0], [1], [0, 0, 1, 1], [], []>} : vector<8x32xf32>, vector<32x8xf32>, vector<8x8xf32> -> vector<8x8xf32>
    %55 = vector.shape_cast %45 : vector<8x8xf32> to vector<1x8x8xf32>
    %56 = vector.shape_cast %48 : vector<8x8xf32> to vector<1x8x8xf32>
    %57 = vector.shape_cast %51 : vector<8x8xf32> to vector<1x8x8xf32>
    %58 = vector.shape_cast %54 : vector<8x8xf32> to vector<1x8x8xf32>
    %59 = tpu.concatenate %55, %56, %57, %58 in 0 : vector<1x8x8xf32>, vector<1x8x8xf32>, vector<1x8x8xf32>, vector<1x8x8xf32> -> vector<4x8x8xf32>
    %c0_36 = arith.constant 0 : index
    %c0_37 = arith.constant 0 : index
    %c0_38 = arith.constant 0 : index
    %c0_39 = arith.constant 0 : index
    %60 = vector.load %arg4[%c0_36, %c0_37, %c0_38, %c0_39] : memref<2x12x1x8xf32, #tpu.memory_space<vmem>>, vector<1x4x1x8xf32>
    %61 = vector.shape_cast %60 : vector<1x4x1x8xf32> to vector<4x1x8xf32>
    %62 = vector.broadcast %61 : vector<4x1x8xf32> to vector<4x8x8xf32>
    %63 = arith.addf %59, %62 : vector<4x8x8xf32>
    %c0_40 = arith.constant 0 : index
    %c4 = arith.constant 4 : index
    %c0_41 = arith.constant 0 : index
    %c0_42 = arith.constant 0 : index
    %64 = vector.load %arg6[%c0_40, %c4, %c0_41, %c0_42] : memref<2x12x32x8xf32, #tpu.memory_space<vmem>>, vector<1x1x32x8xf32>
    %65 = vector.shape_cast %64 : vector<1x1x32x8xf32> to vector<32x8xf32>
    %cst_43 = arith.constant dense<0.000000e+00> : vector<8x8xf32>
    %66 = tpu.matmul %42, %65, %cst_43 {dimension_numbers = #tpu.dot_dimension_numbers<[1], [0], [0], [1], [0, 0, 1, 1], [], []>} : vector<8x32xf32>, vector<32x8xf32>, vector<8x8xf32> -> vector<8x8xf32>
    %c0_44 = arith.constant 0 : index
    %c5 = arith.constant 5 : index
    %c0_45 = arith.constant 0 : index
    %c0_46 = arith.constant 0 : index
    %67 = vector.load %arg6[%c0_44, %c5, %c0_45, %c0_46] : memref<2x12x32x8xf32, #tpu.memory_space<vmem>>, vector<1x1x32x8xf32>
    %68 = vector.shape_cast %67 : vector<1x1x32x8xf32> to vector<32x8xf32>
    %cst_47 = arith.constant dense<0.000000e+00> : vector<8x8xf32>
    %69 = tpu.matmul %42, %68, %cst_47 {dimension_numbers = #tpu.dot_dimension_numbers<[1], [0], [0], [1], [0, 0, 1, 1], [], []>} : vector<8x32xf32>, vector<32x8xf32>, vector<8x8xf32> -> vector<8x8xf32>
    %c0_48 = arith.constant 0 : index
    %c6 = arith.constant 6 : index
    %c0_49 = arith.constant 0 : index
    %c0_50 = arith.constant 0 : index
    %70 = vector.load %arg6[%c0_48, %c6, %c0_49, %c0_50] : memref<2x12x32x8xf32, #tpu.memory_space<vmem>>, vector<1x1x32x8xf32>
    %71 = vector.shape_cast %70 : vector<1x1x32x8xf32> to vector<32x8xf32>
    %cst_51 = arith.constant dense<0.000000e+00> : vector<8x8xf32>
    %72 = tpu.matmul %42, %71, %cst_51 {dimension_numbers = #tpu.dot_dimension_numbers<[1], [0], [0], [1], [0, 0, 1, 1], [], []>} : vector<8x32xf32>, vector<32x8xf32>, vector<8x8xf32> -> vector<8x8xf32>
    %c0_52 = arith.constant 0 : index
    %c7 = arith.constant 7 : index
    %c0_53 = arith.constant 0 : index
    %c0_54 = arith.constant 0 : index
    %73 = vector.load %arg6[%c0_52, %c7, %c0_53, %c0_54] : memref<2x12x32x8xf32, #tpu.memory_space<vmem>>, vector<1x1x32x8xf32>
    %74 = vector.shape_cast %73 : vector<1x1x32x8xf32> to vector<32x8xf32>
    %cst_55 = arith.constant dense<0.000000e+00> : vector<8x8xf32>
    %75 = tpu.matmul %42, %74, %cst_55 {dimension_numbers = #tpu.dot_dimension_numbers<[1], [0], [0], [1], [0, 0, 1, 1], [], []>} : vector<8x32xf32>, vector<32x8xf32>, vector<8x8xf32> -> vector<8x8xf32>
    %76 = vector.shape_cast %66 : vector<8x8xf32> to vector<1x8x8xf32>
    %77 = vector.shape_cast %69 : vector<8x8xf32> to vector<1x8x8xf32>
    %78 = vector.shape_cast %72 : vector<8x8xf32> to vector<1x8x8xf32>
    %79 = vector.shape_cast %75 : vector<8x8xf32> to vector<1x8x8xf32>
    %80 = tpu.concatenate %76, %77, %78, %79 in 0 : vector<1x8x8xf32>, vector<1x8x8xf32>, vector<1x8x8xf32>, vector<1x8x8xf32> -> vector<4x8x8xf32>
    %c0_56 = arith.constant 0 : index
    %c4_57 = arith.constant 4 : index
    %c0_58 = arith.constant 0 : index
    %c0_59 = arith.constant 0 : index
    %81 = vector.load %arg4[%c0_56, %c4_57, %c0_58, %c0_59] : memref<2x12x1x8xf32, #tpu.memory_space<vmem>>, vector<1x4x1x8xf32>
    %82 = vector.shape_cast %81 : vector<1x4x1x8xf32> to vector<4x1x8xf32>
    %83 = vector.broadcast %82 : vector<4x1x8xf32> to vector<4x8x8xf32>
    %84 = arith.addf %80, %83 : vector<4x8x8xf32>
    %c0_60 = arith.constant 0 : index
    %c8 = arith.constant 8 : index
    %c0_61 = arith.constant 0 : index
    %c0_62 = arith.constant 0 : index
    %85 = vector.load %arg6[%c0_60, %c8, %c0_61, %c0_62] : memref<2x12x32x8xf32, #tpu.memory_space<vmem>>, vector<1x1x32x8xf32>
    %86 = vector.shape_cast %85 : vector<1x1x32x8xf32> to vector<32x8xf32>
    %cst_63 = arith.constant dense<0.000000e+00> : vector<8x8xf32>
    %87 = tpu.matmul %42, %86, %cst_63 {dimension_numbers = #tpu.dot_dimension_numbers<[1], [0], [0], [1], [0, 0, 1, 1], [], []>} : vector<8x32xf32>, vector<32x8xf32>, vector<8x8xf32> -> vector<8x8xf32>
    %c0_64 = arith.constant 0 : index
    %c9 = arith.constant 9 : index
    %c0_65 = arith.constant 0 : index
    %c0_66 = arith.constant 0 : index
    %88 = vector.load %arg6[%c0_64, %c9, %c0_65, %c0_66] : memref<2x12x32x8xf32, #tpu.memory_space<vmem>>, vector<1x1x32x8xf32>
    %89 = vector.shape_cast %88 : vector<1x1x32x8xf32> to vector<32x8xf32>
    %cst_67 = arith.constant dense<0.000000e+00> : vector<8x8xf32>
    %90 = tpu.matmul %42, %89, %cst_67 {dimension_numbers = #tpu.dot_dimension_numbers<[1], [0], [0], [1], [0, 0, 1, 1], [], []>} : vector<8x32xf32>, vector<32x8xf32>, vector<8x8xf32> -> vector<8x8xf32>
    %c0_68 = arith.constant 0 : index
    %c10 = arith.constant 10 : index
    %c0_69 = arith.constant 0 : index
    %c0_70 = arith.constant 0 : index
    %91 = vector.load %arg6[%c0_68, %c10, %c0_69, %c0_70] : memref<2x12x32x8xf32, #tpu.memory_space<vmem>>, vector<1x1x32x8xf32>
    %92 = vector.shape_cast %91 : vector<1x1x32x8xf32> to vector<32x8xf32>
    %cst_71 = arith.constant dense<0.000000e+00> : vector<8x8xf32>
    %93 = tpu.matmul %42, %92, %cst_71 {dimension_numbers = #tpu.dot_dimension_numbers<[1], [0], [0], [1], [0, 0, 1, 1], [], []>} : vector<8x32xf32>, vector<32x8xf32>, vector<8x8xf32> -> vector<8x8xf32>
    %c0_72 = arith.constant 0 : index
    %c11 = arith.constant 11 : index
    %c0_73 = arith.constant 0 : index
    %c0_74 = arith.constant 0 : index
    %94 = vector.load %arg6[%c0_72, %c11, %c0_73, %c0_74] : memref<2x12x32x8xf32, #tpu.memory_space<vmem>>, vector<1x1x32x8xf32>
    %95 = vector.shape_cast %94 : vector<1x1x32x8xf32> to vector<32x8xf32>
    %cst_75 = arith.constant dense<0.000000e+00> : vector<8x8xf32>
    %96 = tpu.matmul %42, %95, %cst_75 {dimension_numbers = #tpu.dot_dimension_numbers<[1], [0], [0], [1], [0, 0, 1, 1], [], []>} : vector<8x32xf32>, vector<32x8xf32>, vector<8x8xf32> -> vector<8x8xf32>
    %97 = vector.shape_cast %87 : vector<8x8xf32> to vector<1x8x8xf32>
    %98 = vector.shape_cast %90 : vector<8x8xf32> to vector<1x8x8xf32>
    %99 = vector.shape_cast %93 : vector<8x8xf32> to vector<1x8x8xf32>
    %100 = vector.shape_cast %96 : vector<8x8xf32> to vector<1x8x8xf32>
    %101 = tpu.concatenate %97, %98, %99, %100 in 0 : vector<1x8x8xf32>, vector<1x8x8xf32>, vector<1x8x8xf32>, vector<1x8x8xf32> -> vector<4x8x8xf32>
    %c0_76 = arith.constant 0 : index
    %c8_77 = arith.constant 8 : index
    %c0_78 = arith.constant 0 : index
    %c0_79 = arith.constant 0 : index
    %102 = vector.load %arg4[%c0_76, %c8_77, %c0_78, %c0_79] : memref<2x12x1x8xf32, #tpu.memory_space<vmem>>, vector<1x4x1x8xf32>
    %103 = vector.shape_cast %102 : vector<1x4x1x8xf32> to vector<4x1x8xf32>
    %104 = vector.broadcast %103 : vector<4x1x8xf32> to vector<4x8x8xf32>
    %105 = arith.addf %101, %104 : vector<4x8x8xf32>
    %cst_80 = arith.constant dense<0.000000e+00> : vector<4x8x8xf32>
    %106 = tpu.matmul %63, %84, %cst_80 {dimension_numbers = #tpu.dot_dimension_numbers<[2], [2], [1], [1], [0, 0, 0, 1, 1, 1], [0], [0]>} : vector<4x8x8xf32>, vector<4x8x8xf32>, vector<4x8x8xf32> -> vector<4x8x8xf32>
    %107 = vector.shape_cast %5 : vector<8x8xf32> to vector<1x8x8xf32>
    %108 = vector.broadcast %107 : vector<1x8x8xf32> to vector<4x8x8xf32>
    %109 = arith.addf %106, %108 : vector<4x8x8xf32>
    %cst_81 = arith.constant dense<0xFF800000> : vector<4x8xf32>
    %110 = vector.multi_reduction <maximumf>, %109, %cst_81 [2] : vector<4x8x8xf32> to vector<4x8xf32>
    %111 = vector.shape_cast %110 : vector<4x8xf32> to vector<4x8x1xf32>
    %112 = vector.broadcast %111 : vector<4x8x1xf32> to vector<4x8x8xf32>
    %113 = arith.subf %109, %112 : vector<4x8x8xf32>
    %114 = math.exp %113 : vector<4x8x8xf32>
    %cst_82 = arith.constant dense<0.000000e+00> : vector<4x8xf32>
    %115 = vector.multi_reduction <add>, %114, %cst_82 [2] : vector<4x8x8xf32> to vector<4x8xf32>
    %116 = vector.shape_cast %115 : vector<4x8xf32> to vector<4x8x1xf32>
    %117 = tpu.reciprocal %116 {approx = true} : vector<4x8x1xf32> -> vector<4x8x1xf32>
    %118 = arith.mulf %116, %117 : vector<4x8x1xf32>
    %cst_83 = arith.constant 2.000000e+00 : f32
    %119 = vector.broadcast %cst_83 : f32 to vector<4x8x1xf32>
    %120 = arith.subf %119, %118 : vector<4x8x1xf32>
    %121 = arith.mulf %117, %120 : vector<4x8x1xf32>
    %122 = vector.broadcast %121 : vector<4x8x1xf32> to vector<4x8x8xf32>
    %123 = arith.mulf %114, %122 : vector<4x8x8xf32>
    %cst_84 = arith.constant dense<0.000000e+00> : vector<4x8x8xf32>
    %124 = tpu.matmul %123, %105, %cst_84 {dimension_numbers = #tpu.dot_dimension_numbers<[2], [1], [1], [2], [0, 0, 0, 1, 1, 2], [0], [0]>} : vector<4x8x8xf32>, vector<4x8x8xf32>, vector<4x8x8xf32> -> vector<4x8x8xf32>
    %c0_85 = arith.constant 0 : index
    %c0_86 = arith.constant 0 : index
    %c0_87 = arith.constant 0 : index
    %c0_88 = arith.constant 0 : index
    %125 = vector.load %arg7[%c0_85, %c0_86, %c0_87, %c0_88] : memref<2x4x8x32xf32, #tpu.memory_space<vmem>>, vector<1x4x8x32xf32>
    %126 = vector.shape_cast %125 : vector<1x4x8x32xf32> to vector<4x8x32xf32>
    %cst_89 = arith.constant dense<0.000000e+00> : vector<4x8x32xf32>
    %127 = tpu.matmul %124, %126, %cst_89 {dimension_numbers = #tpu.dot_dimension_numbers<[2], [1], [1], [2], [0, 0, 0, 1, 1, 2], [0], [0]>} : vector<4x8x8xf32>, vector<4x8x32xf32>, vector<4x8x32xf32> -> vector<4x8x32xf32>
    %cst_90 = arith.constant dense<0.000000e+00> : vector<8x32xf32>
    %128 = vector.multi_reduction <add>, %127, %cst_90 [0] : vector<4x8x32xf32> to vector<8x32xf32>
    %129 = arith.addf %12, %128 : vector<8x32xf32>
    %130 = vector.broadcast %19 : vector<1x32xf32> to vector<8x32xf32>
    %131 = arith.addf %129, %130 : vector<8x32xf32>
    %cst_91 = arith.constant dense<0.000000e+00> : vector<8xf32>
    %132 = vector.multi_reduction <add>, %131, %cst_91 [1] : vector<8x32xf32> to vector<8xf32>
    %133 = vector.shape_cast %132 : vector<8xf32> to vector<8x1xf32>
    %cst_92 = arith.constant 3.200000e+01 : f32
    %134 = vector.broadcast %cst_92 : f32 to vector<8x1xf32>
    %135 = arith.divf %133, %134 : vector<8x1xf32>
    %136 = vector.broadcast %135 : vector<8x1xf32> to vector<8x32xf32>
    %137 = arith.subf %131, %136 : vector<8x32xf32>
    %138 = arith.mulf %137, %137 : vector<8x32xf32>
    %cst_93 = arith.constant dense<0.000000e+00> : vector<8xf32>
    %139 = vector.multi_reduction <add>, %138, %cst_93 [1] : vector<8x32xf32> to vector<8xf32>
    %140 = vector.shape_cast %139 : vector<8xf32> to vector<8x1xf32>
    %cst_94 = arith.constant 3.200000e+01 : f32
    %141 = vector.broadcast %cst_94 : f32 to vector<8x1xf32>
    %142 = arith.divf %140, %141 : vector<8x1xf32>
    %143 = vector.broadcast %135 : vector<8x1xf32> to vector<8x32xf32>
    %144 = arith.subf %131, %143 : vector<8x32xf32>
    %cst_95 = arith.constant 9.99999974E-6 : f32
    %145 = vector.broadcast %cst_95 : f32 to vector<8x1xf32>
    %146 = arith.addf %142, %145 : vector<8x1xf32>
    %147 = math.rsqrt %146 : vector<8x1xf32>
    %148 = vector.broadcast %147 : vector<8x1xf32> to vector<8x32xf32>
    %149 = arith.mulf %144, %148 : vector<8x32xf32>
    %150 = vector.broadcast %17 : vector<1x32xf32> to vector<8x32xf32>
    %151 = arith.mulf %149, %150 : vector<8x32xf32>
    %152 = vector.broadcast %18 : vector<1x32xf32> to vector<8x32xf32>
    %153 = arith.addf %151, %152 : vector<8x32xf32>
    %c0_96 = arith.constant 0 : index
    %c0_97 = arith.constant 0 : index
    %c0_98 = arith.constant 0 : index
    %154 = vector.load %arg8[%c0_96, %c0_97, %c0_98] : memref<2x32x128xf32, #tpu.memory_space<vmem>>, vector<1x32x128xf32>
    %155 = vector.shape_cast %154 : vector<1x32x128xf32> to vector<32x128xf32>
    %cst_99 = arith.constant dense<0.000000e+00> : vector<8x128xf32>
    %156 = tpu.matmul %153, %155, %cst_99 {dimension_numbers = #tpu.dot_dimension_numbers<[1], [0], [0], [1], [0, 0, 1, 1], [], []>} : vector<8x32xf32>, vector<32x128xf32>, vector<8x128xf32> -> vector<8x128xf32>
    %c0_100 = arith.constant 0 : index
    %c0_101 = arith.constant 0 : index
    %c0_102 = arith.constant 0 : index
    %157 = vector.load %arg5[%c0_100, %c0_101, %c0_102] : memref<2x1x128xf32, #tpu.memory_space<vmem>>, vector<1x1x128xf32>
    %158 = vector.shape_cast %157 : vector<1x1x128xf32> to vector<1x128xf32>
    %159 = vector.broadcast %158 : vector<1x128xf32> to vector<8x128xf32>
    %160 = arith.addf %156, %159 : vector<8x128xf32>
    %cst_103 = arith.constant 1.702000e+00 : f32
    %161 = vector.broadcast %cst_103 : f32 to vector<8x128xf32>
    %162 = arith.mulf %161, %160 : vector<8x128xf32>
    %163 = arith.negf %162 : vector<8x128xf32>
    %164 = math.exp %163 : vector<8x128xf32>
    %cst_104 = arith.constant 1.000000e+00 : f32
    %165 = vector.broadcast %cst_104 : f32 to vector<8x128xf32>
    %166 = arith.addf %165, %164 : vector<8x128xf32>
    %167 = arith.divf %165, %166 : vector<8x128xf32>
    %168 = arith.mulf %160, %167 : vector<8x128xf32>
    %c0_105 = arith.constant 0 : index
    %c0_106 = arith.constant 0 : index
    %c0_107 = arith.constant 0 : index
    %169 = vector.load %arg9[%c0_105, %c0_106, %c0_107] : memref<2x128x32xf32, #tpu.memory_space<vmem>>, vector<1x128x32xf32>
    %170 = vector.shape_cast %169 : vector<1x128x32xf32> to vector<128x32xf32>
    %cst_108 = arith.constant dense<0.000000e+00> : vector<8x32xf32>
    %171 = tpu.matmul %168, %170, %cst_108 {dimension_numbers = #tpu.dot_dimension_numbers<[1], [0], [0], [1], [0, 0, 1, 1], [], []>} : vector<8x128xf32>, vector<128x32xf32>, vector<8x32xf32> -> vector<8x32xf32>
    %172 = arith.addf %131, %171 : vector<8x32xf32>
    %173 = vector.broadcast %20 : vector<1x32xf32> to vector<8x32xf32>
    %174 = arith.addf %172, %173 : vector<8x32xf32>
    %c1_109 = arith.constant 1 : index
    %c0_110 = arith.constant 0 : index
    %c0_111 = arith.constant 0 : index
    %175 = vector.load %arg3[%c1_109, %c0_110, %c0_111] : memref<2x6x32xf32, #tpu.memory_space<vmem>>, vector<1x6x32xf32>
    %176 = vector.shape_cast %175 : vector<1x6x32xf32> to vector<6x32xf32>
    %177 = vector.extract_strided_slice %176 {offsets = [0, 0], sizes = [1, 32], strides = [1, 1]} : vector<6x32xf32> to vector<1x32xf32>
    %178 = vector.extract_strided_slice %176 {offsets = [1, 0], sizes = [1, 32], strides = [1, 1]} : vector<6x32xf32> to vector<1x32xf32>
    %179 = vector.extract_strided_slice %176 {offsets = [2, 0], sizes = [1, 32], strides = [1, 1]} : vector<6x32xf32> to vector<1x32xf32>
    %180 = vector.extract_strided_slice %176 {offsets = [3, 0], sizes = [1, 32], strides = [1, 1]} : vector<6x32xf32> to vector<1x32xf32>
    %181 = vector.extract_strided_slice %176 {offsets = [4, 0], sizes = [1, 32], strides = [1, 1]} : vector<6x32xf32> to vector<1x32xf32>
    %182 = vector.extract_strided_slice %176 {offsets = [5, 0], sizes = [1, 32], strides = [1, 1]} : vector<6x32xf32> to vector<1x32xf32>
    %cst_112 = arith.constant dense<0.000000e+00> : vector<8xf32>
    %183 = vector.multi_reduction <add>, %174, %cst_112 [1] : vector<8x32xf32> to vector<8xf32>
    %184 = vector.shape_cast %183 : vector<8xf32> to vector<8x1xf32>
    %cst_113 = arith.constant 3.200000e+01 : f32
    %185 = vector.broadcast %cst_113 : f32 to vector<8x1xf32>
    %186 = arith.divf %184, %185 : vector<8x1xf32>
    %187 = vector.broadcast %186 : vector<8x1xf32> to vector<8x32xf32>
    %188 = arith.subf %174, %187 : vector<8x32xf32>
    %189 = arith.mulf %188, %188 : vector<8x32xf32>
    %cst_114 = arith.constant dense<0.000000e+00> : vector<8xf32>
    %190 = vector.multi_reduction <add>, %189, %cst_114 [1] : vector<8x32xf32> to vector<8xf32>
    %191 = vector.shape_cast %190 : vector<8xf32> to vector<8x1xf32>
    %cst_115 = arith.constant 3.200000e+01 : f32
    %192 = vector.broadcast %cst_115 : f32 to vector<8x1xf32>
    %193 = arith.divf %191, %192 : vector<8x1xf32>
    %194 = vector.broadcast %186 : vector<8x1xf32> to vector<8x32xf32>
    %195 = arith.subf %174, %194 : vector<8x32xf32>
    %cst_116 = arith.constant 9.99999974E-6 : f32
    %196 = vector.broadcast %cst_116 : f32 to vector<8x1xf32>
    %197 = arith.addf %193, %196 : vector<8x1xf32>
    %198 = math.rsqrt %197 : vector<8x1xf32>
    %199 = vector.broadcast %198 : vector<8x1xf32> to vector<8x32xf32>
    %200 = arith.mulf %195, %199 : vector<8x32xf32>
    %201 = vector.broadcast %177 : vector<1x32xf32> to vector<8x32xf32>
    %202 = arith.mulf %200, %201 : vector<8x32xf32>
    %203 = vector.broadcast %178 : vector<1x32xf32> to vector<8x32xf32>
    %204 = arith.addf %202, %203 : vector<8x32xf32>
    %c1_117 = arith.constant 1 : index
    %c0_118 = arith.constant 0 : index
    %c0_119 = arith.constant 0 : index
    %c0_120 = arith.constant 0 : index
    %205 = vector.load %arg6[%c1_117, %c0_118, %c0_119, %c0_120] : memref<2x12x32x8xf32, #tpu.memory_space<vmem>>, vector<1x1x32x8xf32>
    %206 = vector.shape_cast %205 : vector<1x1x32x8xf32> to vector<32x8xf32>
    %cst_121 = arith.constant dense<0.000000e+00> : vector<8x8xf32>
    %207 = tpu.matmul %204, %206, %cst_121 {dimension_numbers = #tpu.dot_dimension_numbers<[1], [0], [0], [1], [0, 0, 1, 1], [], []>} : vector<8x32xf32>, vector<32x8xf32>, vector<8x8xf32> -> vector<8x8xf32>
    %c1_122 = arith.constant 1 : index
    %c1_123 = arith.constant 1 : index
    %c0_124 = arith.constant 0 : index
    %c0_125 = arith.constant 0 : index
    %208 = vector.load %arg6[%c1_122, %c1_123, %c0_124, %c0_125] : memref<2x12x32x8xf32, #tpu.memory_space<vmem>>, vector<1x1x32x8xf32>
    %209 = vector.shape_cast %208 : vector<1x1x32x8xf32> to vector<32x8xf32>
    %cst_126 = arith.constant dense<0.000000e+00> : vector<8x8xf32>
    %210 = tpu.matmul %204, %209, %cst_126 {dimension_numbers = #tpu.dot_dimension_numbers<[1], [0], [0], [1], [0, 0, 1, 1], [], []>} : vector<8x32xf32>, vector<32x8xf32>, vector<8x8xf32> -> vector<8x8xf32>
    %c1_127 = arith.constant 1 : index
    %c2_128 = arith.constant 2 : index
    %c0_129 = arith.constant 0 : index
    %c0_130 = arith.constant 0 : index
    %211 = vector.load %arg6[%c1_127, %c2_128, %c0_129, %c0_130] : memref<2x12x32x8xf32, #tpu.memory_space<vmem>>, vector<1x1x32x8xf32>
    %212 = vector.shape_cast %211 : vector<1x1x32x8xf32> to vector<32x8xf32>
    %cst_131 = arith.constant dense<0.000000e+00> : vector<8x8xf32>
    %213 = tpu.matmul %204, %212, %cst_131 {dimension_numbers = #tpu.dot_dimension_numbers<[1], [0], [0], [1], [0, 0, 1, 1], [], []>} : vector<8x32xf32>, vector<32x8xf32>, vector<8x8xf32> -> vector<8x8xf32>
    %c1_132 = arith.constant 1 : index
    %c3_133 = arith.constant 3 : index
    %c0_134 = arith.constant 0 : index
    %c0_135 = arith.constant 0 : index
    %214 = vector.load %arg6[%c1_132, %c3_133, %c0_134, %c0_135] : memref<2x12x32x8xf32, #tpu.memory_space<vmem>>, vector<1x1x32x8xf32>
    %215 = vector.shape_cast %214 : vector<1x1x32x8xf32> to vector<32x8xf32>
    %cst_136 = arith.constant dense<0.000000e+00> : vector<8x8xf32>
    %216 = tpu.matmul %204, %215, %cst_136 {dimension_numbers = #tpu.dot_dimension_numbers<[1], [0], [0], [1], [0, 0, 1, 1], [], []>} : vector<8x32xf32>, vector<32x8xf32>, vector<8x8xf32> -> vector<8x8xf32>
    %217 = vector.shape_cast %207 : vector<8x8xf32> to vector<1x8x8xf32>
    %218 = vector.shape_cast %210 : vector<8x8xf32> to vector<1x8x8xf32>
    %219 = vector.shape_cast %213 : vector<8x8xf32> to vector<1x8x8xf32>
    %220 = vector.shape_cast %216 : vector<8x8xf32> to vector<1x8x8xf32>
    %221 = tpu.concatenate %217, %218, %219, %220 in 0 : vector<1x8x8xf32>, vector<1x8x8xf32>, vector<1x8x8xf32>, vector<1x8x8xf32> -> vector<4x8x8xf32>
    %c1_137 = arith.constant 1 : index
    %c0_138 = arith.constant 0 : index
    %c0_139 = arith.constant 0 : index
    %c0_140 = arith.constant 0 : index
    %222 = vector.load %arg4[%c1_137, %c0_138, %c0_139, %c0_140] : memref<2x12x1x8xf32, #tpu.memory_space<vmem>>, vector<1x4x1x8xf32>
    %223 = vector.shape_cast %222 : vector<1x4x1x8xf32> to vector<4x1x8xf32>
    %224 = vector.broadcast %223 : vector<4x1x8xf32> to vector<4x8x8xf32>
    %225 = arith.addf %221, %224 : vector<4x8x8xf32>
    %c1_141 = arith.constant 1 : index
    %c4_142 = arith.constant 4 : index
    %c0_143 = arith.constant 0 : index
    %c0_144 = arith.constant 0 : index
    %226 = vector.load %arg6[%c1_141, %c4_142, %c0_143, %c0_144] : memref<2x12x32x8xf32, #tpu.memory_space<vmem>>, vector<1x1x32x8xf32>
    %227 = vector.shape_cast %226 : vector<1x1x32x8xf32> to vector<32x8xf32>
    %cst_145 = arith.constant dense<0.000000e+00> : vector<8x8xf32>
    %228 = tpu.matmul %204, %227, %cst_145 {dimension_numbers = #tpu.dot_dimension_numbers<[1], [0], [0], [1], [0, 0, 1, 1], [], []>} : vector<8x32xf32>, vector<32x8xf32>, vector<8x8xf32> -> vector<8x8xf32>
    %c1_146 = arith.constant 1 : index
    %c5_147 = arith.constant 5 : index
    %c0_148 = arith.constant 0 : index
    %c0_149 = arith.constant 0 : index
    %229 = vector.load %arg6[%c1_146, %c5_147, %c0_148, %c0_149] : memref<2x12x32x8xf32, #tpu.memory_space<vmem>>, vector<1x1x32x8xf32>
    %230 = vector.shape_cast %229 : vector<1x1x32x8xf32> to vector<32x8xf32>
    %cst_150 = arith.constant dense<0.000000e+00> : vector<8x8xf32>
    %231 = tpu.matmul %204, %230, %cst_150 {dimension_numbers = #tpu.dot_dimension_numbers<[1], [0], [0], [1], [0, 0, 1, 1], [], []>} : vector<8x32xf32>, vector<32x8xf32>, vector<8x8xf32> -> vector<8x8xf32>
    %c1_151 = arith.constant 1 : index
    %c6_152 = arith.constant 6 : index
    %c0_153 = arith.constant 0 : index
    %c0_154 = arith.constant 0 : index
    %232 = vector.load %arg6[%c1_151, %c6_152, %c0_153, %c0_154] : memref<2x12x32x8xf32, #tpu.memory_space<vmem>>, vector<1x1x32x8xf32>
    %233 = vector.shape_cast %232 : vector<1x1x32x8xf32> to vector<32x8xf32>
    %cst_155 = arith.constant dense<0.000000e+00> : vector<8x8xf32>
    %234 = tpu.matmul %204, %233, %cst_155 {dimension_numbers = #tpu.dot_dimension_numbers<[1], [0], [0], [1], [0, 0, 1, 1], [], []>} : vector<8x32xf32>, vector<32x8xf32>, vector<8x8xf32> -> vector<8x8xf32>
    %c1_156 = arith.constant 1 : index
    %c7_157 = arith.constant 7 : index
    %c0_158 = arith.constant 0 : index
    %c0_159 = arith.constant 0 : index
    %235 = vector.load %arg6[%c1_156, %c7_157, %c0_158, %c0_159] : memref<2x12x32x8xf32, #tpu.memory_space<vmem>>, vector<1x1x32x8xf32>
    %236 = vector.shape_cast %235 : vector<1x1x32x8xf32> to vector<32x8xf32>
    %cst_160 = arith.constant dense<0.000000e+00> : vector<8x8xf32>
    %237 = tpu.matmul %204, %236, %cst_160 {dimension_numbers = #tpu.dot_dimension_numbers<[1], [0], [0], [1], [0, 0, 1, 1], [], []>} : vector<8x32xf32>, vector<32x8xf32>, vector<8x8xf32> -> vector<8x8xf32>
    %238 = vector.shape_cast %228 : vector<8x8xf32> to vector<1x8x8xf32>
    %239 = vector.shape_cast %231 : vector<8x8xf32> to vector<1x8x8xf32>
    %240 = vector.shape_cast %234 : vector<8x8xf32> to vector<1x8x8xf32>
    %241 = vector.shape_cast %237 : vector<8x8xf32> to vector<1x8x8xf32>
    %242 = tpu.concatenate %238, %239, %240, %241 in 0 : vector<1x8x8xf32>, vector<1x8x8xf32>, vector<1x8x8xf32>, vector<1x8x8xf32> -> vector<4x8x8xf32>
    %c1_161 = arith.constant 1 : index
    %c4_162 = arith.constant 4 : index
    %c0_163 = arith.constant 0 : index
    %c0_164 = arith.constant 0 : index
    %243 = vector.load %arg4[%c1_161, %c4_162, %c0_163, %c0_164] : memref<2x12x1x8xf32, #tpu.memory_space<vmem>>, vector<1x4x1x8xf32>
    %244 = vector.shape_cast %243 : vector<1x4x1x8xf32> to vector<4x1x8xf32>
    %245 = vector.broadcast %244 : vector<4x1x8xf32> to vector<4x8x8xf32>
    %246 = arith.addf %242, %245 : vector<4x8x8xf32>
    %c1_165 = arith.constant 1 : index
    %c8_166 = arith.constant 8 : index
    %c0_167 = arith.constant 0 : index
    %c0_168 = arith.constant 0 : index
    %247 = vector.load %arg6[%c1_165, %c8_166, %c0_167, %c0_168] : memref<2x12x32x8xf32, #tpu.memory_space<vmem>>, vector<1x1x32x8xf32>
    %248 = vector.shape_cast %247 : vector<1x1x32x8xf32> to vector<32x8xf32>
    %cst_169 = arith.constant dense<0.000000e+00> : vector<8x8xf32>
    %249 = tpu.matmul %204, %248, %cst_169 {dimension_numbers = #tpu.dot_dimension_numbers<[1], [0], [0], [1], [0, 0, 1, 1], [], []>} : vector<8x32xf32>, vector<32x8xf32>, vector<8x8xf32> -> vector<8x8xf32>
    %c1_170 = arith.constant 1 : index
    %c9_171 = arith.constant 9 : index
    %c0_172 = arith.constant 0 : index
    %c0_173 = arith.constant 0 : index
    %250 = vector.load %arg6[%c1_170, %c9_171, %c0_172, %c0_173] : memref<2x12x32x8xf32, #tpu.memory_space<vmem>>, vector<1x1x32x8xf32>
    %251 = vector.shape_cast %250 : vector<1x1x32x8xf32> to vector<32x8xf32>
    %cst_174 = arith.constant dense<0.000000e+00> : vector<8x8xf32>
    %252 = tpu.matmul %204, %251, %cst_174 {dimension_numbers = #tpu.dot_dimension_numbers<[1], [0], [0], [1], [0, 0, 1, 1], [], []>} : vector<8x32xf32>, vector<32x8xf32>, vector<8x8xf32> -> vector<8x8xf32>
    %c1_175 = arith.constant 1 : index
    %c10_176 = arith.constant 10 : index
    %c0_177 = arith.constant 0 : index
    %c0_178 = arith.constant 0 : index
    %253 = vector.load %arg6[%c1_175, %c10_176, %c0_177, %c0_178] : memref<2x12x32x8xf32, #tpu.memory_space<vmem>>, vector<1x1x32x8xf32>
    %254 = vector.shape_cast %253 : vector<1x1x32x8xf32> to vector<32x8xf32>
    %cst_179 = arith.constant dense<0.000000e+00> : vector<8x8xf32>
    %255 = tpu.matmul %204, %254, %cst_179 {dimension_numbers = #tpu.dot_dimension_numbers<[1], [0], [0], [1], [0, 0, 1, 1], [], []>} : vector<8x32xf32>, vector<32x8xf32>, vector<8x8xf32> -> vector<8x8xf32>
    %c1_180 = arith.constant 1 : index
    %c11_181 = arith.constant 11 : index
    %c0_182 = arith.constant 0 : index
    %c0_183 = arith.constant 0 : index
    %256 = vector.load %arg6[%c1_180, %c11_181, %c0_182, %c0_183] : memref<2x12x32x8xf32, #tpu.memory_space<vmem>>, vector<1x1x32x8xf32>
    %257 = vector.shape_cast %256 : vector<1x1x32x8xf32> to vector<32x8xf32>
    %cst_184 = arith.constant dense<0.000000e+00> : vector<8x8xf32>
    %258 = tpu.matmul %204, %257, %cst_184 {dimension_numbers = #tpu.dot_dimension_numbers<[1], [0], [0], [1], [0, 0, 1, 1], [], []>} : vector<8x32xf32>, vector<32x8xf32>, vector<8x8xf32> -> vector<8x8xf32>
    %259 = vector.shape_cast %249 : vector<8x8xf32> to vector<1x8x8xf32>
    %260 = vector.shape_cast %252 : vector<8x8xf32> to vector<1x8x8xf32>
    %261 = vector.shape_cast %255 : vector<8x8xf32> to vector<1x8x8xf32>
    %262 = vector.shape_cast %258 : vector<8x8xf32> to vector<1x8x8xf32>
    %263 = tpu.concatenate %259, %260, %261, %262 in 0 : vector<1x8x8xf32>, vector<1x8x8xf32>, vector<1x8x8xf32>, vector<1x8x8xf32> -> vector<4x8x8xf32>
    %c1_185 = arith.constant 1 : index
    %c8_186 = arith.constant 8 : index
    %c0_187 = arith.constant 0 : index
    %c0_188 = arith.constant 0 : index
    %264 = vector.load %arg4[%c1_185, %c8_186, %c0_187, %c0_188] : memref<2x12x1x8xf32, #tpu.memory_space<vmem>>, vector<1x4x1x8xf32>
    %265 = vector.shape_cast %264 : vector<1x4x1x8xf32> to vector<4x1x8xf32>
    %266 = vector.broadcast %265 : vector<4x1x8xf32> to vector<4x8x8xf32>
    %267 = arith.addf %263, %266 : vector<4x8x8xf32>
    %cst_189 = arith.constant dense<0.000000e+00> : vector<4x8x8xf32>
    %268 = tpu.matmul %225, %246, %cst_189 {dimension_numbers = #tpu.dot_dimension_numbers<[2], [2], [1], [1], [0, 0, 0, 1, 1, 1], [0], [0]>} : vector<4x8x8xf32>, vector<4x8x8xf32>, vector<4x8x8xf32> -> vector<4x8x8xf32>
    %269 = vector.shape_cast %5 : vector<8x8xf32> to vector<1x8x8xf32>
    %270 = vector.broadcast %269 : vector<1x8x8xf32> to vector<4x8x8xf32>
    %271 = arith.addf %268, %270 : vector<4x8x8xf32>
    %cst_190 = arith.constant dense<0xFF800000> : vector<4x8xf32>
    %272 = vector.multi_reduction <maximumf>, %271, %cst_190 [2] : vector<4x8x8xf32> to vector<4x8xf32>
    %273 = vector.shape_cast %272 : vector<4x8xf32> to vector<4x8x1xf32>
    %274 = vector.broadcast %273 : vector<4x8x1xf32> to vector<4x8x8xf32>
    %275 = arith.subf %271, %274 : vector<4x8x8xf32>
    %276 = math.exp %275 : vector<4x8x8xf32>
    %cst_191 = arith.constant dense<0.000000e+00> : vector<4x8xf32>
    %277 = vector.multi_reduction <add>, %276, %cst_191 [2] : vector<4x8x8xf32> to vector<4x8xf32>
    %278 = vector.shape_cast %277 : vector<4x8xf32> to vector<4x8x1xf32>
    %279 = tpu.reciprocal %278 {approx = true} : vector<4x8x1xf32> -> vector<4x8x1xf32>
    %280 = arith.mulf %278, %279 : vector<4x8x1xf32>
    %cst_192 = arith.constant 2.000000e+00 : f32
    %281 = vector.broadcast %cst_192 : f32 to vector<4x8x1xf32>
    %282 = arith.subf %281, %280 : vector<4x8x1xf32>
    %283 = arith.mulf %279, %282 : vector<4x8x1xf32>
    %284 = vector.broadcast %283 : vector<4x8x1xf32> to vector<4x8x8xf32>
    %285 = arith.mulf %276, %284 : vector<4x8x8xf32>
    %cst_193 = arith.constant dense<0.000000e+00> : vector<4x8x8xf32>
    %286 = tpu.matmul %285, %267, %cst_193 {dimension_numbers = #tpu.dot_dimension_numbers<[2], [1], [1], [2], [0, 0, 0, 1, 1, 2], [0], [0]>} : vector<4x8x8xf32>, vector<4x8x8xf32>, vector<4x8x8xf32> -> vector<4x8x8xf32>
    %c1_194 = arith.constant 1 : index
    %c0_195 = arith.constant 0 : index
    %c0_196 = arith.constant 0 : index
    %c0_197 = arith.constant 0 : index
    %287 = vector.load %arg7[%c1_194, %c0_195, %c0_196, %c0_197] : memref<2x4x8x32xf32, #tpu.memory_space<vmem>>, vector<1x4x8x32xf32>
    %288 = vector.shape_cast %287 : vector<1x4x8x32xf32> to vector<4x8x32xf32>
    %cst_198 = arith.constant dense<0.000000e+00> : vector<4x8x32xf32>
    %289 = tpu.matmul %286, %288, %cst_198 {dimension_numbers = #tpu.dot_dimension_numbers<[2], [1], [1], [2], [0, 0, 0, 1, 1, 2], [0], [0]>} : vector<4x8x8xf32>, vector<4x8x32xf32>, vector<4x8x32xf32> -> vector<4x8x32xf32>
    %cst_199 = arith.constant dense<0.000000e+00> : vector<8x32xf32>
    %290 = vector.multi_reduction <add>, %289, %cst_199 [0] : vector<4x8x32xf32> to vector<8x32xf32>
    %291 = arith.addf %174, %290 : vector<8x32xf32>
    %292 = vector.broadcast %181 : vector<1x32xf32> to vector<8x32xf32>
    %293 = arith.addf %291, %292 : vector<8x32xf32>
    %cst_200 = arith.constant dense<0.000000e+00> : vector<8xf32>
    %294 = vector.multi_reduction <add>, %293, %cst_200 [1] : vector<8x32xf32> to vector<8xf32>
    %295 = vector.shape_cast %294 : vector<8xf32> to vector<8x1xf32>
    %cst_201 = arith.constant 3.200000e+01 : f32
    %296 = vector.broadcast %cst_201 : f32 to vector<8x1xf32>
    %297 = arith.divf %295, %296 : vector<8x1xf32>
    %298 = vector.broadcast %297 : vector<8x1xf32> to vector<8x32xf32>
    %299 = arith.subf %293, %298 : vector<8x32xf32>
    %300 = arith.mulf %299, %299 : vector<8x32xf32>
    %cst_202 = arith.constant dense<0.000000e+00> : vector<8xf32>
    %301 = vector.multi_reduction <add>, %300, %cst_202 [1] : vector<8x32xf32> to vector<8xf32>
    %302 = vector.shape_cast %301 : vector<8xf32> to vector<8x1xf32>
    %cst_203 = arith.constant 3.200000e+01 : f32
    %303 = vector.broadcast %cst_203 : f32 to vector<8x1xf32>
    %304 = arith.divf %302, %303 : vector<8x1xf32>
    %305 = vector.broadcast %297 : vector<8x1xf32> to vector<8x32xf32>
    %306 = arith.subf %293, %305 : vector<8x32xf32>
    %cst_204 = arith.constant 9.99999974E-6 : f32
    %307 = vector.broadcast %cst_204 : f32 to vector<8x1xf32>
    %308 = arith.addf %304, %307 : vector<8x1xf32>
    %309 = math.rsqrt %308 : vector<8x1xf32>
    %310 = vector.broadcast %309 : vector<8x1xf32> to vector<8x32xf32>
    %311 = arith.mulf %306, %310 : vector<8x32xf32>
    %312 = vector.broadcast %179 : vector<1x32xf32> to vector<8x32xf32>
    %313 = arith.mulf %311, %312 : vector<8x32xf32>
    %314 = vector.broadcast %180 : vector<1x32xf32> to vector<8x32xf32>
    %315 = arith.addf %313, %314 : vector<8x32xf32>
    %c1_205 = arith.constant 1 : index
    %c0_206 = arith.constant 0 : index
    %c0_207 = arith.constant 0 : index
    %316 = vector.load %arg8[%c1_205, %c0_206, %c0_207] : memref<2x32x128xf32, #tpu.memory_space<vmem>>, vector<1x32x128xf32>
    %317 = vector.shape_cast %316 : vector<1x32x128xf32> to vector<32x128xf32>
    %cst_208 = arith.constant dense<0.000000e+00> : vector<8x128xf32>
    %318 = tpu.matmul %315, %317, %cst_208 {dimension_numbers = #tpu.dot_dimension_numbers<[1], [0], [0], [1], [0, 0, 1, 1], [], []>} : vector<8x32xf32>, vector<32x128xf32>, vector<8x128xf32> -> vector<8x128xf32>
    %c1_209 = arith.constant 1 : index
    %c0_210 = arith.constant 0 : index
    %c0_211 = arith.constant 0 : index
    %319 = vector.load %arg5[%c1_209, %c0_210, %c0_211] : memref<2x1x128xf32, #tpu.memory_space<vmem>>, vector<1x1x128xf32>
    %320 = vector.shape_cast %319 : vector<1x1x128xf32> to vector<1x128xf32>
    %321 = vector.broadcast %320 : vector<1x128xf32> to vector<8x128xf32>
    %322 = arith.addf %318, %321 : vector<8x128xf32>
    %cst_212 = arith.constant 1.702000e+00 : f32
    %323 = vector.broadcast %cst_212 : f32 to vector<8x128xf32>
    %324 = arith.mulf %323, %322 : vector<8x128xf32>
    %325 = arith.negf %324 : vector<8x128xf32>
    %326 = math.exp %325 : vector<8x128xf32>
    %cst_213 = arith.constant 1.000000e+00 : f32
    %327 = vector.broadcast %cst_213 : f32 to vector<8x128xf32>
    %328 = arith.addf %327, %326 : vector<8x128xf32>
    %329 = arith.divf %327, %328 : vector<8x128xf32>
    %330 = arith.mulf %322, %329 : vector<8x128xf32>
    %c1_214 = arith.constant 1 : index
    %c0_215 = arith.constant 0 : index
    %c0_216 = arith.constant 0 : index
    %331 = vector.load %arg9[%c1_214, %c0_215, %c0_216] : memref<2x128x32xf32, #tpu.memory_space<vmem>>, vector<1x128x32xf32>
    %332 = vector.shape_cast %331 : vector<1x128x32xf32> to vector<128x32xf32>
    %cst_217 = arith.constant dense<0.000000e+00> : vector<8x32xf32>
    %333 = tpu.matmul %330, %332, %cst_217 {dimension_numbers = #tpu.dot_dimension_numbers<[1], [0], [0], [1], [0, 0, 1, 1], [], []>} : vector<8x128xf32>, vector<128x32xf32>, vector<8x32xf32> -> vector<8x32xf32>
    %334 = arith.addf %293, %333 : vector<8x32xf32>
    %335 = vector.broadcast %182 : vector<1x32xf32> to vector<8x32xf32>
    %336 = arith.addf %334, %335 : vector<8x32xf32>
    %c0_218 = arith.constant 0 : index
    %c0_219 = arith.constant 0 : index
    %337 = vector.load %arg13[%c0_218, %c0_219] : memref<8x32xf32, #tpu.memory_space<vmem>>, vector<8x32xf32>
    tpu.vector_store %arg13[%c0_218, %c0_219], %336 {strides = array<i32>} : memref<8x32xf32, #tpu.memory_space<vmem>>, vector<8x32xf32>,
    %c0_220 = arith.constant 0 : index
    %338 = memref.load %arg0[%c0_220] : memref<2xi32, #tpu.memory_space<smem>>
    %339 = arith.index_cast %338 : i32 to index
    %c0_221 = arith.constant 0 : index
    %340 = vector.load %arg13[%339, %c0_221] : memref<8x32xf32, #tpu.memory_space<vmem>>, vector<1x32xf32>
    %cst_222 = arith.constant dense<0.000000e+00> : vector<1xf32>
    %341 = vector.multi_reduction <add>, %340, %cst_222 [1] : vector<1x32xf32> to vector<1xf32>
    %342 = vector.shape_cast %341 : vector<1xf32> to vector<1x1xf32>
    %cst_223 = arith.constant 3.200000e+01 : f32
    %343 = vector.broadcast %cst_223 : f32 to vector<1x1xf32>
    %344 = arith.divf %342, %343 : vector<1x1xf32>
    %345 = vector.broadcast %344 : vector<1x1xf32> to vector<1x32xf32>
    %346 = arith.subf %340, %345 : vector<1x32xf32>
    %347 = arith.mulf %346, %346 : vector<1x32xf32>
    %cst_224 = arith.constant dense<0.000000e+00> : vector<1xf32>
    %348 = vector.multi_reduction <add>, %347, %cst_224 [1] : vector<1x32xf32> to vector<1xf32>
    %349 = vector.shape_cast %348 : vector<1xf32> to vector<1x1xf32>
    %cst_225 = arith.constant 3.200000e+01 : f32
    %350 = vector.broadcast %cst_225 : f32 to vector<1x1xf32>
    %351 = arith.divf %349, %350 : vector<1x1xf32>
    %352 = vector.broadcast %344 : vector<1x1xf32> to vector<1x32xf32>
    %353 = arith.subf %340, %352 : vector<1x32xf32>
    %cst_226 = arith.constant 9.99999974E-6 : f32
    %354 = vector.broadcast %cst_226 : f32 to vector<1x1xf32>
    %355 = arith.addf %351, %354 : vector<1x1xf32>
    %356 = math.rsqrt %355 : vector<1x1xf32>
    %357 = vector.broadcast %356 : vector<1x1xf32> to vector<1x32xf32>
    %358 = arith.mulf %353, %357 : vector<1x32xf32>
    %359 = arith.mulf %358, %7 : vector<1x32xf32>
    %360 = arith.addf %359, %8 : vector<1x32xf32>
    %cst_227 = arith.constant dense<0.000000e+00> : vector<1x16xf32>
    %361 = tpu.matmul %360, %9, %cst_227 {dimension_numbers = #tpu.dot_dimension_numbers<[1], [0], [0], [1], [0, 0, 1, 1], [], []>} : vector<1x32xf32>, vector<32x16xf32>, vector<1x16xf32> -> vector<1x16xf32>
    %c0_228 = arith.constant 0 : index
    %c0_229 = arith.constant 0 : index
    %362 = vector.load %arg12[%c0_228, %c0_229] : memref<2x16xf32, #tpu.memory_space<vmem>>, vector<1x16xf32>
    tpu.vector_store %arg12[%c0_228, %c0_229], %361 {strides = array<i32>} : memref<2x16xf32, #tpu.memory_space<vmem>>, vector<1x16xf32>,
    %c1_230 = arith.constant 1 : index
    %c0_231 = arith.constant 0 : index
    %c0_232 = arith.constant 0 : index
    %363 = vector.load %arg1[%c1_230, %c0_231, %c0_232] : memref<2x8x32xf32, #tpu.memory_space<vmem>>, vector<1x8x32xf32>
    %364 = vector.shape_cast %363 : vector<1x8x32xf32> to vector<8x32xf32>
    %365 = arith.addf %364, %6 : vector<8x32xf32>
    %c0_233 = arith.constant 0 : index
    %c0_234 = arith.constant 0 : index
    %c0_235 = arith.constant 0 : index
    %366 = vector.load %arg3[%c0_233, %c0_234, %c0_235] : memref<2x6x32xf32, #tpu.memory_space<vmem>>, vector<1x6x32xf32>
    %367 = vector.shape_cast %366 : vector<1x6x32xf32> to vector<6x32xf32>
    %368 = vector.extract_strided_slice %367 {offsets = [0, 0], sizes = [1, 32], strides = [1, 1]} : vector<6x32xf32> to vector<1x32xf32>
    %369 = vector.extract_strided_slice %367 {offsets = [1, 0], sizes = [1, 32], strides = [1, 1]} : vector<6x32xf32> to vector<1x32xf32>
    %370 = vector.extract_strided_slice %367 {offsets = [2, 0], sizes = [1, 32], strides = [1, 1]} : vector<6x32xf32> to vector<1x32xf32>
    %371 = vector.extract_strided_slice %367 {offsets = [3, 0], sizes = [1, 32], strides = [1, 1]} : vector<6x32xf32> to vector<1x32xf32>
    %372 = vector.extract_strided_slice %367 {offsets = [4, 0], sizes = [1, 32], strides = [1, 1]} : vector<6x32xf32> to vector<1x32xf32>
    %373 = vector.extract_strided_slice %367 {offsets = [5, 0], sizes = [1, 32], strides = [1, 1]} : vector<6x32xf32> to vector<1x32xf32>
    %cst_236 = arith.constant dense<0.000000e+00> : vector<8xf32>
    %374 = vector.multi_reduction <add>, %365, %cst_236 [1] : vector<8x32xf32> to vector<8xf32>
    %375 = vector.shape_cast %374 : vector<8xf32> to vector<8x1xf32>
    %cst_237 = arith.constant 3.200000e+01 : f32
    %376 = vector.broadcast %cst_237 : f32 to vector<8x1xf32>
    %377 = arith.divf %375, %376 : vector<8x1xf32>
    %378 = vector.broadcast %377 : vector<8x1xf32> to vector<8x32xf32>
    %379 = arith.subf %365, %378 : vector<8x32xf32>
    %380 = arith.mulf %379, %379 : vector<8x32xf32>
    %cst_238 = arith.constant dense<0.000000e+00> : vector<8xf32>
    %381 = vector.multi_reduction <add>, %380, %cst_238 [1] : vector<8x32xf32> to vector<8xf32>
    %382 = vector.shape_cast %381 : vector<8xf32> to vector<8x1xf32>
    %cst_239 = arith.constant 3.200000e+01 : f32
    %383 = vector.broadcast %cst_239 : f32 to vector<8x1xf32>
    %384 = arith.divf %382, %383 : vector<8x1xf32>
    %385 = vector.broadcast %377 : vector<8x1xf32> to vector<8x32xf32>
    %386 = arith.subf %365, %385 : vector<8x32xf32>
    %cst_240 = arith.constant 9.99999974E-6 : f32
    %387 = vector.broadcast %cst_240 : f32 to vector<8x1xf32>
    %388 = arith.addf %384, %387 : vector<8x1xf32>
    %389 = math.rsqrt %388 : vector<8x1xf32>
    %390 = vector.broadcast %389 : vector<8x1xf32> to vector<8x32xf32>
    %391 = arith.mulf %386, %390 : vector<8x32xf32>
    %392 = vector.broadcast %368 : vector<1x32xf32> to vector<8x32xf32>
    %393 = arith.mulf %391, %392 : vector<8x32xf32>
    %394 = vector.broadcast %369 : vector<1x32xf32> to vector<8x32xf32>
    %395 = arith.addf %393, %394 : vector<8x32xf32>
    %c0_241 = arith.constant 0 : index
    %c0_242 = arith.constant 0 : index
    %c0_243 = arith.constant 0 : index
    %c0_244 = arith.constant 0 : index
    %396 = vector.load %arg6[%c0_241, %c0_242, %c0_243, %c0_244] : memref<2x12x32x8xf32, #tpu.memory_space<vmem>>, vector<1x1x32x8xf32>
    %397 = vector.shape_cast %396 : vector<1x1x32x8xf32> to vector<32x8xf32>
    %cst_245 = arith.constant dense<0.000000e+00> : vector<8x8xf32>
    %398 = tpu.matmul %395, %397, %cst_245 {dimension_numbers = #tpu.dot_dimension_numbers<[1], [0], [0], [1], [0, 0, 1, 1], [], []>} : vector<8x32xf32>, vector<32x8xf32>, vector<8x8xf32> -> vector<8x8xf32>
    %c0_246 = arith.constant 0 : index
    %c1_247 = arith.constant 1 : index
    %c0_248 = arith.constant 0 : index
    %c0_249 = arith.constant 0 : index
    %399 = vector.load %arg6[%c0_246, %c1_247, %c0_248, %c0_249] : memref<2x12x32x8xf32, #tpu.memory_space<vmem>>, vector<1x1x32x8xf32>
    %400 = vector.shape_cast %399 : vector<1x1x32x8xf32> to vector<32x8xf32>
    %cst_250 = arith.constant dense<0.000000e+00> : vector<8x8xf32>
    %401 = tpu.matmul %395, %400, %cst_250 {dimension_numbers = #tpu.dot_dimension_numbers<[1], [0], [0], [1], [0, 0, 1, 1], [], []>} : vector<8x32xf32>, vector<32x8xf32>, vector<8x8xf32> -> vector<8x8xf32>
    %c0_251 = arith.constant 0 : index
    %c2_252 = arith.constant 2 : index
    %c0_253 = arith.constant 0 : index
    %c0_254 = arith.constant 0 : index
    %402 = vector.load %arg6[%c0_251, %c2_252, %c0_253, %c0_254] : memref<2x12x32x8xf32, #tpu.memory_space<vmem>>, vector<1x1x32x8xf32>
    %403 = vector.shape_cast %402 : vector<1x1x32x8xf32> to vector<32x8xf32>
    %cst_255 = arith.constant dense<0.000000e+00> : vector<8x8xf32>
    %404 = tpu.matmul %395, %403, %cst_255 {dimension_numbers = #tpu.dot_dimension_numbers<[1], [0], [0], [1], [0, 0, 1, 1], [], []>} : vector<8x32xf32>, vector<32x8xf32>, vector<8x8xf32> -> vector<8x8xf32>
    %c0_256 = arith.constant 0 : index
    %c3_257 = arith.constant 3 : index
    %c0_258 = arith.constant 0 : index
    %c0_259 = arith.constant 0 : index
    %405 = vector.load %arg6[%c0_256, %c3_257, %c0_258, %c0_259] : memref<2x12x32x8xf32, #tpu.memory_space<vmem>>, vector<1x1x32x8xf32>
    %406 = vector.shape_cast %405 : vector<1x1x32x8xf32> to vector<32x8xf32>
    %cst_260 = arith.constant dense<0.000000e+00> : vector<8x8xf32>
    %407 = tpu.matmul %395, %406, %cst_260 {dimension_numbers = #tpu.dot_dimension_numbers<[1], [0], [0], [1], [0, 0, 1, 1], [], []>} : vector<8x32xf32>, vector<32x8xf32>, vector<8x8xf32> -> vector<8x8xf32>
    %408 = vector.shape_cast %398 : vector<8x8xf32> to vector<1x8x8xf32>
    %409 = vector.shape_cast %401 : vector<8x8xf32> to vector<1x8x8xf32>
    %410 = vector.shape_cast %404 : vector<8x8xf32> to vector<1x8x8xf32>
    %411 = vector.shape_cast %407 : vector<8x8xf32> to vector<1x8x8xf32>
    %412 = tpu.concatenate %408, %409, %410, %411 in 0 : vector<1x8x8xf32>, vector<1x8x8xf32>, vector<1x8x8xf32>, vector<1x8x8xf32> -> vector<4x8x8xf32>
    %c0_261 = arith.constant 0 : index
    %c0_262 = arith.constant 0 : index
    %c0_263 = arith.constant 0 : index
    %c0_264 = arith.constant 0 : index
    %413 = vector.load %arg4[%c0_261, %c0_262, %c0_263, %c0_264] : memref<2x12x1x8xf32, #tpu.memory_space<vmem>>, vector<1x4x1x8xf32>
    %414 = vector.shape_cast %413 : vector<1x4x1x8xf32> to vector<4x1x8xf32>
    %415 = vector.broadcast %414 : vector<4x1x8xf32> to vector<4x8x8xf32>
    %416 = arith.addf %412, %415 : vector<4x8x8xf32>
    %c0_265 = arith.constant 0 : index
    %c4_266 = arith.constant 4 : index
    %c0_267 = arith.constant 0 : index
    %c0_268 = arith.constant 0 : index
    %417 = vector.load %arg6[%c0_265, %c4_266, %c0_267, %c0_268] : memref<2x12x32x8xf32, #tpu.memory_space<vmem>>, vector<1x1x32x8xf32>
    %418 = vector.shape_cast %417 : vector<1x1x32x8xf32> to vector<32x8xf32>
    %cst_269 = arith.constant dense<0.000000e+00> : vector<8x8xf32>
    %419 = tpu.matmul %395, %418, %cst_269 {dimension_numbers = #tpu.dot_dimension_numbers<[1], [0], [0], [1], [0, 0, 1, 1], [], []>} : vector<8x32xf32>, vector<32x8xf32>, vector<8x8xf32> -> vector<8x8xf32>
    %c0_270 = arith.constant 0 : index
    %c5_271 = arith.constant 5 : index
    %c0_272 = arith.constant 0 : index
    %c0_273 = arith.constant 0 : index
    %420 = vector.load %arg6[%c0_270, %c5_271, %c0_272, %c0_273] : memref<2x12x32x8xf32, #tpu.memory_space<vmem>>, vector<1x1x32x8xf32>
    %421 = vector.shape_cast %420 : vector<1x1x32x8xf32> to vector<32x8xf32>
    %cst_274 = arith.constant dense<0.000000e+00> : vector<8x8xf32>
    %422 = tpu.matmul %395, %421, %cst_274 {dimension_numbers = #tpu.dot_dimension_numbers<[1], [0], [0], [1], [0, 0, 1, 1], [], []>} : vector<8x32xf32>, vector<32x8xf32>, vector<8x8xf32> -> vector<8x8xf32>
    %c0_275 = arith.constant 0 : index
    %c6_276 = arith.constant 6 : index
    %c0_277 = arith.constant 0 : index
    %c0_278 = arith.constant 0 : index
    %423 = vector.load %arg6[%c0_275, %c6_276, %c0_277, %c0_278] : memref<2x12x32x8xf32, #tpu.memory_space<vmem>>, vector<1x1x32x8xf32>
    %424 = vector.shape_cast %423 : vector<1x1x32x8xf32> to vector<32x8xf32>
    %cst_279 = arith.constant dense<0.000000e+00> : vector<8x8xf32>
    %425 = tpu.matmul %395, %424, %cst_279 {dimension_numbers = #tpu.dot_dimension_numbers<[1], [0], [0], [1], [0, 0, 1, 1], [], []>} : vector<8x32xf32>, vector<32x8xf32>, vector<8x8xf32> -> vector<8x8xf32>
    %c0_280 = arith.constant 0 : index
    %c7_281 = arith.constant 7 : index
    %c0_282 = arith.constant 0 : index
    %c0_283 = arith.constant 0 : index
    %426 = vector.load %arg6[%c0_280, %c7_281, %c0_282, %c0_283] : memref<2x12x32x8xf32, #tpu.memory_space<vmem>>, vector<1x1x32x8xf32>
    %427 = vector.shape_cast %426 : vector<1x1x32x8xf32> to vector<32x8xf32>
    %cst_284 = arith.constant dense<0.000000e+00> : vector<8x8xf32>
    %428 = tpu.matmul %395, %427, %cst_284 {dimension_numbers = #tpu.dot_dimension_numbers<[1], [0], [0], [1], [0, 0, 1, 1], [], []>} : vector<8x32xf32>, vector<32x8xf32>, vector<8x8xf32> -> vector<8x8xf32>
    %429 = vector.shape_cast %419 : vector<8x8xf32> to vector<1x8x8xf32>
    %430 = vector.shape_cast %422 : vector<8x8xf32> to vector<1x8x8xf32>
    %431 = vector.shape_cast %425 : vector<8x8xf32> to vector<1x8x8xf32>
    %432 = vector.shape_cast %428 : vector<8x8xf32> to vector<1x8x8xf32>
    %433 = tpu.concatenate %429, %430, %431, %432 in 0 : vector<1x8x8xf32>, vector<1x8x8xf32>, vector<1x8x8xf32>, vector<1x8x8xf32> -> vector<4x8x8xf32>
    %c0_285 = arith.constant 0 : index
    %c4_286 = arith.constant 4 : index
    %c0_287 = arith.constant 0 : index
    %c0_288 = arith.constant 0 : index
    %434 = vector.load %arg4[%c0_285, %c4_286, %c0_287, %c0_288] : memref<2x12x1x8xf32, #tpu.memory_space<vmem>>, vector<1x4x1x8xf32>
    %435 = vector.shape_cast %434 : vector<1x4x1x8xf32> to vector<4x1x8xf32>
    %436 = vector.broadcast %435 : vector<4x1x8xf32> to vector<4x8x8xf32>
    %437 = arith.addf %433, %436 : vector<4x8x8xf32>
    %c0_289 = arith.constant 0 : index
    %c8_290 = arith.constant 8 : index
    %c0_291 = arith.constant 0 : index
    %c0_292 = arith.constant 0 : index
    %438 = vector.load %arg6[%c0_289, %c8_290, %c0_291, %c0_292] : memref<2x12x32x8xf32, #tpu.memory_space<vmem>>, vector<1x1x32x8xf32>
    %439 = vector.shape_cast %438 : vector<1x1x32x8xf32> to vector<32x8xf32>
    %cst_293 = arith.constant dense<0.000000e+00> : vector<8x8xf32>
    %440 = tpu.matmul %395, %439, %cst_293 {dimension_numbers = #tpu.dot_dimension_numbers<[1], [0], [0], [1], [0, 0, 1, 1], [], []>} : vector<8x32xf32>, vector<32x8xf32>, vector<8x8xf32> -> vector<8x8xf32>
    %c0_294 = arith.constant 0 : index
    %c9_295 = arith.constant 9 : index
    %c0_296 = arith.constant 0 : index
    %c0_297 = arith.constant 0 : index
    %441 = vector.load %arg6[%c0_294, %c9_295, %c0_296, %c0_297] : memref<2x12x32x8xf32, #tpu.memory_space<vmem>>, vector<1x1x32x8xf32>
    %442 = vector.shape_cast %441 : vector<1x1x32x8xf32> to vector<32x8xf32>
    %cst_298 = arith.constant dense<0.000000e+00> : vector<8x8xf32>
    %443 = tpu.matmul %395, %442, %cst_298 {dimension_numbers = #tpu.dot_dimension_numbers<[1], [0], [0], [1], [0, 0, 1, 1], [], []>} : vector<8x32xf32>, vector<32x8xf32>, vector<8x8xf32> -> vector<8x8xf32>
    %c0_299 = arith.constant 0 : index
    %c10_300 = arith.constant 10 : index
    %c0_301 = arith.constant 0 : index
    %c0_302 = arith.constant 0 : index
    %444 = vector.load %arg6[%c0_299, %c10_300, %c0_301, %c0_302] : memref<2x12x32x8xf32, #tpu.memory_space<vmem>>, vector<1x1x32x8xf32>
    %445 = vector.shape_cast %444 : vector<1x1x32x8xf32> to vector<32x8xf32>
    %cst_303 = arith.constant dense<0.000000e+00> : vector<8x8xf32>
    %446 = tpu.matmul %395, %445, %cst_303 {dimension_numbers = #tpu.dot_dimension_numbers<[1], [0], [0], [1], [0, 0, 1, 1], [], []>} : vector<8x32xf32>, vector<32x8xf32>, vector<8x8xf32> -> vector<8x8xf32>
    %c0_304 = arith.constant 0 : index
    %c11_305 = arith.constant 11 : index
    %c0_306 = arith.constant 0 : index
    %c0_307 = arith.constant 0 : index
    %447 = vector.load %arg6[%c0_304, %c11_305, %c0_306, %c0_307] : memref<2x12x32x8xf32, #tpu.memory_space<vmem>>, vector<1x1x32x8xf32>
    %448 = vector.shape_cast %447 : vector<1x1x32x8xf32> to vector<32x8xf32>
    %cst_308 = arith.constant dense<0.000000e+00> : vector<8x8xf32>
    %449 = tpu.matmul %395, %448, %cst_308 {dimension_numbers = #tpu.dot_dimension_numbers<[1], [0], [0], [1], [0, 0, 1, 1], [], []>} : vector<8x32xf32>, vector<32x8xf32>, vector<8x8xf32> -> vector<8x8xf32>
    %450 = vector.shape_cast %440 : vector<8x8xf32> to vector<1x8x8xf32>
    %451 = vector.shape_cast %443 : vector<8x8xf32> to vector<1x8x8xf32>
    %452 = vector.shape_cast %446 : vector<8x8xf32> to vector<1x8x8xf32>
    %453 = vector.shape_cast %449 : vector<8x8xf32> to vector<1x8x8xf32>
    %454 = tpu.concatenate %450, %451, %452, %453 in 0 : vector<1x8x8xf32>, vector<1x8x8xf32>, vector<1x8x8xf32>, vector<1x8x8xf32> -> vector<4x8x8xf32>
    %c0_309 = arith.constant 0 : index
    %c8_310 = arith.constant 8 : index
    %c0_311 = arith.constant 0 : index
    %c0_312 = arith.constant 0 : index
    %455 = vector.load %arg4[%c0_309, %c8_310, %c0_311, %c0_312] : memref<2x12x1x8xf32, #tpu.memory_space<vmem>>, vector<1x4x1x8xf32>
    %456 = vector.shape_cast %455 : vector<1x4x1x8xf32> to vector<4x1x8xf32>
    %457 = vector.broadcast %456 : vector<4x1x8xf32> to vector<4x8x8xf32>
    %458 = arith.addf %454, %457 : vector<4x8x8xf32>
    %cst_313 = arith.constant dense<0.000000e+00> : vector<4x8x8xf32>
    %459 = tpu.matmul %416, %437, %cst_313 {dimension_numbers = #tpu.dot_dimension_numbers<[2], [2], [1], [1], [0, 0, 0, 1, 1, 1], [0], [0]>} : vector<4x8x8xf32>, vector<4x8x8xf32>, vector<4x8x8xf32> -> vector<4x8x8xf32>
    %460 = vector.shape_cast %5 : vector<8x8xf32> to vector<1x8x8xf32>
    %461 = vector.broadcast %460 : vector<1x8x8xf32> to vector<4x8x8xf32>
    %462 = arith.addf %459, %461 : vector<4x8x8xf32>
    %cst_314 = arith.constant dense<0xFF800000> : vector<4x8xf32>
    %463 = vector.multi_reduction <maximumf>, %462, %cst_314 [2] : vector<4x8x8xf32> to vector<4x8xf32>
    %464 = vector.shape_cast %463 : vector<4x8xf32> to vector<4x8x1xf32>
    %465 = vector.broadcast %464 : vector<4x8x1xf32> to vector<4x8x8xf32>
    %466 = arith.subf %462, %465 : vector<4x8x8xf32>
    %467 = math.exp %466 : vector<4x8x8xf32>
    %cst_315 = arith.constant dense<0.000000e+00> : vector<4x8xf32>
    %468 = vector.multi_reduction <add>, %467, %cst_315 [2] : vector<4x8x8xf32> to vector<4x8xf32>
    %469 = vector.shape_cast %468 : vector<4x8xf32> to vector<4x8x1xf32>
    %470 = tpu.reciprocal %469 {approx = true} : vector<4x8x1xf32> -> vector<4x8x1xf32>
    %471 = arith.mulf %469, %470 : vector<4x8x1xf32>
    %cst_316 = arith.constant 2.000000e+00 : f32
    %472 = vector.broadcast %cst_316 : f32 to vector<4x8x1xf32>
    %473 = arith.subf %472, %471 : vector<4x8x1xf32>
    %474 = arith.mulf %470, %473 : vector<4x8x1xf32>
    %475 = vector.broadcast %474 : vector<4x8x1xf32> to vector<4x8x8xf32>
    %476 = arith.mulf %467, %475 : vector<4x8x8xf32>
    %cst_317 = arith.constant dense<0.000000e+00> : vector<4x8x8xf32>
    %477 = tpu.matmul %476, %458, %cst_317 {dimension_numbers = #tpu.dot_dimension_numbers<[2], [1], [1], [2], [0, 0, 0, 1, 1, 2], [0], [0]>} : vector<4x8x8xf32>, vector<4x8x8xf32>, vector<4x8x8xf32> -> vector<4x8x8xf32>
    %c0_318 = arith.constant 0 : index
    %c0_319 = arith.constant 0 : index
    %c0_320 = arith.constant 0 : index
    %c0_321 = arith.constant 0 : index
    %478 = vector.load %arg7[%c0_318, %c0_319, %c0_320, %c0_321] : memref<2x4x8x32xf32, #tpu.memory_space<vmem>>, vector<1x4x8x32xf32>
    %479 = vector.shape_cast %478 : vector<1x4x8x32xf32> to vector<4x8x32xf32>
    %cst_322 = arith.constant dense<0.000000e+00> : vector<4x8x32xf32>
    %480 = tpu.matmul %477, %479, %cst_322 {dimension_numbers = #tpu.dot_dimension_numbers<[2], [1], [1], [2], [0, 0, 0, 1, 1, 2], [0], [0]>} : vector<4x8x8xf32>, vector<4x8x32xf32>, vector<4x8x32xf32> -> vector<4x8x32xf32>
    %cst_323 = arith.constant dense<0.000000e+00> : vector<8x32xf32>
    %481 = vector.multi_reduction <add>, %480, %cst_323 [0] : vector<4x8x32xf32> to vector<8x32xf32>
    %482 = arith.addf %365, %481 : vector<8x32xf32>
    %483 = vector.broadcast %372 : vector<1x32xf32> to vector<8x32xf32>
    %484 = arith.addf %482, %483 : vector<8x32xf32>
    %cst_324 = arith.constant dense<0.000000e+00> : vector<8xf32>
    %485 = vector.multi_reduction <add>, %484, %cst_324 [1] : vector<8x32xf32> to vector<8xf32>
    %486 = vector.shape_cast %485 : vector<8xf32> to vector<8x1xf32>
    %cst_325 = arith.constant 3.200000e+01 : f32
    %487 = vector.broadcast %cst_325 : f32 to vector<8x1xf32>
    %488 = arith.divf %486, %487 : vector<8x1xf32>
    %489 = vector.broadcast %488 : vector<8x1xf32> to vector<8x32xf32>
    %490 = arith.subf %484, %489 : vector<8x32xf32>
    %491 = arith.mulf %490, %490 : vector<8x32xf32>
    %cst_326 = arith.constant dense<0.000000e+00> : vector<8xf32>
    %492 = vector.multi_reduction <add>, %491, %cst_326 [1] : vector<8x32xf32> to vector<8xf32>
    %493 = vector.shape_cast %492 : vector<8xf32> to vector<8x1xf32>
    %cst_327 = arith.constant 3.200000e+01 : f32
    %494 = vector.broadcast %cst_327 : f32 to vector<8x1xf32>
    %495 = arith.divf %493, %494 : vector<8x1xf32>
    %496 = vector.broadcast %488 : vector<8x1xf32> to vector<8x32xf32>
    %497 = arith.subf %484, %496 : vector<8x32xf32>
    %cst_328 = arith.constant 9.99999974E-6 : f32
    %498 = vector.broadcast %cst_328 : f32 to vector<8x1xf32>
    %499 = arith.addf %495, %498 : vector<8x1xf32>
    %500 = math.rsqrt %499 : vector<8x1xf32>
    %501 = vector.broadcast %500 : vector<8x1xf32> to vector<8x32xf32>
    %502 = arith.mulf %497, %501 : vector<8x32xf32>
    %503 = vector.broadcast %370 : vector<1x32xf32> to vector<8x32xf32>
    %504 = arith.mulf %502, %503 : vector<8x32xf32>
    %505 = vector.broadcast %371 : vector<1x32xf32> to vector<8x32xf32>
    %506 = arith.addf %504, %505 : vector<8x32xf32>
    %c0_329 = arith.constant 0 : index
    %c0_330 = arith.constant 0 : index
    %c0_331 = arith.constant 0 : index
    %507 = vector.load %arg8[%c0_329, %c0_330, %c0_331] : memref<2x32x128xf32, #tpu.memory_space<vmem>>, vector<1x32x128xf32>
    %508 = vector.shape_cast %507 : vector<1x32x128xf32> to vector<32x128xf32>
    %cst_332 = arith.constant dense<0.000000e+00> : vector<8x128xf32>
    %509 = tpu.matmul %506, %508, %cst_332 {dimension_numbers = #tpu.dot_dimension_numbers<[1], [0], [0], [1], [0, 0, 1, 1], [], []>} : vector<8x32xf32>, vector<32x128xf32>, vector<8x128xf32> -> vector<8x128xf32>
    %c0_333 = arith.constant 0 : index
    %c0_334 = arith.constant 0 : index
    %c0_335 = arith.constant 0 : index
    %510 = vector.load %arg5[%c0_333, %c0_334, %c0_335] : memref<2x1x128xf32, #tpu.memory_space<vmem>>, vector<1x1x128xf32>
    %511 = vector.shape_cast %510 : vector<1x1x128xf32> to vector<1x128xf32>
    %512 = vector.broadcast %511 : vector<1x128xf32> to vector<8x128xf32>
    %513 = arith.addf %509, %512 : vector<8x128xf32>
    %cst_336 = arith.constant 1.702000e+00 : f32
    %514 = vector.broadcast %cst_336 : f32 to vector<8x128xf32>
    %515 = arith.mulf %514, %513 : vector<8x128xf32>
    %516 = arith.negf %515 : vector<8x128xf32>
    %517 = math.exp %516 : vector<8x128xf32>
    %cst_337 = arith.constant 1.000000e+00 : f32
    %518 = vector.broadcast %cst_337 : f32 to vector<8x128xf32>
    %519 = arith.addf %518, %517 : vector<8x128xf32>
    %520 = arith.divf %518, %519 : vector<8x128xf32>
    %521 = arith.mulf %513, %520 : vector<8x128xf32>
    %c0_338 = arith.constant 0 : index
    %c0_339 = arith.constant 0 : index
    %c0_340 = arith.constant 0 : index
    %522 = vector.load %arg9[%c0_338, %c0_339, %c0_340] : memref<2x128x32xf32, #tpu.memory_space<vmem>>, vector<1x128x32xf32>
    %523 = vector.shape_cast %522 : vector<1x128x32xf32> to vector<128x32xf32>
    %cst_341 = arith.constant dense<0.000000e+00> : vector<8x32xf32>
    %524 = tpu.matmul %521, %523, %cst_341 {dimension_numbers = #tpu.dot_dimension_numbers<[1], [0], [0], [1], [0, 0, 1, 1], [], []>} : vector<8x128xf32>, vector<128x32xf32>, vector<8x32xf32> -> vector<8x32xf32>
    %525 = arith.addf %484, %524 : vector<8x32xf32>
    %526 = vector.broadcast %373 : vector<1x32xf32> to vector<8x32xf32>
    %527 = arith.addf %525, %526 : vector<8x32xf32>
    %c1_342 = arith.constant 1 : index
    %c0_343 = arith.constant 0 : index
    %c0_344 = arith.constant 0 : index
    %528 = vector.load %arg3[%c1_342, %c0_343, %c0_344] : memref<2x6x32xf32, #tpu.memory_space<vmem>>, vector<1x6x32xf32>
    %529 = vector.shape_cast %528 : vector<1x6x32xf32> to vector<6x32xf32>
    %530 = vector.extract_strided_slice %529 {offsets = [0, 0], sizes = [1, 32], strides = [1, 1]} : vector<6x32xf32> to vector<1x32xf32>
    %531 = vector.extract_strided_slice %529 {offsets = [1, 0], sizes = [1, 32], strides = [1, 1]} : vector<6x32xf32> to vector<1x32xf32>
    %532 = vector.extract_strided_slice %529 {offsets = [2, 0], sizes = [1, 32], strides = [1, 1]} : vector<6x32xf32> to vector<1x32xf32>
    %533 = vector.extract_strided_slice %529 {offsets = [3, 0], sizes = [1, 32], strides = [1, 1]} : vector<6x32xf32> to vector<1x32xf32>
    %534 = vector.extract_strided_slice %529 {offsets = [4, 0], sizes = [1, 32], strides = [1, 1]} : vector<6x32xf32> to vector<1x32xf32>
    %535 = vector.extract_strided_slice %529 {offsets = [5, 0], sizes = [1, 32], strides = [1, 1]} : vector<6x32xf32> to vector<1x32xf32>
    %cst_345 = arith.constant dense<0.000000e+00> : vector<8xf32>
    %536 = vector.multi_reduction <add>, %527, %cst_345 [1] : vector<8x32xf32> to vector<8xf32>
    %537 = vector.shape_cast %536 : vector<8xf32> to vector<8x1xf32>
    %cst_346 = arith.constant 3.200000e+01 : f32
    %538 = vector.broadcast %cst_346 : f32 to vector<8x1xf32>
    %539 = arith.divf %537, %538 : vector<8x1xf32>
    %540 = vector.broadcast %539 : vector<8x1xf32> to vector<8x32xf32>
    %541 = arith.subf %527, %540 : vector<8x32xf32>
    %542 = arith.mulf %541, %541 : vector<8x32xf32>
    %cst_347 = arith.constant dense<0.000000e+00> : vector<8xf32>
    %543 = vector.multi_reduction <add>, %542, %cst_347 [1] : vector<8x32xf32> to vector<8xf32>
    %544 = vector.shape_cast %543 : vector<8xf32> to vector<8x1xf32>
    %cst_348 = arith.constant 3.200000e+01 : f32
    %545 = vector.broadcast %cst_348 : f32 to vector<8x1xf32>
    %546 = arith.divf %544, %545 : vector<8x1xf32>
    %547 = vector.broadcast %539 : vector<8x1xf32> to vector<8x32xf32>
    %548 = arith.subf %527, %547 : vector<8x32xf32>
    %cst_349 = arith.constant 9.99999974E-6 : f32
    %549 = vector.broadcast %cst_349 : f32 to vector<8x1xf32>
    %550 = arith.addf %546, %549 : vector<8x1xf32>
    %551 = math.rsqrt %550 : vector<8x1xf32>
    %552 = vector.broadcast %551 : vector<8x1xf32> to vector<8x32xf32>
    %553 = arith.mulf %548, %552 : vector<8x32xf32>
    %554 = vector.broadcast %530 : vector<1x32xf32> to vector<8x32xf32>
    %555 = arith.mulf %553, %554 : vector<8x32xf32>
    %556 = vector.broadcast %531 : vector<1x32xf32> to vector<8x32xf32>
    %557 = arith.addf %555, %556 : vector<8x32xf32>
    %c1_350 = arith.constant 1 : index
    %c0_351 = arith.constant 0 : index
    %c0_352 = arith.constant 0 : index
    %c0_353 = arith.constant 0 : index
    %558 = vector.load %arg6[%c1_350, %c0_351, %c0_352, %c0_353] : memref<2x12x32x8xf32, #tpu.memory_space<vmem>>, vector<1x1x32x8xf32>
    %559 = vector.shape_cast %558 : vector<1x1x32x8xf32> to vector<32x8xf32>
    %cst_354 = arith.constant dense<0.000000e+00> : vector<8x8xf32>
    %560 = tpu.matmul %557, %559, %cst_354 {dimension_numbers = #tpu.dot_dimension_numbers<[1], [0], [0], [1], [0, 0, 1, 1], [], []>} : vector<8x32xf32>, vector<32x8xf32>, vector<8x8xf32> -> vector<8x8xf32>
    %c1_355 = arith.constant 1 : index
    %c1_356 = arith.constant 1 : index
    %c0_357 = arith.constant 0 : index
    %c0_358 = arith.constant 0 : index
    %561 = vector.load %arg6[%c1_355, %c1_356, %c0_357, %c0_358] : memref<2x12x32x8xf32, #tpu.memory_space<vmem>>, vector<1x1x32x8xf32>
    %562 = vector.shape_cast %561 : vector<1x1x32x8xf32> to vector<32x8xf32>
    %cst_359 = arith.constant dense<0.000000e+00> : vector<8x8xf32>
    %563 = tpu.matmul %557, %562, %cst_359 {dimension_numbers = #tpu.dot_dimension_numbers<[1], [0], [0], [1], [0, 0, 1, 1], [], []>} : vector<8x32xf32>, vector<32x8xf32>, vector<8x8xf32> -> vector<8x8xf32>
    %c1_360 = arith.constant 1 : index
    %c2_361 = arith.constant 2 : index
    %c0_362 = arith.constant 0 : index
    %c0_363 = arith.constant 0 : index
    %564 = vector.load %arg6[%c1_360, %c2_361, %c0_362, %c0_363] : memref<2x12x32x8xf32, #tpu.memory_space<vmem>>, vector<1x1x32x8xf32>
    %565 = vector.shape_cast %564 : vector<1x1x32x8xf32> to vector<32x8xf32>
    %cst_364 = arith.constant dense<0.000000e+00> : vector<8x8xf32>
    %566 = tpu.matmul %557, %565, %cst_364 {dimension_numbers = #tpu.dot_dimension_numbers<[1], [0], [0], [1], [0, 0, 1, 1], [], []>} : vector<8x32xf32>, vector<32x8xf32>, vector<8x8xf32> -> vector<8x8xf32>
    %c1_365 = arith.constant 1 : index
    %c3_366 = arith.constant 3 : index
    %c0_367 = arith.constant 0 : index
    %c0_368 = arith.constant 0 : index
    %567 = vector.load %arg6[%c1_365, %c3_366, %c0_367, %c0_368] : memref<2x12x32x8xf32, #tpu.memory_space<vmem>>, vector<1x1x32x8xf32>
    %568 = vector.shape_cast %567 : vector<1x1x32x8xf32> to vector<32x8xf32>
    %cst_369 = arith.constant dense<0.000000e+00> : vector<8x8xf32>
    %569 = tpu.matmul %557, %568, %cst_369 {dimension_numbers = #tpu.dot_dimension_numbers<[1], [0], [0], [1], [0, 0, 1, 1], [], []>} : vector<8x32xf32>, vector<32x8xf32>, vector<8x8xf32> -> vector<8x8xf32>
    %570 = vector.shape_cast %560 : vector<8x8xf32> to vector<1x8x8xf32>
    %571 = vector.shape_cast %563 : vector<8x8xf32> to vector<1x8x8xf32>
    %572 = vector.shape_cast %566 : vector<8x8xf32> to vector<1x8x8xf32>
    %573 = vector.shape_cast %569 : vector<8x8xf32> to vector<1x8x8xf32>
    %574 = tpu.concatenate %570, %571, %572, %573 in 0 : vector<1x8x8xf32>, vector<1x8x8xf32>, vector<1x8x8xf32>, vector<1x8x8xf32> -> vector<4x8x8xf32>
    %c1_370 = arith.constant 1 : index
    %c0_371 = arith.constant 0 : index
    %c0_372 = arith.constant 0 : index
    %c0_373 = arith.constant 0 : index
    %575 = vector.load %arg4[%c1_370, %c0_371, %c0_372, %c0_373] : memref<2x12x1x8xf32, #tpu.memory_space<vmem>>, vector<1x4x1x8xf32>
    %576 = vector.shape_cast %575 : vector<1x4x1x8xf32> to vector<4x1x8xf32>
    %577 = vector.broadcast %576 : vector<4x1x8xf32> to vector<4x8x8xf32>
    %578 = arith.addf %574, %577 : vector<4x8x8xf32>
    %c1_374 = arith.constant 1 : index
    %c4_375 = arith.constant 4 : index
    %c0_376 = arith.constant 0 : index
    %c0_377 = arith.constant 0 : index
    %579 = vector.load %arg6[%c1_374, %c4_375, %c0_376, %c0_377] : memref<2x12x32x8xf32, #tpu.memory_space<vmem>>, vector<1x1x32x8xf32>
    %580 = vector.shape_cast %579 : vector<1x1x32x8xf32> to vector<32x8xf32>
    %cst_378 = arith.constant dense<0.000000e+00> : vector<8x8xf32>
    %581 = tpu.matmul %557, %580, %cst_378 {dimension_numbers = #tpu.dot_dimension_numbers<[1], [0], [0], [1], [0, 0, 1, 1], [], []>} : vector<8x32xf32>, vector<32x8xf32>, vector<8x8xf32> -> vector<8x8xf32>
    %c1_379 = arith.constant 1 : index
    %c5_380 = arith.constant 5 : index
    %c0_381 = arith.constant 0 : index
    %c0_382 = arith.constant 0 : index
    %582 = vector.load %arg6[%c1_379, %c5_380, %c0_381, %c0_382] : memref<2x12x32x8xf32, #tpu.memory_space<vmem>>, vector<1x1x32x8xf32>
    %583 = vector.shape_cast %582 : vector<1x1x32x8xf32> to vector<32x8xf32>
    %cst_383 = arith.constant dense<0.000000e+00> : vector<8x8xf32>
    %584 = tpu.matmul %557, %583, %cst_383 {dimension_numbers = #tpu.dot_dimension_numbers<[1], [0], [0], [1], [0, 0, 1, 1], [], []>} : vector<8x32xf32>, vector<32x8xf32>, vector<8x8xf32> -> vector<8x8xf32>
    %c1_384 = arith.constant 1 : index
    %c6_385 = arith.constant 6 : index
    %c0_386 = arith.constant 0 : index
    %c0_387 = arith.constant 0 : index
    %585 = vector.load %arg6[%c1_384, %c6_385, %c0_386, %c0_387] : memref<2x12x32x8xf32, #tpu.memory_space<vmem>>, vector<1x1x32x8xf32>
    %586 = vector.shape_cast %585 : vector<1x1x32x8xf32> to vector<32x8xf32>
    %cst_388 = arith.constant dense<0.000000e+00> : vector<8x8xf32>
    %587 = tpu.matmul %557, %586, %cst_388 {dimension_numbers = #tpu.dot_dimension_numbers<[1], [0], [0], [1], [0, 0, 1, 1], [], []>} : vector<8x32xf32>, vector<32x8xf32>, vector<8x8xf32> -> vector<8x8xf32>
    %c1_389 = arith.constant 1 : index
    %c7_390 = arith.constant 7 : index
    %c0_391 = arith.constant 0 : index
    %c0_392 = arith.constant 0 : index
    %588 = vector.load %arg6[%c1_389, %c7_390, %c0_391, %c0_392] : memref<2x12x32x8xf32, #tpu.memory_space<vmem>>, vector<1x1x32x8xf32>
    %589 = vector.shape_cast %588 : vector<1x1x32x8xf32> to vector<32x8xf32>
    %cst_393 = arith.constant dense<0.000000e+00> : vector<8x8xf32>
    %590 = tpu.matmul %557, %589, %cst_393 {dimension_numbers = #tpu.dot_dimension_numbers<[1], [0], [0], [1], [0, 0, 1, 1], [], []>} : vector<8x32xf32>, vector<32x8xf32>, vector<8x8xf32> -> vector<8x8xf32>
    %591 = vector.shape_cast %581 : vector<8x8xf32> to vector<1x8x8xf32>
    %592 = vector.shape_cast %584 : vector<8x8xf32> to vector<1x8x8xf32>
    %593 = vector.shape_cast %587 : vector<8x8xf32> to vector<1x8x8xf32>
    %594 = vector.shape_cast %590 : vector<8x8xf32> to vector<1x8x8xf32>
    %595 = tpu.concatenate %591, %592, %593, %594 in 0 : vector<1x8x8xf32>, vector<1x8x8xf32>, vector<1x8x8xf32>, vector<1x8x8xf32> -> vector<4x8x8xf32>
    %c1_394 = arith.constant 1 : index
    %c4_395 = arith.constant 4 : index
    %c0_396 = arith.constant 0 : index
    %c0_397 = arith.constant 0 : index
    %596 = vector.load %arg4[%c1_394, %c4_395, %c0_396, %c0_397] : memref<2x12x1x8xf32, #tpu.memory_space<vmem>>, vector<1x4x1x8xf32>
    %597 = vector.shape_cast %596 : vector<1x4x1x8xf32> to vector<4x1x8xf32>
    %598 = vector.broadcast %597 : vector<4x1x8xf32> to vector<4x8x8xf32>
    %599 = arith.addf %595, %598 : vector<4x8x8xf32>
    %c1_398 = arith.constant 1 : index
    %c8_399 = arith.constant 8 : index
    %c0_400 = arith.constant 0 : index
    %c0_401 = arith.constant 0 : index
    %600 = vector.load %arg6[%c1_398, %c8_399, %c0_400, %c0_401] : memref<2x12x32x8xf32, #tpu.memory_space<vmem>>, vector<1x1x32x8xf32>
    %601 = vector.shape_cast %600 : vector<1x1x32x8xf32> to vector<32x8xf32>
    %cst_402 = arith.constant dense<0.000000e+00> : vector<8x8xf32>
    %602 = tpu.matmul %557, %601, %cst_402 {dimension_numbers = #tpu.dot_dimension_numbers<[1], [0], [0], [1], [0, 0, 1, 1], [], []>} : vector<8x32xf32>, vector<32x8xf32>, vector<8x8xf32> -> vector<8x8xf32>
    %c1_403 = arith.constant 1 : index
    %c9_404 = arith.constant 9 : index
    %c0_405 = arith.constant 0 : index
    %c0_406 = arith.constant 0 : index
    %603 = vector.load %arg6[%c1_403, %c9_404, %c0_405, %c0_406] : memref<2x12x32x8xf32, #tpu.memory_space<vmem>>, vector<1x1x32x8xf32>
    %604 = vector.shape_cast %603 : vector<1x1x32x8xf32> to vector<32x8xf32>
    %cst_407 = arith.constant dense<0.000000e+00> : vector<8x8xf32>
    %605 = tpu.matmul %557, %604, %cst_407 {dimension_numbers = #tpu.dot_dimension_numbers<[1], [0], [0], [1], [0, 0, 1, 1], [], []>} : vector<8x32xf32>, vector<32x8xf32>, vector<8x8xf32> -> vector<8x8xf32>
    %c1_408 = arith.constant 1 : index
    %c10_409 = arith.constant 10 : index
    %c0_410 = arith.constant 0 : index
    %c0_411 = arith.constant 0 : index
    %606 = vector.load %arg6[%c1_408, %c10_409, %c0_410, %c0_411] : memref<2x12x32x8xf32, #tpu.memory_space<vmem>>, vector<1x1x32x8xf32>
    %607 = vector.shape_cast %606 : vector<1x1x32x8xf32> to vector<32x8xf32>
    %cst_412 = arith.constant dense<0.000000e+00> : vector<8x8xf32>
    %608 = tpu.matmul %557, %607, %cst_412 {dimension_numbers = #tpu.dot_dimension_numbers<[1], [0], [0], [1], [0, 0, 1, 1], [], []>} : vector<8x32xf32>, vector<32x8xf32>, vector<8x8xf32> -> vector<8x8xf32>
    %c1_413 = arith.constant 1 : index
    %c11_414 = arith.constant 11 : index
    %c0_415 = arith.constant 0 : index
    %c0_416 = arith.constant 0 : index
    %609 = vector.load %arg6[%c1_413, %c11_414, %c0_415, %c0_416] : memref<2x12x32x8xf32, #tpu.memory_space<vmem>>, vector<1x1x32x8xf32>
    %610 = vector.shape_cast %609 : vector<1x1x32x8xf32> to vector<32x8xf32>
    %cst_417 = arith.constant dense<0.000000e+00> : vector<8x8xf32>
    %611 = tpu.matmul %557, %610, %cst_417 {dimension_numbers = #tpu.dot_dimension_numbers<[1], [0], [0], [1], [0, 0, 1, 1], [], []>} : vector<8x32xf32>, vector<32x8xf32>, vector<8x8xf32> -> vector<8x8xf32>
    %612 = vector.shape_cast %602 : vector<8x8xf32> to vector<1x8x8xf32>
    %613 = vector.shape_cast %605 : vector<8x8xf32> to vector<1x8x8xf32>
    %614 = vector.shape_cast %608 : vector<8x8xf32> to vector<1x8x8xf32>
    %615 = vector.shape_cast %611 : vector<8x8xf32> to vector<1x8x8xf32>
    %616 = tpu.concatenate %612, %613, %614, %615 in 0 : vector<1x8x8xf32>, vector<1x8x8xf32>, vector<1x8x8xf32>, vector<1x8x8xf32> -> vector<4x8x8xf32>
    %c1_418 = arith.constant 1 : index
    %c8_419 = arith.constant 8 : index
    %c0_420 = arith.constant 0 : index
    %c0_421 = arith.constant 0 : index
    %617 = vector.load %arg4[%c1_418, %c8_419, %c0_420, %c0_421] : memref<2x12x1x8xf32, #tpu.memory_space<vmem>>, vector<1x4x1x8xf32>
    %618 = vector.shape_cast %617 : vector<1x4x1x8xf32> to vector<4x1x8xf32>
    %619 = vector.broadcast %618 : vector<4x1x8xf32> to vector<4x8x8xf32>
    %620 = arith.addf %616, %619 : vector<4x8x8xf32>
    %cst_422 = arith.constant dense<0.000000e+00> : vector<4x8x8xf32>
    %621 = tpu.matmul %578, %599, %cst_422 {dimension_numbers = #tpu.dot_dimension_numbers<[2], [2], [1], [1], [0, 0, 0, 1, 1, 1], [0], [0]>} : vector<4x8x8xf32>, vector<4x8x8xf32>, vector<4x8x8xf32> -> vector<4x8x8xf32>
    %622 = vector.shape_cast %5 : vector<8x8xf32> to vector<1x8x8xf32>
    %623 = vector.broadcast %622 : vector<1x8x8xf32> to vector<4x8x8xf32>
    %624 = arith.addf %621, %623 : vector<4x8x8xf32>
    %cst_423 = arith.constant dense<0xFF800000> : vector<4x8xf32>
    %625 = vector.multi_reduction <maximumf>, %624, %cst_423 [2] : vector<4x8x8xf32> to vector<4x8xf32>
    %626 = vector.shape_cast %625 : vector<4x8xf32> to vector<4x8x1xf32>
    %627 = vector.broadcast %626 : vector<4x8x1xf32> to vector<4x8x8xf32>
    %628 = arith.subf %624, %627 : vector<4x8x8xf32>
    %629 = math.exp %628 : vector<4x8x8xf32>
    %cst_424 = arith.constant dense<0.000000e+00> : vector<4x8xf32>
    %630 = vector.multi_reduction <add>, %629, %cst_424 [2] : vector<4x8x8xf32> to vector<4x8xf32>
    %631 = vector.shape_cast %630 : vector<4x8xf32> to vector<4x8x1xf32>
    %632 = tpu.reciprocal %631 {approx = true} : vector<4x8x1xf32> -> vector<4x8x1xf32>
    %633 = arith.mulf %631, %632 : vector<4x8x1xf32>
    %cst_425 = arith.constant 2.000000e+00 : f32
    %634 = vector.broadcast %cst_425 : f32 to vector<4x8x1xf32>
    %635 = arith.subf %634, %633 : vector<4x8x1xf32>
    %636 = arith.mulf %632, %635 : vector<4x8x1xf32>
    %637 = vector.broadcast %636 : vector<4x8x1xf32> to vector<4x8x8xf32>
    %638 = arith.mulf %629, %637 : vector<4x8x8xf32>
    %cst_426 = arith.constant dense<0.000000e+00> : vector<4x8x8xf32>
    %639 = tpu.matmul %638, %620, %cst_426 {dimension_numbers = #tpu.dot_dimension_numbers<[2], [1], [1], [2], [0, 0, 0, 1, 1, 2], [0], [0]>} : vector<4x8x8xf32>, vector<4x8x8xf32>, vector<4x8x8xf32> -> vector<4x8x8xf32>
    %c1_427 = arith.constant 1 : index
    %c0_428 = arith.constant 0 : index
    %c0_429 = arith.constant 0 : index
    %c0_430 = arith.constant 0 : index
    %640 = vector.load %arg7[%c1_427, %c0_428, %c0_429, %c0_430] : memref<2x4x8x32xf32, #tpu.memory_space<vmem>>, vector<1x4x8x32xf32>
    %641 = vector.shape_cast %640 : vector<1x4x8x32xf32> to vector<4x8x32xf32>
    %cst_431 = arith.constant dense<0.000000e+00> : vector<4x8x32xf32>
    %642 = tpu.matmul %639, %641, %cst_431 {dimension_numbers = #tpu.dot_dimension_numbers<[2], [1], [1], [2], [0, 0, 0, 1, 1, 2], [0], [0]>} : vector<4x8x8xf32>, vector<4x8x32xf32>, vector<4x8x32xf32> -> vector<4x8x32xf32>
    %cst_432 = arith.constant dense<0.000000e+00> : vector<8x32xf32>
    %643 = vector.multi_reduction <add>, %642, %cst_432 [0] : vector<4x8x32xf32> to vector<8x32xf32>
    %644 = arith.addf %527, %643 : vector<8x32xf32>
    %645 = vector.broadcast %534 : vector<1x32xf32> to vector<8x32xf32>
    %646 = arith.addf %644, %645 : vector<8x32xf32>
    %cst_433 = arith.constant dense<0.000000e+00> : vector<8xf32>
    %647 = vector.multi_reduction <add>, %646, %cst_433 [1] : vector<8x32xf32> to vector<8xf32>
    %648 = vector.shape_cast %647 : vector<8xf32> to vector<8x1xf32>
    %cst_434 = arith.constant 3.200000e+01 : f32
    %649 = vector.broadcast %cst_434 : f32 to vector<8x1xf32>
    %650 = arith.divf %648, %649 : vector<8x1xf32>
    %651 = vector.broadcast %650 : vector<8x1xf32> to vector<8x32xf32>
    %652 = arith.subf %646, %651 : vector<8x32xf32>
    %653 = arith.mulf %652, %652 : vector<8x32xf32>
    %cst_435 = arith.constant dense<0.000000e+00> : vector<8xf32>
    %654 = vector.multi_reduction <add>, %653, %cst_435 [1] : vector<8x32xf32> to vector<8xf32>
    %655 = vector.shape_cast %654 : vector<8xf32> to vector<8x1xf32>
    %cst_436 = arith.constant 3.200000e+01 : f32
    %656 = vector.broadcast %cst_436 : f32 to vector<8x1xf32>
    %657 = arith.divf %655, %656 : vector<8x1xf32>
    %658 = vector.broadcast %650 : vector<8x1xf32> to vector<8x32xf32>
    %659 = arith.subf %646, %658 : vector<8x32xf32>
    %cst_437 = arith.constant 9.99999974E-6 : f32
    %660 = vector.broadcast %cst_437 : f32 to vector<8x1xf32>
    %661 = arith.addf %657, %660 : vector<8x1xf32>
    %662 = math.rsqrt %661 : vector<8x1xf32>
    %663 = vector.broadcast %662 : vector<8x1xf32> to vector<8x32xf32>
    %664 = arith.mulf %659, %663 : vector<8x32xf32>
    %665 = vector.broadcast %532 : vector<1x32xf32> to vector<8x32xf32>
    %666 = arith.mulf %664, %665 : vector<8x32xf32>
    %667 = vector.broadcast %533 : vector<1x32xf32> to vector<8x32xf32>
    %668 = arith.addf %666, %667 : vector<8x32xf32>
    %c1_438 = arith.constant 1 : index
    %c0_439 = arith.constant 0 : index
    %c0_440 = arith.constant 0 : index
    %669 = vector.load %arg8[%c1_438, %c0_439, %c0_440] : memref<2x32x128xf32, #tpu.memory_space<vmem>>, vector<1x32x128xf32>
    %670 = vector.shape_cast %669 : vector<1x32x128xf32> to vector<32x128xf32>
    %cst_441 = arith.constant dense<0.000000e+00> : vector<8x128xf32>
    %671 = tpu.matmul %668, %670, %cst_441 {dimension_numbers = #tpu.dot_dimension_numbers<[1], [0], [0], [1], [0, 0, 1, 1], [], []>} : vector<8x32xf32>, vector<32x128xf32>, vector<8x128xf32> -> vector<8x128xf32>
    %c1_442 = arith.constant 1 : index
    %c0_443 = arith.constant 0 : index
    %c0_444 = arith.constant 0 : index
    %672 = vector.load %arg5[%c1_442, %c0_443, %c0_444] : memref<2x1x128xf32, #tpu.memory_space<vmem>>, vector<1x1x128xf32>
    %673 = vector.shape_cast %672 : vector<1x1x128xf32> to vector<1x128xf32>
    %674 = vector.broadcast %673 : vector<1x128xf32> to vector<8x128xf32>
    %675 = arith.addf %671, %674 : vector<8x128xf32>
    %cst_445 = arith.constant 1.702000e+00 : f32
    %676 = vector.broadcast %cst_445 : f32 to vector<8x128xf32>
    %677 = arith.mulf %676, %675 : vector<8x128xf32>
    %678 = arith.negf %677 : vector<8x128xf32>
    %679 = math.exp %678 : vector<8x128xf32>
    %cst_446 = arith.constant 1.000000e+00 : f32
    %680 = vector.broadcast %cst_446 : f32 to vector<8x128xf32>
    %681 = arith.addf %680, %679 : vector<8x128xf32>
    %682 = arith.divf %680, %681 : vector<8x128xf32>
    %683 = arith.mulf %675, %682 : vector<8x128xf32>
    %c1_447 = arith.constant 1 : index
    %c0_448 = arith.constant 0 : index
    %c0_449 = arith.constant 0 : index
    %684 = vector.load %arg9[%c1_447, %c0_448, %c0_449] : memref<2x128x32xf32, #tpu.memory_space<vmem>>, vector<1x128x32xf32>
    %685 = vector.shape_cast %684 : vector<1x128x32xf32> to vector<128x32xf32>
    %cst_450 = arith.constant dense<0.000000e+00> : vector<8x32xf32>
    %686 = tpu.matmul %683, %685, %cst_450 {dimension_numbers = #tpu.dot_dimension_numbers<[1], [0], [0], [1], [0, 0, 1, 1], [], []>} : vector<8x128xf32>, vector<128x32xf32>, vector<8x32xf32> -> vector<8x32xf32>
    %687 = arith.addf %646, %686 : vector<8x32xf32>
    %688 = vector.broadcast %535 : vector<1x32xf32> to vector<8x32xf32>
    %689 = arith.addf %687, %688 : vector<8x32xf32>
    %c0_451 = arith.constant 0 : index
    %c0_452 = arith.constant 0 : index
    %690 = vector.load %arg13[%c0_451, %c0_452] : memref<8x32xf32, #tpu.memory_space<vmem>>, vector<8x32xf32>
    tpu.vector_store %arg13[%c0_451, %c0_452], %689 {strides = array<i32>} : memref<8x32xf32, #tpu.memory_space<vmem>>, vector<8x32xf32>,
    %c1_453 = arith.constant 1 : index
    %691 = memref.load %arg0[%c1_453] : memref<2xi32, #tpu.memory_space<smem>>
    %692 = arith.index_cast %691 : i32 to index
    %c0_454 = arith.constant 0 : index
    %693 = vector.load %arg13[%692, %c0_454] : memref<8x32xf32, #tpu.memory_space<vmem>>, vector<1x32xf32>
    %cst_455 = arith.constant dense<0.000000e+00> : vector<1xf32>
    %694 = vector.multi_reduction <add>, %693, %cst_455 [1] : vector<1x32xf32> to vector<1xf32>
    %695 = vector.shape_cast %694 : vector<1xf32> to vector<1x1xf32>
    %cst_456 = arith.constant 3.200000e+01 : f32
    %696 = vector.broadcast %cst_456 : f32 to vector<1x1xf32>
    %697 = arith.divf %695, %696 : vector<1x1xf32>
    %698 = vector.broadcast %697 : vector<1x1xf32> to vector<1x32xf32>
    %699 = arith.subf %693, %698 : vector<1x32xf32>
    %700 = arith.mulf %699, %699 : vector<1x32xf32>
    %cst_457 = arith.constant dense<0.000000e+00> : vector<1xf32>
    %701 = vector.multi_reduction <add>, %700, %cst_457 [1] : vector<1x32xf32> to vector<1xf32>
    %702 = vector.shape_cast %701 : vector<1xf32> to vector<1x1xf32>
    %cst_458 = arith.constant 3.200000e+01 : f32
    %703 = vector.broadcast %cst_458 : f32 to vector<1x1xf32>
    %704 = arith.divf %702, %703 : vector<1x1xf32>
    %705 = vector.broadcast %697 : vector<1x1xf32> to vector<1x32xf32>
    %706 = arith.subf %693, %705 : vector<1x32xf32>
    %cst_459 = arith.constant 9.99999974E-6 : f32
    %707 = vector.broadcast %cst_459 : f32 to vector<1x1xf32>
    %708 = arith.addf %704, %707 : vector<1x1xf32>
    %709 = math.rsqrt %708 : vector<1x1xf32>
    %710 = vector.broadcast %709 : vector<1x1xf32> to vector<1x32xf32>
    %711 = arith.mulf %706, %710 : vector<1x32xf32>
    %712 = arith.mulf %711, %7 : vector<1x32xf32>
    %713 = arith.addf %712, %8 : vector<1x32xf32>
    %cst_460 = arith.constant dense<0.000000e+00> : vector<1x16xf32>
    %714 = tpu.matmul %713, %9, %cst_460 {dimension_numbers = #tpu.dot_dimension_numbers<[1], [0], [0], [1], [0, 0, 1, 1], [], []>} : vector<1x32xf32>, vector<32x16xf32>, vector<1x16xf32> -> vector<1x16xf32>
    %c1_461 = arith.constant 1 : index
    %c0_462 = arith.constant 0 : index
    %715 = vector.load %arg12[%c1_461, %c0_462] : memref<2x16xf32, #tpu.memory_space<vmem>>, vector<1x16xf32>
    tpu.vector_store %arg12[%c1_461, %c0_462], %714 {strides = array<i32>} : memref<2x16xf32, #tpu.memory_space<vmem>>, vector<1x16xf32>,
    return
  }
}

</mosaic_0001>

<llo_original>
// kernel: clip_text_forward.1
$region0: #{clip_text_forward.1}
  #allocation0 [shape = 'u32[]', space=smem, size = 0x4, offset = 0x4, fixed_abs, tag = 'smem constant byte address 0x4 - core index']
  #allocation1 [shape = 'u32[144,128]{1,0:T(1,128)}', space=vmem, size = 0x12000, scoped, tag = 'internal scratch']
  #allocation2 [shape = 'f32[8,32]{1,0:T(8,128)}', space=vmem, size = 0x1000, scoped, tag = 'scratch operand']
  %s0 = inlined_call_operand.vmem [shape: s32[2], index: 0, kind: input, shape index: {}]
  %s1 = inlined_call_operand.vmem [shape: f32[2,8,32], index: 1, kind: input, shape index: {}]
  %s2 = inlined_call_operand.vmem [shape: f32[8,32], index: 2, kind: input, shape index: {}]
  %s3 = inlined_call_operand.vmem [shape: f32[2,6,32], index: 3, kind: input, shape index: {}]
  %s4 = inlined_call_operand.vmem [shape: f32[2,12,1,8], index: 4, kind: input, shape index: {}]
  %s5 = inlined_call_operand.vmem [shape: f32[2,1,128], index: 5, kind: input, shape index: {}]
  %s6 = inlined_call_operand.vmem [shape: f32[2,12,32,8], index: 6, kind: input, shape index: {}]
  %s7 = inlined_call_operand.vmem [shape: f32[2,4,8,32], index: 7, kind: input, shape index: {}]
  %s8 = inlined_call_operand.vmem [shape: f32[2,32,128], index: 8, kind: input, shape index: {}]
  %s9 = inlined_call_operand.vmem [shape: f32[2,128,32], index: 9, kind: input, shape index: {}]
  %s10 = inlined_call_operand.vmem [shape: f32[2,32], index: 10, kind: input, shape index: {}]
  %s11 = inlined_call_operand.vmem [shape: f32[32,16], index: 11, kind: input, shape index: {}]
  %s12 = inlined_call_operand.hbm [shape: f32[2,16], index: 12, kind: output, shape index: {}]
  %s13 = sld [smem:[#allocation0]]
  $region62: #{clip_text_forward.1} parent=0
    _
  %s15 = ssub.s32 1, %s13
  %s16 = scalar_select 0, %s15, %s13
  $region1: #{clip_text_forward.1} parent=0
    #allocation3 [shape = 'u8[512]{0}', space=smem, size = 0x200, scoped, tag = 'input window, operand 0, single buffered']
    #allocation4 [shape = 's32[1]{0}', space=sflag, size = 0x4, scoped, tag = 'scoped memory for clip_text_forward.1']
    #allocation5 [shape = 's32[1]{0}', space=sflag, size = 0x4, scoped, tag = 'scoped memory for clip_text_forward.1']
    #allocation6 [shape = 'u8[1024]{0}', space=vmem, size = 0x400, scoped, tag = 'output window, operand 0, single buffered']
    %17 = vsyncpa [#allocation5], 0
    %18 = vsyncpa [#allocation4], 0
    // Predicated region
    $region2: #{clip_text_forward.1} parent=1 // pred_check
      _
    $region3: #{clip_text_forward.1} parent=1 // pred_check_branch
      %20 = sbr.rel (0) target = $region5
    $region4: #{clip_text_forward.1} parent=1 // pred_region
      %s22 = ssub.s32 16, 16
      %23 = vsyncadd [#allocation5], %s22
      %s25 = sshll.u32 %s0, 4
      %s26 = int_to_ptr.vmem [resolvable:$true] %s25
      %28 = dma.vmem_to_smem %s26, 16, [#allocation3], [#allocation5]
    $region5: #{clip_text_forward.1} parent=1 // pred_fallthru
      _
    // Predicated region
    $region6: #{clip_text_forward.1} parent=1 // pred_check
      _
    $region7: #{clip_text_forward.1} parent=1 // pred_check_branch
      %30 = sbr.rel (0) target = $region9
    $region8: #{clip_text_forward.1} parent=1 // pred_region
      _
    $region9: #{clip_text_forward.1} parent=1 // pred_fallthru
      _
    // Predicated region
    $region10: #{clip_text_forward.1} parent=1 // pred_check
      _
    $region11: #{clip_text_forward.1} parent=1 // pred_check_branch
      %32 = sbr.rel (0) target = $region13
    $region12: #{clip_text_forward.1} parent=1 // pred_region
      _
    $region13: #{clip_text_forward.1} parent=1 // pred_fallthru
      _
    // Predicated region
    $region14: #{clip_text_forward.1} parent=1 // pred_check
      _
    $region15: #{clip_text_forward.1} parent=1 // pred_check_branch
      %34 = sbr.rel (0) target = $region17
    $region16: #{clip_text_forward.1} parent=1 // pred_region
      _
    $region17: #{clip_text_forward.1} parent=1 // pred_fallthru
      _
    // Predicated region
    $region18: #{clip_text_forward.1} parent=1 // pred_check
      _
    $region19: #{clip_text_forward.1} parent=1 // pred_check_branch
      %36 = sbr.rel (0) target = $region21
    $region20: #{clip_text_forward.1} parent=1 // pred_region
      _
    $region21: #{clip_text_forward.1} parent=1 // pred_fallthru
      _
    // Predicated region
    $region22: #{clip_text_forward.1} parent=1 // pred_check
      _
    $region23: #{clip_text_forward.1} parent=1 // pred_check_branch
      %38 = sbr.rel (0) target = $region25
    $region24: #{clip_text_forward.1} parent=1 // pred_region
      _
    $region25: #{clip_text_forward.1} parent=1 // pred_fallthru
      _
    // Predicated region
    $region26: #{clip_text_forward.1} parent=1 // pred_check
      _
    $region27: #{clip_text_forward.1} parent=1 // pred_check_branch
      %40 = sbr.rel (0) target = $region29
    $region28: #{clip_text_forward.1} parent=1 // pred_region
      _
    $region29: #{clip_text_forward.1} parent=1 // pred_fallthru
      _
    // Predicated region
    $region30: #{clip_text_forward.1} parent=1 // pred_check
      _
    $region31: #{clip_text_forward.1} parent=1 // pred_check_branch
      %42 = sbr.rel (0) target = $region33
    $region32: #{clip_text_forward.1} parent=1 // pred_region
      _
    $region33: #{clip_text_forward.1} parent=1 // pred_fallthru
      _
    // Predicated region
    $region34: #{clip_text_forward.1} parent=1 // pred_check
      _
    $region35: #{clip_text_forward.1} parent=1 // pred_check_branch
      %44 = sbr.rel (0) target = $region37
    $region36: #{clip_text_forward.1} parent=1 // pred_region
      _
    $region37: #{clip_text_forward.1} parent=1 // pred_fallthru
      _
    // Predicated region
    $region38: #{clip_text_forward.1} parent=1 // pred_check
      _
    $region39: #{clip_text_forward.1} parent=1 // pred_check_branch
      %46 = sbr.rel (0) target = $region41
    $region40: #{clip_text_forward.1} parent=1 // pred_region
      _
    $region41: #{clip_text_forward.1} parent=1 // pred_fallthru
      _
    // Predicated region
    $region42: #{clip_text_forward.1} parent=1 // pred_check
      _
    $region43: #{clip_text_forward.1} parent=1 // pred_check_branch
      %48 = sbr.rel (0) target = $region45
    $region44: #{clip_text_forward.1} parent=1 // pred_region
      _
    $region45: #{clip_text_forward.1} parent=1 // pred_fallthru
      _
    // Predicated region
    $region46: #{clip_text_forward.1} parent=1 // pred_check
      _
    $region47: #{clip_text_forward.1} parent=1 // pred_check_branch
      %50 = sbr.rel (0) target = $region49
    $region48: #{clip_text_forward.1} parent=1 // pred_region
      _
    $region49: #{clip_text_forward.1} parent=1 // pred_fallthru
      _
    // Predicated region
    $region50: #{clip_text_forward.1} parent=1 // pred_check
      _
    $region51: #{clip_text_forward.1} parent=1 // pred_check_branch
      %52 = sbr.rel (0) target = $region53
    $region52: #{clip_text_forward.1} parent=1 // pred_region
      %53 = dma.done [#allocation5], 16
    $region53: #{clip_text_forward.1} parent=1 // pred_fallthru
      _
    %54 = sfence
    %v55 = vlaneseq
    %v56 = vshrl.u32 %v55, 7
    %v57 = vlaneseq
    %v58 = vand.u32 %v57, 127
    %vm59 = vcmp.le.s32.totalorder %v58, %v56
    %v60 = vsel %vm59, 0.0, -1e+30
    %v61 = vld [vmem:[%s2] sm:$0xff]
    %v62 = vld [vmem:[%s10] sm:$0x1]
    %v63 = vld [vmem:[%s10 + $0x1] sm:$0x1]
    %v64 = vld [vmem:[%s11] sm:$0xff]
    %v65 = vld [vmem:[%s11 + $0x8] sm:$0xff]
    %v66 = vld [vmem:[%s11 + $0x10] sm:$0xff]
    %v67 = vld [vmem:[%s11 + $0x18] sm:$0xff]
    %v68 = vld [vmem:[%s1] sm:$0xff]
    %v69 = vadd.f32 %v68, %v61
    %v70 = vld [vmem:[%s3] sm:$0x3f]
    %vm71 = vcmask 261120
    %v72 = vsel %vm71, %v69, 0.0
    %73 = vadd.xlane.f32.xlu0 %v72
    %v74 = vpop.xlane.xlu0 %73
    %v75 = vrcp.pop 32.0
    %v76 = vmul.f32 %v74, %v75
    %v77 = vsub.f32 %v69, %v76
    %v78 = vmul.f32 %v77, %v77
    %v79 = vsel %vm71, %v78, 0.0
    %80 = vadd.xlane.f32.xlu0 %v79
    %v81 = vpop.xlane.xlu0 %80
    %v82 = vmul.f32 %v81, %v75
    %v83 = vadd.f32 %v82, 1e-05
    %v84 = vrsqrt.pop %v83
    %v85 = vmul.f32 %v77, %v84
    %v86 = vlaneseq
    %v87 = vshrl.u32 %v86, 7
    %v88 = vsub.s32 0, %v87
    %v89 = vrot.slane %v70, %v88
    %v90 = vmul.f32 %v85, %v89
    %v91 = vlaneseq
    %v92 = vshrl.u32 %v91, 7
    %v93 = vsub.s32 1, %v92
    %v94 = vrot.slane %v70, %v93
    %v95 = vadd.f32 %v90, %v94
    %v96 = vld [vmem:[%s6] sm:$0xff]
    %v97 = vld [vmem:[%s6 + $0x8] sm:$0xff]
    %v98 = vld [vmem:[%s6 + $0x10] sm:$0xff]
    %v99 = vld [vmem:[%s6 + $0x18] sm:$0xff]
    %v101 = vsel %vm71, %v95, 0
    %103 = vmatprep.subr.mxu0 0.0
    %104 = vmatpush1.msra.mxu0 %v96
    %105 = vmatprep.subr.mxu0 0.0
    %106 = vmatpush1.msra.mxu0 %v97
    %107 = vmatprep.subr.mxu0 0.0
    %108 = vmatpush1.msra.mxu0 %v98
    %109 = vmatprep.subr.mxu0 0.0
    %110 = vmatpush1.msra.mxu0 %v99
    %111 = vmatprep.subr.mxu0 0.0
    %112 = vmatpush1.msra.mxu0 0.0
    %113 = vmatprep.subr.mxu0 0.0
    %114 = vmatpush1.msra.mxu0 0.0
    %115 = vmatprep.subr.mxu0 0.0
    %116 = vmatpush1.msra.mxu0 0.0
    %117 = vmatprep.subr.mxu0 0.0
    %118 = vmatpush1.msra.mxu0 0.0
    %119 = vmatprep.subr.mxu0 0.0
    %120 = vmatpush1.msra.mxu0 0.0
    %121 = vmatprep.subr.mxu0 0.0
    %122 = vmatpush1.msra.mxu0 0.0
    %123 = vmatprep.subr.mxu0 0.0
    %124 = vmatpush1.msra.mxu0 0.0
    %125 = vmatprep.subr.mxu0 0.0
    %126 = vmatpush1.msra.mxu0 0.0
    %127 = vmatprep.subr.mxu0 0.0
    %128 = vmatpush1.msra.mxu0 0.0
    %129 = vmatprep.subr.mxu0 0.0
    %130 = vmatpush1.msra.mxu0 0.0
    %131 = vmatprep.subr.mxu0 0.0
    %132 = vmatpush1.msra.mxu0 0.0
    %133 = vmatprep.subr.mxu0 0.0
    %134 = vmatpush1.msra.mxu0 0.0
    %135 = vmatprep.subr.mxu0 0.0
    %136 = vmatpush1.msra.mxu0 0.0
    %137 = vmatprep.subr.mxu0 0.0
    %138 = vmatpush1.msra.mxu0 0.0
    %139 = vmatprep.subr.mxu0 0.0
    %140 = vmatpush1.msra.mxu0 0.0
    %141 = vmatprep.subr.mxu0 0.0
    %142 = vmatpush1.msra.mxu0 0.0
    %143 = vmatprep.subr.mxu0 0.0
    %144 = vmatpush1.msra.mxu0 0.0
    %145 = vmatprep.subr.mxu0 0.0
    %146 = vmatpush1.msra.mxu0 0.0
    %147 = vmatprep.subr.mxu0 0.0
    %148 = vmatpush1.msra.mxu0 0.0
    %149 = vmatprep.subr.mxu0 0.0
    %150 = vmatpush1.msra.mxu0 0.0
    %151 = vmatprep.subr.mxu0 0.0
    %152 = vmatpush1.msra.mxu0 0.0
    %153 = vmatprep.subr.mxu0 0.0
    %154 = vmatpush1.msra.mxu0 0.0
    %155 = vmatprep.subr.mxu0 0.0
    %156 = vmatpush1.msra.mxu0 0.0
    %157 = vmatprep.subr.mxu0 0.0
    %158 = vmatpush1.msra.mxu0 0.0
    %159 = vmatprep.subr.mxu0 0.0
    %160 = vmatpush1.msra.mxu0 0.0
    %161 = vmatprep.subr.mxu0 0.0
    %162 = vmatpush1.msra.mxu0 0.0
    %163 = vmatprep.subr.mxu0 0.0
    %164 = vmatpush1.msra.mxu0 0.0
    %165 = vmatprep.subr.mxu0 0.0
    %166 = vmatpush1.msra.mxu0 0.0
    %167 = vmatprep.mubr.f32.mxu0 0.0
    %168 = vmatmul.mubr.f32.gmra.mrb[0].mxu0 %v101
    %v169 = vpop.f32.mrb[0].mxu0
    %v170 = vadd.f32 0.0, %v169
    %v171 = vpop.f32.mrb[0].mxu0
    %172 = vdwg.mxu0
    %s173 = scalar_lea.vmem %s6, 32
    %v174 = vld [vmem:[%s173] sm:$0xff]
    %v175 = vld [vmem:[%s173 + $0x8] sm:$0xff]
    %v176 = vld [vmem:[%s173 + $0x10] sm:$0xff]
    %v177 = vld [vmem:[%s173 + $0x18] sm:$0xff]
    %178 = vmatprep.subr.mxu0 0.0
    %179 = vmatpush1.msra.mxu0 %v174
    %180 = vmatprep.subr.mxu0 0.0
    %181 = vmatpush1.msra.mxu0 %v175
    %182 = vmatprep.subr.mxu0 0.0
    %183 = vmatpush1.msra.mxu0 %v176
    %184 = vmatprep.subr.mxu0 0.0
    %185 = vmatpush1.msra.mxu0 %v177
    %186 = vmatprep.subr.mxu0 0.0
    %187 = vmatpush1.msra.mxu0 0.0
    %188 = vmatprep.subr.mxu0 0.0
    %189 = vmatpush1.msra.mxu0 0.0
    %190 = vmatprep.subr.mxu0 0.0
    %191 = vmatpush1.msra.mxu0 0.0
    %192 = vmatprep.subr.mxu0 0.0
    %193 = vmatpush1.msra.mxu0 0.0
    %194 = vmatprep.subr.mxu0 0.0
    %195 = vmatpush1.msra.mxu0 0.0
    %196 = vmatprep.subr.mxu0 0.0
    %197 = vmatpush1.msra.mxu0 0.0
    %198 = vmatprep.subr.mxu0 0.0
    %199 = vmatpush1.msra.mxu0 0.0
    %200 = vmatprep.subr.mxu0 0.0
    %201 = vmatpush1.msra.mxu0 0.0
    %202 = vmatprep.subr.mxu0 0.0
    %203 = vmatpush1.msra.mxu0 0.0
    %204 = vmatprep.subr.mxu0 0.0
    %205 = vmatpush1.msra.mxu0 0.0
    %206 = vmatprep.subr.mxu0 0.0
    %207 = vmatpush1.msra.mxu0 0.0
    %208 = vmatprep.subr.mxu0 0.0
    %209 = vmatpush1.msra.mxu0 0.0
    %210 = vmatprep.subr.mxu0 0.0
    %211 = vmatpush1.msra.mxu0 0.0
    %212 = vmatprep.subr.mxu0 0.0
    %213 = vmatpush1.msra.mxu0 0.0
    %214 = vmatprep.subr.mxu0 0.0
    %215 = vmatpush1.msra.mxu0 0.0
    %216 = vmatprep.subr.mxu0 0.0
    %217 = vmatpush1.msra.mxu0 0.0
    %218 = vmatprep.subr.mxu0 0.0
    %219 = vmatpush1.msra.mxu0 0.0
    %220 = vmatprep.subr.mxu0 0.0
    %221 = vmatpush1.msra.mxu0 0.0
    %222 = vmatprep.subr.mxu0 0.0
    %223 = vmatpush1.msra.mxu0 0.0
    %224 = vmatprep.subr.mxu0 0.0
    %225 = vmatpush1.msra.mxu0 0.0
    %226 = vmatprep.subr.mxu0 0.0
    %227 = vmatpush1.msra.mxu0 0.0
    %228 = vmatprep.subr.mxu0 0.0
    %229 = vmatpush1.msra.mxu0 0.0
    %230 = vmatprep.subr.mxu0 0.0
    %231 = vmatpush1.msra.mxu0 0.0
    %232 = vmatprep.subr.mxu0 0.0
    %233 = vmatpush1.msra.mxu0 0.0
    %234 = vmatprep.subr.mxu0 0.0
    %235 = vmatpush1.msra.mxu0 0.0
    %236 = vmatprep.subr.mxu0 0.0
    %237 = vmatpush1.msra.mxu0 0.0
    %238 = vmatprep.subr.mxu0 0.0
    %239 = vmatpush1.msra.mxu0 0.0
    %240 = vmatprep.subr.mxu0 0.0
    %241 = vmatpush1.msra.mxu0 0.0
    %242 = vmatprep.mubr.f32.mxu0 0.0
    %243 = vmatmul.mubr.f32.gmra.mrb[0].mxu0 %v101
    %v244 = vpop.f32.mrb[0].mxu0
    %v245 = vadd.f32 0.0, %v244
    %v246 = vpop.f32.mrb[0].mxu0
    %247 = vdwg.mxu0
    %s248 = scalar_lea.vmem %s6, 64
    %v249 = vld [vmem:[%s248] sm:$0xff]
    %v250 = vld [vmem:[%s248 + $0x8] sm:$0xff]
    %v251 = vld [vmem:[%s248 + $0x10] sm:$0xff]
    %v252 = vld [vmem:[%s248 + $0x18] sm:$0xff]
    %253 = vmatprep.subr.mxu0 0.0
    %254 = vmatpush1.msra.mxu0 %v249
    %255 = vmatprep.subr.mxu0 0.0
    %256 = vmatpush1.msra.mxu0 %v250
    %257 = vmatprep.subr.mxu0 0.0
    %258 = vmatpush1.msra.mxu0 %v251
    %259 = vmatprep.subr.mxu0 0.0
    %260 = vmatpush1.msra.mxu0 %v252
    %261 = vmatprep.subr.mxu0 0.0
    %262 = vmatpush1.msra.mxu0 0.0
    %263 = vmatprep.subr.mxu0 0.0
    %264 = vmatpush1.msra.mxu0 0.0
    %265 = vmatprep.subr.mxu0 0.0
    %266 = vmatpush1.msra.mxu0 0.0
    %267 = vmatprep.subr.mxu0 0.0
    %268 = vmatpush1.msra.mxu0 0.0
    %269 = vmatprep.subr.mxu0 0.0
    %270 = vmatpush1.msra.mxu0 0.0
    %271 = vmatprep.subr.mxu0 0.0
    %272 = vmatpush1.msra.mxu0 0.0
    %273 = vmatprep.subr.mxu0 0.0
    %274 = vmatpush1.msra.mxu0 0.0
    %275 = vmatprep.subr.mxu0 0.0
    %276 = vmatpush1.msra.mxu0 0.0
    %277 = vmatprep.subr.mxu0 0.0
    %278 = vmatpush1.msra.mxu0 0.0
    %279 = vmatprep.subr.mxu0 0.0
    %280 = vmatpush1.msra.mxu0 0.0
    %281 = vmatprep.subr.mxu0 0.0
    %282 = vmatpush1.msra.mxu0 0.0
    %283 = vmatprep.subr.mxu0 0.0
    %284 = vmatpush1.msra.mxu0 0.0
    %285 = vmatprep.subr.mxu0 0.0
    %286 = vmatpush1.msra.mxu0 0.0
    %287 = vmatprep.subr.mxu0 0.0
    %288 = vmatpush1.msra.mxu0 0.0
    %289 = vmatprep.subr.mxu0 0.0
    %290 = vmatpush1.msra.mxu0 0.0
    %291 = vmatprep.subr.mxu0 0.0
    %292 = vmatpush1.msra.mxu0 0.0
    %293 = vmatprep.subr.mxu0 0.0
    %294 = vmatpush1.msra.mxu0 0.0
    %295 = vmatprep.subr.mxu0 0.0
    %296 = vmatpush1.msra.mxu0 0.0
    %297 = vmatprep.subr.mxu0 0.0
    %298 = vmatpush1.msra.mxu0 0.0
    %299 = vmatprep.subr.mxu0 0.0
    %300 = vmatpush1.msra.mxu0 0.0
    %301 = vmatprep.subr.mxu0 0.0
    %302 = vmatpush1.msra.mxu0 0.0
    %303 = vmatprep.subr.mxu0 0.0
    %304 = vmatpush1.msra.mxu0 0.0
    %305 = vmatprep.subr.mxu0 0.0
    %306 = vmatpush1.msra.mxu0 0.0
    %307 = vmatprep.subr.mxu0 0.0
    %308 = vmatpush1.msra.mxu0 0.0
    %309 = vmatprep.subr.mxu0 0.0
    %310 = vmatpush1.msra.mxu0 0.0
    %311 = vmatprep.subr.mxu0 0.0
    %312 = vmatpush1.msra.mxu0 0.0
    %313 = vmatprep.subr.mxu0 0.0
    %314 = vmatpush1.msra.mxu0 0.0
    %315 = vmatprep.subr.mxu0 0.0
    %316 = vmatpush1.msra.mxu0 0.0
    %317 = vmatprep.mubr.f32.mxu0 0.0
    %318 = vmatmul.mubr.f32.gmra.mrb[0].mxu0 %v101
    %v319 = vpop.f32.mrb[0].mxu0
    %v320 = vadd.f32 0.0, %v319
    %v321 = vpop.f32.mrb[0].mxu0
    %322 = vdwg.mxu0
    %s323 = scalar_lea.vmem %s6, 96
    %v324 = vld [vmem:[%s323] sm:$0xff]
    %v325 = vld [vmem:[%s323 + $0x8] sm:$0xff]
    %v326 = vld [vmem:[%s323 + $0x10] sm:$0xff]
    %v327 = vld [vmem:[%s323 + $0x18] sm:$0xff]
    %328 = vmatprep.subr.mxu0 0.0
    %329 = vmatpush1.msra.mxu0 %v324
    %330 = vmatprep.subr.mxu0 0.0
    %331 = vmatpush1.msra.mxu0 %v325
    %332 = vmatprep.subr.mxu0 0.0
    %333 = vmatpush1.msra.mxu0 %v326
    %334 = vmatprep.subr.mxu0 0.0
    %335 = vmatpush1.msra.mxu0 %v327
    %336 = vmatprep.subr.mxu0 0.0
    %337 = vmatpush1.msra.mxu0 0.0
    %338 = vmatprep.subr.mxu0 0.0
    %339 = vmatpush1.msra.mxu0 0.0
    %340 = vmatprep.subr.mxu0 0.0
    %341 = vmatpush1.msra.mxu0 0.0
    %342 = vmatprep.subr.mxu0 0.0
    %343 = vmatpush1.msra.mxu0 0.0
    %344 = vmatprep.subr.mxu0 0.0
    %345 = vmatpush1.msra.mxu0 0.0
    %346 = vmatprep.subr.mxu0 0.0
    %347 = vmatpush1.msra.mxu0 0.0
    %348 = vmatprep.subr.mxu0 0.0
    %349 = vmatpush1.msra.mxu0 0.0
    %350 = vmatprep.subr.mxu0 0.0
    %351 = vmatpush1.msra.mxu0 0.0
    %352 = vmatprep.subr.mxu0 0.0
    %353 = vmatpush1.msra.mxu0 0.0
    %354 = vmatprep.subr.mxu0 0.0
    %355 = vmatpush1.msra.mxu0 0.0
    %356 = vmatprep.subr.mxu0 0.0
    %357 = vmatpush1.msra.mxu0 0.0
    %358 = vmatprep.subr.mxu0 0.0
    %359 = vmatpush1.msra.mxu0 0.0
    %360 = vmatprep.subr.mxu0 0.0
    %361 = vmatpush1.msra.mxu0 0.0
    %362 = vmatprep.subr.mxu0 0.0
    %363 = vmatpush1.msra.mxu0 0.0
    %364 = vmatprep.subr.mxu0 0.0
    %365 = vmatpush1.msra.mxu0 0.0
    %366 = vmatprep.subr.mxu0 0.0
    %367 = vmatpush1.msra.mxu0 0.0
    %368 = vmatprep.subr.mxu0 0.0
    %369 = vmatpush1.msra.mxu0 0.0
    %370 = vmatprep.subr.mxu0 0.0
    %371 = vmatpush1.msra.mxu0 0.0
    %372 = vmatprep.subr.mxu0 0.0
    %373 = vmatpush1.msra.mxu0 0.0
    %374 = vmatprep.subr.mxu0 0.0
    %375 = vmatpush1.msra.mxu0 0.0
    %376 = vmatprep.subr.mxu0 0.0
    %377 = vmatpush1.msra.mxu0 0.0
    %378 = vmatprep.subr.mxu0 0.0
    %379 = vmatpush1.msra.mxu0 0.0
    %380 = vmatprep.subr.mxu0 0.0
    %381 = vmatpush1.msra.mxu0 0.0
    %382 = vmatprep.subr.mxu0 0.0
    %383 = vmatpush1.msra.mxu0 0.0
    %384 = vmatprep.subr.mxu0 0.0
    %385 = vmatpush1.msra.mxu0 0.0
    %386 = vmatprep.subr.mxu0 0.0
    %387 = vmatpush1.msra.mxu0 0.0
    %388 = vmatprep.subr.mxu0 0.0
    %389 = vmatpush1.msra.mxu0 0.0
    %390 = vmatprep.subr.mxu0 0.0
    %391 = vmatpush1.msra.mxu0 0.0
    %392 = vmatprep.mubr.f32.mxu0 0.0
    %393 = vmatmul.mubr.f32.gmra.mrb[0].mxu0 %v101
    %v394 = vpop.f32.mrb[0].mxu0
    %v395 = vadd.f32 0.0, %v394
    %v396 = vpop.f32.mrb[0].mxu0
    %397 = vdwg.mxu0
    %v398 = vld [vmem:[%s4] sm:$0x1]
    %v399 = vld [vmem:[%s4 + $0x1] sm:$0x1]
    %v400 = vld [vmem:[%s4 + $0x2] sm:$0x1]
    %v401 = vld [vmem:[%s4 + $0x3] sm:$0x1]
    %v406 = vlaneseq
    %v407 = vshrl.u32 %v406, 7
    %v408 = vsub.s32 0, %v407
    %v409 = vrot.slane %v398, %v408
    %v410 = vlaneseq
    %v411 = vshrl.u32 %v410, 7
    %v412 = vsub.s32 0, %v411
    %v413 = vrot.slane %v399, %v412
    %v414 = vlaneseq
    %v415 = vshrl.u32 %v414, 7
    %v416 = vsub.s32 0, %v415
    %v417 = vrot.slane %v400, %v416
    %v418 = vlaneseq
    %v419 = vshrl.u32 %v418, 7
    %v420 = vsub.s32 0, %v419
    %v421 = vrot.slane %v401, %v420
    %v426 = vadd.f32 %v170, %v409
    %v427 = vadd.f32 %v245, %v413
    %v428 = vadd.f32 %v320, %v417
    %v429 = vadd.f32 %v395, %v421
    %s430 = scalar_lea.vmem %s6, 128
    %v431 = vld [vmem:[%s430] sm:$0xff]
    %v432 = vld [vmem:[%s430 + $0x8] sm:$0xff]
    %v433 = vld [vmem:[%s430 + $0x10] sm:$0xff]
    %v434 = vld [vmem:[%s430 + $0x18] sm:$0xff]
    %435 = vmatprep.subr.mxu0 0.0
    %436 = vmatpush1.msra.mxu0 %v431
    %437 = vmatprep.subr.mxu0 0.0
    %438 = vmatpush1.msra.mxu0 %v432
    %439 = vmatprep.subr.mxu0 0.0
    %440 = vmatpush1.msra.mxu0 %v433
    %441 = vmatprep.subr.mxu0 0.0
    %442 = vmatpush1.msra.mxu0 %v434
    %443 = vmatprep.subr.mxu0 0.0
    %444 = vmatpush1.msra.mxu0 0.0
    %445 = vmatprep.subr.mxu0 0.0
    %446 = vmatpush1.msra.mxu0 0.0
    %447 = vmatprep.subr.mxu0 0.0
    %448 = vmatpush1.msra.mxu0 0.0
    %449 = vmatprep.subr.mxu0 0.0
    %450 = vmatpush1.msra.mxu0 0.0
    %451 = vmatprep.subr.mxu0 0.0
    %452 = vmatpush1.msra.mxu0 0.0
    %453 = vmatprep.subr.mxu0 0.0
    %454 = vmatpush1.msra.mxu0 0.0
    %455 = vmatprep.subr.mxu0 0.0
    %456 = vmatpush1.msra.mxu0 0.0
    %457 = vmatprep.subr.mxu0 0.0
    %458 = vmatpush1.msra.mxu0 0.0
    %459 = vmatprep.subr.mxu0 0.0
    %460 = vmatpush1.msra.mxu0 0.0
    %461 = vmatprep.subr.mxu0 0.0
    %462 = vmatpush1.msra.mxu0 0.0
    %463 = vmatprep.subr.mxu0 0.0
    %464 = vmatpush1.msra.mxu0 0.0
    %465 = vmatprep.subr.mxu0 0.0
    %466 = vmatpush1.msra.mxu0 0.0
    %467 = vmatprep.subr.mxu0 0.0
    %468 = vmatpush1.msra.mxu0 0.0
    %469 = vmatprep.subr.mxu0 0.0
    %470 = vmatpush1.msra.mxu0 0.0
    %471 = vmatprep.subr.mxu0 0.0
    %472 = vmatpush1.msra.mxu0 0.0
    %473 = vmatprep.subr.mxu0 0.0
    %474 = vmatpush1.msra.mxu0 0.0
    %475 = vmatprep.subr.mxu0 0.0
    %476 = vmatpush1.msra.mxu0 0.0
    %477 = vmatprep.subr.mxu0 0.0
    %478 = vmatpush1.msra.mxu0 0.0
    %479 = vmatprep.subr.mxu0 0.0
    %480 = vmatpush1.msra.mxu0 0.0
    %481 = vmatprep.subr.mxu0 0.0
    %482 = vmatpush1.msra.mxu0 0.0
    %483 = vmatprep.subr.mxu0 0.0
    %484 = vmatpush1.msra.mxu0 0.0
    %485 = vmatprep.subr.mxu0 0.0
    %486 = vmatpush1.msra.mxu0 0.0
    %487 = vmatprep.subr.mxu0 0.0
    %488 = vmatpush1.msra.mxu0 0.0
    %489 = vmatprep.subr.mxu0 0.0
    %490 = vmatpush1.msra.mxu0 0.0
    %491 = vmatprep.subr.mxu0 0.0
    %492 = vmatpush1.msra.mxu0 0.0
    %493 = vmatprep.subr.mxu0 0.0
    %494 = vmatpush1.msra.mxu0 0.0
    %495 = vmatprep.subr.mxu0 0.0
    %496 = vmatpush1.msra.mxu0 0.0
    %497 = vmatprep.subr.mxu0 0.0
    %498 = vmatpush1.msra.mxu0 0.0
    %499 = vmatprep.mubr.f32.mxu0 0.0
    %500 = vmatmul.mubr.f32.gmra.mrb[0].mxu0 %v101
    %v501 = vpop.f32.mrb[0].mxu0
    %v502 = vadd.f32 0.0, %v501
    %v503 = vpop.f32.mrb[0].mxu0
    %504 = vdwg.mxu0
    %s505 = scalar_lea.vmem %s6, 160
    %v506 = vld [vmem:[%s505] sm:$0xff]
    %v507 = vld [vmem:[%s505 + $0x8] sm:$0xff]
    %v508 = vld [vmem:[%s505 + $0x10] sm:$0xff]
    %v509 = vld [vmem:[%s505 + $0x18] sm:$0xff]
    %510 = vmatprep.subr.mxu0 0.0
    %511 = vmatpush1.msra.mxu0 %v506
    %512 = vmatprep.subr.mxu0 0.0
    %513 = vmatpush1.msra.mxu0 %v507
    %514 = vmatprep.subr.mxu0 0.0
    %515 = vmatpush1.msra.mxu0 %v508
    %516 = vmatprep.subr.mxu0 0.0
    %517 = vmatpush1.msra.mxu0 %v509
    %518 = vmatprep.subr.mxu0 0.0
    %519 = vmatpush1.msra.mxu0 0.0
    %520 = vmatprep.subr.mxu0 0.0
    %521 = vmatpush1.msra.mxu0 0.0
    %522 = vmatprep.subr.mxu0 0.0
    %523 = vmatpush1.msra.mxu0 0.0
    %524 = vmatprep.subr.mxu0 0.0
    %525 = vmatpush1.msra.mxu0 0.0
    %526 = vmatprep.subr.mxu0 0.0
    %527 = vmatpush1.msra.mxu0 0.0
    %528 = vmatprep.subr.mxu0 0.0
    %529 = vmatpush1.msra.mxu0 0.0
    %530 = vmatprep.subr.mxu0 0.0
    %531 = vmatpush1.msra.mxu0 0.0
    %532 = vmatprep.subr.mxu0 0.0
    %533 = vmatpush1.msra.mxu0 0.0
    %534 = vmatprep.subr.mxu0 0.0
    %535 = vmatpush1.msra.mxu0 0.0
    %536 = vmatprep.subr.mxu0 0.0
    %537 = vmatpush1.msra.mxu0 0.0
    %538 = vmatprep.subr.mxu0 0.0
    %539 = vmatpush1.msra.mxu0 0.0
    %540 = vmatprep.subr.mxu0 0.0
    %541 = vmatpush1.msra.mxu0 0.0
    %542 = vmatprep.subr.mxu0 0.0
    %543 = vmatpush1.msra.mxu0 0.0
    %544 = vmatprep.subr.mxu0 0.0
    %545 = vmatpush1.msra.mxu0 0.0
    %546 = vmatprep.subr.mxu0 0.0
    %547 = vmatpush1.msra.mxu0 0.0
    %548 = vmatprep.subr.mxu0 0.0
    %549 = vmatpush1.msra.mxu0 0.0
    %550 = vmatprep.subr.mxu0 0.0
    %551 = vmatpush1.msra.mxu0 0.0
    %552 = vmatprep.subr.mxu0 0.0
    %553 = vmatpush1.msra.mxu0 0.0
    %554 = vmatprep.subr.mxu0 0.0
    %555 = vmatpush1.msra.mxu0 0.0
    %556 = vmatprep.subr.mxu0 0.0
    %557 = vmatpush1.msra.mxu0 0.0
    %558 = vmatprep.subr.mxu0 0.0
    %559 = vmatpush1.msra.mxu0 0.0
    %560 = vmatprep.subr.mxu0 0.0
    %561 = vmatpush1.msra.mxu0 0.0
    %562 = vmatprep.subr.mxu0 0.0
    %563 = vmatpush1.msra.mxu0 0.0
    %564 = vmatprep.subr.mxu0 0.0
    %565 = vmatpush1.msra.mxu0 0.0
    %566 = vmatprep.subr.mxu0 0.0
    %567 = vmatpush1.msra.mxu0 0.0
    %568 = vmatprep.subr.mxu0 0.0
    %569 = vmatpush1.msra.mxu0 0.0
    %570 = vmatprep.subr.mxu0 0.0
    %571 = vmatpush1.msra.mxu0 0.0
    %572 = vmatprep.subr.mxu0 0.0
    %573 = vmatpush1.msra.mxu0 0.0
    %574 = vmatprep.mubr.f32.mxu0 0.0
    %575 = vmatmul.mubr.f32.gmra.mrb[0].mxu0 %v101
    %v576 = vpop.f32.mrb[0].mxu0
    %v577 = vadd.f32 0.0, %v576
    %v578 = vpop.f32.mrb[0].mxu0
    %579 = vdwg.mxu0
    %s580 = scalar_lea.vmem %s6, 192
    %v581 = vld [vmem:[%s580] sm:$0xff]
    %v582 = vld [vmem:[%s580 + $0x8] sm:$0xff]
    %v583 = vld [vmem:[%s580 + $0x10] sm:$0xff]
    %v584 = vld [vmem:[%s580 + $0x18] sm:$0xff]
    %585 = vmatprep.subr.mxu0 0.0
    %586 = vmatpush1.msra.mxu0 %v581
    %587 = vmatprep.subr.mxu0 0.0
    %588 = vmatpush1.msra.mxu0 %v582
    %589 = vmatprep.subr.mxu0 0.0
    %590 = vmatpush1.msra.mxu0 %v583
    %591 = vmatprep.subr.mxu0 0.0
    %592 = vmatpush1.msra.mxu0 %v584
    %593 = vmatprep.subr.mxu0 0.0
    %594 = vmatpush1.msra.mxu0 0.0
    %595 = vmatprep.subr.mxu0 0.0
    %596 = vmatpush1.msra.mxu0 0.0
    %597 = vmatprep.subr.mxu0 0.0
    %598 = vmatpush1.msra.mxu0 0.0
    %599 = vmatprep.subr.mxu0 0.0
    %600 = vmatpush1.msra.mxu0 0.0
    %601 = vmatprep.subr.mxu0 0.0
    %602 = vmatpush1.msra.mxu0 0.0
    %603 = vmatprep.subr.mxu0 0.0
    %604 = vmatpush1.msra.mxu0 0.0
    %605 = vmatprep.subr.mxu0 0.0
    %606 = vmatpush1.msra.mxu0 0.0
    %607 = vmatprep.subr.mxu0 0.0
    %608 = vmatpush1.msra.mxu0 0.0
    %609 = vmatprep.subr.mxu0 0.0
    %610 = vmatpush1.msra.mxu0 0.0
    %611 = vmatprep.subr.mxu0 0.0
    %612 = vmatpush1.msra.mxu0 0.0
    %613 = vmatprep.subr.mxu0 0.0
    %614 = vmatpush1.msra.mxu0 0.0
    %615 = vmatprep.subr.mxu0 0.0
    %616 = vmatpush1.msra.mxu0 0.0
    %617 = vmatprep.subr.mxu0 0.0
    %618 = vmatpush1.msra.mxu0 0.0
    %619 = vmatprep.subr.mxu0 0.0
    %620 = vmatpush1.msra.mxu0 0.0
    %621 = vmatprep.subr.mxu0 0.0
    %622 = vmatpush1.msra.mxu0 0.0
    %623 = vmatprep.subr.mxu0 0.0
    %624 = vmatpush1.msra.mxu0 0.0
    %625 = vmatprep.subr.mxu0 0.0
    %626 = vmatpush1.msra.mxu0 0.0
    %627 = vmatprep.subr.mxu0 0.0
    %628 = vmatpush1.msra.mxu0 0.0
    %629 = vmatprep.subr.mxu0 0.0
    %630 = vmatpush1.msra.mxu0 0.0
    %631 = vmatprep.subr.mxu0 0.0
    %632 = vmatpush1.msra.mxu0 0.0
    %633 = vmatprep.subr.mxu0 0.0
    %634 = vmatpush1.msra.mxu0 0.0
    %635 = vmatprep.subr.mxu0 0.0
    %636 = vmatpush1.msra.mxu0 0.0
    %637 = vmatprep.subr.mxu0 0.0
    %638 = vmatpush1.msra.mxu0 0.0
    %639 = vmatprep.subr.mxu0 0.0
    %640 = vmatpush1.msra.mxu0 0.0
    %641 = vmatprep.subr.mxu0 0.0
    %642 = vmatpush1.msra.mxu0 0.0
    %643 = vmatprep.subr.mxu0 0.0
    %644 = vmatpush1.msra.mxu0 0.0
    %645 = vmatprep.subr.mxu0 0.0
    %646 = vmatpush1.msra.mxu0 0.0
    %647 = vmatprep.subr.mxu0 0.0
    %648 = vmatpush1.msra.mxu0 0.0
    %649 = vmatprep.mubr.f32.mxu0 0.0
    %650 = vmatmul.mubr.f32.gmra.mrb[0].mxu0 %v101
    %v651 = vpop.f32.mrb[0].mxu0
    %v652 = vadd.f32 0.0, %v651
    %v653 = vpop.f32.mrb[0].mxu0
    %654 = vdwg.mxu0
    %s655 = scalar_lea.vmem %s6, 224
    %v656 = vld [vmem:[%s655] sm:$0xff]
    %v657 = vld [vmem:[%s655 + $0x8] sm:$0xff]
    %v658 = vld [vmem:[%s655 + $0x10] sm:$0xff]
    %v659 = vld [vmem:[%s655 + $0x18] sm:$0xff]
    %660 = vmatprep.subr.mxu0 0.0
    %661 = vmatpush1.msra.mxu0 %v656
    %662 = vmatprep.subr.mxu0 0.0
    %663 = vmatpush1.msra.mxu0 %v657
    %664 = vmatprep.subr.mxu0 0.0
    %665 = vmatpush1.msra.mxu0 %v658
    %666 = vmatprep.subr.mxu0 0.0
    %667 = vmatpush1.msra.mxu0 %v659
    %668 = vmatprep.subr.mxu0 0.0
    %669 = vmatpush1.msra.mxu0 0.0
    %670 = vmatprep.subr.mxu0 0.0
    %671 = vmatpush1.msra.mxu0 0.0
    %672 = vmatprep.subr.mxu0 0.0
    %673 = vmatpush1.msra.mxu0 0.0
    %674 = vmatprep.subr.mxu0 0.0
    %675 = vmatpush1.msra.mxu0 0.0
    %676 = vmatprep.subr.mxu0 0.0
    %677 = vmatpush1.msra.mxu0 0.0
    %678 = vmatprep.subr.mxu0 0.0
    %679 = vmatpush1.msra.mxu0 0.0
    %680 = vmatprep.subr.mxu0 0.0
    %681 = vmatpush1.msra.mxu0 0.0
    %682 = vmatprep.subr.mxu0 0.0
    %683 = vmatpush1.msra.mxu0 0.0
    %684 = vmatprep.subr.mxu0 0.0
    %685 = vmatpush1.msra.mxu0 0.0
    %686 = vmatprep.subr.mxu0 0.0
    %687 = vmatpush1.msra.mxu0 0.0
    %688 = vmatprep.subr.mxu0 0.0
    %689 = vmatpush1.msra.mxu0 0.0
    %690 = vmatprep.subr.mxu0 0.0
    %691 = vmatpush1.msra.mxu0 0.0
    %692 = vmatprep.subr.mxu0 0.0
    %693 = vmatpush1.msra.mxu0 0.0
    %694 = vmatprep.subr.mxu0 0.0
    %695 = vmatpush1.msra.mxu0 0.0
    %696 = vmatprep.subr.mxu0 0.0
    %697 = vmatpush1.msra.mxu0 0.0
    %698 = vmatprep.subr.mxu0 0.0
    %699 = vmatpush1.msra.mxu0 0.0
    %700 = vmatprep.subr.mxu0 0.0
    %701 = vmatpush1.msra.mxu0 0.0
    %702 = vmatprep.subr.mxu0 0.0
    %703 = vmatpush1.msra.mxu0 0.0
    %704 = vmatprep.subr.mxu0 0.0
    %705 = vmatpush1.msra.mxu0 0.0
    %706 = vmatprep.subr.mxu0 0.0
    %707 = vmatpush1.msra.mxu0 0.0
    %708 = vmatprep.subr.mxu0 0.0
    %709 = vmatpush1.msra.mxu0 0.0
    %710 = vmatprep.subr.mxu0 0.0
    %711 = vmatpush1.msra.mxu0 0.0
    %712 = vmatprep.subr.mxu0 0.0
    %713 = vmatpush1.msra.mxu0 0.0
    %714 = vmatprep.subr.mxu0 0.0
    %715 = vmatpush1.msra.mxu0 0.0
    %716 = vmatprep.subr.mxu0 0.0
    %717 = vmatpush1.msra.mxu0 0.0
    %718 = vmatprep.subr.mxu0 0.0
    %719 = vmatpush1.msra.mxu0 0.0
    %720 = vmatprep.subr.mxu0 0.0
    %721 = vmatpush1.msra.mxu0 0.0
    %722 = vmatprep.subr.mxu0 0.0
    %723 = vmatpush1.msra.mxu0 0.0
    %724 = vmatprep.mubr.f32.mxu0 0.0
    %725 = vmatmul.mubr.f32.gmra.mrb[0].mxu0 %v101
    %v726 = vpop.f32.mrb[0].mxu0
    %v727 = vadd.f32 0.0, %v726
    %v728 = vpop.f32.mrb[0].mxu0
    %729 = vdwg.mxu0
    %s730 = scalar_lea.vmem %s4, 4
    %v731 = vld [vmem:[%s730] sm:$0x1]
    %v732 = vld [vmem:[%s730 + $0x1] sm:$0x1]
    %v733 = vld [vmem:[%s730 + $0x2] sm:$0x1]
    %v734 = vld [vmem:[%s730 + $0x3] sm:$0x1]
    %v739 = vlaneseq
    %v740 = vshrl.u32 %v739, 7
    %v741 = vsub.s32 0, %v740
    %v742 = vrot.slane %v731, %v741
    %v743 = vlaneseq
    %v744 = vshrl.u32 %v743, 7
    %v745 = vsub.s32 0, %v744
    %v746 = vrot.slane %v732, %v745
    %v747 = vlaneseq
    %v748 = vshrl.u32 %v747, 7
    %v749 = vsub.s32 0, %v748
    %v750 = vrot.slane %v733, %v749
    %v751 = vlaneseq
    %v752 = vshrl.u32 %v751, 7
    %v753 = vsub.s32 0, %v752
    %v754 = vrot.slane %v734, %v753
    %v759 = vadd.f32 %v502, %v742
    %v760 = vadd.f32 %v577, %v746
    %v761 = vadd.f32 %v652, %v750
    %v762 = vadd.f32 %v727, %v754
    %s763 = scalar_lea.vmem %s6, 256
    %v764 = vld [vmem:[%s763] sm:$0xff]
    %v765 = vld [vmem:[%s763 + $0x8] sm:$0xff]
    %v766 = vld [vmem:[%s763 + $0x10] sm:$0xff]
    %v767 = vld [vmem:[%s763 + $0x18] sm:$0xff]
    %768 = vmatprep.subr.mxu0 0.0
    %769 = vmatpush1.msra.mxu0 %v764
    %770 = vmatprep.subr.mxu0 0.0
    %771 = vmatpush1.msra.mxu0 %v765
    %772 = vmatprep.subr.mxu0 0.0
    %773 = vmatpush1.msra.mxu0 %v766
    %774 = vmatprep.subr.mxu0 0.0
    %775 = vmatpush1.msra.mxu0 %v767
    %776 = vmatprep.subr.mxu0 0.0
    %777 = vmatpush1.msra.mxu0 0.0
    %778 = vmatprep.subr.mxu0 0.0
    %779 = vmatpush1.msra.mxu0 0.0
    %780 = vmatprep.subr.mxu0 0.0
    %781 = vmatpush1.msra.mxu0 0.0
    %782 = vmatprep.subr.mxu0 0.0
    %783 = vmatpush1.msra.mxu0 0.0
    %784 = vmatprep.subr.mxu0 0.0
    %785 = vmatpush1.msra.mxu0 0.0
    %786 = vmatprep.subr.mxu0 0.0
    %787 = vmatpush1.msra.mxu0 0.0
    %788 = vmatprep.subr.mxu0 0.0
    %789 = vmatpush1.msra.mxu0 0.0
    %790 = vmatprep.subr.mxu0 0.0
    %791 = vmatpush1.msra.mxu0 0.0
    %792 = vmatprep.subr.mxu0 0.0
    %793 = vmatpush1.msra.mxu0 0.0
    %794 = vmatprep.subr.mxu0 0.0
    %795 = vmatpush1.msra.mxu0 0.0
    %796 = vmatprep.subr.mxu0 0.0
    %797 = vmatpush1.msra.mxu0 0.0
    %798 = vmatprep.subr.mxu0 0.0
    %799 = vmatpush1.msra.mxu0 0.0
    %800 = vmatprep.subr.mxu0 0.0
    %801 = vmatpush1.msra.mxu0 0.0
    %802 = vmatprep.subr.mxu0 0.0
    %803 = vmatpush1.msra.mxu0 0.0
    %804 = vmatprep.subr.mxu0 0.0
    %805 = vmatpush1.msra.mxu0 0.0
    %806 = vmatprep.subr.mxu0 0.0
    %807 = vmatpush1.msra.mxu0 0.0
    %808 = vmatprep.subr.mxu0 0.0
    %809 = vmatpush1.msra.mxu0 0.0
    %810 = vmatprep.subr.mxu0 0.0
    %811 = vmatpush1.msra.mxu0 0.0
    %812 = vmatprep.subr.mxu0 0.0
    %813 = vmatpush1.msra.mxu0 0.0
    %814 = vmatprep.subr.mxu0 0.0
    %815 = vmatpush1.msra.mxu0 0.0
    %816 = vmatprep.subr.mxu0 0.0
    %817 = vmatpush1.msra.mxu0 0.0
    %818 = vmatprep.subr.mxu0 0.0
    %819 = vmatpush1.msra.mxu0 0.0
    %820 = vmatprep.subr.mxu0 0.0
    %821 = vmatpush1.msra.mxu0 0.0
    %822 = vmatprep.subr.mxu0 0.0
    %823 = vmatpush1.msra.mxu0 0.0
    %824 = vmatprep.subr.mxu0 0.0
    %825 = vmatpush1.msra.mxu0 0.0
    %826 = vmatprep.subr.mxu0 0.0
    %827 = vmatpush1.msra.mxu0 0.0
    %828 = vmatprep.subr.mxu0 0.0
    %829 = vmatpush1.msra.mxu0 0.0
    %830 = vmatprep.subr.mxu0 0.0
    %831 = vmatpush1.msra.mxu0 0.0
    %832 = vmatprep.mubr.f32.mxu0 0.0
    %833 = vmatmul.mubr.f32.gmra.mrb[0].mxu0 %v101
    %v834 = vpop.f32.mrb[0].mxu0
    %v835 = vadd.f32 0.0, %v834
    %v836 = vpop.f32.mrb[0].mxu0
    %837 = vdwg.mxu0
    %s838 = scalar_lea.vmem %s6, 288
    %v839 = vld [vmem:[%s838] sm:$0xff]
    %v840 = vld [vmem:[%s838 + $0x8] sm:$0xff]
    %v841 = vld [vmem:[%s838 + $0x10] sm:$0xff]
    %v842 = vld [vmem:[%s838 + $0x18] sm:$0xff]
    %843 = vmatprep.subr.mxu0 0.0
    %844 = vmatpush1.msra.mxu0 %v839
    %845 = vmatprep.subr.mxu0 0.0
    %846 = vmatpush1.msra.mxu0 %v840
    %847 = vmatprep.subr.mxu0 0.0
    %848 = vmatpush1.msra.mxu0 %v841
    %849 = vmatprep.subr.mxu0 0.0
    %850 = vmatpush1.msra.mxu0 %v842
    %851 = vmatprep.subr.mxu0 0.0
    %852 = vmatpush1.msra.mxu0 0.0
    %853 = vmatprep.subr.mxu0 0.0
    %854 = vmatpush1.msra.mxu0 0.0
    %855 = vmatprep.subr.mxu0 0.0
    %856 = vmatpush1.msra.mxu0 0.0
    %857 = vmatprep.subr.mxu0 0.0
    %858 = vmatpush1.msra.mxu0 0.0
    %859 = vmatprep.subr.mxu0 0.0
    %860 = vmatpush1.msra.mxu0 0.0
    %861 = vmatprep.subr.mxu0 0.0
    %862 = vmatpush1.msra.mxu0 0.0
    %863 = vmatprep.subr.mxu0 0.0
    %864 = vmatpush1.msra.mxu0 0.0
    %865 = vmatprep.subr.mxu0 0.0
    %866 = vmatpush1.msra.mxu0 0.0
    %867 = vmatprep.subr.mxu0 0.0
    %868 = vmatpush1.msra.mxu0 0.0
    %869 = vmatprep.subr.mxu0 0.0
    %870 = vmatpush1.msra.mxu0 0.0
    %871 = vmatprep.subr.mxu0 0.0
    %872 = vmatpush1.msra.mxu0 0.0
    %873 = vmatprep.subr.mxu0 0.0
    %874 = vmatpush1.msra.mxu0 0.0
    %875 = vmatprep.subr.mxu0 0.0
    %876 = vmatpush1.msra.mxu0 0.0
    %877 = vmatprep.subr.mxu0 0.0
    %878 = vmatpush1.msra.mxu0 0.0
    %879 = vmatprep.subr.mxu0 0.0
    %880 = vmatpush1.msra.mxu0 0.0
    %881 = vmatprep.subr.mxu0 0.0
    %882 = vmatpush1.msra.mxu0 0.0
    %883 = vmatprep.subr.mxu0 0.0
    %884 = vmatpush1.msra.mxu0 0.0
    %885 = vmatprep.subr.mxu0 0.0
    %886 = vmatpush1.msra.mxu0 0.0
    %887 = vmatprep.subr.mxu0 0.0
    %888 = vmatpush1.msra.mxu0 0.0
    %889 = vmatprep.subr.mxu0 0.0
    %890 = vmatpush1.msra.mxu0 0.0
    %891 = vmatprep.subr.mxu0 0.0
    %892 = vmatpush1.msra.mxu0 0.0
    %893 = vmatprep.subr.mxu0 0.0
    %894 = vmatpush1.msra.mxu0 0.0
    %895 = vmatprep.subr.mxu0 0.0
    %896 = vmatpush1.msra.mxu0 0.0
    %897 = vmatprep.subr.mxu0 0.0
    %898 = vmatpush1.msra.mxu0 0.0
    %899 = vmatprep.subr.mxu0 0.0
    %900 = vmatpush1.msra.mxu0 0.0
    %901 = vmatprep.subr.mxu0 0.0
    %902 = vmatpush1.msra.mxu0 0.0
    %903 = vmatprep.subr.mxu0 0.0
    %904 = vmatpush1.msra.mxu0 0.0
    %905 = vmatprep.subr.mxu0 0.0
    %906 = vmatpush1.msra.mxu0 0.0
    %907 = vmatprep.mubr.f32.mxu0 0.0
    %908 = vmatmul.mubr.f32.gmra.mrb[0].mxu0 %v101
    %v909 = vpop.f32.mrb[0].mxu0
    %v910 = vadd.f32 0.0, %v909
    %v911 = vpop.f32.mrb[0].mxu0
    %912 = vdwg.mxu0
    %s913 = scalar_lea.vmem %s6, 320
    %v914 = vld [vmem:[%s913] sm:$0xff]
    %v915 = vld [vmem:[%s913 + $0x8] sm:$0xff]
    %v916 = vld [vmem:[%s913 + $0x10] sm:$0xff]
    %v917 = vld [vmem:[%s913 + $0x18] sm:$0xff]
    %918 = vmatprep.subr.mxu0 0.0
    %919 = vmatpush1.msra.mxu0 %v914
    %920 = vmatprep.subr.mxu0 0.0
    %921 = vmatpush1.msra.mxu0 %v915
    %922 = vmatprep.subr.mxu0 0.0
    %923 = vmatpush1.msra.mxu0 %v916
    %924 = vmatprep.subr.mxu0 0.0
    %925 = vmatpush1.msra.mxu0 %v917
    %926 = vmatprep.subr.mxu0 0.0
    %927 = vmatpush1.msra.mxu0 0.0
    %928 = vmatprep.subr.mxu0 0.0
    %929 = vmatpush1.msra.mxu0 0.0
    %930 = vmatprep.subr.mxu0 0.0
    %931 = vmatpush1.msra.mxu0 0.0
    %932 = vmatprep.subr.mxu0 0.0
    %933 = vmatpush1.msra.mxu0 0.0
    %934 = vmatprep.subr.mxu0 0.0
    %935 = vmatpush1.msra.mxu0 0.0
    %936 = vmatprep.subr.mxu0 0.0
    %937 = vmatpush1.msra.mxu0 0.0
    %938 = vmatprep.subr.mxu0 0.0
    %939 = vmatpush1.msra.mxu0 0.0
    %940 = vmatprep.subr.mxu0 0.0
    %941 = vmatpush1.msra.mxu0 0.0
    %942 = vmatprep.subr.mxu0 0.0
    %943 = vmatpush1.msra.mxu0 0.0
    %944 = vmatprep.subr.mxu0 0.0
    %945 = vmatpush1.msra.mxu0 0.0
    %946 = vmatprep.subr.mxu0 0.0
    %947 = vmatpush1.msra.mxu0 0.0
    %948 = vmatprep.subr.mxu0 0.0
    %949 = vmatpush1.msra.mxu0 0.0
    %950 = vmatprep.subr.mxu0 0.0
    %951 = vmatpush1.msra.mxu0 0.0
    %952 = vmatprep.subr.mxu0 0.0
    %953 = vmatpush1.msra.mxu0 0.0
    %954 = vmatprep.subr.mxu0 0.0
    %955 = vmatpush1.msra.mxu0 0.0
    %956 = vmatprep.subr.mxu0 0.0
    %957 = vmatpush1.msra.mxu0 0.0
    %958 = vmatprep.subr.mxu0 0.0
    %959 = vmatpush1.msra.mxu0 0.0
    %960 = vmatprep.subr.mxu0 0.0
    %961 = vmatpush1.msra.mxu0 0.0
    %962 = vmatprep.subr.mxu0 0.0
    %963 = vmatpush1.msra.mxu0 0.0
    %964 = vmatprep.subr.mxu0 0.0
    %965 = vmatpush1.msra.mxu0 0.0
    %966 = vmatprep.subr.mxu0 0.0
    %967 = vmatpush1.msra.mxu0 0.0
    %968 = vmatprep.subr.mxu0 0.0
    %969 = vmatpush1.msra.mxu0 0.0
    %970 = vmatprep.subr.mxu0 0.0
    %971 = vmatpush1.msra.mxu0 0.0
    %972 = vmatprep.subr.mxu0 0.0
    %973 = vmatpush1.msra.mxu0 0.0
    %974 = vmatprep.subr.mxu0 0.0
    %975 = vmatpush1.msra.mxu0 0.0
    %976 = vmatprep.subr.mxu0 0.0
    %977 = vmatpush1.msra.mxu0 0.0
    %978 = vmatprep.subr.mxu0 0.0
    %979 = vmatpush1.msra.mxu0 0.0
    %980 = vmatprep.subr.mxu0 0.0
    %981 = vmatpush1.msra.mxu0 0.0
    %982 = vmatprep.mubr.f32.mxu0 0.0
    %983 = vmatmul.mubr.f32.gmra.mrb[0].mxu0 %v101
    %v984 = vpop.f32.mrb[0].mxu0
    %v985 = vadd.f32 0.0, %v984
    %v986 = vpop.f32.mrb[0].mxu0
    %987 = vdwg.mxu0
    %s988 = scalar_lea.vmem %s6, 352
    %v989 = vld [vmem:[%s988] sm:$0xff]
    %v990 = vld [vmem:[%s988 + $0x8] sm:$0xff]
    %v991 = vld [vmem:[%s988 + $0x10] sm:$0xff]
    %v992 = vld [vmem:[%s988 + $0x18] sm:$0xff]
    %993 = vmatprep.subr.mxu0 0.0
    %994 = vmatpush1.msra.mxu0 %v989
    %995 = vmatprep.subr.mxu0 0.0
    %996 = vmatpush1.msra.mxu0 %v990
    %997 = vmatprep.subr.mxu0 0.0
    %998 = vmatpush1.msra.mxu0 %v991
    %999 = vmatprep.subr.mxu0 0.0
    %1000 = vmatpush1.msra.mxu0 %v992
    %1001 = vmatprep.subr.mxu0 0.0
    %1002 = vmatpush1.msra.mxu0 0.0
    %1003 = vmatprep.subr.mxu0 0.0
    %1004 = vmatpush1.msra.mxu0 0.0
    %1005 = vmatprep.subr.mxu0 0.0
    %1006 = vmatpush1.msra.mxu0 0.0
    %1007 = vmatprep.subr.mxu0 0.0
    %1008 = vmatpush1.msra.mxu0 0.0
    %1009 = vmatprep.subr.mxu0 0.0
    %1010 = vmatpush1.msra.mxu0 0.0
    %1011 = vmatprep.subr.mxu0 0.0
    %1012 = vmatpush1.msra.mxu0 0.0
    %1013 = vmatprep.subr.mxu0 0.0
    %1014 = vmatpush1.msra.mxu0 0.0
    %1015 = vmatprep.subr.mxu0 0.0
    %1016 = vmatpush1.msra.mxu0 0.0
    %1017 = vmatprep.subr.mxu0 0.0
    %1018 = vmatpush1.msra.mxu0 0.0
    %1019 = vmatprep.subr.mxu0 0.0
    %1020 = vmatpush1.msra.mxu0 0.0
    %1021 = vmatprep.subr.mxu0 0.0
    %1022 = vmatpush1.msra.mxu0 0.0
    %1023 = vmatprep.subr.mxu0 0.0
    %1024 = vmatpush1.msra.mxu0 0.0
    %1025 = vmatprep.subr.mxu0 0.0
    %1026 = vmatpush1.msra.mxu0 0.0
    %1027 = vmatprep.subr.mxu0 0.0
    %1028 = vmatpush1.msra.mxu0 0.0
    %1029 = vmatprep.subr.mxu0 0.0
    %1030 = vmatpush1.msra.mxu0 0.0
    %1031 = vmatprep.subr.mxu0 0.0
    %1032 = vmatpush1.msra.mxu0 0.0
    %1033 = vmatprep.subr.mxu0 0.0
    %1034 = vmatpush1.msra.mxu0 0.0
    %1035 = vmatprep.subr.mxu0 0.0
    %1036 = vmatpush1.msra.mxu0 0.0
    %1037 = vmatprep.subr.mxu0 0.0
    %1038 = vmatpush1.msra.mxu0 0.0
    %1039 = vmatprep.subr.mxu0 0.0
    %1040 = vmatpush1.msra.mxu0 0.0
    %1041 = vmatprep.subr.mxu0 0.0
    %1042 = vmatpush1.msra.mxu0 0.0
    %1043 = vmatprep.subr.mxu0 0.0
    %1044 = vmatpush1.msra.mxu0 0.0
    %1045 = vmatprep.subr.mxu0 0.0
    %1046 = vmatpush1.msra.mxu0 0.0
    %1047 = vmatprep.subr.mxu0 0.0
    %1048 = vmatpush1.msra.mxu0 0.0
    %1049 = vmatprep.subr.mxu0 0.0
    %1050 = vmatpush1.msra.mxu0 0.0
    %1051 = vmatprep.subr.mxu0 0.0
    %1052 = vmatpush1.msra.mxu0 0.0
    %1053 = vmatprep.subr.mxu0 0.0
    %1054 = vmatpush1.msra.mxu0 0.0
    %1055 = vmatprep.subr.mxu0 0.0
    %1056 = vmatpush1.msra.mxu0 0.0
    %1057 = vmatprep.mubr.f32.mxu0 0.0
    %1058 = vmatmul.mubr.f32.gmra.mrb[0].mxu0 %v101
    %v1059 = vpop.f32.mrb[0].mxu0
    %v1060 = vadd.f32 0.0, %v1059
    %v1061 = vpop.f32.mrb[0].mxu0
    %1062 = vdwg.mxu0
    %s1063 = scalar_lea.vmem %s4, 8
    %v1064 = vld [vmem:[%s1063] sm:$0x1]
    %v1065 = vld [vmem:[%s1063 + $0x1] sm:$0x1]
    %v1066 = vld [vmem:[%s1063 + $0x2] sm:$0x1]
    %v1067 = vld [vmem:[%s1063 + $0x3] sm:$0x1]
    %v1072 = vlaneseq
    %v1073 = vshrl.u32 %v1072, 7
    %v1074 = vsub.s32 0, %v1073
    %v1075 = vrot.slane %v1064, %v1074
    %v1076 = vlaneseq
    %v1077 = vshrl.u32 %v1076, 7
    %v1078 = vsub.s32 0, %v1077
    %v1079 = vrot.slane %v1065, %v1078
    %v1080 = vlaneseq
    %v1081 = vshrl.u32 %v1080, 7
    %v1082 = vsub.s32 0, %v1081
    %v1083 = vrot.slane %v1066, %v1082
    %v1084 = vlaneseq
    %v1085 = vshrl.u32 %v1084, 7
    %v1086 = vsub.s32 0, %v1085
    %v1087 = vrot.slane %v1067, %v1086
    %v1092 = vadd.f32 %v835, %v1075
    %v1093 = vadd.f32 %v910, %v1079
    %v1094 = vadd.f32 %v985, %v1083
    %v1095 = vadd.f32 %v1060, %v1087
    %vm1096 = vcmask 64512
    %v1098 = vsel %vm1096, %v426, 0
    %v1101 = vsel %vm1096, %v759, 0
    %1103 = vmatprep.subr.mxu0 0.0
    %1104 = vmatpush1.xpose.msra.mxu0 %v1101
    %1105 = vmatprep.subr.mxu0 0.0
    %1106 = vmatpush1.xpose.msra.mxu0 0.0
    %1107 = vmatprep.subr.mxu0 0.0
    %1108 = vmatpush1.xpose.msra.mxu0 0.0
    %1109 = vmatprep.subr.mxu0 0.0
    %1110 = vmatpush1.xpose.msra.mxu0 0.0
    %1111 = vmatprep.subr.mxu0 0.0
    %1112 = vmatpush1.xpose.msra.mxu0 0.0
    %1113 = vmatprep.subr.mxu0 0.0
    %1114 = vmatpush1.xpose.msra.mxu0 0.0
    %1115 = vmatprep.subr.mxu0 0.0
    %1116 = vmatpush1.xpose.msra.mxu0 0.0
    %1117 = vmatprep.subr.mxu0 0.0
    %1118 = vmatpush1.xpose.msra.mxu0 0.0
    %1119 = vmatprep.subr.mxu0 0.0
    %1120 = vmatpush1.xpose.msra.mxu0 0.0
    %1121 = vmatprep.subr.mxu0 0.0
    %1122 = vmatpush1.xpose.msra.mxu0 0.0
    %1123 = vmatprep.subr.mxu0 0.0
    %1124 = vmatpush1.xpose.msra.mxu0 0.0
    %1125 = vmatprep.subr.mxu0 0.0
    %1126 = vmatpush1.xpose.msra.mxu0 0.0
    %1127 = vmatprep.subr.mxu0 0.0
    %1128 = vmatpush1.xpose.msra.mxu0 0.0
    %1129 = vmatprep.subr.mxu0 0.0
    %1130 = vmatpush1.xpose.msra.mxu0 0.0
    %1131 = vmatprep.subr.mxu0 0.0
    %1132 = vmatpush1.xpose.msra.mxu0 0.0
    %1133 = vmatprep.subr.mxu0 0.0
    %1134 = vmatpush1.xpose.msra.mxu0 0.0
    %1135 = vmatprep.subr.mxu0 0.0
    %1136 = vmatpush1.xpose.msra.mxu0 0.0
    %1137 = vmatprep.subr.mxu0 0.0
    %1138 = vmatpush1.xpose.msra.mxu0 0.0
    %1139 = vmatprep.subr.mxu0 0.0
    %1140 = vmatpush1.xpose.msra.mxu0 0.0
    %1141 = vmatprep.subr.mxu0 0.0
    %1142 = vmatpush1.xpose.msra.mxu0 0.0
    %1143 = vmatprep.subr.mxu0 0.0
    %1144 = vmatpush1.xpose.msra.mxu0 0.0
    %1145 = vmatprep.subr.mxu0 0.0
    %1146 = vmatpush1.xpose.msra.mxu0 0.0
    %1147 = vmatprep.subr.mxu0 0.0
    %1148 = vmatpush1.xpose.msra.mxu0 0.0
    %1149 = vmatprep.subr.mxu0 0.0
    %1150 = vmatpush1.xpose.msra.mxu0 0.0
    %1151 = vmatprep.subr.mxu0 0.0
    %1152 = vmatpush1.xpose.msra.mxu0 0.0
    %1153 = vmatprep.subr.mxu0 0.0
    %1154 = vmatpush1.xpose.msra.mxu0 0.0
    %1155 = vmatprep.subr.mxu0 0.0
    %1156 = vmatpush1.xpose.msra.mxu0 0.0
    %1157 = vmatprep.subr.mxu0 0.0
    %1158 = vmatpush1.xpose.msra.mxu0 0.0
    %1159 = vmatprep.subr.mxu0 0.0
    %1160 = vmatpush1.xpose.msra.mxu0 0.0
    %1161 = vmatprep.subr.mxu0 0.0
    %1162 = vmatpush1.xpose.msra.mxu0 0.0
    %1163 = vmatprep.subr.mxu0 0.0
    %1164 = vmatpush1.xpose.msra.mxu0 0.0
    %1165 = vmatprep.subr.mxu0 0.0
    %1166 = vmatpush1.xpose.msra.mxu0 0.0
    %1167 = vmatprep.mubr.f32.mxu0 0.0
    %1168 = vmatmul.mubr.f32.gmra.mrb[0].mxu0 %v1098
    %v1169 = vpop.f32.mrb[0].mxu0
    %v1170 = vadd.f32 %v60, %v1169
    %v1171 = vpop.f32.mrb[0].mxu0
    %1172 = vdwg.mxu0
    %v1174 = vsel %vm1096, %v427, 0
    %v1177 = vsel %vm1096, %v760, 0
    %1179 = vmatprep.subr.mxu0 0.0
    %1180 = vmatpush1.xpose.msra.mxu0 %v1177
    %1181 = vmatprep.subr.mxu0 0.0
    %1182 = vmatpush1.xpose.msra.mxu0 0.0
    %1183 = vmatprep.subr.mxu0 0.0
    %1184 = vmatpush1.xpose.msra.mxu0 0.0
    %1185 = vmatprep.subr.mxu0 0.0
    %1186 = vmatpush1.xpose.msra.mxu0 0.0
    %1187 = vmatprep.subr.mxu0 0.0
    %1188 = vmatpush1.xpose.msra.mxu0 0.0
    %1189 = vmatprep.subr.mxu0 0.0
    %1190 = vmatpush1.xpose.msra.mxu0 0.0
    %1191 = vmatprep.subr.mxu0 0.0
    %1192 = vmatpush1.xpose.msra.mxu0 0.0
    %1193 = vmatprep.subr.mxu0 0.0
    %1194 = vmatpush1.xpose.msra.mxu0 0.0
    %1195 = vmatprep.subr.mxu0 0.0
    %1196 = vmatpush1.xpose.msra.mxu0 0.0
    %1197 = vmatprep.subr.mxu0 0.0
    %1198 = vmatpush1.xpose.msra.mxu0 0.0
    %1199 = vmatprep.subr.mxu0 0.0
    %1200 = vmatpush1.xpose.msra.mxu0 0.0
    %1201 = vmatprep.subr.mxu0 0.0
    %1202 = vmatpush1.xpose.msra.mxu0 0.0
    %1203 = vmatprep.subr.mxu0 0.0
    %1204 = vmatpush1.xpose.msra.mxu0 0.0
    %1205 = vmatprep.subr.mxu0 0.0
    %1206 = vmatpush1.xpose.msra.mxu0 0.0
    %1207 = vmatprep.subr.mxu0 0.0
    %1208 = vmatpush1.xpose.msra.mxu0 0.0
    %1209 = vmatprep.subr.mxu0 0.0
    %1210 = vmatpush1.xpose.msra.mxu0 0.0
    %1211 = vmatprep.subr.mxu0 0.0
    %1212 = vmatpush1.xpose.msra.mxu0 0.0
    %1213 = vmatprep.subr.mxu0 0.0
    %1214 = vmatpush1.xpose.msra.mxu0 0.0
    %1215 = vmatprep.subr.mxu0 0.0
    %1216 = vmatpush1.xpose.msra.mxu0 0.0
    %1217 = vmatprep.subr.mxu0 0.0
    %1218 = vmatpush1.xpose.msra.mxu0 0.0
    %1219 = vmatprep.subr.mxu0 0.0
    %1220 = vmatpush1.xpose.msra.mxu0 0.0
    %1221 = vmatprep.subr.mxu0 0.0
    %1222 = vmatpush1.xpose.msra.mxu0 0.0
    %1223 = vmatprep.subr.mxu0 0.0
    %1224 = vmatpush1.xpose.msra.mxu0 0.0
    %1225 = vmatprep.subr.mxu0 0.0
    %1226 = vmatpush1.xpose.msra.mxu0 0.0
    %1227 = vmatprep.subr.mxu0 0.0
    %1228 = vmatpush1.xpose.msra.mxu0 0.0
    %1229 = vmatprep.subr.mxu0 0.0
    %1230 = vmatpush1.xpose.msra.mxu0 0.0
    %1231 = vmatprep.subr.mxu0 0.0
    %1232 = vmatpush1.xpose.msra.mxu0 0.0
    %1233 = vmatprep.subr.mxu0 0.0
    %1234 = vmatpush1.xpose.msra.mxu0 0.0
    %1235 = vmatprep.subr.mxu0 0.0
    %1236 = vmatpush1.xpose.msra.mxu0 0.0
    %1237 = vmatprep.subr.mxu0 0.0
    %1238 = vmatpush1.xpose.msra.mxu0 0.0
    %1239 = vmatprep.subr.mxu0 0.0
    %1240 = vmatpush1.xpose.msra.mxu0 0.0
    %1241 = vmatprep.subr.mxu0 0.0
    %1242 = vmatpush1.xpose.msra.mxu0 0.0
    %1243 = vmatprep.mubr.f32.mxu0 0.0
    %1244 = vmatmul.mubr.f32.gmra.mrb[0].mxu0 %v1174
    %v1245 = vpop.f32.mrb[0].mxu0
    %v1246 = vadd.f32 %v60, %v1245
    %v1247 = vpop.f32.mrb[0].mxu0
    %1248 = vdwg.mxu0
    %v1250 = vsel %vm1096, %v428, 0
    %v1253 = vsel %vm1096, %v761, 0
    %1255 = vmatprep.subr.mxu0 0.0
    %1256 = vmatpush1.xpose.msra.mxu0 %v1253
    %1257 = vmatprep.subr.mxu0 0.0
    %1258 = vmatpush1.xpose.msra.mxu0 0.0
    %1259 = vmatprep.subr.mxu0 0.0
    %1260 = vmatpush1.xpose.msra.mxu0 0.0
    %1261 = vmatprep.subr.mxu0 0.0
    %1262 = vmatpush1.xpose.msra.mxu0 0.0
    %1263 = vmatprep.subr.mxu0 0.0
    %1264 = vmatpush1.xpose.msra.mxu0 0.0
    %1265 = vmatprep.subr.mxu0 0.0
    %1266 = vmatpush1.xpose.msra.mxu0 0.0
    %1267 = vmatprep.subr.mxu0 0.0
    %1268 = vmatpush1.xpose.msra.mxu0 0.0
    %1269 = vmatprep.subr.mxu0 0.0
    %1270 = vmatpush1.xpose.msra.mxu0 0.0
    %1271 = vmatprep.subr.mxu0 0.0
    %1272 = vmatpush1.xpose.msra.mxu0 0.0
    %1273 = vmatprep.subr.mxu0 0.0
    %1274 = vmatpush1.xpose.msra.mxu0 0.0
    %1275 = vmatprep.subr.mxu0 0.0
    %1276 = vmatpush1.xpose.msra.mxu0 0.0
    %1277 = vmatprep.subr.mxu0 0.0
    %1278 = vmatpush1.xpose.msra.mxu0 0.0
    %1279 = vmatprep.subr.mxu0 0.0
    %1280 = vmatpush1.xpose.msra.mxu0 0.0
    %1281 = vmatprep.subr.mxu0 0.0
    %1282 = vmatpush1.xpose.msra.mxu0 0.0
    %1283 = vmatprep.subr.mxu0 0.0
    %1284 = vmatpush1.xpose.msra.mxu0 0.0
    %1285 = vmatprep.subr.mxu0 0.0
    %1286 = vmatpush1.xpose.msra.mxu0 0.0
    %1287 = vmatprep.subr.mxu0 0.0
    %1288 = vmatpush1.xpose.msra.mxu0 0.0
    %1289 = vmatprep.subr.mxu0 0.0
    %1290 = vmatpush1.xpose.msra.mxu0 0.0
    %1291 = vmatprep.subr.mxu0 0.0
    %1292 = vmatpush1.xpose.msra.mxu0 0.0
    %1293 = vmatprep.subr.mxu0 0.0
    %1294 = vmatpush1.xpose.msra.mxu0 0.0
    %1295 = vmatprep.subr.mxu0 0.0
    %1296 = vmatpush1.xpose.msra.mxu0 0.0
    %1297 = vmatprep.subr.mxu0 0.0
    %1298 = vmatpush1.xpose.msra.mxu0 0.0
    %1299 = vmatprep.subr.mxu0 0.0
    %1300 = vmatpush1.xpose.msra.mxu0 0.0
    %1301 = vmatprep.subr.mxu0 0.0
    %1302 = vmatpush1.xpose.msra.mxu0 0.0
    %1303 = vmatprep.subr.mxu0 0.0
    %1304 = vmatpush1.xpose.msra.mxu0 0.0
    %1305 = vmatprep.subr.mxu0 0.0
    %1306 = vmatpush1.xpose.msra.mxu0 0.0
    %1307 = vmatprep.subr.mxu0 0.0
    %1308 = vmatpush1.xpose.msra.mxu0 0.0
    %1309 = vmatprep.subr.mxu0 0.0
    %1310 = vmatpush1.xpose.msra.mxu0 0.0
    %1311 = vmatprep.subr.mxu0 0.0
    %1312 = vmatpush1.xpose.msra.mxu0 0.0
    %1313 = vmatprep.subr.mxu0 0.0
    %1314 = vmatpush1.xpose.msra.mxu0 0.0
    %1315 = vmatprep.subr.mxu0 0.0
    %1316 = vmatpush1.xpose.msra.mxu0 0.0
    %1317 = vmatprep.subr.mxu0 0.0
    %1318 = vmatpush1.xpose.msra.mxu0 0.0
    %1319 = vmatprep.mubr.f32.mxu0 0.0
    %1320 = vmatmul.mubr.f32.gmra.mrb[0].mxu0 %v1250
    %v1321 = vpop.f32.mrb[0].mxu0
    %v1322 = vadd.f32 %v60, %v1321
    %v1323 = vpop.f32.mrb[0].mxu0
    %1324 = vdwg.mxu0
    %v1326 = vsel %vm1096, %v429, 0
    %v1329 = vsel %vm1096, %v762, 0
    %1331 = vmatprep.subr.mxu0 0.0
    %1332 = vmatpush1.xpose.msra.mxu0 %v1329
    %1333 = vmatprep.subr.mxu0 0.0
    %1334 = vmatpush1.xpose.msra.mxu0 0.0
    %1335 = vmatprep.subr.mxu0 0.0
    %1336 = vmatpush1.xpose.msra.mxu0 0.0
    %1337 = vmatprep.subr.mxu0 0.0
    %1338 = vmatpush1.xpose.msra.mxu0 0.0
    %1339 = vmatprep.subr.mxu0 0.0
    %1340 = vmatpush1.xpose.msra.mxu0 0.0
    %1341 = vmatprep.subr.mxu0 0.0
    %1342 = vmatpush1.xpose.msra.mxu0 0.0
    %1343 = vmatprep.subr.mxu0 0.0
    %1344 = vmatpush1.xpose.msra.mxu0 0.0
    %1345 = vmatprep.subr.mxu0 0.0
    %1346 = vmatpush1.xpose.msra.mxu0 0.0
    %1347 = vmatprep.subr.mxu0 0.0
    %1348 = vmatpush1.xpose.msra.mxu0 0.0
    %1349 = vmatprep.subr.mxu0 0.0
    %1350 = vmatpush1.xpose.msra.mxu0 0.0
    %1351 = vmatprep.subr.mxu0 0.0
    %1352 = vmatpush1.xpose.msra.mxu0 0.0
    %1353 = vmatprep.subr.mxu0 0.0
    %1354 = vmatpush1.xpose.msra.mxu0 0.0
    %1355 = vmatprep.subr.mxu0 0.0
    %1356 = vmatpush1.xpose.msra.mxu0 0.0
    %1357 = vmatprep.subr.mxu0 0.0
    %1358 = vmatpush1.xpose.msra.mxu0 0.0
    %1359 = vmatprep.subr.mxu0 0.0
    %1360 = vmatpush1.xpose.msra.mxu0 0.0
    %1361 = vmatprep.subr.mxu0 0.0
    %1362 = vmatpush1.xpose.msra.mxu0 0.0
    %1363 = vmatprep.subr.mxu0 0.0
    %1364 = vmatpush1.xpose.msra.mxu0 0.0
    %1365 = vmatprep.subr.mxu0 0.0
    %1366 = vmatpush1.xpose.msra.mxu0 0.0
    %1367 = vmatprep.subr.mxu0 0.0
    %1368 = vmatpush1.xpose.msra.mxu0 0.0
    %1369 = vmatprep.subr.mxu0 0.0
    %1370 = vmatpush1.xpose.msra.mxu0 0.0
    %1371 = vmatprep.subr.mxu0 0.0
    %1372 = vmatpush1.xpose.msra.mxu0 0.0
    %1373 = vmatprep.subr.mxu0 0.0
    %1374 = vmatpush1.xpose.msra.mxu0 0.0
    %1375 = vmatprep.subr.mxu0 0.0
    %1376 = vmatpush1.xpose.msra.mxu0 0.0
    %1377 = vmatprep.subr.mxu0 0.0
    %1378 = vmatpush1.xpose.msra.mxu0 0.0
    %1379 = vmatprep.subr.mxu0 0.0
    %1380 = vmatpush1.xpose.msra.mxu0 0.0
    %1381 = vmatprep.subr.mxu0 0.0
    %1382 = vmatpush1.xpose.msra.mxu0 0.0
    %1383 = vmatprep.subr.mxu0 0.0
    %1384 = vmatpush1.xpose.msra.mxu0 0.0
    %1385 = vmatprep.subr.mxu0 0.0
    %1386 = vmatpush1.xpose.msra.mxu0 0.0
    %1387 = vmatprep.subr.mxu0 0.0
    %1388 = vmatpush1.xpose.msra.mxu0 0.0
    %1389 = vmatprep.subr.mxu0 0.0
    %1390 = vmatpush1.xpose.msra.mxu0 0.0
    %1391 = vmatprep.subr.mxu0 0.0
    %1392 = vmatpush1.xpose.msra.mxu0 0.0
    %1393 = vmatprep.subr.mxu0 0.0
    %1394 = vmatpush1.xpose.msra.mxu0 0.0
    %1395 = vmatprep.mubr.f32.mxu0 0.0
    %1396 = vmatmul.mubr.f32.gmra.mrb[0].mxu0 %v1326
    %v1397 = vpop.f32.mrb[0].mxu0
    %v1398 = vadd.f32 %v60, %v1397
    %v1399 = vpop.f32.mrb[0].mxu0
    %1400 = vdwg.mxu0
    %v1401 = vsel %vm1096, %v1170, -inf
    %1402 = vmax.xlane.f32.xlu0 %v1401
    %v1403 = vpop.xlane.xlu0 %1402
    %v1404 = vsel %vm1096, %v1246, -inf
    %1405 = vmax.xlane.f32.xlu0 %v1404
    %v1406 = vpop.xlane.xlu0 %1405
    %v1407 = vsel %vm1096, %v1322, -inf
    %1408 = vmax.xlane.f32.xlu0 %v1407
    %v1409 = vpop.xlane.xlu0 %1408
    %v1410 = vsel %vm1096, %v1398, -inf
    %1411 = vmax.xlane.f32.xlu0 %v1410
    %v1412 = vpop.xlane.xlu0 %1411
    %v1413 = vsub.f32 %v1170, %v1403
    %v1414 = vsub.f32 %v1246, %v1406
    %v1415 = vsub.f32 %v1322, %v1409
    %v1416 = vsub.f32 %v1398, %v1412
    %v1417 = vmul.f32 %v1413, 1.442695
    %v1418 = vpow.pop %v1417
    %v1419 = vmul.f32 %v1414, 1.442695
    %v1420 = vpow.pop %v1419
    %v1421 = vmul.f32 %v1415, 1.442695
    %v1422 = vpow.pop %v1421
    %v1423 = vmul.f32 %v1416, 1.442695
    %v1424 = vpow.pop %v1423
    %v1425 = vsel %vm1096, %v1418, 0.0
    %1426 = vadd.xlane.f32.xlu0 %v1425
    %v1427 = vpop.xlane.xlu0 %1426
    %v1428 = vsel %vm1096, %v1420, 0.0
    %1429 = vadd.xlane.f32.xlu0 %v1428
    %v1430 = vpop.xlane.xlu0 %1429
    %v1431 = vsel %vm1096, %v1422, 0.0
    %1432 = vadd.xlane.f32.xlu0 %v1431
    %v1433 = vpop.xlane.xlu0 %1432
    %v1434 = vsel %vm1096, %v1424, 0.0
    %1435 = vadd.xlane.f32.xlu0 %v1434
    %v1436 = vpop.xlane.xlu0 %1435
    %v1437 = vrcp.pop %v1427
    %v1438 = vrcp.pop %v1430
    %v1439 = vrcp.pop %v1433
    %v1440 = vrcp.pop %v1436
    %v1441 = vmul.f32 %v1427, %v1437
    %v1442 = vmul.f32 %v1430, %v1438
    %v1443 = vmul.f32 %v1433, %v1439
    %v1444 = vmul.f32 %v1436, %v1440
    %v1445 = vsub.f32 2.0, %v1441
    %v1446 = vsub.f32 2.0, %v1442
    %v1447 = vsub.f32 2.0, %v1443
    %v1448 = vsub.f32 2.0, %v1444
    %v1449 = vmul.f32 %v1437, %v1445
    %v1450 = vmul.f32 %v1438, %v1446
    %v1451 = vmul.f32 %v1439, %v1447
    %v1452 = vmul.f32 %v1440, %v1448
    %v1453 = vmul.f32 %v1418, %v1449
    %v1454 = vmul.f32 %v1420, %v1450
    %v1455 = vmul.f32 %v1422, %v1451
    %v1456 = vmul.f32 %v1424, %v1452
    %v1458 = vsel %vm1096, %v1453, 0
    %1460 = vmatprep.subr.mxu0 0.0
    %1461 = vmatpush1.msra.mxu0 %v1092
    %1462 = vmatprep.subr.mxu0 0.0
    %1463 = vmatpush1.msra.mxu0 0.0
    %1464 = vmatprep.subr.mxu0 0.0
    %1465 = vmatpush1.msra.mxu0 0.0
    %1466 = vmatprep.subr.mxu0 0.0
    %1467 = vmatpush1.msra.mxu0 0.0
    %1468 = vmatprep.subr.mxu0 0.0
    %1469 = vmatpush1.msra.mxu0 0.0
    %1470 = vmatprep.subr.mxu0 0.0
    %1471 = vmatpush1.msra.mxu0 0.0
    %1472 = vmatprep.subr.mxu0 0.0
    %1473 = vmatpush1.msra.mxu0 0.0
    %1474 = vmatprep.subr.mxu0 0.0
    %1475 = vmatpush1.msra.mxu0 0.0
    %1476 = vmatprep.subr.mxu0 0.0
    %1477 = vmatpush1.msra.mxu0 0.0
    %1478 = vmatprep.subr.mxu0 0.0
    %1479 = vmatpush1.msra.mxu0 0.0
    %1480 = vmatprep.subr.mxu0 0.0
    %1481 = vmatpush1.msra.mxu0 0.0
    %1482 = vmatprep.subr.mxu0 0.0
    %1483 = vmatpush1.msra.mxu0 0.0
    %1484 = vmatprep.subr.mxu0 0.0
    %1485 = vmatpush1.msra.mxu0 0.0
    %1486 = vmatprep.subr.mxu0 0.0
    %1487 = vmatpush1.msra.mxu0 0.0
    %1488 = vmatprep.subr.mxu0 0.0
    %1489 = vmatpush1.msra.mxu0 0.0
    %1490 = vmatprep.subr.mxu0 0.0
    %1491 = vmatpush1.msra.mxu0 0.0
    %1492 = vmatprep.subr.mxu0 0.0
    %1493 = vmatpush1.msra.mxu0 0.0
    %1494 = vmatprep.subr.mxu0 0.0
    %1495 = vmatpush1.msra.mxu0 0.0
    %1496 = vmatprep.subr.mxu0 0.0
    %1497 = vmatpush1.msra.mxu0 0.0
    %1498 = vmatprep.subr.mxu0 0.0
    %1499 = vmatpush1.msra.mxu0 0.0
    %1500 = vmatprep.subr.mxu0 0.0
    %1501 = vmatpush1.msra.mxu0 0.0
    %1502 = vmatprep.subr.mxu0 0.0
    %1503 = vmatpush1.msra.mxu0 0.0
    %1504 = vmatprep.subr.mxu0 0.0
    %1505 = vmatpush1.msra.mxu0 0.0
    %1506 = vmatprep.subr.mxu0 0.0
    %1507 = vmatpush1.msra.mxu0 0.0
    %1508 = vmatprep.subr.mxu0 0.0
    %1509 = vmatpush1.msra.mxu0 0.0
    %1510 = vmatprep.subr.mxu0 0.0
    %1511 = vmatpush1.msra.mxu0 0.0
    %1512 = vmatprep.subr.mxu0 0.0
    %1513 = vmatpush1.msra.mxu0 0.0
    %1514 = vmatprep.subr.mxu0 0.0
    %1515 = vmatpush1.msra.mxu0 0.0
    %1516 = vmatprep.subr.mxu0 0.0
    %1517 = vmatpush1.msra.mxu0 0.0
    %1518 = vmatprep.subr.mxu0 0.0
    %1519 = vmatpush1.msra.mxu0 0.0
    %1520 = vmatprep.subr.mxu0 0.0
    %1521 = vmatpush1.msra.mxu0 0.0
    %1522 = vmatprep.subr.mxu0 0.0
    %1523 = vmatpush1.msra.mxu0 0.0
    %1524 = vmatprep.mubr.f32.mxu0 0.0
    %1525 = vmatmul.mubr.f32.gmra.mrb[0].mxu0 %v1458
    %v1526 = vpop.f32.mrb[0].mxu0
    %v1527 = vadd.f32 0.0, %v1526
    %v1528 = vpop.f32.mrb[0].mxu0
    %1529 = vdwg.mxu0
    %v1531 = vsel %vm1096, %v1454, 0
    %1533 = vmatprep.subr.mxu0 0.0
    %1534 = vmatpush1.msra.mxu0 %v1093
    %1535 = vmatprep.subr.mxu0 0.0
    %1536 = vmatpush1.msra.mxu0 0.0
    %1537 = vmatprep.subr.mxu0 0.0
    %1538 = vmatpush1.msra.mxu0 0.0
    %1539 = vmatprep.subr.mxu0 0.0
    %1540 = vmatpush1.msra.mxu0 0.0
    %1541 = vmatprep.subr.mxu0 0.0
    %1542 = vmatpush1.msra.mxu0 0.0
    %1543 = vmatprep.subr.mxu0 0.0
    %1544 = vmatpush1.msra.mxu0 0.0
    %1545 = vmatprep.subr.mxu0 0.0
    %1546 = vmatpush1.msra.mxu0 0.0
    %1547 = vmatprep.subr.mxu0 0.0
    %1548 = vmatpush1.msra.mxu0 0.0
    %1549 = vmatprep.subr.mxu0 0.0
    %1550 = vmatpush1.msra.mxu0 0.0
    %1551 = vmatprep.subr.mxu0 0.0
    %1552 = vmatpush1.msra.mxu0 0.0
    %1553 = vmatprep.subr.mxu0 0.0
    %1554 = vmatpush1.msra.mxu0 0.0
    %1555 = vmatprep.subr.mxu0 0.0
    %1556 = vmatpush1.msra.mxu0 0.0
    %1557 = vmatprep.subr.mxu0 0.0
    %1558 = vmatpush1.msra.mxu0 0.0
    %1559 = vmatprep.subr.mxu0 0.0
    %1560 = vmatpush1.msra.mxu0 0.0
    %1561 = vmatprep.subr.mxu0 0.0
    %1562 = vmatpush1.msra.mxu0 0.0
    %1563 = vmatprep.subr.mxu0 0.0
    %1564 = vmatpush1.msra.mxu0 0.0
    %1565 = vmatprep.subr.mxu0 0.0
    %1566 = vmatpush1.msra.mxu0 0.0
    %1567 = vmatprep.subr.mxu0 0.0
    %1568 = vmatpush1.msra.mxu0 0.0
    %1569 = vmatprep.subr.mxu0 0.0
    %1570 = vmatpush1.msra.mxu0 0.0
    %1571 = vmatprep.subr.mxu0 0.0
    %1572 = vmatpush1.msra.mxu0 0.0
    %1573 = vmatprep.subr.mxu0 0.0
    %1574 = vmatpush1.msra.mxu0 0.0
    %1575 = vmatprep.subr.mxu0 0.0
    %1576 = vmatpush1.msra.mxu0 0.0
    %1577 = vmatprep.subr.mxu0 0.0
    %1578 = vmatpush1.msra.mxu0 0.0
    %1579 = vmatprep.subr.mxu0 0.0
    %1580 = vmatpush1.msra.mxu0 0.0
    %1581 = vmatprep.subr.mxu0 0.0
    %1582 = vmatpush1.msra.mxu0 0.0
    %1583 = vmatprep.subr.mxu0 0.0
    %1584 = vmatpush1.msra.mxu0 0.0
    %1585 = vmatprep.subr.mxu0 0.0
    %1586 = vmatpush1.msra.mxu0 0.0
    %1587 = vmatprep.subr.mxu0 0.0
    %1588 = vmatpush1.msra.mxu0 0.0
    %1589 = vmatprep.subr.mxu0 0.0
    %1590 = vmatpush1.msra.mxu0 0.0
    %1591 = vmatprep.subr.mxu0 0.0
    %1592 = vmatpush1.msra.mxu0 0.0
    %1593 = vmatprep.subr.mxu0 0.0
    %1594 = vmatpush1.msra.mxu0 0.0
    %1595 = vmatprep.subr.mxu0 0.0
    %1596 = vmatpush1.msra.mxu0 0.0
    %1597 = vmatprep.mubr.f32.mxu0 0.0
    %1598 = vmatmul.mubr.f32.gmra.mrb[0].mxu0 %v1531
    %v1599 = vpop.f32.mrb[0].mxu0
    %v1600 = vadd.f32 0.0, %v1599
    %v1601 = vpop.f32.mrb[0].mxu0
    %1602 = vdwg.mxu0
    %v1604 = vsel %vm1096, %v1455, 0
    %1606 = vmatprep.subr.mxu0 0.0
    %1607 = vmatpush1.msra.mxu0 %v1094
    %1608 = vmatprep.subr.mxu0 0.0
    %1609 = vmatpush1.msra.mxu0 0.0
    %1610 = vmatprep.subr.mxu0 0.0
    %1611 = vmatpush1.msra.mxu0 0.0
    %1612 = vmatprep.subr.mxu0 0.0
    %1613 = vmatpush1.msra.mxu0 0.0
    %1614 = vmatprep.subr.mxu0 0.0
    %1615 = vmatpush1.msra.mxu0 0.0
    %1616 = vmatprep.subr.mxu0 0.0
    %1617 = vmatpush1.msra.mxu0 0.0
    %1618 = vmatprep.subr.mxu0 0.0
    %1619 = vmatpush1.msra.mxu0 0.0
    %1620 = vmatprep.subr.mxu0 0.0
    %1621 = vmatpush1.msra.mxu0 0.0
    %1622 = vmatprep.subr.mxu0 0.0
    %1623 = vmatpush1.msra.mxu0 0.0
    %1624 = vmatprep.subr.mxu0 0.0
    %1625 = vmatpush1.msra.mxu0 0.0
    %1626 = vmatprep.subr.mxu0 0.0
    %1627 = vmatpush1.msra.mxu0 0.0
    %1628 = vmatprep.subr.mxu0 0.0
    %1629 = vmatpush1.msra.mxu0 0.0
    %1630 = vmatprep.subr.mxu0 0.0
    %1631 = vmatpush1.msra.mxu0 0.0
    %1632 = vmatprep.subr.mxu0 0.0
    %1633 = vmatpush1.msra.mxu0 0.0
    %1634 = vmatprep.subr.mxu0 0.0
    %1635 = vmatpush1.msra.mxu0 0.0
    %1636 = vmatprep.subr.mxu0 0.0
    %1637 = vmatpush1.msra.mxu0 0.0
    %1638 = vmatprep.subr.mxu0 0.0
    %1639 = vmatpush1.msra.mxu0 0.0
    %1640 = vmatprep.subr.mxu0 0.0
    %1641 = vmatpush1.msra.mxu0 0.0
    %1642 = vmatprep.subr.mxu0 0.0
    %1643 = vmatpush1.msra.mxu0 0.0
    %1644 = vmatprep.subr.mxu0 0.0
    %1645 = vmatpush1.msra.mxu0 0.0
    %1646 = vmatprep.subr.mxu0 0.0
    %1647 = vmatpush1.msra.mxu0 0.0
    %1648 = vmatprep.subr.mxu0 0.0
    %1649 = vmatpush1.msra.mxu0 0.0
    %1650 = vmatprep.subr.mxu0 0.0
    %1651 = vmatpush1.msra.mxu0 0.0
    %1652 = vmatprep.subr.mxu0 0.0
    %1653 = vmatpush1.msra.mxu0 0.0
    %1654 = vmatprep.subr.mxu0 0.0
    %1655 = vmatpush1.msra.mxu0 0.0
    %1656 = vmatprep.subr.mxu0 0.0
    %1657 = vmatpush1.msra.mxu0 0.0
    %1658 = vmatprep.subr.mxu0 0.0
    %1659 = vmatpush1.msra.mxu0 0.0
    %1660 = vmatprep.subr.mxu0 0.0
    %1661 = vmatpush1.msra.mxu0 0.0
    %1662 = vmatprep.subr.mxu0 0.0
    %1663 = vmatpush1.msra.mxu0 0.0
    %1664 = vmatprep.subr.mxu0 0.0
    %1665 = vmatpush1.msra.mxu0 0.0
    %1666 = vmatprep.subr.mxu0 0.0
    %1667 = vmatpush1.msra.mxu0 0.0
    %1668 = vmatprep.subr.mxu0 0.0
    %1669 = vmatpush1.msra.mxu0 0.0
    %1670 = vmatprep.mubr.f32.mxu0 0.0
    %1671 = vmatmul.mubr.f32.gmra.mrb[0].mxu0 %v1604
    %v1672 = vpop.f32.mrb[0].mxu0
    %v1673 = vadd.f32 0.0, %v1672
    %v1674 = vpop.f32.mrb[0].mxu0
    %1675 = vdwg.mxu0
    %v1677 = vsel %vm1096, %v1456, 0
    %1679 = vmatprep.subr.mxu0 0.0
    %1680 = vmatpush1.msra.mxu0 %v1095
    %1681 = vmatprep.subr.mxu0 0.0
    %1682 = vmatpush1.msra.mxu0 0.0
    %1683 = vmatprep.subr.mxu0 0.0
    %1684 = vmatpush1.msra.mxu0 0.0
    %1685 = vmatprep.subr.mxu0 0.0
    %1686 = vmatpush1.msra.mxu0 0.0
    %1687 = vmatprep.subr.mxu0 0.0
    %1688 = vmatpush1.msra.mxu0 0.0
    %1689 = vmatprep.subr.mxu0 0.0
    %1690 = vmatpush1.msra.mxu0 0.0
    %1691 = vmatprep.subr.mxu0 0.0
    %1692 = vmatpush1.msra.mxu0 0.0
    %1693 = vmatprep.subr.mxu0 0.0
    %1694 = vmatpush1.msra.mxu0 0.0
    %1695 = vmatprep.subr.mxu0 0.0
    %1696 = vmatpush1.msra.mxu0 0.0
    %1697 = vmatprep.subr.mxu0 0.0
    %1698 = vmatpush1.msra.mxu0 0.0
    %1699 = vmatprep.subr.mxu0 0.0
    %1700 = vmatpush1.msra.mxu0 0.0
    %1701 = vmatprep.subr.mxu0 0.0
    %1702 = vmatpush1.msra.mxu0 0.0
    %1703 = vmatprep.subr.mxu0 0.0
    %1704 = vmatpush1.msra.mxu0 0.0
    %1705 = vmatprep.subr.mxu0 0.0
    %1706 = vmatpush1.msra.mxu0 0.0
    %1707 = vmatprep.subr.mxu0 0.0
    %1708 = vmatpush1.msra.mxu0 0.0
    %1709 = vmatprep.subr.mxu0 0.0
    %1710 = vmatpush1.msra.mxu0 0.0
    %1711 = vmatprep.subr.mxu0 0.0
    %1712 = vmatpush1.msra.mxu0 0.0
    %1713 = vmatprep.subr.mxu0 0.0
    %1714 = vmatpush1.msra.mxu0 0.0
    %1715 = vmatprep.subr.mxu0 0.0
    %1716 = vmatpush1.msra.mxu0 0.0
    %1717 = vmatprep.subr.mxu0 0.0
    %1718 = vmatpush1.msra.mxu0 0.0
    %1719 = vmatprep.subr.mxu0 0.0
    %1720 = vmatpush1.msra.mxu0 0.0
    %1721 = vmatprep.subr.mxu0 0.0
    %1722 = vmatpush1.msra.mxu0 0.0
    %1723 = vmatprep.subr.mxu0 0.0
    %1724 = vmatpush1.msra.mxu0 0.0
    %1725 = vmatprep.subr.mxu0 0.0
    %1726 = vmatpush1.msra.mxu0 0.0
    %1727 = vmatprep.subr.mxu0 0.0
    %1728 = vmatpush1.msra.mxu0 0.0
    %1729 = vmatprep.subr.mxu0 0.0
    %1730 = vmatpush1.msra.mxu0 0.0
    %1731 = vmatprep.subr.mxu0 0.0
    %1732 = vmatpush1.msra.mxu0 0.0
    %1733 = vmatprep.subr.mxu0 0.0
    %1734 = vmatpush1.msra.mxu0 0.0
    %1735 = vmatprep.subr.mxu0 0.0
    %1736 = vmatpush1.msra.mxu0 0.0
    %1737 = vmatprep.subr.mxu0 0.0
    %1738 = vmatpush1.msra.mxu0 0.0
    %1739 = vmatprep.subr.mxu0 0.0
    %1740 = vmatpush1.msra.mxu0 0.0
    %1741 = vmatprep.subr.mxu0 0.0
    %1742 = vmatpush1.msra.mxu0 0.0
    %1743 = vmatprep.mubr.f32.mxu0 0.0
    %1744 = vmatmul.mubr.f32.gmra.mrb[0].mxu0 %v1677
    %v1745 = vpop.f32.mrb[0].mxu0
    %v1746 = vadd.f32 0.0, %v1745
    %v1747 = vpop.f32.mrb[0].mxu0
    %1748 = vdwg.mxu0
    %v1749 = vld [vmem:[%s7] sm:$0xff]
    %v1750 = vld [vmem:[%s7 + $0x8] sm:$0xff]
    %v1751 = vld [vmem:[%s7 + $0x10] sm:$0xff]
    %v1752 = vld [vmem:[%s7 + $0x18] sm:$0xff]
    %v1754 = vsel %vm1096, %v1527, 0
    %1756 = vmatprep.subr.mxu0 0.0
    %1757 = vmatpush1.msra.mxu0 %v1749
    %1758 = vmatprep.subr.mxu0 0.0
    %1759 = vmatpush1.msra.mxu0 0.0
    %1760 = vmatprep.subr.mxu0 0.0
    %1761 = vmatpush1.msra.mxu0 0.0
    %1762 = vmatprep.subr.mxu0 0.0
    %1763 = vmatpush1.msra.mxu0 0.0
    %1764 = vmatprep.subr.mxu0 0.0
    %1765 = vmatpush1.msra.mxu0 0.0
    %1766 = vmatprep.subr.mxu0 0.0
    %1767 = vmatpush1.msra.mxu0 0.0
    %1768 = vmatprep.subr.mxu0 0.0
    %1769 = vmatpush1.msra.mxu0 0.0
    %1770 = vmatprep.subr.mxu0 0.0
    %1771 = vmatpush1.msra.mxu0 0.0
    %1772 = vmatprep.subr.mxu0 0.0
    %1773 = vmatpush1.msra.mxu0 0.0
    %1774 = vmatprep.subr.mxu0 0.0
    %1775 = vmatpush1.msra.mxu0 0.0
    %1776 = vmatprep.subr.mxu0 0.0
    %1777 = vmatpush1.msra.mxu0 0.0
    %1778 = vmatprep.subr.mxu0 0.0
    %1779 = vmatpush1.msra.mxu0 0.0
    %1780 = vmatprep.subr.mxu0 0.0
    %1781 = vmatpush1.msra.mxu0 0.0
    %1782 = vmatprep.subr.mxu0 0.0
    %1783 = vmatpush1.msra.mxu0 0.0
    %1784 = vmatprep.subr.mxu0 0.0
    %1785 = vmatpush1.msra.mxu0 0.0
    %1786 = vmatprep.subr.mxu0 0.0
    %1787 = vmatpush1.msra.mxu0 0.0
    %1788 = vmatprep.subr.mxu0 0.0
    %1789 = vmatpush1.msra.mxu0 0.0
    %1790 = vmatprep.subr.mxu0 0.0
    %1791 = vmatpush1.msra.mxu0 0.0
    %1792 = vmatprep.subr.mxu0 0.0
    %1793 = vmatpush1.msra.mxu0 0.0
    %1794 = vmatprep.subr.mxu0 0.0
    %1795 = vmatpush1.msra.mxu0 0.0
    %1796 = vmatprep.subr.mxu0 0.0
    %1797 = vmatpush1.msra.mxu0 0.0
    %1798 = vmatprep.subr.mxu0 0.0
    %1799 = vmatpush1.msra.mxu0 0.0
    %1800 = vmatprep.subr.mxu0 0.0
    %1801 = vmatpush1.msra.mxu0 0.0
    %1802 = vmatprep.subr.mxu0 0.0
    %1803 = vmatpush1.msra.mxu0 0.0
    %1804 = vmatprep.subr.mxu0 0.0
    %1805 = vmatpush1.msra.mxu0 0.0
    %1806 = vmatprep.subr.mxu0 0.0
    %1807 = vmatpush1.msra.mxu0 0.0
    %1808 = vmatprep.subr.mxu0 0.0
    %1809 = vmatpush1.msra.mxu0 0.0
    %1810 = vmatprep.subr.mxu0 0.0
    %1811 = vmatpush1.msra.mxu0 0.0
    %1812 = vmatprep.subr.mxu0 0.0
    %1813 = vmatpush1.msra.mxu0 0.0
    %1814 = vmatprep.subr.mxu0 0.0
    %1815 = vmatpush1.msra.mxu0 0.0
    %1816 = vmatprep.subr.mxu0 0.0
    %1817 = vmatpush1.msra.mxu0 0.0
    %1818 = vmatprep.subr.mxu0 0.0
    %1819 = vmatpush1.msra.mxu0 0.0
    %1820 = vmatprep.mubr.f32.mxu0 0.0
    %1821 = vmatmul.mubr.f32.gmra.mrb[0].mxu0 %v1754
    %v1822 = vpop.f32.mrb[0].mxu0
    %v1823 = vadd.f32 0.0, %v1822
    %v1824 = vpop.f32.mrb[0].mxu0
    %1825 = vdwg.mxu0
    %v1827 = vsel %vm1096, %v1600, 0
    %1829 = vmatprep.subr.mxu0 0.0
    %1830 = vmatpush1.msra.mxu0 %v1750
    %1831 = vmatprep.subr.mxu0 0.0
    %1832 = vmatpush1.msra.mxu0 0.0
    %1833 = vmatprep.subr.mxu0 0.0
    %1834 = vmatpush1.msra.mxu0 0.0
    %1835 = vmatprep.subr.mxu0 0.0
    %1836 = vmatpush1.msra.mxu0 0.0
    %1837 = vmatprep.subr.mxu0 0.0
    %1838 = vmatpush1.msra.mxu0 0.0
    %1839 = vmatprep.subr.mxu0 0.0
    %1840 = vmatpush1.msra.mxu0 0.0
    %1841 = vmatprep.subr.mxu0 0.0
    %1842 = vmatpush1.msra.mxu0 0.0
    %1843 = vmatprep.subr.mxu0 0.0
    %1844 = vmatpush1.msra.mxu0 0.0
    %1845 = vmatprep.subr.mxu0 0.0
    %1846 = vmatpush1.msra.mxu0 0.0
    %1847 = vmatprep.subr.mxu0 0.0
    %1848 = vmatpush1.msra.mxu0 0.0
    %1849 = vmatprep.subr.mxu0 0.0
    %1850 = vmatpush1.msra.mxu0 0.0
    %1851 = vmatprep.subr.mxu0 0.0
    %1852 = vmatpush1.msra.mxu0 0.0
    %1853 = vmatprep.subr.mxu0 0.0
    %1854 = vmatpush1.msra.mxu0 0.0
    %1855 = vmatprep.subr.mxu0 0.0
    %1856 = vmatpush1.msra.mxu0 0.0
    %1857 = vmatprep.subr.mxu0 0.0
    %1858 = vmatpush1.msra.mxu0 0.0
    %1859 = vmatprep.subr.mxu0 0.0
    %1860 = vmatpush1.msra.mxu0 0.0
    %1861 = vmatprep.subr.mxu0 0.0
    %1862 = vmatpush1.msra.mxu0 0.0
    %1863 = vmatprep.subr.mxu0 0.0
    %1864 = vmatpush1.msra.mxu0 0.0
    %1865 = vmatprep.subr.mxu0 0.0
    %1866 = vmatpush1.msra.mxu0 0.0
    %1867 = vmatprep.subr.mxu0 0.0
    %1868 = vmatpush1.msra.mxu0 0.0
    %1869 = vmatprep.subr.mxu0 0.0
    %1870 = vmatpush1.msra.mxu0 0.0
    %1871 = vmatprep.subr.mxu0 0.0
    %1872 = vmatpush1.msra.mxu0 0.0
    %1873 = vmatprep.subr.mxu0 0.0
    %1874 = vmatpush1.msra.mxu0 0.0
    %1875 = vmatprep.subr.mxu0 0.0
    %1876 = vmatpush1.msra.mxu0 0.0
    %1877 = vmatprep.subr.mxu0 0.0
    %1878 = vmatpush1.msra.mxu0 0.0
    %1879 = vmatprep.subr.mxu0 0.0
    %1880 = vmatpush1.msra.mxu0 0.0
    %1881 = vmatprep.subr.mxu0 0.0
    %1882 = vmatpush1.msra.mxu0 0.0
    %1883 = vmatprep.subr.mxu0 0.0
    %1884 = vmatpush1.msra.mxu0 0.0
    %1885 = vmatprep.subr.mxu0 0.0
    %1886 = vmatpush1.msra.mxu0 0.0
    %1887 = vmatprep.subr.mxu0 0.0
    %1888 = vmatpush1.msra.mxu0 0.0
    %1889 = vmatprep.subr.mxu0 0.0
    %1890 = vmatpush1.msra.mxu0 0.0
    %1891 = vmatprep.subr.mxu0 0.0
    %1892 = vmatpush1.msra.mxu0 0.0
    %1893 = vmatprep.mubr.f32.mxu0 0.0
    %1894 = vmatmul.mubr.f32.gmra.mrb[0].mxu0 %v1827
    %v1895 = vpop.f32.mrb[0].mxu0
    %v1896 = vadd.f32 0.0, %v1895
    %v1897 = vpop.f32.mrb[0].mxu0
    %1898 = vdwg.mxu0
    %v1900 = vsel %vm1096, %v1673, 0
    %1902 = vmatprep.subr.mxu0 0.0
    %1903 = vmatpush1.msra.mxu0 %v1751
    %1904 = vmatprep.subr.mxu0 0.0
    %1905 = vmatpush1.msra.mxu0 0.0
    %1906 = vmatprep.subr.mxu0 0.0
    %1907 = vmatpush1.msra.mxu0 0.0
    %1908 = vmatprep.subr.mxu0 0.0
    %1909 = vmatpush1.msra.mxu0 0.0
    %1910 = vmatprep.subr.mxu0 0.0
    %1911 = vmatpush1.msra.mxu0 0.0
    %1912 = vmatprep.subr.mxu0 0.0
    %1913 = vmatpush1.msra.mxu0 0.0
    %1914 = vmatprep.subr.mxu0 0.0
    %1915 = vmatpush1.msra.mxu0 0.0
    %1916 = vmatprep.subr.mxu0 0.0
    %1917 = vmatpush1.msra.mxu0 0.0
    %1918 = vmatprep.subr.mxu0 0.0
    %1919 = vmatpush1.msra.mxu0 0.0
    %1920 = vmatprep.subr.mxu0 0.0
    %1921 = vmatpush1.msra.mxu0 0.0
    %1922 = vmatprep.subr.mxu0 0.0
    %1923 = vmatpush1.msra.mxu0 0.0
    %1924 = vmatprep.subr.mxu0 0.0
    %1925 = vmatpush1.msra.mxu0 0.0
    %1926 = vmatprep.subr.mxu0 0.0
    %1927 = vmatpush1.msra.mxu0 0.0
    %1928 = vmatprep.subr.mxu0 0.0
    %1929 = vmatpush1.msra.mxu0 0.0
    %1930 = vmatprep.subr.mxu0 0.0
    %1931 = vmatpush1.msra.mxu0 0.0
    %1932 = vmatprep.subr.mxu0 0.0
    %1933 = vmatpush1.msra.mxu0 0.0
    %1934 = vmatprep.subr.mxu0 0.0
    %1935 = vmatpush1.msra.mxu0 0.0
    %1936 = vmatprep.subr.mxu0 0.0
    %1937 = vmatpush1.msra.mxu0 0.0
    %1938 = vmatprep.subr.mxu0 0.0
    %1939 = vmatpush1.msra.mxu0 0.0
    %1940 = vmatprep.subr.mxu0 0.0
    %1941 = vmatpush1.msra.mxu0 0.0
    %1942 = vmatprep.subr.mxu0 0.0
    %1943 = vmatpush1.msra.mxu0 0.0
    %1944 = vmatprep.subr.mxu0 0.0
    %1945 = vmatpush1.msra.mxu0 0.0
    %1946 = vmatprep.subr.mxu0 0.0
    %1947 = vmatpush1.msra.mxu0 0.0
    %1948 = vmatprep.subr.mxu0 0.0
    %1949 = vmatpush1.msra.mxu0 0.0
    %1950 = vmatprep.subr.mxu0 0.0
    %1951 = vmatpush1.msra.mxu0 0.0
    %1952 = vmatprep.subr.mxu0 0.0
    %1953 = vmatpush1.msra.mxu0 0.0
    %1954 = vmatprep.subr.mxu0 0.0
    %1955 = vmatpush1.msra.mxu0 0.0
    %1956 = vmatprep.subr.mxu0 0.0
    %1957 = vmatpush1.msra.mxu0 0.0
    %1958 = vmatprep.subr.mxu0 0.0
    %1959 = vmatpush1.msra.mxu0 0.0
    %1960 = vmatprep.subr.mxu0 0.0
    %1961 = vmatpush1.msra.mxu0 0.0
    %1962 = vmatprep.subr.mxu0 0.0
    %1963 = vmatpush1.msra.mxu0 0.0
    %1964 = vmatprep.subr.mxu0 0.0
    %1965 = vmatpush1.msra.mxu0 0.0
    %1966 = vmatprep.mubr.f32.mxu0 0.0
    %1967 = vmatmul.mubr.f32.gmra.mrb[0].mxu0 %v1900
    %v1968 = vpop.f32.mrb[0].mxu0
    %v1969 = vadd.f32 0.0, %v1968
    %v1970 = vpop.f32.mrb[0].mxu0
    %1971 = vdwg.mxu0
    %v1973 = vsel %vm1096, %v1746, 0
    %1975 = vmatprep.subr.mxu0 0.0
    %1976 = vmatpush1.msra.mxu0 %v1752
    %1977 = vmatprep.subr.mxu0 0.0
    %1978 = vmatpush1.msra.mxu0 0.0
    %1979 = vmatprep.subr.mxu0 0.0
    %1980 = vmatpush1.msra.mxu0 0.0
    %1981 = vmatprep.subr.mxu0 0.0
    %1982 = vmatpush1.msra.mxu0 0.0
    %1983 = vmatprep.subr.mxu0 0.0
    %1984 = vmatpush1.msra.mxu0 0.0
    %1985 = vmatprep.subr.mxu0 0.0
    %1986 = vmatpush1.msra.mxu0 0.0
    %1987 = vmatprep.subr.mxu0 0.0
    %1988 = vmatpush1.msra.mxu0 0.0
    %1989 = vmatprep.subr.mxu0 0.0
    %1990 = vmatpush1.msra.mxu0 0.0
    %1991 = vmatprep.subr.mxu0 0.0
    %1992 = vmatpush1.msra.mxu0 0.0
    %1993 = vmatprep.subr.mxu0 0.0
    %1994 = vmatpush1.msra.mxu0 0.0
    %1995 = vmatprep.subr.mxu0 0.0
    %1996 = vmatpush1.msra.mxu0 0.0
    %1997 = vmatprep.subr.mxu0 0.0
    %1998 = vmatpush1.msra.mxu0 0.0
    %1999 = vmatprep.subr.mxu0 0.0
    %2000 = vmatpush1.msra.mxu0 0.0
    %2001 = vmatprep.subr.mxu0 0.0
    %2002 = vmatpush1.msra.mxu0 0.0
    %2003 = vmatprep.subr.mxu0 0.0
    %2004 = vmatpush1.msra.mxu0 0.0
    %2005 = vmatprep.subr.mxu0 0.0
    %2006 = vmatpush1.msra.mxu0 0.0
    %2007 = vmatprep.subr.mxu0 0.0
    %2008 = vmatpush1.msra.mxu0 0.0
    %2009 = vmatprep.subr.mxu0 0.0
    %2010 = vmatpush1.msra.mxu0 0.0
    %2011 = vmatprep.subr.mxu0 0.0
    %2012 = vmatpush1.msra.mxu0 0.0
    %2013 = vmatprep.subr.mxu0 0.0
    %2014 = vmatpush1.msra.mxu0 0.0
    %2015 = vmatprep.subr.mxu0 0.0
    %2016 = vmatpush1.msra.mxu0 0.0
    %2017 = vmatprep.subr.mxu0 0.0
    %2018 = vmatpush1.msra.mxu0 0.0
    %2019 = vmatprep.subr.mxu0 0.0
    %2020 = vmatpush1.msra.mxu0 0.0
    %2021 = vmatprep.subr.mxu0 0.0
    %2022 = vmatpush1.msra.mxu0 0.0
    %2023 = vmatprep.subr.mxu0 0.0
    %2024 = vmatpush1.msra.mxu0 0.0
    %2025 = vmatprep.subr.mxu0 0.0
    %2026 = vmatpush1.msra.mxu0 0.0
    %2027 = vmatprep.subr.mxu0 0.0
    %2028 = vmatpush1.msra.mxu0 0.0
    %2029 = vmatprep.subr.mxu0 0.0
    %2030 = vmatpush1.msra.mxu0 0.0
    %2031 = vmatprep.subr.mxu0 0.0
    %2032 = vmatpush1.msra.mxu0 0.0
    %2033 = vmatprep.subr.mxu0 0.0
    %2034 = vmatpush1.msra.mxu0 0.0
    %2035 = vmatprep.subr.mxu0 0.0
    %2036 = vmatpush1.msra.mxu0 0.0
    %2037 = vmatprep.subr.mxu0 0.0
    %2038 = vmatpush1.msra.mxu0 0.0
    %2039 = vmatprep.mubr.f32.mxu0 0.0
    %2040 = vmatmul.mubr.f32.gmra.mrb[0].mxu0 %v1973
    %v2041 = vpop.f32.mrb[0].mxu0
    %v2042 = vadd.f32 0.0, %v2041
    %v2043 = vpop.f32.mrb[0].mxu0
    %2044 = vdwg.mxu0
    %v2045 = vsel %vm71, %v1823, 0.0
    %v2046 = vsel %vm71, %v1896, 0.0
    %v2047 = vadd.f32 %v2045, %v2046
    %v2048 = vsel %vm71, %v1969, 0.0
    %v2049 = vadd.f32 %v2047, %v2048
    %v2050 = vsel %vm71, %v2042, 0.0
    %v2051 = vadd.f32 %v2049, %v2050
    %v2052 = vadd.f32 %v69, %v2051
    %v2053 = vlaneseq
    %v2054 = vshrl.u32 %v2053, 7
    %v2055 = vsub.s32 4, %v2054
    %v2056 = vrot.slane %v70, %v2055
    %v2057 = vadd.f32 %v2052, %v2056
    %v2058 = vsel %vm71, %v2057, 0.0
    %2059 = vadd.xlane.f32.xlu0 %v2058
    %v2060 = vpop.xlane.xlu0 %2059
    %v2061 = vmul.f32 %v2060, %v75
    %v2062 = vsub.f32 %v2057, %v2061
    %v2063 = vmul.f32 %v2062, %v2062
    %v2064 = vsel %vm71, %v2063, 0.0
    %2065 = vadd.xlane.f32.xlu0 %v2064
    %v2066 = vpop.xlane.xlu0 %2065
    %v2067 = vmul.f32 %v2066, %v75
    %v2068 = vadd.f32 %v2067, 1e-05
    %v2069 = vrsqrt.pop %v2068
    %v2070 = vmul.f32 %v2062, %v2069
    %v2071 = vlaneseq
    %v2072 = vshrl.u32 %v2071, 7
    %v2073 = vsub.s32 2, %v2072
    %v2074 = vrot.slane %v70, %v2073
    %v2075 = vmul.f32 %v2070, %v2074
    %v2076 = vlaneseq
    %v2077 = vshrl.u32 %v2076, 7
    %v2078 = vsub.s32 3, %v2077
    %v2079 = vrot.slane %v70, %v2078
    %v2080 = vadd.f32 %v2075, %v2079
    %v2081 = vld [vmem:[%s8] sm:$0xff]
    %v2082 = vld [vmem:[%s8 + $0x8] sm:$0xff]
    %v2083 = vld [vmem:[%s8 + $0x10] sm:$0xff]
    %v2084 = vld [vmem:[%s8 + $0x18] sm:$0xff]
    %v2085 = vld [vmem:[%s5] sm:$0x1]
    %v2087 = vlaneseq
    %v2088 = vshrl.u32 %v2087, 7
    %v2089 = vsub.s32 0, %v2088
    %v2090 = vrot.slane %v2085, %v2089
    %v2093 = vsel %vm71, %v2080, 0
    %2095 = vmatprep.subr.mxu0 0.0
    %2096 = vmatpush1.msra.mxu0 %v2081
    %2097 = vmatprep.subr.mxu0 0.0
    %2098 = vmatpush1.msra.mxu0 %v2082
    %2099 = vmatprep.subr.mxu0 0.0
    %2100 = vmatpush1.msra.mxu0 %v2083
    %2101 = vmatprep.subr.mxu0 0.0
    %2102 = vmatpush1.msra.mxu0 %v2084
    %2103 = vmatprep.subr.mxu0 0.0
    %2104 = vmatpush1.msra.mxu0 0.0
    %2105 = vmatprep.subr.mxu0 0.0
    %2106 = vmatpush1.msra.mxu0 0.0
    %2107 = vmatprep.subr.mxu0 0.0
    %2108 = vmatpush1.msra.mxu0 0.0
    %2109 = vmatprep.subr.mxu0 0.0
    %2110 = vmatpush1.msra.mxu0 0.0
    %2111 = vmatprep.subr.mxu0 0.0
    %2112 = vmatpush1.msra.mxu0 0.0
    %2113 = vmatprep.subr.mxu0 0.0
    %2114 = vmatpush1.msra.mxu0 0.0
    %2115 = vmatprep.subr.mxu0 0.0
    %2116 = vmatpush1.msra.mxu0 0.0
    %2117 = vmatprep.subr.mxu0 0.0
    %2118 = vmatpush1.msra.mxu0 0.0
    %2119 = vmatprep.subr.mxu0 0.0
    %2120 = vmatpush1.msra.mxu0 0.0
    %2121 = vmatprep.subr.mxu0 0.0
    %2122 = vmatpush1.msra.mxu0 0.0
    %2123 = vmatprep.subr.mxu0 0.0
    %2124 = vmatpush1.msra.mxu0 0.0
    %2125 = vmatprep.subr.mxu0 0.0
    %2126 = vmatpush1.msra.mxu0 0.0
    %2127 = vmatprep.subr.mxu0 0.0
    %2128 = vmatpush1.msra.mxu0 0.0
    %2129 = vmatprep.subr.mxu0 0.0
    %2130 = vmatpush1.msra.mxu0 0.0
    %2131 = vmatprep.subr.mxu0 0.0
    %2132 = vmatpush1.msra.mxu0 0.0
    %2133 = vmatprep.subr.mxu0 0.0
    %2134 = vmatpush1.msra.mxu0 0.0
    %2135 = vmatprep.subr.mxu0 0.0
    %2136 = vmatpush1.msra.mxu0 0.0
    %2137 = vmatprep.subr.mxu0 0.0
    %2138 = vmatpush1.msra.mxu0 0.0
    %2139 = vmatprep.subr.mxu0 0.0
    %2140 = vmatpush1.msra.mxu0 0.0
    %2141 = vmatprep.subr.mxu0 0.0
    %2142 = vmatpush1.msra.mxu0 0.0
    %2143 = vmatprep.subr.mxu0 0.0
    %2144 = vmatpush1.msra.mxu0 0.0
    %2145 = vmatprep.subr.mxu0 0.0
    %2146 = vmatpush1.msra.mxu0 0.0
    %2147 = vmatprep.subr.mxu0 0.0
    %2148 = vmatpush1.msra.mxu0 0.0
    %2149 = vmatprep.subr.mxu0 0.0
    %2150 = vmatpush1.msra.mxu0 0.0
    %2151 = vmatprep.subr.mxu0 0.0
    %2152 = vmatpush1.msra.mxu0 0.0
    %2153 = vmatprep.subr.mxu0 0.0
    %2154 = vmatpush1.msra.mxu0 0.0
    %2155 = vmatprep.subr.mxu0 0.0
    %2156 = vmatpush1.msra.mxu0 0.0
    %2157 = vmatprep.subr.mxu0 0.0
    %2158 = vmatpush1.msra.mxu0 0.0
    %2159 = vmatprep.mubr.f32.mxu0 0.0
    %2160 = vmatmul.mubr.f32.gmra.mrb[0].mxu0 %v2093
    %v2161 = vpop.f32.mrb[0].mxu0
    %v2162 = vadd.f32 %v2090, %v2161
    %v2163 = vpop.f32.mrb[0].mxu0
    %2164 = vdwg.mxu0
    %v2165 = vmul.f32 %v2162, 1.702
    %v2166 = vxor.u32 %v2165, 2147483648
    %v2167 = vmul.f32 %v2166, 1.442695
    %v2168 = vpow.pop %v2167
    %v2169 = vadd.f32 %v2168, 1.0
    %v2170 = vrcp.pop %v2169
    %v2171 = vmul.f32 1.0, %v2170
    %v2172 = vmul.f32 %v2162, %v2171
    %v2173 = vld [vmem:[%s9] sm:$0xff]
    %v2174 = vld [vmem:[%s9 + $0x8] sm:$0xff]
    %v2175 = vld [vmem:[%s9 + $0x10] sm:$0xff]
    %v2176 = vld [vmem:[%s9 + $0x18] sm:$0xff]
    %v2177 = vld [vmem:[%s9 + $0x20] sm:$0xff]
    %v2178 = vld [vmem:[%s9 + $0x28] sm:$0xff]
    %v2179 = vld [vmem:[%s9 + $0x30] sm:$0xff]
    %v2180 = vld [vmem:[%s9 + $0x38] sm:$0xff]
    %v2181 = vld [vmem:[%s9 + $0x40] sm:$0xff]
    %v2182 = vld [vmem:[%s9 + $0x48] sm:$0xff]
    %v2183 = vld [vmem:[%s9 + $0x50] sm:$0xff]
    %v2184 = vld [vmem:[%s9 + $0x58] sm:$0xff]
    %v2185 = vld [vmem:[%s9 + $0x60] sm:$0xff]
    %v2186 = vld [vmem:[%s9 + $0x68] sm:$0xff]
    %v2187 = vld [vmem:[%s9 + $0x70] sm:$0xff]
    %v2188 = vld [vmem:[%s9 + $0x78] sm:$0xff]
    %2189 = vmatprep.subr.mxu0 0.0
    %2190 = vmatpush1.msra.mxu0 %v2173
    %2191 = vmatprep.subr.mxu0 0.0
    %2192 = vmatpush1.msra.mxu0 %v2174
    %2193 = vmatprep.subr.mxu0 0.0
    %2194 = vmatpush1.msra.mxu0 %v2175
    %2195 = vmatprep.subr.mxu0 0.0
    %2196 = vmatpush1.msra.mxu0 %v2176
    %2197 = vmatprep.subr.mxu0 0.0
    %2198 = vmatpush1.msra.mxu0 %v2177
    %2199 = vmatprep.subr.mxu0 0.0
    %2200 = vmatpush1.msra.mxu0 %v2178
    %2201 = vmatprep.subr.mxu0 0.0
    %2202 = vmatpush1.msra.mxu0 %v2179
    %2203 = vmatprep.subr.mxu0 0.0
    %2204 = vmatpush1.msra.mxu0 %v2180
    %2205 = vmatprep.subr.mxu0 0.0
    %2206 = vmatpush1.msra.mxu0 %v2181
    %2207 = vmatprep.subr.mxu0 0.0
    %2208 = vmatpush1.msra.mxu0 %v2182
    %2209 = vmatprep.subr.mxu0 0.0
    %2210 = vmatpush1.msra.mxu0 %v2183
    %2211 = vmatprep.subr.mxu0 0.0
    %2212 = vmatpush1.msra.mxu0 %v2184
    %2213 = vmatprep.subr.mxu0 0.0
    %2214 = vmatpush1.msra.mxu0 %v2185
    %2215 = vmatprep.subr.mxu0 0.0
    %2216 = vmatpush1.msra.mxu0 %v2186
    %2217 = vmatprep.subr.mxu0 0.0
    %2218 = vmatpush1.msra.mxu0 %v2187
    %2219 = vmatprep.subr.mxu0 0.0
    %2220 = vmatpush1.msra.mxu0 %v2188
    %2221 = vmatprep.subr.mxu0 0.0
    %2222 = vmatpush1.msra.mxu0 0.0
    %2223 = vmatprep.subr.mxu0 0.0
    %2224 = vmatpush1.msra.mxu0 0.0
    %2225 = vmatprep.subr.mxu0 0.0
    %2226 = vmatpush1.msra.mxu0 0.0
    %2227 = vmatprep.subr.mxu0 0.0
    %2228 = vmatpush1.msra.mxu0 0.0
    %2229 = vmatprep.subr.mxu0 0.0
    %2230 = vmatpush1.msra.mxu0 0.0
    %2231 = vmatprep.subr.mxu0 0.0
    %2232 = vmatpush1.msra.mxu0 0.0
    %2233 = vmatprep.subr.mxu0 0.0
    %2234 = vmatpush1.msra.mxu0 0.0
    %2235 = vmatprep.subr.mxu0 0.0
    %2236 = vmatpush1.msra.mxu0 0.0
    %2237 = vmatprep.subr.mxu0 0.0
    %2238 = vmatpush1.msra.mxu0 0.0
    %2239 = vmatprep.subr.mxu0 0.0
    %2240 = vmatpush1.msra.mxu0 0.0
    %2241 = vmatprep.subr.mxu0 0.0
    %2242 = vmatpush1.msra.mxu0 0.0
    %2243 = vmatprep.subr.mxu0 0.0
    %2244 = vmatpush1.msra.mxu0 0.0
    %2245 = vmatprep.subr.mxu0 0.0
    %2246 = vmatpush1.msra.mxu0 0.0
    %2247 = vmatprep.subr.mxu0 0.0
    %2248 = vmatpush1.msra.mxu0 0.0
    %2249 = vmatprep.subr.mxu0 0.0
    %2250 = vmatpush1.msra.mxu0 0.0
    %2251 = vmatprep.subr.mxu0 0.0
    %2252 = vmatpush1.msra.mxu0 0.0
    %2253 = vmatprep.mubr.f32.mxu0 0.0
    %2254 = vmatmul.mubr.f32.gmra.mrb[0].mxu0 %v2172
    %v2255 = vpop.f32.mrb[0].mxu0
    %v2256 = vadd.f32 0.0, %v2255
    %v2257 = vpop.f32.mrb[0].mxu0
    %2258 = vdwg.mxu0
    %v2259 = vadd.f32 %v2057, %v2256
    %v2260 = vlaneseq
    %v2261 = vshrl.u32 %v2260, 7
    %v2262 = vsub.s32 5, %v2261
    %v2263 = vrot.slane %v70, %v2262
    %v2264 = vadd.f32 %v2259, %v2263
    %s2265 = scalar_lea.vmem %s3, 8
    %v2266 = vld [vmem:[%s2265] sm:$0x3f]
    %v2267 = vsel %vm71, %v2264, 0.0
    %2268 = vadd.xlane.f32.xlu0 %v2267
    %v2269 = vpop.xlane.xlu0 %2268
    %v2270 = vmul.f32 %v2269, %v75
    %v2271 = vsub.f32 %v2264, %v2270
    %v2272 = vmul.f32 %v2271, %v2271
    %v2273 = vsel %vm71, %v2272, 0.0
    %2274 = vadd.xlane.f32.xlu0 %v2273
    %v2275 = vpop.xlane.xlu0 %2274
    %v2276 = vmul.f32 %v2275, %v75
    %v2277 = vadd.f32 %v2276, 1e-05
    %v2278 = vrsqrt.pop %v2277
    %v2279 = vmul.f32 %v2271, %v2278
    %v2280 = vlaneseq
    %v2281 = vshrl.u32 %v2280, 7
    %v2282 = vsub.s32 0, %v2281
    %v2283 = vrot.slane %v2266, %v2282
    %v2284 = vmul.f32 %v2279, %v2283
    %v2285 = vlaneseq
    %v2286 = vshrl.u32 %v2285, 7
    %v2287 = vsub.s32 1, %v2286
    %v2288 = vrot.slane %v2266, %v2287
    %v2289 = vadd.f32 %v2284, %v2288
    %s2290 = scalar_lea.vmem %s6, 384
    %v2291 = vld [vmem:[%s2290] sm:$0xff]
    %v2292 = vld [vmem:[%s2290 + $0x8] sm:$0xff]
    %v2293 = vld [vmem:[%s2290 + $0x10] sm:$0xff]
    %v2294 = vld [vmem:[%s2290 + $0x18] sm:$0xff]
    %v2296 = vsel %vm71, %v2289, 0
    %2298 = vmatprep.subr.mxu0 0.0
    %2299 = vmatpush1.msra.mxu0 %v2291
    %2300 = vmatprep.subr.mxu0 0.0
    %2301 = vmatpush1.msra.mxu0 %v2292
    %2302 = vmatprep.subr.mxu0 0.0
    %2303 = vmatpush1.msra.mxu0 %v2293
    %2304 = vmatprep.subr.mxu0 0.0
    %2305 = vmatpush1.msra.mxu0 %v2294
    %2306 = vmatprep.subr.mxu0 0.0
    %2307 = vmatpush1.msra.mxu0 0.0
    %2308 = vmatprep.subr.mxu0 0.0
    %2309 = vmatpush1.msra.mxu0 0.0
    %2310 = vmatprep.subr.mxu0 0.0
    %2311 = vmatpush1.msra.mxu0 0.0
    %2312 = vmatprep.subr.mxu0 0.0
    %2313 = vmatpush1.msra.mxu0 0.0
    %2314 = vmatprep.subr.mxu0 0.0
    %2315 = vmatpush1.msra.mxu0 0.0
    %2316 = vmatprep.subr.mxu0 0.0
    %2317 = vmatpush1.msra.mxu0 0.0
    %2318 = vmatprep.subr.mxu0 0.0
    %2319 = vmatpush1.msra.mxu0 0.0
    %2320 = vmatprep.subr.mxu0 0.0
    %2321 = vmatpush1.msra.mxu0 0.0
    %2322 = vmatprep.subr.mxu0 0.0
    %2323 = vmatpush1.msra.mxu0 0.0
    %2324 = vmatprep.subr.mxu0 0.0
    %2325 = vmatpush1.msra.mxu0 0.0
    %2326 = vmatprep.subr.mxu0 0.0
    %2327 = vmatpush1.msra.mxu0 0.0
    %2328 = vmatprep.subr.mxu0 0.0
    %2329 = vmatpush1.msra.mxu0 0.0
    %2330 = vmatprep.subr.mxu0 0.0
    %2331 = vmatpush1.msra.mxu0 0.0
    %2332 = vmatprep.subr.mxu0 0.0
    %2333 = vmatpush1.msra.mxu0 0.0
    %2334 = vmatprep.subr.mxu0 0.0
    %2335 = vmatpush1.msra.mxu0 0.0
    %2336 = vmatprep.subr.mxu0 0.0
    %2337 = vmatpush1.msra.mxu0 0.0
    %2338 = vmatprep.subr.mxu0 0.0
    %2339 = vmatpush1.msra.mxu0 0.0
    %2340 = vmatprep.subr.mxu0 0.0
    %2341 = vmatpush1.msra.mxu0 0.0
    %2342 = vmatprep.subr.mxu0 0.0
    %2343 = vmatpush1.msra.mxu0 0.0
    %2344 = vmatprep.subr.mxu0 0.0
    %2345 = vmatpush1.msra.mxu0 0.0
    %2346 = vmatprep.subr.mxu0 0.0
    %2347 = vmatpush1.msra.mxu0 0.0
    %2348 = vmatprep.subr.mxu0 0.0
    %2349 = vmatpush1.msra.mxu0 0.0
    %2350 = vmatprep.subr.mxu0 0.0
    %2351 = vmatpush1.msra.mxu0 0.0
    %2352 = vmatprep.subr.mxu0 0.0
    %2353 = vmatpush1.msra.mxu0 0.0
    %2354 = vmatprep.subr.mxu0 0.0
    %2355 = vmatpush1.msra.mxu0 0.0
    %2356 = vmatprep.subr.mxu0 0.0
    %2357 = vmatpush1.msra.mxu0 0.0
    %2358 = vmatprep.subr.mxu0 0.0
    %2359 = vmatpush1.msra.mxu0 0.0
    %2360 = vmatprep.subr.mxu0 0.0
    %2361 = vmatpush1.msra.mxu0 0.0
    %2362 = vmatprep.mubr.f32.mxu0 0.0
    %2363 = vmatmul.mubr.f32.gmra.mrb[0].mxu0 %v2296
    %v2364 = vpop.f32.mrb[0].mxu0
    %v2365 = vadd.f32 0.0, %v2364
    %v2366 = vpop.f32.mrb[0].mxu0
    %2367 = vdwg.mxu0
    %s2368 = scalar_lea.vmem %s6, 416
    %v2369 = vld [vmem:[%s2368] sm:$0xff]
    %v2370 = vld [vmem:[%s2368 + $0x8] sm:$0xff]
    %v2371 = vld [vmem:[%s2368 + $0x10] sm:$0xff]
    %v2372 = vld [vmem:[%s2368 + $0x18] sm:$0xff]
    %2373 = vmatprep.subr.mxu0 0.0
    %2374 = vmatpush1.msra.mxu0 %v2369
    %2375 = vmatprep.subr.mxu0 0.0
    %2376 = vmatpush1.msra.mxu0 %v2370
    %2377 = vmatprep.subr.mxu0 0.0
    %2378 = vmatpush1.msra.mxu0 %v2371
    %2379 = vmatprep.subr.mxu0 0.0
    %2380 = vmatpush1.msra.mxu0 %v2372
    %2381 = vmatprep.subr.mxu0 0.0
    %2382 = vmatpush1.msra.mxu0 0.0
    %2383 = vmatprep.subr.mxu0 0.0
    %2384 = vmatpush1.msra.mxu0 0.0
    %2385 = vmatprep.subr.mxu0 0.0
    %2386 = vmatpush1.msra.mxu0 0.0
    %2387 = vmatprep.subr.mxu0 0.0
    %2388 = vmatpush1.msra.mxu0 0.0
    %2389 = vmatprep.subr.mxu0 0.0
    %2390 = vmatpush1.msra.mxu0 0.0
    %2391 = vmatprep.subr.mxu0 0.0
    %2392 = vmatpush1.msra.mxu0 0.0
    %2393 = vmatprep.subr.mxu0 0.0
    %2394 = vmatpush1.msra.mxu0 0.0
    %2395 = vmatprep.subr.mxu0 0.0
    %2396 = vmatpush1.msra.mxu0 0.0
    %2397 = vmatprep.subr.mxu0 0.0
    %2398 = vmatpush1.msra.mxu0 0.0
    %2399 = vmatprep.subr.mxu0 0.0
    %2400 = vmatpush1.msra.mxu0 0.0
    %2401 = vmatprep.subr.mxu0 0.0
    %2402 = vmatpush1.msra.mxu0 0.0
    %2403 = vmatprep.subr.mxu0 0.0
    %2404 = vmatpush1.msra.mxu0 0.0
    %2405 = vmatprep.subr.mxu0 0.0
    %2406 = vmatpush1.msra.mxu0 0.0
    %2407 = vmatprep.subr.mxu0 0.0
    %2408 = vmatpush1.msra.mxu0 0.0
    %2409 = vmatprep.subr.mxu0 0.0
    %2410 = vmatpush1.msra.mxu0 0.0
    %2411 = vmatprep.subr.mxu0 0.0
    %2412 = vmatpush1.msra.mxu0 0.0
    %2413 = vmatprep.subr.mxu0 0.0
    %2414 = vmatpush1.msra.mxu0 0.0
    %2415 = vmatprep.subr.mxu0 0.0
    %2416 = vmatpush1.msra.mxu0 0.0
    %2417 = vmatprep.subr.mxu0 0.0
    %2418 = vmatpush1.msra.mxu0 0.0
    %2419 = vmatprep.subr.mxu0 0.0
    %2420 = vmatpush1.msra.mxu0 0.0
    %2421 = vmatprep.subr.mxu0 0.0
    %2422 = vmatpush1.msra.mxu0 0.0
    %2423 = vmatprep.subr.mxu0 0.0
    %2424 = vmatpush1.msra.mxu0 0.0
    %2425 = vmatprep.subr.mxu0 0.0
    %2426 = vmatpush1.msra.mxu0 0.0
    %2427 = vmatprep.subr.mxu0 0.0
    %2428 = vmatpush1.msra.mxu0 0.0
    %2429 = vmatprep.subr.mxu0 0.0
    %2430 = vmatpush1.msra.mxu0 0.0
    %2431 = vmatprep.subr.mxu0 0.0
    %2432 = vmatpush1.msra.mxu0 0.0
    %2433 = vmatprep.subr.mxu0 0.0
    %2434 = vmatpush1.msra.mxu0 0.0
    %2435 = vmatprep.subr.mxu0 0.0
    %2436 = vmatpush1.msra.mxu0 0.0
    %2437 = vmatprep.mubr.f32.mxu0 0.0
    %2438 = vmatmul.mubr.f32.gmra.mrb[0].mxu0 %v2296
    %v2439 = vpop.f32.mrb[0].mxu0
    %v2440 = vadd.f32 0.0, %v2439
    %v2441 = vpop.f32.mrb[0].mxu0
    %2442 = vdwg.mxu0
    %s2443 = scalar_lea.vmem %s6, 448
    %v2444 = vld [vmem:[%s2443] sm:$0xff]
    %v2445 = vld [vmem:[%s2443 + $0x8] sm:$0xff]
    %v2446 = vld [vmem:[%s2443 + $0x10] sm:$0xff]
    %v2447 = vld [vmem:[%s2443 + $0x18] sm:$0xff]
    %2448 = vmatprep.subr.mxu0 0.0
    %2449 = vmatpush1.msra.mxu0 %v2444
    %2450 = vmatprep.subr.mxu0 0.0
    %2451 = vmatpush1.msra.mxu0 %v2445
    %2452 = vmatprep.subr.mxu0 0.0
    %2453 = vmatpush1.msra.mxu0 %v2446
    %2454 = vmatprep.subr.mxu0 0.0
    %2455 = vmatpush1.msra.mxu0 %v2447
    %2456 = vmatprep.subr.mxu0 0.0
    %2457 = vmatpush1.msra.mxu0 0.0
    %2458 = vmatprep.subr.mxu0 0.0
    %2459 = vmatpush1.msra.mxu0 0.0
    %2460 = vmatprep.subr.mxu0 0.0
    %2461 = vmatpush1.msra.mxu0 0.0
    %2462 = vmatprep.subr.mxu0 0.0
    %2463 = vmatpush1.msra.mxu0 0.0
    %2464 = vmatprep.subr.mxu0 0.0
    %2465 = vmatpush1.msra.mxu0 0.0
    %2466 = vmatprep.subr.mxu0 0.0
    %2467 = vmatpush1.msra.mxu0 0.0
    %2468 = vmatprep.subr.mxu0 0.0
    %2469 = vmatpush1.msra.mxu0 0.0
    %2470 = vmatprep.subr.mxu0 0.0
    %2471 = vmatpush1.msra.mxu0 0.0
    %2472 = vmatprep.subr.mxu0 0.0
    %2473 = vmatpush1.msra.mxu0 0.0
    %2474 = vmatprep.subr.mxu0 0.0
    %2475 = vmatpush1.msra.mxu0 0.0
    %2476 = vmatprep.subr.mxu0 0.0
    %2477 = vmatpush1.msra.mxu0 0.0
    %2478 = vmatprep.subr.mxu0 0.0
    %2479 = vmatpush1.msra.mxu0 0.0
    %2480 = vmatprep.subr.mxu0 0.0
    %2481 = vmatpush1.msra.mxu0 0.0
    %2482 = vmatprep.subr.mxu0 0.0
    %2483 = vmatpush1.msra.mxu0 0.0
    %2484 = vmatprep.subr.mxu0 0.0
    %2485 = vmatpush1.msra.mxu0 0.0
    %2486 = vmatprep.subr.mxu0 0.0
    %2487 = vmatpush1.msra.mxu0 0.0
    %2488 = vmatprep.subr.mxu0 0.0
    %2489 = vmatpush1.msra.mxu0 0.0
    %2490 = vmatprep.subr.mxu0 0.0
    %2491 = vmatpush1.msra.mxu0 0.0
    %2492 = vmatprep.subr.mxu0 0.0
    %2493 = vmatpush1.msra.mxu0 0.0
    %2494 = vmatprep.subr.mxu0 0.0
    %2495 = vmatpush1.msra.mxu0 0.0
    %2496 = vmatprep.subr.mxu0 0.0
    %2497 = vmatpush1.msra.mxu0 0.0
    %2498 = vmatprep.subr.mxu0 0.0
    %2499 = vmatpush1.msra.mxu0 0.0
    %2500 = vmatprep.subr.mxu0 0.0
    %2501 = vmatpush1.msra.mxu0 0.0
    %2502 = vmatprep.subr.mxu0 0.0
    %2503 = vmatpush1.msra.mxu0 0.0
    %2504 = vmatprep.subr.mxu0 0.0
    %2505 = vmatpush1.msra.mxu0 0.0
    %2506 = vmatprep.subr.mxu0 0.0
    %2507 = vmatpush1.msra.mxu0 0.0
    %2508 = vmatprep.subr.mxu0 0.0
    %2509 = vmatpush1.msra.mxu0 0.0
    %2510 = vmatprep.subr.mxu0 0.0
    %2511 = vmatpush1.msra.mxu0 0.0
    %2512 = vmatprep.mubr.f32.mxu0 0.0
    %2513 = vmatmul.mubr.f32.gmra.mrb[0].mxu0 %v2296
    %v2514 = vpop.f32.mrb[0].mxu0
    %v2515 = vadd.f32 0.0, %v2514
    %v2516 = vpop.f32.mrb[0].mxu0
    %2517 = vdwg.mxu0
    %s2518 = scalar_lea.vmem %s6, 480
    %v2519 = vld [vmem:[%s2518] sm:$0xff]
    %v2520 = vld [vmem:[%s2518 + $0x8] sm:$0xff]
    %v2521 = vld [vmem:[%s2518 + $0x10] sm:$0xff]
    %v2522 = vld [vmem:[%s2518 + $0x18] sm:$0xff]
    %2523 = vmatprep.subr.mxu0 0.0
    %2524 = vmatpush1.msra.mxu0 %v2519
    %2525 = vmatprep.subr.mxu0 0.0
    %2526 = vmatpush1.msra.mxu0 %v2520
    %2527 = vmatprep.subr.mxu0 0.0
    %2528 = vmatpush1.msra.mxu0 %v2521
    %2529 = vmatprep.subr.mxu0 0.0
    %2530 = vmatpush1.msra.mxu0 %v2522
    %2531 = vmatprep.subr.mxu0 0.0
    %2532 = vmatpush1.msra.mxu0 0.0
    %2533 = vmatprep.subr.mxu0 0.0
    %2534 = vmatpush1.msra.mxu0 0.0
    %2535 = vmatprep.subr.mxu0 0.0
    %2536 = vmatpush1.msra.mxu0 0.0
    %2537 = vmatprep.subr.mxu0 0.0
    %2538 = vmatpush1.msra.mxu0 0.0
    %2539 = vmatprep.subr.mxu0 0.0
    %2540 = vmatpush1.msra.mxu0 0.0
    %2541 = vmatprep.subr.mxu0 0.0
    %2542 = vmatpush1.msra.mxu0 0.0
    %2543 = vmatprep.subr.mxu0 0.0
    %2544 = vmatpush1.msra.mxu0 0.0
    %2545 = vmatprep.subr.mxu0 0.0
    %2546 = vmatpush1.msra.mxu0 0.0
    %2547 = vmatprep.subr.mxu0 0.0
    %2548 = vmatpush1.msra.mxu0 0.0
    %2549 = vmatprep.subr.mxu0 0.0
    %2550 = vmatpush1.msra.mxu0 0.0
    %2551 = vmatprep.subr.mxu0 0.0
    %2552 = vmatpush1.msra.mxu0 0.0
    %2553 = vmatprep.subr.mxu0 0.0
    %2554 = vmatpush1.msra.mxu0 0.0
    %2555 = vmatprep.subr.mxu0 0.0
    %2556 = vmatpush1.msra.mxu0 0.0
    %2557 = vmatprep.subr.mxu0 0.0
    %2558 = vmatpush1.msra.mxu0 0.0
    %2559 = vmatprep.subr.mxu0 0.0
    %2560 = vmatpush1.msra.mxu0 0.0
    %2561 = vmatprep.subr.mxu0 0.0
    %2562 = vmatpush1.msra.mxu0 0.0
    %2563 = vmatprep.subr.mxu0 0.0
    %2564 = vmatpush1.msra.mxu0 0.0
    %2565 = vmatprep.subr.mxu0 0.0
    %2566 = vmatpush1.msra.mxu0 0.0
    %2567 = vmatprep.subr.mxu0 0.0
    %2568 = vmatpush1.msra.mxu0 0.0
    %2569 = vmatprep.subr.mxu0 0.0
    %2570 = vmatpush1.msra.mxu0 0.0
    %2571 = vmatprep.subr.mxu0 0.0
    %2572 = vmatpush1.msra.mxu0 0.0
    %2573 = vmatprep.subr.mxu0 0.0
    %2574 = vmatpush1.msra.mxu0 0.0
    %2575 = vmatprep.subr.mxu0 0.0
    %2576 = vmatpush1.msra.mxu0 0.0
    %2577 = vmatprep.subr.mxu0 0.0
    %2578 = vmatpush1.msra.mxu0 0.0
    %2579 = vmatprep.subr.mxu0 0.0
    %2580 = vmatpush1.msra.mxu0 0.0
    %2581 = vmatprep.subr.mxu0 0.0
    %2582 = vmatpush1.msra.mxu0 0.0
    %2583 = vmatprep.subr.mxu0 0.0
    %2584 = vmatpush1.msra.mxu0 0.0
    %2585 = vmatprep.subr.mxu0 0.0
    %2586 = vmatpush1.msra.mxu0 0.0
    %2587 = vmatprep.mubr.f32.mxu0 0.0
    %2588 = vmatmul.mubr.f32.gmra.mrb[0].mxu0 %v2296
    %v2589 = vpop.f32.mrb[0].mxu0
    %v2590 = vadd.f32 0.0, %v2589
    %v2591 = vpop.f32.mrb[0].mxu0
    %2592 = vdwg.mxu0
    %s2593 = scalar_lea.vmem %s4, 12
    %v2594 = vld [vmem:[%s2593] sm:$0x1]
    %v2595 = vld [vmem:[%s2593 + $0x1] sm:$0x1]
    %v2596 = vld [vmem:[%s2593 + $0x2] sm:$0x1]
    %v2597 = vld [vmem:[%s2593 + $0x3] sm:$0x1]
    %v2602 = vlaneseq
    %v2603 = vshrl.u32 %v2602, 7
    %v2604 = vsub.s32 0, %v2603
    %v2605 = vrot.slane %v2594, %v2604
    %v2606 = vlaneseq
    %v2607 = vshrl.u32 %v2606, 7
    %v2608 = vsub.s32 0, %v2607
    %v2609 = vrot.slane %v2595, %v2608
    %v2610 = vlaneseq
    %v2611 = vshrl.u32 %v2610, 7
    %v2612 = vsub.s32 0, %v2611
    %v2613 = vrot.slane %v2596, %v2612
    %v2614 = vlaneseq
    %v2615 = vshrl.u32 %v2614, 7
    %v2616 = vsub.s32 0, %v2615
    %v2617 = vrot.slane %v2597, %v2616
    %v2622 = vadd.f32 %v2365, %v2605
    %v2623 = vadd.f32 %v2440, %v2609
    %v2624 = vadd.f32 %v2515, %v2613
    %v2625 = vadd.f32 %v2590, %v2617
    %s2626 = scalar_lea.vmem %s6, 512
    %v2627 = vld [vmem:[%s2626] sm:$0xff]
    %v2628 = vld [vmem:[%s2626 + $0x8] sm:$0xff]
    %v2629 = vld [vmem:[%s2626 + $0x10] sm:$0xff]
    %v2630 = vld [vmem:[%s2626 + $0x18] sm:$0xff]
    %2631 = vmatprep.subr.mxu0 0.0
    %2632 = vmatpush1.msra.mxu0 %v2627
    %2633 = vmatprep.subr.mxu0 0.0
    %2634 = vmatpush1.msra.mxu0 %v2628
    %2635 = vmatprep.subr.mxu0 0.0
    %2636 = vmatpush1.msra.mxu0 %v2629
    %2637 = vmatprep.subr.mxu0 0.0
    %2638 = vmatpush1.msra.mxu0 %v2630
    %2639 = vmatprep.subr.mxu0 0.0
    %2640 = vmatpush1.msra.mxu0 0.0
    %2641 = vmatprep.subr.mxu0 0.0
    %2642 = vmatpush1.msra.mxu0 0.0
    %2643 = vmatprep.subr.mxu0 0.0
    %2644 = vmatpush1.msra.mxu0 0.0
    %2645 = vmatprep.subr.mxu0 0.0
    %2646 = vmatpush1.msra.mxu0 0.0
    %2647 = vmatprep.subr.mxu0 0.0
    %2648 = vmatpush1.msra.mxu0 0.0
    %2649 = vmatprep.subr.mxu0 0.0
    %2650 = vmatpush1.msra.mxu0 0.0
    %2651 = vmatprep.subr.mxu0 0.0
    %2652 = vmatpush1.msra.mxu0 0.0
    %2653 = vmatprep.subr.mxu0 0.0
    %2654 = vmatpush1.msra.mxu0 0.0
    %2655 = vmatprep.subr.mxu0 0.0
    %2656 = vmatpush1.msra.mxu0 0.0
    %2657 = vmatprep.subr.mxu0 0.0
    %2658 = vmatpush1.msra.mxu0 0.0
    %2659 = vmatprep.subr.mxu0 0.0
    %2660 = vmatpush1.msra.mxu0 0.0
    %2661 = vmatprep.subr.mxu0 0.0
    %2662 = vmatpush1.msra.mxu0 0.0
    %2663 = vmatprep.subr.mxu0 0.0
    %2664 = vmatpush1.msra.mxu0 0.0
    %2665 = vmatprep.subr.mxu0 0.0
    %2666 = vmatpush1.msra.mxu0 0.0
    %2667 = vmatprep.subr.mxu0 0.0
    %2668 = vmatpush1.msra.mxu0 0.0
    %2669 = vmatprep.subr.mxu0 0.0
    %2670 = vmatpush1.msra.mxu0 0.0
    %2671 = vmatprep.subr.mxu0 0.0
    %2672 = vmatpush1.msra.mxu0 0.0
    %2673 = vmatprep.subr.mxu0 0.0
    %2674 = vmatpush1.msra.mxu0 0.0
    %2675 = vmatprep.subr.mxu0 0.0
    %2676 = vmatpush1.msra.mxu0 0.0
    %2677 = vmatprep.subr.mxu0 0.0
    %2678 = vmatpush1.msra.mxu0 0.0
    %2679 = vmatprep.subr.mxu0 0.0
    %2680 = vmatpush1.msra.mxu0 0.0
    %2681 = vmatprep.subr.mxu0 0.0
    %2682 = vmatpush1.msra.mxu0 0.0
    %2683 = vmatprep.subr.mxu0 0.0
    %2684 = vmatpush1.msra.mxu0 0.0
    %2685 = vmatprep.subr.mxu0 0.0
    %2686 = vmatpush1.msra.mxu0 0.0
    %2687 = vmatprep.subr.mxu0 0.0
    %2688 = vmatpush1.msra.mxu0 0.0
    %2689 = vmatprep.subr.mxu0 0.0
    %2690 = vmatpush1.msra.mxu0 0.0
    %2691 = vmatprep.subr.mxu0 0.0
    %2692 = vmatpush1.msra.mxu0 0.0
    %2693 = vmatprep.subr.mxu0 0.0
    %2694 = vmatpush1.msra.mxu0 0.0
    %2695 = vmatprep.mubr.f32.mxu0 0.0
    %2696 = vmatmul.mubr.f32.gmra.mrb[0].mxu0 %v2296
    %v2697 = vpop.f32.mrb[0].mxu0
    %v2698 = vadd.f32 0.0, %v2697
    %v2699 = vpop.f32.mrb[0].mxu0
    %2700 = vdwg.mxu0
    %s2701 = scalar_lea.vmem %s6, 544
    %v2702 = vld [vmem:[%s2701] sm:$0xff]
    %v2703 = vld [vmem:[%s2701 + $0x8] sm:$0xff]
    %v2704 = vld [vmem:[%s2701 + $0x10] sm:$0xff]
    %v2705 = vld [vmem:[%s2701 + $0x18] sm:$0xff]
    %2706 = vmatprep.subr.mxu0 0.0
    %2707 = vmatpush1.msra.mxu0 %v2702
    %2708 = vmatprep.subr.mxu0 0.0
    %2709 = vmatpush1.msra.mxu0 %v2703
    %2710 = vmatprep.subr.mxu0 0.0
    %2711 = vmatpush1.msra.mxu0 %v2704
    %2712 = vmatprep.subr.mxu0 0.0
    %2713 = vmatpush1.msra.mxu0 %v2705
    %2714 = vmatprep.subr.mxu0 0.0
    %2715 = vmatpush1.msra.mxu0 0.0
    %2716 = vmatprep.subr.mxu0 0.0
    %2717 = vmatpush1.msra.mxu0 0.0
    %2718 = vmatprep.subr.mxu0 0.0
    %2719 = vmatpush1.msra.mxu0 0.0
    %2720 = vmatprep.subr.mxu0 0.0
    %2721 = vmatpush1.msra.mxu0 0.0
    %2722 = vmatprep.subr.mxu0 0.0
    %2723 = vmatpush1.msra.mxu0 0.0
    %2724 = vmatprep.subr.mxu0 0.0
    %2725 = vmatpush1.msra.mxu0 0.0
    %2726 = vmatprep.subr.mxu0 0.0
    %2727 = vmatpush1.msra.mxu0 0.0
    %2728 = vmatprep.subr.mxu0 0.0
    %2729 = vmatpush1.msra.mxu0 0.0
    %2730 = vmatprep.subr.mxu0 0.0
    %2731 = vmatpush1.msra.mxu0 0.0
    %2732 = vmatprep.subr.mxu0 0.0
    %2733 = vmatpush1.msra.mxu0 0.0
    %2734 = vmatprep.subr.mxu0 0.0
    %2735 = vmatpush1.msra.mxu0 0.0
    %2736 = vmatprep.subr.mxu0 0.0
    %2737 = vmatpush1.msra.mxu0 0.0
    %2738 = vmatprep.subr.mxu0 0.0
    %2739 = vmatpush1.msra.mxu0 0.0
    %2740 = vmatprep.subr.mxu0 0.0
    %2741 = vmatpush1.msra.mxu0 0.0
    %2742 = vmatprep.subr.mxu0 0.0
    %2743 = vmatpush1.msra.mxu0 0.0
    %2744 = vmatprep.subr.mxu0 0.0
    %2745 = vmatpush1.msra.mxu0 0.0
    %2746 = vmatprep.subr.mxu0 0.0
    %2747 = vmatpush1.msra.mxu0 0.0
    %2748 = vmatprep.subr.mxu0 0.0
    %2749 = vmatpush1.msra.mxu0 0.0
    %2750 = vmatprep.subr.mxu0 0.0
    %2751 = vmatpush1.msra.mxu0 0.0
    %2752 = vmatprep.subr.mxu0 0.0
    %2753 = vmatpush1.msra.mxu0 0.0
    %2754 = vmatprep.subr.mxu0 0.0
    %2755 = vmatpush1.msra.mxu0 0.0
    %2756 = vmatprep.subr.mxu0 0.0
    %2757 = vmatpush1.msra.mxu0 0.0
    %2758 = vmatprep.subr.mxu0 0.0
    %2759 = vmatpush1.msra.mxu0 0.0
    %2760 = vmatprep.subr.mxu0 0.0
    %2761 = vmatpush1.msra.mxu0 0.0
    %2762 = vmatprep.subr.mxu0 0.0
    %2763 = vmatpush1.msra.mxu0 0.0
    %2764 = vmatprep.subr.mxu0 0.0
    %2765 = vmatpush1.msra.mxu0 0.0
    %2766 = vmatprep.subr.mxu0 0.0
    %2767 = vmatpush1.msra.mxu0 0.0
    %2768 = vmatprep.subr.mxu0 0.0
    %2769 = vmatpush1.msra.mxu0 0.0
    %2770 = vmatprep.mubr.f32.mxu0 0.0
    %2771 = vmatmul.mubr.f32.gmra.mrb[0].mxu0 %v2296
    %v2772 = vpop.f32.mrb[0].mxu0
    %v2773 = vadd.f32 0.0, %v2772
    %v2774 = vpop.f32.mrb[0].mxu0
    %2775 = vdwg.mxu0
    %s2776 = scalar_lea.vmem %s6, 576
    %v2777 = vld [vmem:[%s2776] sm:$0xff]
    %v2778 = vld [vmem:[%s2776 + $0x8] sm:$0xff]
    %v2779 = vld [vmem:[%s2776 + $0x10] sm:$0xff]
    %v2780 = vld [vmem:[%s2776 + $0x18] sm:$0xff]
    %2781 = vmatprep.subr.mxu0 0.0
    %2782 = vmatpush1.msra.mxu0 %v2777
    %2783 = vmatprep.subr.mxu0 0.0
    %2784 = vmatpush1.msra.mxu0 %v2778
    %2785 = vmatprep.subr.mxu0 0.0
    %2786 = vmatpush1.msra.mxu0 %v2779
    %2787 = vmatprep.subr.mxu0 0.0
    %2788 = vmatpush1.msra.mxu0 %v2780
    %2789 = vmatprep.subr.mxu0 0.0
    %2790 = vmatpush1.msra.mxu0 0.0
    %2791 = vmatprep.subr.mxu0 0.0
    %2792 = vmatpush1.msra.mxu0 0.0
    %2793 = vmatprep.subr.mxu0 0.0
    %2794 = vmatpush1.msra.mxu0 0.0
    %2795 = vmatprep.subr.mxu0 0.0
    %2796 = vmatpush1.msra.mxu0 0.0
    %2797 = vmatprep.subr.mxu0 0.0
    %2798 = vmatpush1.msra.mxu0 0.0
    %2799 = vmatprep.subr.mxu0 0.0
    %2800 = vmatpush1.msra.mxu0 0.0
    %2801 = vmatprep.subr.mxu0 0.0
    %2802 = vmatpush1.msra.mxu0 0.0
    %2803 = vmatprep.subr.mxu0 0.0
    %2804 = vmatpush1.msra.mxu0 0.0
    %2805 = vmatprep.subr.mxu0 0.0
    %2806 = vmatpush1.msra.mxu0 0.0
    %2807 = vmatprep.subr.mxu0 0.0
    %2808 = vmatpush1.msra.mxu0 0.0
    %2809 = vmatprep.subr.mxu0 0.0
    %2810 = vmatpush1.msra.mxu0 0.0
    %2811 = vmatprep.subr.mxu0 0.0
    %2812 = vmatpush1.msra.mxu0 0.0
    %2813 = vmatprep.subr.mxu0 0.0
    %2814 = vmatpush1.msra.mxu0 0.0
    %2815 = vmatprep.subr.mxu0 0.0
    %2816 = vmatpush1.msra.mxu0 0.0
    %2817 = vmatprep.subr.mxu0 0.0
    %2818 = vmatpush1.msra.mxu0 0.0
    %2819 = vmatprep.subr.mxu0 0.0
    %2820 = vmatpush1.msra.mxu0 0.0
    %2821 = vmatprep.subr.mxu0 0.0
    %2822 = vmatpush1.msra.mxu0 0.0
    %2823 = vmatprep.subr.mxu0 0.0
    %2824 = vmatpush1.msra.mxu0 0.0
    %2825 = vmatprep.subr.mxu0 0.0
    %2826 = vmatpush1.msra.mxu0 0.0
    %2827 = vmatprep.subr.mxu0 0.0
    %2828 = vmatpush1.msra.mxu0 0.0
    %2829 = vmatprep.subr.mxu0 0.0
    %2830 = vmatpush1.msra.mxu0 0.0
    %2831 = vmatprep.subr.mxu0 0.0
    %2832 = vmatpush1.msra.mxu0 0.0
    %2833 = vmatprep.subr.mxu0 0.0
    %2834 = vmatpush1.msra.mxu0 0.0
    %2835 = vmatprep.subr.mxu0 0.0
    %2836 = vmatpush1.msra.mxu0 0.0
    %2837 = vmatprep.subr.mxu0 0.0
    %2838 = vmatpush1.msra.mxu0 0.0
    %2839 = vmatprep.subr.mxu0 0.0
    %2840 = vmatpush1.msra.mxu0 0.0
    %2841 = vmatprep.subr.mxu0 0.0
    %2842 = vmatpush1.msra.mxu0 0.0
    %2843 = vmatprep.subr.mxu0 0.0
    %2844 = vmatpush1.msra.mxu0 0.0
    %2845 = vmatprep.mubr.f32.mxu0 0.0
    %2846 = vmatmul.mubr.f32.gmra.mrb[0].mxu0 %v2296
    %v2847 = vpop.f32.mrb[0].mxu0
    %v2848 = vadd.f32 0.0, %v2847
    %v2849 = vpop.f32.mrb[0].mxu0
    %2850 = vdwg.mxu0
    %s2851 = scalar_lea.vmem %s6, 608
    %v2852 = vld [vmem:[%s2851] sm:$0xff]
    %v2853 = vld [vmem:[%s2851 + $0x8] sm:$0xff]
    %v2854 = vld [vmem:[%s2851 + $0x10] sm:$0xff]
    %v2855 = vld [vmem:[%s2851 + $0x18] sm:$0xff]
    %2856 = vmatprep.subr.mxu0 0.0
    %2857 = vmatpush1.msra.mxu0 %v2852
    %2858 = vmatprep.subr.mxu0 0.0
    %2859 = vmatpush1.msra.mxu0 %v2853
    %2860 = vmatprep.subr.mxu0 0.0
    %2861 = vmatpush1.msra.mxu0 %v2854
    %2862 = vmatprep.subr.mxu0 0.0
    %2863 = vmatpush1.msra.mxu0 %v2855
    %2864 = vmatprep.subr.mxu0 0.0
    %2865 = vmatpush1.msra.mxu0 0.0
    %2866 = vmatprep.subr.mxu0 0.0
    %2867 = vmatpush1.msra.mxu0 0.0
    %2868 = vmatprep.subr.mxu0 0.0
    %2869 = vmatpush1.msra.mxu0 0.0
    %2870 = vmatprep.subr.mxu0 0.0
    %2871 = vmatpush1.msra.mxu0 0.0
    %2872 = vmatprep.subr.mxu0 0.0
    %2873 = vmatpush1.msra.mxu0 0.0
    %2874 = vmatprep.subr.mxu0 0.0
    %2875 = vmatpush1.msra.mxu0 0.0
    %2876 = vmatprep.subr.mxu0 0.0
    %2877 = vmatpush1.msra.mxu0 0.0
    %2878 = vmatprep.subr.mxu0 0.0
    %2879 = vmatpush1.msra.mxu0 0.0
    %2880 = vmatprep.subr.mxu0 0.0
    %2881 = vmatpush1.msra.mxu0 0.0
    %2882 = vmatprep.subr.mxu0 0.0
    %2883 = vmatpush1.msra.mxu0 0.0
    %2884 = vmatprep.subr.mxu0 0.0
    %2885 = vmatpush1.msra.mxu0 0.0
    %2886 = vmatprep.subr.mxu0 0.0
    %2887 = vmatpush1.msra.mxu0 0.0
    %2888 = vmatprep.subr.mxu0 0.0
    %2889 = vmatpush1.msra.mxu0 0.0
    %2890 = vmatprep.subr.mxu0 0.0
    %2891 = vmatpush1.msra.mxu0 0.0
    %2892 = vmatprep.subr.mxu0 0.0
    %2893 = vmatpush1.msra.mxu0 0.0
    %2894 = vmatprep.subr.mxu0 0.0
    %2895 = vmatpush1.msra.mxu0 0.0
    %2896 = vmatprep.subr.mxu0 0.0
    %2897 = vmatpush1.msra.mxu0 0.0
    %2898 = vmatprep.subr.mxu0 0.0
    %2899 = vmatpush1.msra.mxu0 0.0
    %2900 = vmatprep.subr.mxu0 0.0
    %2901 = vmatpush1.msra.mxu0 0.0
    %2902 = vmatprep.subr.mxu0 0.0
    %2903 = vmatpush1.msra.mxu0 0.0
    %2904 = vmatprep.subr.mxu0 0.0
    %2905 = vmatpush1.msra.mxu0 0.0
    %2906 = vmatprep.subr.mxu0 0.0
    %2907 = vmatpush1.msra.mxu0 0.0
    %2908 = vmatprep.subr.mxu0 0.0
    %2909 = vmatpush1.msra.mxu0 0.0
    %2910 = vmatprep.subr.mxu0 0.0
    %2911 = vmatpush1.msra.mxu0 0.0
    %2912 = vmatprep.subr.mxu0 0.0
    %2913 = vmatpush1.msra.mxu0 0.0
    %2914 = vmatprep.subr.mxu0 0.0
    %2915 = vmatpush1.msra.mxu0 0.0
    %2916 = vmatprep.subr.mxu0 0.0
    %2917 = vmatpush1.msra.mxu0 0.0
    %2918 = vmatprep.subr.mxu0 0.0
    %2919 = vmatpush1.msra.mxu0 0.0
    %2920 = vmatprep.mubr.f32.mxu0 0.0
    %2921 = vmatmul.mubr.f32.gmra.mrb[0].mxu0 %v2296
    %v2922 = vpop.f32.mrb[0].mxu0
    %v2923 = vadd.f32 0.0, %v2922
    %v2924 = vpop.f32.mrb[0].mxu0
    %2925 = vdwg.mxu0
    %s2926 = scalar_lea.vmem %s4, 16
    %v2927 = vld [vmem:[%s2926] sm:$0x1]
    %v2928 = vld [vmem:[%s2926 + $0x1] sm:$0x1]
    %v2929 = vld [vmem:[%s2926 + $0x2] sm:$0x1]
    %v2930 = vld [vmem:[%s2926 + $0x3] sm:$0x1]
    %v2935 = vlaneseq
    %v2936 = vshrl.u32 %v2935, 7
    %v2937 = vsub.s32 0, %v2936
    %v2938 = vrot.slane %v2927, %v2937
    %v2939 = vlaneseq
    %v2940 = vshrl.u32 %v2939, 7
    %v2941 = vsub.s32 0, %v2940
    %v2942 = vrot.slane %v2928, %v2941
    %v2943 = vlaneseq
    %v2944 = vshrl.u32 %v2943, 7
    %v2945 = vsub.s32 0, %v2944
    %v2946 = vrot.slane %v2929, %v2945
    %v2947 = vlaneseq
    %v2948 = vshrl.u32 %v2947, 7
    %v2949 = vsub.s32 0, %v2948
    %v2950 = vrot.slane %v2930, %v2949
    %v2955 = vadd.f32 %v2698, %v2938
    %v2956 = vadd.f32 %v2773, %v2942
    %v2957 = vadd.f32 %v2848, %v2946
    %v2958 = vadd.f32 %v2923, %v2950
    %s2959 = scalar_lea.vmem %s6, 640
    %v2960 = vld [vmem:[%s2959] sm:$0xff]
    %v2961 = vld [vmem:[%s2959 + $0x8] sm:$0xff]
    %v2962 = vld [vmem:[%s2959 + $0x10] sm:$0xff]
    %v2963 = vld [vmem:[%s2959 + $0x18] sm:$0xff]
    %2964 = vmatprep.subr.mxu0 0.0
    %2965 = vmatpush1.msra.mxu0 %v2960
    %2966 = vmatprep.subr.mxu0 0.0
    %2967 = vmatpush1.msra.mxu0 %v2961
    %2968 = vmatprep.subr.mxu0 0.0
    %2969 = vmatpush1.msra.mxu0 %v2962
    %2970 = vmatprep.subr.mxu0 0.0
    %2971 = vmatpush1.msra.mxu0 %v2963
    %2972 = vmatprep.subr.mxu0 0.0
    %2973 = vmatpush1.msra.mxu0 0.0
    %2974 = vmatprep.subr.mxu0 0.0
    %2975 = vmatpush1.msra.mxu0 0.0
    %2976 = vmatprep.subr.mxu0 0.0
    %2977 = vmatpush1.msra.mxu0 0.0
    %2978 = vmatprep.subr.mxu0 0.0
    %2979 = vmatpush1.msra.mxu0 0.0
    %2980 = vmatprep.subr.mxu0 0.0
    %2981 = vmatpush1.msra.mxu0 0.0
    %2982 = vmatprep.subr.mxu0 0.0
    %2983 = vmatpush1.msra.mxu0 0.0
    %2984 = vmatprep.subr.mxu0 0.0
    %2985 = vmatpush1.msra.mxu0 0.0
    %2986 = vmatprep.subr.mxu0 0.0
    %2987 = vmatpush1.msra.mxu0 0.0
    %2988 = vmatprep.subr.mxu0 0.0
    %2989 = vmatpush1.msra.mxu0 0.0
    %2990 = vmatprep.subr.mxu0 0.0
    %2991 = vmatpush1.msra.mxu0 0.0
    %2992 = vmatprep.subr.mxu0 0.0
    %2993 = vmatpush1.msra.mxu0 0.0
    %2994 = vmatprep.subr.mxu0 0.0
    %2995 = vmatpush1.msra.mxu0 0.0
    %2996 = vmatprep.subr.mxu0 0.0
    %2997 = vmatpush1.msra.mxu0 0.0
    %2998 = vmatprep.subr.mxu0 0.0
    %2999 = vmatpush1.msra.mxu0 0.0
    %3000 = vmatprep.subr.mxu0 0.0
    %3001 = vmatpush1.msra.mxu0 0.0
    %3002 = vmatprep.subr.mxu0 0.0
    %3003 = vmatpush1.msra.mxu0 0.0
    %3004 = vmatprep.subr.mxu0 0.0
    %3005 = vmatpush1.msra.mxu0 0.0
    %3006 = vmatprep.subr.mxu0 0.0
    %3007 = vmatpush1.msra.mxu0 0.0
    %3008 = vmatprep.subr.mxu0 0.0
    %3009 = vmatpush1.msra.mxu0 0.0
    %3010 = vmatprep.subr.mxu0 0.0
    %3011 = vmatpush1.msra.mxu0 0.0
    %3012 = vmatprep.subr.mxu0 0.0
    %3013 = vmatpush1.msra.mxu0 0.0
    %3014 = vmatprep.subr.mxu0 0.0
    %3015 = vmatpush1.msra.mxu0 0.0
    %3016 = vmatprep.subr.mxu0 0.0
    %3017 = vmatpush1.msra.mxu0 0.0
    %3018 = vmatprep.subr.mxu0 0.0
    %3019 = vmatpush1.msra.mxu0 0.0
    %3020 = vmatprep.subr.mxu0 0.0
    %3021 = vmatpush1.msra.mxu0 0.0
    %3022 = vmatprep.subr.mxu0 0.0
    %3023 = vmatpush1.msra.mxu0 0.0
    %3024 = vmatprep.subr.mxu0 0.0
    %3025 = vmatpush1.msra.mxu0 0.0
    %3026 = vmatprep.subr.mxu0 0.0
    %3027 = vmatpush1.msra.mxu0 0.0
    %3028 = vmatprep.mubr.f32.mxu0 0.0
    %3029 = vmatmul.mubr.f32.gmra.mrb[0].mxu0 %v2296
    %v3030 = vpop.f32.mrb[0].mxu0
    %v3031 = vadd.f32 0.0, %v3030
    %v3032 = vpop.f32.mrb[0].mxu0
    %3033 = vdwg.mxu0
    %s3034 = scalar_lea.vmem %s6, 672
    %v3035 = vld [vmem:[%s3034] sm:$0xff]
    %v3036 = vld [vmem:[%s3034 + $0x8] sm:$0xff]
    %v3037 = vld [vmem:[%s3034 + $0x10] sm:$0xff]
    %v3038 = vld [vmem:[%s3034 + $0x18] sm:$0xff]
    %3039 = vmatprep.subr.mxu0 0.0
    %3040 = vmatpush1.msra.mxu0 %v3035
    %3041 = vmatprep.subr.mxu0 0.0
    %3042 = vmatpush1.msra.mxu0 %v3036
    %3043 = vmatprep.subr.mxu0 0.0
    %3044 = vmatpush1.msra.mxu0 %v3037
    %3045 = vmatprep.subr.mxu0 0.0
    %3046 = vmatpush1.msra.mxu0 %v3038
    %3047 = vmatprep.subr.mxu0 0.0
    %3048 = vmatpush1.msra.mxu0 0.0
    %3049 = vmatprep.subr.mxu0 0.0
    %3050 = vmatpush1.msra.mxu0 0.0
    %3051 = vmatprep.subr.mxu0 0.0
    %3052 = vmatpush1.msra.mxu0 0.0
    %3053 = vmatprep.subr.mxu0 0.0
    %3054 = vmatpush1.msra.mxu0 0.0
    %3055 = vmatprep.subr.mxu0 0.0
    %3056 = vmatpush1.msra.mxu0 0.0
    %3057 = vmatprep.subr.mxu0 0.0
    %3058 = vmatpush1.msra.mxu0 0.0
    %3059 = vmatprep.subr.mxu0 0.0
    %3060 = vmatpush1.msra.mxu0 0.0
    %3061 = vmatprep.subr.mxu0 0.0
    %3062 = vmatpush1.msra.mxu0 0.0
    %3063 = vmatprep.subr.mxu0 0.0
    %3064 = vmatpush1.msra.mxu0 0.0
    %3065 = vmatprep.subr.mxu0 0.0
    %3066 = vmatpush1.msra.mxu0 0.0
    %3067 = vmatprep.subr.mxu0 0.0
    %3068 = vmatpush1.msra.mxu0 0.0
    %3069 = vmatprep.subr.mxu0 0.0
    %3070 = vmatpush1.msra.mxu0 0.0
    %3071 = vmatprep.subr.mxu0 0.0
    %3072 = vmatpush1.msra.mxu0 0.0
    %3073 = vmatprep.subr.mxu0 0.0
    %3074 = vmatpush1.msra.mxu0 0.0
    %3075 = vmatprep.subr.mxu0 0.0
    %3076 = vmatpush1.msra.mxu0 0.0
    %3077 = vmatprep.subr.mxu0 0.0
    %3078 = vmatpush1.msra.mxu0 0.0
    %3079 = vmatprep.subr.mxu0 0.0
    %3080 = vmatpush1.msra.mxu0 0.0
    %3081 = vmatprep.subr.mxu0 0.0
    %3082 = vmatpush1.msra.mxu0 0.0
    %3083 = vmatprep.subr.mxu0 0.0
    %3084 = vmatpush1.msra.mxu0 0.0
    %3085 = vmatprep.subr.mxu0 0.0
    %3086 = vmatpush1.msra.mxu0 0.0
    %3087 = vmatprep.subr.mxu0 0.0
    %3088 = vmatpush1.msra.mxu0 0.0
    %3089 = vmatprep.subr.mxu0 0.0
    %3090 = vmatpush1.msra.mxu0 0.0
    %3091 = vmatprep.subr.mxu0 0.0
    %3092 = vmatpush1.msra.mxu0 0.0
    %3093 = vmatprep.subr.mxu0 0.0
    %3094 = vmatpush1.msra.mxu0 0.0
    %3095 = vmatprep.subr.mxu0 0.0
    %3096 = vmatpush1.msra.mxu0 0.0
    %3097 = vmatprep.subr.mxu0 0.0
    %3098 = vmatpush1.msra.mxu0 0.0
    %3099 = vmatprep.subr.mxu0 0.0
    %3100 = vmatpush1.msra.mxu0 0.0
    %3101 = vmatprep.subr.mxu0 0.0
    %3102 = vmatpush1.msra.mxu0 0.0
    %3103 = vmatprep.mubr.f32.mxu0 0.0
    %3104 = vmatmul.mubr.f32.gmra.mrb[0].mxu0 %v2296
    %v3105 = vpop.f32.mrb[0].mxu0
    %v3106 = vadd.f32 0.0, %v3105
    %v3107 = vpop.f32.mrb[0].mxu0
    %3108 = vdwg.mxu0
    %s3109 = scalar_lea.vmem %s6, 704
    %v3110 = vld [vmem:[%s3109] sm:$0xff]
    %v3111 = vld [vmem:[%s3109 + $0x8] sm:$0xff]
    %v3112 = vld [vmem:[%s3109 + $0x10] sm:$0xff]
    %v3113 = vld [vmem:[%s3109 + $0x18] sm:$0xff]
    %3114 = vmatprep.subr.mxu0 0.0
    %3115 = vmatpush1.msra.mxu0 %v3110
    %3116 = vmatprep.subr.mxu0 0.0
    %3117 = vmatpush1.msra.mxu0 %v3111
    %3118 = vmatprep.subr.mxu0 0.0
    %3119 = vmatpush1.msra.mxu0 %v3112
    %3120 = vmatprep.subr.mxu0 0.0
    %3121 = vmatpush1.msra.mxu0 %v3113
    %3122 = vmatprep.subr.mxu0 0.0
    %3123 = vmatpush1.msra.mxu0 0.0
    %3124 = vmatprep.subr.mxu0 0.0
    %3125 = vmatpush1.msra.mxu0 0.0
    %3126 = vmatprep.subr.mxu0 0.0
    %3127 = vmatpush1.msra.mxu0 0.0
    %3128 = vmatprep.subr.mxu0 0.0
    %3129 = vmatpush1.msra.mxu0 0.0
    %3130 = vmatprep.subr.mxu0 0.0
    %3131 = vmatpush1.msra.mxu0 0.0
    %3132 = vmatprep.subr.mxu0 0.0
    %3133 = vmatpush1.msra.mxu0 0.0
    %3134 = vmatprep.subr.mxu0 0.0
    %3135 = vmatpush1.msra.mxu0 0.0
    %3136 = vmatprep.subr.mxu0 0.0
    %3137 = vmatpush1.msra.mxu0 0.0
    %3138 = vmatprep.subr.mxu0 0.0
    %3139 = vmatpush1.msra.mxu0 0.0
    %3140 = vmatprep.subr.mxu0 0.0
    %3141 = vmatpush1.msra.mxu0 0.0
    %3142 = vmatprep.subr.mxu0 0.0
    %3143 = vmatpush1.msra.mxu0 0.0
    %3144 = vmatprep.subr.mxu0 0.0
    %3145 = vmatpush1.msra.mxu0 0.0
    %3146 = vmatprep.subr.mxu0 0.0
    %3147 = vmatpush1.msra.mxu0 0.0
    %3148 = vmatprep.subr.mxu0 0.0
    %3149 = vmatpush1.msra.mxu0 0.0
    %3150 = vmatprep.subr.mxu0 0.0
    %3151 = vmatpush1.msra.mxu0 0.0
    %3152 = vmatprep.subr.mxu0 0.0
    %3153 = vmatpush1.msra.mxu0 0.0
    %3154 = vmatprep.subr.mxu0 0.0
    %3155 = vmatpush1.msra.mxu0 0.0
    %3156 = vmatprep.subr.mxu0 0.0
    %3157 = vmatpush1.msra.mxu0 0.0
    %3158 = vmatprep.subr.mxu0 0.0
    %3159 = vmatpush1.msra.mxu0 0.0
    %3160 = vmatprep.subr.mxu0 0.0
    %3161 = vmatpush1.msra.mxu0 0.0
    %3162 = vmatprep.subr.mxu0 0.0
    %3163 = vmatpush1.msra.mxu0 0.0
    %3164 = vmatprep.subr.mxu0 0.0
    %3165 = vmatpush1.msra.mxu0 0.0
    %3166 = vmatprep.subr.mxu0 0.0
    %3167 = vmatpush1.msra.mxu0 0.0
    %3168 = vmatprep.subr.mxu0 0.0
    %3169 = vmatpush1.msra.mxu0 0.0
    %3170 = vmatprep.subr.mxu0 0.0
    %3171 = vmatpush1.msra.mxu0 0.0
    %3172 = vmatprep.subr.mxu0 0.0
    %3173 = vmatpush1.msra.mxu0 0.0
    %3174 = vmatprep.subr.mxu0 0.0
    %3175 = vmatpush1.msra.mxu0 0.0
    %3176 = vmatprep.subr.mxu0 0.0
    %3177 = vmatpush1.msra.mxu0 0.0
    %3178 = vmatprep.mubr.f32.mxu0 0.0
    %3179 = vmatmul.mubr.f32.gmra.mrb[0].mxu0 %v2296
    %v3180 = vpop.f32.mrb[0].mxu0
    %v3181 = vadd.f32 0.0, %v3180
    %v3182 = vpop.f32.mrb[0].mxu0
    %3183 = vdwg.mxu0
    %s3184 = scalar_lea.vmem %s6, 736
    %v3185 = vld [vmem:[%s3184] sm:$0xff]
    %v3186 = vld [vmem:[%s3184 + $0x8] sm:$0xff]
    %v3187 = vld [vmem:[%s3184 + $0x10] sm:$0xff]
    %v3188 = vld [vmem:[%s3184 + $0x18] sm:$0xff]
    %3189 = vmatprep.subr.mxu0 0.0
    %3190 = vmatpush1.msra.mxu0 %v3185
    %3191 = vmatprep.subr.mxu0 0.0
    %3192 = vmatpush1.msra.mxu0 %v3186
    %3193 = vmatprep.subr.mxu0 0.0
    %3194 = vmatpush1.msra.mxu0 %v3187
    %3195 = vmatprep.subr.mxu0 0.0
    %3196 = vmatpush1.msra.mxu0 %v3188
    %3197 = vmatprep.subr.mxu0 0.0
    %3198 = vmatpush1.msra.mxu0 0.0
    %3199 = vmatprep.subr.mxu0 0.0
    %3200 = vmatpush1.msra.mxu0 0.0
    %3201 = vmatprep.subr.mxu0 0.0
    %3202 = vmatpush1.msra.mxu0 0.0
    %3203 = vmatprep.subr.mxu0 0.0
    %3204 = vmatpush1.msra.mxu0 0.0
    %3205 = vmatprep.subr.mxu0 0.0
    %3206 = vmatpush1.msra.mxu0 0.0
    %3207 = vmatprep.subr.mxu0 0.0
    %3208 = vmatpush1.msra.mxu0 0.0
    %3209 = vmatprep.subr.mxu0 0.0
    %3210 = vmatpush1.msra.mxu0 0.0
    %3211 = vmatprep.subr.mxu0 0.0
    %3212 = vmatpush1.msra.mxu0 0.0
    %3213 = vmatprep.subr.mxu0 0.0
    %3214 = vmatpush1.msra.mxu0 0.0
    %3215 = vmatprep.subr.mxu0 0.0
    %3216 = vmatpush1.msra.mxu0 0.0
    %3217 = vmatprep.subr.mxu0 0.0
    %3218 = vmatpush1.msra.mxu0 0.0
    %3219 = vmatprep.subr.mxu0 0.0
    %3220 = vmatpush1.msra.mxu0 0.0
    %3221 = vmatprep.subr.mxu0 0.0
    %3222 = vmatpush1.msra.mxu0 0.0
    %3223 = vmatprep.subr.mxu0 0.0
    %3224 = vmatpush1.msra.mxu0 0.0
    %3225 = vmatprep.subr.mxu0 0.0
    %3226 = vmatpush1.msra.mxu0 0.0
    %3227 = vmatprep.subr.mxu0 0.0
    %3228 = vmatpush1.msra.mxu0 0.0
    %3229 = vmatprep.subr.mxu0 0.0
    %3230 = vmatpush1.msra.mxu0 0.0
    %3231 = vmatprep.subr.mxu0 0.0
    %3232 = vmatpush1.msra.mxu0 0.0
    %3233 = vmatprep.subr.mxu0 0.0
    %3234 = vmatpush1.msra.mxu0 0.0
    %3235 = vmatprep.subr.mxu0 0.0
    %3236 = vmatpush1.msra.mxu0 0.0
    %3237 = vmatprep.subr.mxu0 0.0
    %3238 = vmatpush1.msra.mxu0 0.0
    %3239 = vmatprep.subr.mxu0 0.0
    %3240 = vmatpush1.msra.mxu0 0.0
    %3241 = vmatprep.subr.mxu0 0.0
    %3242 = vmatpush1.msra.mxu0 0.0
    %3243 = vmatprep.subr.mxu0 0.0
    %3244 = vmatpush1.msra.mxu0 0.0
    %3245 = vmatprep.subr.mxu0 0.0
    %3246 = vmatpush1.msra.mxu0 0.0
    %3247 = vmatprep.subr.mxu0 0.0
    %3248 = vmatpush1.msra.mxu0 0.0
    %3249 = vmatprep.subr.mxu0 0.0
    %3250 = vmatpush1.msra.mxu0 0.0
    %3251 = vmatprep.subr.mxu0 0.0
    %3252 = vmatpush1.msra.mxu0 0.0
    %3253 = vmatprep.mubr.f32.mxu0 0.0
    %3254 = vmatmul.mubr.f32.gmra.mrb[0].mxu0 %v2296
    %v3255 = vpop.f32.mrb[0].mxu0
    %v3256 = vadd.f32 0.0, %v3255
    %v3257 = vpop.f32.mrb[0].mxu0
    %3258 = vdwg.mxu0
    %s3259 = scalar_lea.vmem %s4, 20
    %v3260 = vld [vmem:[%s3259] sm:$0x1]
    %v3261 = vld [vmem:[%s3259 + $0x1] sm:$0x1]
    %v3262 = vld [vmem:[%s3259 + $0x2] sm:$0x1]
    %v3263 = vld [vmem:[%s3259 + $0x3] sm:$0x1]
    %v3268 = vlaneseq
    %v3269 = vshrl.u32 %v3268, 7
    %v3270 = vsub.s32 0, %v3269
    %v3271 = vrot.slane %v3260, %v3270
    %v3272 = vlaneseq
    %v3273 = vshrl.u32 %v3272, 7
    %v3274 = vsub.s32 0, %v3273
    %v3275 = vrot.slane %v3261, %v3274
    %v3276 = vlaneseq
    %v3277 = vshrl.u32 %v3276, 7
    %v3278 = vsub.s32 0, %v3277
    %v3279 = vrot.slane %v3262, %v3278
    %v3280 = vlaneseq
    %v3281 = vshrl.u32 %v3280, 7
    %v3282 = vsub.s32 0, %v3281
    %v3283 = vrot.slane %v3263, %v3282
    %v3288 = vadd.f32 %v3031, %v3271
    %v3289 = vadd.f32 %v3106, %v3275
    %v3290 = vadd.f32 %v3181, %v3279
    %v3291 = vadd.f32 %v3256, %v3283
    %v3293 = vsel %vm1096, %v2622, 0
    %v3296 = vsel %vm1096, %v2955, 0
    %3298 = vmatprep.subr.mxu0 0.0
    %3299 = vmatpush1.xpose.msra.mxu0 %v3296
    %3300 = vmatprep.subr.mxu0 0.0
    %3301 = vmatpush1.xpose.msra.mxu0 0.0
    %3302 = vmatprep.subr.mxu0 0.0
    %3303 = vmatpush1.xpose.msra.mxu0 0.0
    %3304 = vmatprep.subr.mxu0 0.0
    %3305 = vmatpush1.xpose.msra.mxu0 0.0
    %3306 = vmatprep.subr.mxu0 0.0
    %3307 = vmatpush1.xpose.msra.mxu0 0.0
    %3308 = vmatprep.subr.mxu0 0.0
    %3309 = vmatpush1.xpose.msra.mxu0 0.0
    %3310 = vmatprep.subr.mxu0 0.0
    %3311 = vmatpush1.xpose.msra.mxu0 0.0
    %3312 = vmatprep.subr.mxu0 0.0
    %3313 = vmatpush1.xpose.msra.mxu0 0.0
    %3314 = vmatprep.subr.mxu0 0.0
    %3315 = vmatpush1.xpose.msra.mxu0 0.0
    %3316 = vmatprep.subr.mxu0 0.0
    %3317 = vmatpush1.xpose.msra.mxu0 0.0
    %3318 = vmatprep.subr.mxu0 0.0
    %3319 = vmatpush1.xpose.msra.mxu0 0.0
    %3320 = vmatprep.subr.mxu0 0.0
    %3321 = vmatpush1.xpose.msra.mxu0 0.0
    %3322 = vmatprep.subr.mxu0 0.0
    %3323 = vmatpush1.xpose.msra.mxu0 0.0
    %3324 = vmatprep.subr.mxu0 0.0
    %3325 = vmatpush1.xpose.msra.mxu0 0.0
    %3326 = vmatprep.subr.mxu0 0.0
    %3327 = vmatpush1.xpose.msra.mxu0 0.0
    %3328 = vmatprep.subr.mxu0 0.0
    %3329 = vmatpush1.xpose.msra.mxu0 0.0
    %3330 = vmatprep.subr.mxu0 0.0
    %3331 = vmatpush1.xpose.msra.mxu0 0.0
    %3332 = vmatprep.subr.mxu0 0.0
    %3333 = vmatpush1.xpose.msra.mxu0 0.0
    %3334 = vmatprep.subr.mxu0 0.0
    %3335 = vmatpush1.xpose.msra.mxu0 0.0
    %3336 = vmatprep.subr.mxu0 0.0
    %3337 = vmatpush1.xpose.msra.mxu0 0.0
    %3338 = vmatprep.subr.mxu0 0.0
    %3339 = vmatpush1.xpose.msra.mxu0 0.0
    %3340 = vmatprep.subr.mxu0 0.0
    %3341 = vmatpush1.xpose.msra.mxu0 0.0
    %3342 = vmatprep.subr.mxu0 0.0
    %3343 = vmatpush1.xpose.msra.mxu0 0.0
    %3344 = vmatprep.subr.mxu0 0.0
    %3345 = vmatpush1.xpose.msra.mxu0 0.0
    %3346 = vmatprep.subr.mxu0 0.0
    %3347 = vmatpush1.xpose.msra.mxu0 0.0
    %3348 = vmatprep.subr.mxu0 0.0
    %3349 = vmatpush1.xpose.msra.mxu0 0.0
    %3350 = vmatprep.subr.mxu0 0.0
    %3351 = vmatpush1.xpose.msra.mxu0 0.0
    %3352 = vmatprep.subr.mxu0 0.0
    %3353 = vmatpush1.xpose.msra.mxu0 0.0
    %3354 = vmatprep.subr.mxu0 0.0
    %3355 = vmatpush1.xpose.msra.mxu0 0.0
    %3356 = vmatprep.subr.mxu0 0.0
    %3357 = vmatpush1.xpose.msra.mxu0 0.0
    %3358 = vmatprep.subr.mxu0 0.0
    %3359 = vmatpush1.xpose.msra.mxu0 0.0
    %3360 = vmatprep.subr.mxu0 0.0
    %3361 = vmatpush1.xpose.msra.mxu0 0.0
    %3362 = vmatprep.mubr.f32.mxu0 0.0
    %3363 = vmatmul.mubr.f32.gmra.mrb[0].mxu0 %v3293
    %v3364 = vpop.f32.mrb[0].mxu0
    %v3365 = vadd.f32 %v60, %v3364
    %v3366 = vpop.f32.mrb[0].mxu0
    %3367 = vdwg.mxu0
    %v3369 = vsel %vm1096, %v2623, 0
    %v3372 = vsel %vm1096, %v2956, 0
    %3374 = vmatprep.subr.mxu0 0.0
    %3375 = vmatpush1.xpose.msra.mxu0 %v3372
    %3376 = vmatprep.subr.mxu0 0.0
    %3377 = vmatpush1.xpose.msra.mxu0 0.0
    %3378 = vmatprep.subr.mxu0 0.0
    %3379 = vmatpush1.xpose.msra.mxu0 0.0
    %3380 = vmatprep.subr.mxu0 0.0
    %3381 = vmatpush1.xpose.msra.mxu0 0.0
    %3382 = vmatprep.subr.mxu0 0.0
    %3383 = vmatpush1.xpose.msra.mxu0 0.0
    %3384 = vmatprep.subr.mxu0 0.0
    %3385 = vmatpush1.xpose.msra.mxu0 0.0
    %3386 = vmatprep.subr.mxu0 0.0
    %3387 = vmatpush1.xpose.msra.mxu0 0.0
    %3388 = vmatprep.subr.mxu0 0.0
    %3389 = vmatpush1.xpose.msra.mxu0 0.0
    %3390 = vmatprep.subr.mxu0 0.0
    %3391 = vmatpush1.xpose.msra.mxu0 0.0
    %3392 = vmatprep.subr.mxu0 0.0
    %3393 = vmatpush1.xpose.msra.mxu0 0.0
    %3394 = vmatprep.subr.mxu0 0.0
    %3395 = vmatpush1.xpose.msra.mxu0 0.0
    %3396 = vmatprep.subr.mxu0 0.0
    %3397 = vmatpush1.xpose.msra.mxu0 0.0
    %3398 = vmatprep.subr.mxu0 0.0
    %3399 = vmatpush1.xpose.msra.mxu0 0.0
    %3400 = vmatprep.subr.mxu0 0.0
    %3401 = vmatpush1.xpose.msra.mxu0 0.0
    %3402 = vmatprep.subr.mxu0 0.0
    %3403 = vmatpush1.xpose.msra.mxu0 0.0
    %3404 = vmatprep.subr.mxu0 0.0
    %3405 = vmatpush1.xpose.msra.mxu0 0.0
    %3406 = vmatprep.subr.mxu0 0.0
    %3407 = vmatpush1.xpose.msra.mxu0 0.0
    %3408 = vmatprep.subr.mxu0 0.0
    %3409 = vmatpush1.xpose.msra.mxu0 0.0
    %3410 = vmatprep.subr.mxu0 0.0
    %3411 = vmatpush1.xpose.msra.mxu0 0.0
    %3412 = vmatprep.subr.mxu0 0.0
    %3413 = vmatpush1.xpose.msra.mxu0 0.0
    %3414 = vmatprep.subr.mxu0 0.0
    %3415 = vmatpush1.xpose.msra.mxu0 0.0
    %3416 = vmatprep.subr.mxu0 0.0
    %3417 = vmatpush1.xpose.msra.mxu0 0.0
    %3418 = vmatprep.subr.mxu0 0.0
    %3419 = vmatpush1.xpose.msra.mxu0 0.0
    %3420 = vmatprep.subr.mxu0 0.0
    %3421 = vmatpush1.xpose.msra.mxu0 0.0
    %3422 = vmatprep.subr.mxu0 0.0
    %3423 = vmatpush1.xpose.msra.mxu0 0.0
    %3424 = vmatprep.subr.mxu0 0.0
    %3425 = vmatpush1.xpose.msra.mxu0 0.0
    %3426 = vmatprep.subr.mxu0 0.0
    %3427 = vmatpush1.xpose.msra.mxu0 0.0
    %3428 = vmatprep.subr.mxu0 0.0
    %3429 = vmatpush1.xpose.msra.mxu0 0.0
    %3430 = vmatprep.subr.mxu0 0.0
    %3431 = vmatpush1.xpose.msra.mxu0 0.0
    %3432 = vmatprep.subr.mxu0 0.0
    %3433 = vmatpush1.xpose.msra.mxu0 0.0
    %3434 = vmatprep.subr.mxu0 0.0
    %3435 = vmatpush1.xpose.msra.mxu0 0.0
    %3436 = vmatprep.subr.mxu0 0.0
    %3437 = vmatpush1.xpose.msra.mxu0 0.0
    %3438 = vmatprep.mubr.f32.mxu0 0.0
    %3439 = vmatmul.mubr.f32.gmra.mrb[0].mxu0 %v3369
    %v3440 = vpop.f32.mrb[0].mxu0
    %v3441 = vadd.f32 %v60, %v3440
    %v3442 = vpop.f32.mrb[0].mxu0
    %3443 = vdwg.mxu0
    %v3445 = vsel %vm1096, %v2624, 0
    %v3448 = vsel %vm1096, %v2957, 0
    %3450 = vmatprep.subr.mxu0 0.0
    %3451 = vmatpush1.xpose.msra.mxu0 %v3448
    %3452 = vmatprep.subr.mxu0 0.0
    %3453 = vmatpush1.xpose.msra.mxu0 0.0
    %3454 = vmatprep.subr.mxu0 0.0
    %3455 = vmatpush1.xpose.msra.mxu0 0.0
    %3456 = vmatprep.subr.mxu0 0.0
    %3457 = vmatpush1.xpose.msra.mxu0 0.0
    %3458 = vmatprep.subr.mxu0 0.0
    %3459 = vmatpush1.xpose.msra.mxu0 0.0
    %3460 = vmatprep.subr.mxu0 0.0
    %3461 = vmatpush1.xpose.msra.mxu0 0.0
    %3462 = vmatprep.subr.mxu0 0.0
    %3463 = vmatpush1.xpose.msra.mxu0 0.0
    %3464 = vmatprep.subr.mxu0 0.0
    %3465 = vmatpush1.xpose.msra.mxu0 0.0
    %3466 = vmatprep.subr.mxu0 0.0
    %3467 = vmatpush1.xpose.msra.mxu0 0.0
    %3468 = vmatprep.subr.mxu0 0.0
    %3469 = vmatpush1.xpose.msra.mxu0 0.0
    %3470 = vmatprep.subr.mxu0 0.0
    %3471 = vmatpush1.xpose.msra.mxu0 0.0
    %3472 = vmatprep.subr.mxu0 0.0
    %3473 = vmatpush1.xpose.msra.mxu0 0.0
    %3474 = vmatprep.subr.mxu0 0.0
    %3475 = vmatpush1.xpose.msra.mxu0 0.0
    %3476 = vmatprep.subr.mxu0 0.0
    %3477 = vmatpush1.xpose.msra.mxu0 0.0
    %3478 = vmatprep.subr.mxu0 0.0
    %3479 = vmatpush1.xpose.msra.mxu0 0.0
    %3480 = vmatprep.subr.mxu0 0.0
    %3481 = vmatpush1.xpose.msra.mxu0 0.0
    %3482 = vmatprep.subr.mxu0 0.0
    %3483 = vmatpush1.xpose.msra.mxu0 0.0
    %3484 = vmatprep.subr.mxu0 0.0
    %3485 = vmatpush1.xpose.msra.mxu0 0.0
    %3486 = vmatprep.subr.mxu0 0.0
    %3487 = vmatpush1.xpose.msra.mxu0 0.0
    %3488 = vmatprep.subr.mxu0 0.0
    %3489 = vmatpush1.xpose.msra.mxu0 0.0
    %3490 = vmatprep.subr.mxu0 0.0
    %3491 = vmatpush1.xpose.msra.mxu0 0.0
    %3492 = vmatprep.subr.mxu0 0.0
    %3493 = vmatpush1.xpose.msra.mxu0 0.0
    %3494 = vmatprep.subr.mxu0 0.0
    %3495 = vmatpush1.xpose.msra.mxu0 0.0
    %3496 = vmatprep.subr.mxu0 0.0
    %3497 = vmatpush1.xpose.msra.mxu0 0.0
    %3498 = vmatprep.subr.mxu0 0.0
    %3499 = vmatpush1.xpose.msra.mxu0 0.0
    %3500 = vmatprep.subr.mxu0 0.0
    %3501 = vmatpush1.xpose.msra.mxu0 0.0
    %3502 = vmatprep.subr.mxu0 0.0
    %3503 = vmatpush1.xpose.msra.mxu0 0.0
    %3504 = vmatprep.subr.mxu0 0.0
    %3505 = vmatpush1.xpose.msra.mxu0 0.0
    %3506 = vmatprep.subr.mxu0 0.0
    %3507 = vmatpush1.xpose.msra.mxu0 0.0
    %3508 = vmatprep.subr.mxu0 0.0
    %3509 = vmatpush1.xpose.msra.mxu0 0.0
    %3510 = vmatprep.subr.mxu0 0.0
    %3511 = vmatpush1.xpose.msra.mxu0 0.0
    %3512 = vmatprep.subr.mxu0 0.0
    %3513 = vmatpush1.xpose.msra.mxu0 0.0
    %3514 = vmatprep.mubr.f32.mxu0 0.0
    %3515 = vmatmul.mubr.f32.gmra.mrb[0].mxu0 %v3445
    %v3516 = vpop.f32.mrb[0].mxu0
    %v3517 = vadd.f32 %v60, %v3516
    %v3518 = vpop.f32.mrb[0].mxu0
    %3519 = vdwg.mxu0
    %v3521 = vsel %vm1096, %v2625, 0
    %v3524 = vsel %vm1096, %v2958, 0
    %3526 = vmatprep.subr.mxu0 0.0
    %3527 = vmatpush1.xpose.msra.mxu0 %v3524
    %3528 = vmatprep.subr.mxu0 0.0
    %3529 = vmatpush1.xpose.msra.mxu0 0.0
    %3530 = vmatprep.subr.mxu0 0.0
    %3531 = vmatpush1.xpose.msra.mxu0 0.0
    %3532 = vmatprep.subr.mxu0 0.0
    %3533 = vmatpush1.xpose.msra.mxu0 0.0
    %3534 = vmatprep.subr.mxu0 0.0
    %3535 = vmatpush1.xpose.msra.mxu0 0.0
    %3536 = vmatprep.subr.mxu0 0.0
    %3537 = vmatpush1.xpose.msra.mxu0 0.0
    %3538 = vmatprep.subr.mxu0 0.0
    %3539 = vmatpush1.xpose.msra.mxu0 0.0
    %3540 = vmatprep.subr.mxu0 0.0
    %3541 = vmatpush1.xpose.msra.mxu0 0.0
    %3542 = vmatprep.subr.mxu0 0.0
    %3543 = vmatpush1.xpose.msra.mxu0 0.0
    %3544 = vmatprep.subr.mxu0 0.0
    %3545 = vmatpush1.xpose.msra.mxu0 0.0
    %3546 = vmatprep.subr.mxu0 0.0
    %3547 = vmatpush1.xpose.msra.mxu0 0.0
    %3548 = vmatprep.subr.mxu0 0.0
    %3549 = vmatpush1.xpose.msra.mxu0 0.0
    %3550 = vmatprep.subr.mxu0 0.0
    %3551 = vmatpush1.xpose.msra.mxu0 0.0
    %3552 = vmatprep.subr.mxu0 0.0
    %3553 = vmatpush1.xpose.msra.mxu0 0.0
    %3554 = vmatprep.subr.mxu0 0.0
    %3555 = vmatpush1.xpose.msra.mxu0 0.0
    %3556 = vmatprep.subr.mxu0 0.0
    %3557 = vmatpush1.xpose.msra.mxu0 0.0
    %3558 = vmatprep.subr.mxu0 0.0
    %3559 = vmatpush1.xpose.msra.mxu0 0.0
    %3560 = vmatprep.subr.mxu0 0.0
    %3561 = vmatpush1.xpose.msra.mxu0 0.0
    %3562 = vmatprep.subr.mxu0 0.0
    %3563 = vmatpush1.xpose.msra.mxu0 0.0
    %3564 = vmatprep.subr.mxu0 0.0
    %3565 = vmatpush1.xpose.msra.mxu0 0.0
    %3566 = vmatprep.subr.mxu0 0.0
    %3567 = vmatpush1.xpose.msra.mxu0 0.0
    %3568 = vmatprep.subr.mxu0 0.0
    %3569 = vmatpush1.xpose.msra.mxu0 0.0
    %3570 = vmatprep.subr.mxu0 0.0
    %3571 = vmatpush1.xpose.msra.mxu0 0.0
    %3572 = vmatprep.subr.mxu0 0.0
    %3573 = vmatpush1.xpose.msra.mxu0 0.0
    %3574 = vmatprep.subr.mxu0 0.0
    %3575 = vmatpush1.xpose.msra.mxu0 0.0
    %3576 = vmatprep.subr.mxu0 0.0
    %3577 = vmatpush1.xpose.msra.mxu0 0.0
    %3578 = vmatprep.subr.mxu0 0.0
    %3579 = vmatpush1.xpose.msra.mxu0 0.0
    %3580 = vmatprep.subr.mxu0 0.0
    %3581 = vmatpush1.xpose.msra.mxu0 0.0
    %3582 = vmatprep.subr.mxu0 0.0
    %3583 = vmatpush1.xpose.msra.mxu0 0.0
    %3584 = vmatprep.subr.mxu0 0.0
    %3585 = vmatpush1.xpose.msra.mxu0 0.0
    %3586 = vmatprep.subr.mxu0 0.0
    %3587 = vmatpush1.xpose.msra.mxu0 0.0
    %3588 = vmatprep.subr.mxu0 0.0
    %3589 = vmatpush1.xpose.msra.mxu0 0.0
    %3590 = vmatprep.mubr.f32.mxu0 0.0
    %3591 = vmatmul.mubr.f32.gmra.mrb[0].mxu0 %v3521
    %v3592 = vpop.f32.mrb[0].mxu0
    %v3593 = vadd.f32 %v60, %v3592
    %v3594 = vpop.f32.mrb[0].mxu0
    %3595 = vdwg.mxu0
    %v3596 = vsel %vm1096, %v3365, -inf
    %3597 = vmax.xlane.f32.xlu0 %v3596
    %v3598 = vpop.xlane.xlu0 %3597
    %v3599 = vsel %vm1096, %v3441, -inf
    %3600 = vmax.xlane.f32.xlu0 %v3599
    %v3601 = vpop.xlane.xlu0 %3600
    %v3602 = vsel %vm1096, %v3517, -inf
    %3603 = vmax.xlane.f32.xlu0 %v3602
    %v3604 = vpop.xlane.xlu0 %3603
    %v3605 = vsel %vm1096, %v3593, -inf
    %3606 = vmax.xlane.f32.xlu0 %v3605
    %v3607 = vpop.xlane.xlu0 %3606
    %v3608 = vsub.f32 %v3365, %v3598
    %v3609 = vsub.f32 %v3441, %v3601
    %v3610 = vsub.f32 %v3517, %v3604
    %v3611 = vsub.f32 %v3593, %v3607
    %v3612 = vmul.f32 %v3608, 1.442695
    %v3613 = vpow.pop %v3612
    %v3614 = vmul.f32 %v3609, 1.442695
    %v3615 = vpow.pop %v3614
    %v3616 = vmul.f32 %v3610, 1.442695
    %v3617 = vpow.pop %v3616
    %v3618 = vmul.f32 %v3611, 1.442695
    %v3619 = vpow.pop %v3618
    %v3620 = vsel %vm1096, %v3613, 0.0
    %3621 = vadd.xlane.f32.xlu0 %v3620
    %v3622 = vpop.xlane.xlu0 %3621
    %v3623 = vsel %vm1096, %v3615, 0.0
    %3624 = vadd.xlane.f32.xlu0 %v3623
    %v3625 = vpop.xlane.xlu0 %3624
    %v3626 = vsel %vm1096, %v3617, 0.0
    %3627 = vadd.xlane.f32.xlu0 %v3626
    %v3628 = vpop.xlane.xlu0 %3627
    %v3629 = vsel %vm1096, %v3619, 0.0
    %3630 = vadd.xlane.f32.xlu0 %v3629
    %v3631 = vpop.xlane.xlu0 %3630
    %v3632 = vrcp.pop %v3622
    %v3633 = vrcp.pop %v3625
    %v3634 = vrcp.pop %v3628
    %v3635 = vrcp.pop %v3631
    %v3636 = vmul.f32 %v3622, %v3632
    %v3637 = vmul.f32 %v3625, %v3633
    %v3638 = vmul.f32 %v3628, %v3634
    %v3639 = vmul.f32 %v3631, %v3635
    %v3640 = vsub.f32 2.0, %v3636
    %v3641 = vsub.f32 2.0, %v3637
    %v3642 = vsub.f32 2.0, %v3638
    %v3643 = vsub.f32 2.0, %v3639
    %v3644 = vmul.f32 %v3632, %v3640
    %v3645 = vmul.f32 %v3633, %v3641
    %v3646 = vmul.f32 %v3634, %v3642
    %v3647 = vmul.f32 %v3635, %v3643
    %v3648 = vmul.f32 %v3613, %v3644
    %v3649 = vmul.f32 %v3615, %v3645
    %v3650 = vmul.f32 %v3617, %v3646
    %v3651 = vmul.f32 %v3619, %v3647
    %v3653 = vsel %vm1096, %v3648, 0
    %3655 = vmatprep.subr.mxu0 0.0
    %3656 = vmatpush1.msra.mxu0 %v3288
    %3657 = vmatprep.subr.mxu0 0.0
    %3658 = vmatpush1.msra.mxu0 0.0
    %3659 = vmatprep.subr.mxu0 0.0
    %3660 = vmatpush1.msra.mxu0 0.0
    %3661 = vmatprep.subr.mxu0 0.0
    %3662 = vmatpush1.msra.mxu0 0.0
    %3663 = vmatprep.subr.mxu0 0.0
    %3664 = vmatpush1.msra.mxu0 0.0
    %3665 = vmatprep.subr.mxu0 0.0
    %3666 = vmatpush1.msra.mxu0 0.0
    %3667 = vmatprep.subr.mxu0 0.0
    %3668 = vmatpush1.msra.mxu0 0.0
    %3669 = vmatprep.subr.mxu0 0.0
    %3670 = vmatpush1.msra.mxu0 0.0
    %3671 = vmatprep.subr.mxu0 0.0
    %3672 = vmatpush1.msra.mxu0 0.0
    %3673 = vmatprep.subr.mxu0 0.0
    %3674 = vmatpush1.msra.mxu0 0.0
    %3675 = vmatprep.subr.mxu0 0.0
    %3676 = vmatpush1.msra.mxu0 0.0
    %3677 = vmatprep.subr.mxu0 0.0
    %3678 = vmatpush1.msra.mxu0 0.0
    %3679 = vmatprep.subr.mxu0 0.0
    %3680 = vmatpush1.msra.mxu0 0.0
    %3681 = vmatprep.subr.mxu0 0.0
    %3682 = vmatpush1.msra.mxu0 0.0
    %3683 = vmatprep.subr.mxu0 0.0
    %3684 = vmatpush1.msra.mxu0 0.0
    %3685 = vmatprep.subr.mxu0 0.0
    %3686 = vmatpush1.msra.mxu0 0.0
    %3687 = vmatprep.subr.mxu0 0.0
    %3688 = vmatpush1.msra.mxu0 0.0
    %3689 = vmatprep.subr.mxu0 0.0
    %3690 = vmatpush1.msra.mxu0 0.0
    %3691 = vmatprep.subr.mxu0 0.0
    %3692 = vmatpush1.msra.mxu0 0.0
    %3693 = vmatprep.subr.mxu0 0.0
    %3694 = vmatpush1.msra.mxu0 0.0
    %3695 = vmatprep.subr.mxu0 0.0
    %3696 = vmatpush1.msra.mxu0 0.0
    %3697 = vmatprep.subr.mxu0 0.0
    %3698 = vmatpush1.msra.mxu0 0.0
    %3699 = vmatprep.subr.mxu0 0.0
    %3700 = vmatpush1.msra.mxu0 0.0
    %3701 = vmatprep.subr.mxu0 0.0
    %3702 = vmatpush1.msra.mxu0 0.0
    %3703 = vmatprep.subr.mxu0 0.0
    %3704 = vmatpush1.msra.mxu0 0.0
    %3705 = vmatprep.subr.mxu0 0.0
    %3706 = vmatpush1.msra.mxu0 0.0
    %3707 = vmatprep.subr.mxu0 0.0
    %3708 = vmatpush1.msra.mxu0 0.0
    %3709 = vmatprep.subr.mxu0 0.0
    %3710 = vmatpush1.msra.mxu0 0.0
    %3711 = vmatprep.subr.mxu0 0.0
    %3712 = vmatpush1.msra.mxu0 0.0
    %3713 = vmatprep.subr.mxu0 0.0
    %3714 = vmatpush1.msra.mxu0 0.0
    %3715 = vmatprep.subr.mxu0 0.0
    %3716 = vmatpush1.msra.mxu0 0.0
    %3717 = vmatprep.subr.mxu0 0.0
    %3718 = vmatpush1.msra.mxu0 0.0
    %3719 = vmatprep.mubr.f32.mxu0 0.0
    %3720 = vmatmul.mubr.f32.gmra.mrb[0].mxu0 %v3653
    %v3721 = vpop.f32.mrb[0].mxu0
    %v3722 = vadd.f32 0.0, %v3721
    %v3723 = vpop.f32.mrb[0].mxu0
    %3724 = vdwg.mxu0
    %v3726 = vsel %vm1096, %v3649, 0
    %3728 = vmatprep.subr.mxu0 0.0
    %3729 = vmatpush1.msra.mxu0 %v3289
    %3730 = vmatprep.subr.mxu0 0.0
    %3731 = vmatpush1.msra.mxu0 0.0
    %3732 = vmatprep.subr.mxu0 0.0
    %3733 = vmatpush1.msra.mxu0 0.0
    %3734 = vmatprep.subr.mxu0 0.0
    %3735 = vmatpush1.msra.mxu0 0.0
    %3736 = vmatprep.subr.mxu0 0.0
    %3737 = vmatpush1.msra.mxu0 0.0
    %3738 = vmatprep.subr.mxu0 0.0
    %3739 = vmatpush1.msra.mxu0 0.0
    %3740 = vmatprep.subr.mxu0 0.0
    %3741 = vmatpush1.msra.mxu0 0.0
    %3742 = vmatprep.subr.mxu0 0.0
    %3743 = vmatpush1.msra.mxu0 0.0
    %3744 = vmatprep.subr.mxu0 0.0
    %3745 = vmatpush1.msra.mxu0 0.0
    %3746 = vmatprep.subr.mxu0 0.0
    %3747 = vmatpush1.msra.mxu0 0.0
    %3748 = vmatprep.subr.mxu0 0.0
    %3749 = vmatpush1.msra.mxu0 0.0
    %3750 = vmatprep.subr.mxu0 0.0
    %3751 = vmatpush1.msra.mxu0 0.0
    %3752 = vmatprep.subr.mxu0 0.0
    %3753 = vmatpush1.msra.mxu0 0.0
    %3754 = vmatprep.subr.mxu0 0.0
    %3755 = vmatpush1.msra.mxu0 0.0
    %3756 = vmatprep.subr.mxu0 0.0
    %3757 = vmatpush1.msra.mxu0 0.0
    %3758 = vmatprep.subr.mxu0 0.0
    %3759 = vmatpush1.msra.mxu0 0.0
    %3760 = vmatprep.subr.mxu0 0.0
    %3761 = vmatpush1.msra.mxu0 0.0
    %3762 = vmatprep.subr.mxu0 0.0
    %3763 = vmatpush1.msra.mxu0 0.0
    %3764 = vmatprep.subr.mxu0 0.0
    %3765 = vmatpush1.msra.mxu0 0.0
    %3766 = vmatprep.subr.mxu0 0.0
    %3767 = vmatpush1.msra.mxu0 0.0
    %3768 = vmatprep.subr.mxu0 0.0
    %3769 = vmatpush1.msra.mxu0 0.0
    %3770 = vmatprep.subr.mxu0 0.0
    %3771 = vmatpush1.msra.mxu0 0.0
    %3772 = vmatprep.subr.mxu0 0.0
    %3773 = vmatpush1.msra.mxu0 0.0
    %3774 = vmatprep.subr.mxu0 0.0
    %3775 = vmatpush1.msra.mxu0 0.0
    %3776 = vmatprep.subr.mxu0 0.0
    %3777 = vmatpush1.msra.mxu0 0.0
    %3778 = vmatprep.subr.mxu0 0.0
    %3779 = vmatpush1.msra.mxu0 0.0
    %3780 = vmatprep.subr.mxu0 0.0
    %3781 = vmatpush1.msra.mxu0 0.0
    %3782 = vmatprep.subr.mxu0 0.0
    %3783 = vmatpush1.msra.mxu0 0.0
    %3784 = vmatprep.subr.mxu0 0.0
    %3785 = vmatpush1.msra.mxu0 0.0
    %3786 = vmatprep.subr.mxu0 0.0
    %3787 = vmatpush1.msra.mxu0 0.0
    %3788 = vmatprep.subr.mxu0 0.0
    %3789 = vmatpush1.msra.mxu0 0.0
    %3790 = vmatprep.subr.mxu0 0.0
    %3791 = vmatpush1.msra.mxu0 0.0
    %3792 = vmatprep.mubr.f32.mxu0 0.0
    %3793 = vmatmul.mubr.f32.gmra.mrb[0].mxu0 %v3726
    %v3794 = vpop.f32.mrb[0].mxu0
    %v3795 = vadd.f32 0.0, %v3794
    %v3796 = vpop.f32.mrb[0].mxu0
    %3797 = vdwg.mxu0
    %v3799 = vsel %vm1096, %v3650, 0
    %3801 = vmatprep.subr.mxu0 0.0
    %3802 = vmatpush1.msra.mxu0 %v3290
    %3803 = vmatprep.subr.mxu0 0.0
    %3804 = vmatpush1.msra.mxu0 0.0
    %3805 = vmatprep.subr.mxu0 0.0
    %3806 = vmatpush1.msra.mxu0 0.0
    %3807 = vmatprep.subr.mxu0 0.0
    %3808 = vmatpush1.msra.mxu0 0.0
    %3809 = vmatprep.subr.mxu0 0.0
    %3810 = vmatpush1.msra.mxu0 0.0
    %3811 = vmatprep.subr.mxu0 0.0
    %3812 = vmatpush1.msra.mxu0 0.0
    %3813 = vmatprep.subr.mxu0 0.0
    %3814 = vmatpush1.msra.mxu0 0.0
    %3815 = vmatprep.subr.mxu0 0.0
    %3816 = vmatpush1.msra.mxu0 0.0
    %3817 = vmatprep.subr.mxu0 0.0
    %3818 = vmatpush1.msra.mxu0 0.0
    %3819 = vmatprep.subr.mxu0 0.0
    %3820 = vmatpush1.msra.mxu0 0.0
    %3821 = vmatprep.subr.mxu0 0.0
    %3822 = vmatpush1.msra.mxu0 0.0
    %3823 = vmatprep.subr.mxu0 0.0
    %3824 = vmatpush1.msra.mxu0 0.0
    %3825 = vmatprep.subr.mxu0 0.0
    %3826 = vmatpush1.msra.mxu0 0.0
    %3827 = vmatprep.subr.mxu0 0.0
    %3828 = vmatpush1.msra.mxu0 0.0
    %3829 = vmatprep.subr.mxu0 0.0
    %3830 = vmatpush1.msra.mxu0 0.0
    %3831 = vmatprep.subr.mxu0 0.0
    %3832 = vmatpush1.msra.mxu0 0.0
    %3833 = vmatprep.subr.mxu0 0.0
    %3834 = vmatpush1.msra.mxu0 0.0
    %3835 = vmatprep.subr.mxu0 0.0
    %3836 = vmatpush1.msra.mxu0 0.0
    %3837 = vmatprep.subr.mxu0 0.0
    %3838 = vmatpush1.msra.mxu0 0.0
    %3839 = vmatprep.subr.mxu0 0.0
    %3840 = vmatpush1.msra.mxu0 0.0
    %3841 = vmatprep.subr.mxu0 0.0
    %3842 = vmatpush1.msra.mxu0 0.0
    %3843 = vmatprep.subr.mxu0 0.0
    %3844 = vmatpush1.msra.mxu0 0.0
    %3845 = vmatprep.subr.mxu0 0.0
    %3846 = vmatpush1.msra.mxu0 0.0
    %3847 = vmatprep.subr.mxu0 0.0
    %3848 = vmatpush1.msra.mxu0 0.0
    %3849 = vmatprep.subr.mxu0 0.0
    %3850 = vmatpush1.msra.mxu0 0.0
    %3851 = vmatprep.subr.mxu0 0.0
    %3852 = vmatpush1.msra.mxu0 0.0
    %3853 = vmatprep.subr.mxu0 0.0
    %3854 = vmatpush1.msra.mxu0 0.0
    %3855 = vmatprep.subr.mxu0 0.0
    %3856 = vmatpush1.msra.mxu0 0.0
    %3857 = vmatprep.subr.mxu0 0.0
    %3858 = vmatpush1.msra.mxu0 0.0
    %3859 = vmatprep.subr.mxu0 0.0
    %3860 = vmatpush1.msra.mxu0 0.0
    %3861 = vmatprep.subr.mxu0 0.0
    %3862 = vmatpush1.msra.mxu0 0.0
    %3863 = vmatprep.subr.mxu0 0.0
    %3864 = vmatpush1.msra.mxu0 0.0
    %3865 = vmatprep.mubr.f32.mxu0 0.0
    %3866 = vmatmul.mubr.f32.gmra.mrb[0].mxu0 %v3799
    %v3867 = vpop.f32.mrb[0].mxu0
    %v3868 = vadd.f32 0.0, %v3867
    %v3869 = vpop.f32.mrb[0].mxu0
    %3870 = vdwg.mxu0
    %v3872 = vsel %vm1096, %v3651, 0
    %3874 = vmatprep.subr.mxu0 0.0
    %3875 = vmatpush1.msra.mxu0 %v3291
    %3876 = vmatprep.subr.mxu0 0.0
    %3877 = vmatpush1.msra.mxu0 0.0
    %3878 = vmatprep.subr.mxu0 0.0
    %3879 = vmatpush1.msra.mxu0 0.0
    %3880 = vmatprep.subr.mxu0 0.0
    %3881 = vmatpush1.msra.mxu0 0.0
    %3882 = vmatprep.subr.mxu0 0.0
    %3883 = vmatpush1.msra.mxu0 0.0
    %3884 = vmatprep.subr.mxu0 0.0
    %3885 = vmatpush1.msra.mxu0 0.0
    %3886 = vmatprep.subr.mxu0 0.0
    %3887 = vmatpush1.msra.mxu0 0.0
    %3888 = vmatprep.subr.mxu0 0.0
    %3889 = vmatpush1.msra.mxu0 0.0
    %3890 = vmatprep.subr.mxu0 0.0
    %3891 = vmatpush1.msra.mxu0 0.0
    %3892 = vmatprep.subr.mxu0 0.0
    %3893 = vmatpush1.msra.mxu0 0.0
    %3894 = vmatprep.subr.mxu0 0.0
    %3895 = vmatpush1.msra.mxu0 0.0
    %3896 = vmatprep.subr.mxu0 0.0
    %3897 = vmatpush1.msra.mxu0 0.0
    %3898 = vmatprep.subr.mxu0 0.0
    %3899 = vmatpush1.msra.mxu0 0.0
    %3900 = vmatprep.subr.mxu0 0.0
    %3901 = vmatpush1.msra.mxu0 0.0
    %3902 = vmatprep.subr.mxu0 0.0
    %3903 = vmatpush1.msra.mxu0 0.0
    %3904 = vmatprep.subr.mxu0 0.0
    %3905 = vmatpush1.msra.mxu0 0.0
    %3906 = vmatprep.subr.mxu0 0.0
    %3907 = vmatpush1.msra.mxu0 0.0
    %3908 = vmatprep.subr.mxu0 0.0
    %3909 = vmatpush1.msra.mxu0 0.0
    %3910 = vmatprep.subr.mxu0 0.0
    %3911 = vmatpush1.msra.mxu0 0.0
    %3912 = vmatprep.subr.mxu0 0.0
    %3913 = vmatpush1.msra.mxu0 0.0
    %3914 = vmatprep.subr.mxu0 0.0
    %3915 = vmatpush1.msra.mxu0 0.0
    %3916 = vmatprep.subr.mxu0 0.0
    %3917 = vmatpush1.msra.mxu0 0.0
    %3918 = vmatprep.subr.mxu0 0.0
    %3919 = vmatpush1.msra.mxu0 0.0
    %3920 = vmatprep.subr.mxu0 0.0
    %3921 = vmatpush1.msra.mxu0 0.0
    %3922 = vmatprep.subr.mxu0 0.0
    %3923 = vmatpush1.msra.mxu0 0.0
    %3924 = vmatprep.subr.mxu0 0.0
    %3925 = vmatpush1.msra.mxu0 0.0
    %3926 = vmatprep.subr.mxu0 0.0
    %3927 = vmatpush1.msra.mxu0 0.0
    %3928 = vmatprep.subr.mxu0 0.0
    %3929 = vmatpush1.msra.mxu0 0.0
    %3930 = vmatprep.subr.mxu0 0.0
    %3931 = vmatpush1.msra.mxu0 0.0
    %3932 = vmatprep.subr.mxu0 0.0
    %3933 = vmatpush1.msra.mxu0 0.0
    %3934 = vmatprep.subr.mxu0 0.0
    %3935 = vmatpush1.msra.mxu0 0.0
    %3936 = vmatprep.subr.mxu0 0.0
    %3937 = vmatpush1.msra.mxu0 0.0
    %3938 = vmatprep.mubr.f32.mxu0 0.0
    %3939 = vmatmul.mubr.f32.gmra.mrb[0].mxu0 %v3872
    %v3940 = vpop.f32.mrb[0].mxu0
    %v3941 = vadd.f32 0.0, %v3940
    %v3942 = vpop.f32.mrb[0].mxu0
    %3943 = vdwg.mxu0
    %s3944 = scalar_lea.vmem %s7, 32
    %v3945 = vld [vmem:[%s3944] sm:$0xff]
    %v3946 = vld [vmem:[%s3944 + $0x8] sm:$0xff]
    %v3947 = vld [vmem:[%s3944 + $0x10] sm:$0xff]
    %v3948 = vld [vmem:[%s3944 + $0x18] sm:$0xff]
    %v3950 = vsel %vm1096, %v3722, 0
    %3952 = vmatprep.subr.mxu0 0.0
    %3953 = vmatpush1.msra.mxu0 %v3945
    %3954 = vmatprep.subr.mxu0 0.0
    %3955 = vmatpush1.msra.mxu0 0.0
    %3956 = vmatprep.subr.mxu0 0.0
    %3957 = vmatpush1.msra.mxu0 0.0
    %3958 = vmatprep.subr.mxu0 0.0
    %3959 = vmatpush1.msra.mxu0 0.0
    %3960 = vmatprep.subr.mxu0 0.0
    %3961 = vmatpush1.msra.mxu0 0.0
    %3962 = vmatprep.subr.mxu0 0.0
    %3963 = vmatpush1.msra.mxu0 0.0
    %3964 = vmatprep.subr.mxu0 0.0
    %3965 = vmatpush1.msra.mxu0 0.0
    %3966 = vmatprep.subr.mxu0 0.0
    %3967 = vmatpush1.msra.mxu0 0.0
    %3968 = vmatprep.subr.mxu0 0.0
    %3969 = vmatpush1.msra.mxu0 0.0
    %3970 = vmatprep.subr.mxu0 0.0
    %3971 = vmatpush1.msra.mxu0 0.0
    %3972 = vmatprep.subr.mxu0 0.0
    %3973 = vmatpush1.msra.mxu0 0.0
    %3974 = vmatprep.subr.mxu0 0.0
    %3975 = vmatpush1.msra.mxu0 0.0
    %3976 = vmatprep.subr.mxu0 0.0
    %3977 = vmatpush1.msra.mxu0 0.0
    %3978 = vmatprep.subr.mxu0 0.0
    %3979 = vmatpush1.msra.mxu0 0.0
    %3980 = vmatprep.subr.mxu0 0.0
    %3981 = vmatpush1.msra.mxu0 0.0
    %3982 = vmatprep.subr.mxu0 0.0
    %3983 = vmatpush1.msra.mxu0 0.0
    %3984 = vmatprep.subr.mxu0 0.0
    %3985 = vmatpush1.msra.mxu0 0.0
    %3986 = vmatprep.subr.mxu0 0.0
    %3987 = vmatpush1.msra.mxu0 0.0
    %3988 = vmatprep.subr.mxu0 0.0
    %3989 = vmatpush1.msra.mxu0 0.0
    %3990 = vmatprep.subr.mxu0 0.0
    %3991 = vmatpush1.msra.mxu0 0.0
    %3992 = vmatprep.subr.mxu0 0.0
    %3993 = vmatpush1.msra.mxu0 0.0
    %3994 = vmatprep.subr.mxu0 0.0
    %3995 = vmatpush1.msra.mxu0 0.0
    %3996 = vmatprep.subr.mxu0 0.0
    %3997 = vmatpush1.msra.mxu0 0.0
    %3998 = vmatprep.subr.mxu0 0.0
    %3999 = vmatpush1.msra.mxu0 0.0
    %4000 = vmatprep.subr.mxu0 0.0
    %4001 = vmatpush1.msra.mxu0 0.0
    %4002 = vmatprep.subr.mxu0 0.0
    %4003 = vmatpush1.msra.mxu0 0.0
    %4004 = vmatprep.subr.mxu0 0.0
    %4005 = vmatpush1.msra.mxu0 0.0
    %4006 = vmatprep.subr.mxu0 0.0
    %4007 = vmatpush1.msra.mxu0 0.0
    %4008 = vmatprep.subr.mxu0 0.0
    %4009 = vmatpush1.msra.mxu0 0.0
    %4010 = vmatprep.subr.mxu0 0.0
    %4011 = vmatpush1.msra.mxu0 0.0
    %4012 = vmatprep.subr.mxu0 0.0
    %4013 = vmatpush1.msra.mxu0 0.0
    %4014 = vmatprep.subr.mxu0 0.0
    %4015 = vmatpush1.msra.mxu0 0.0
    %4016 = vmatprep.mubr.f32.mxu0 0.0
    %4017 = vmatmul.mubr.f32.gmra.mrb[0].mxu0 %v3950
    %v4018 = vpop.f32.mrb[0].mxu0
    %v4019 = vadd.f32 0.0, %v4018
    %v4020 = vpop.f32.mrb[0].mxu0
    %4021 = vdwg.mxu0
    %v4023 = vsel %vm1096, %v3795, 0
    %4025 = vmatprep.subr.mxu0 0.0
    %4026 = vmatpush1.msra.mxu0 %v3946
    %4027 = vmatprep.subr.mxu0 0.0
    %4028 = vmatpush1.msra.mxu0 0.0
    %4029 = vmatprep.subr.mxu0 0.0
    %4030 = vmatpush1.msra.mxu0 0.0
    %4031 = vmatprep.subr.mxu0 0.0
    %4032 = vmatpush1.msra.mxu0 0.0
    %4033 = vmatprep.subr.mxu0 0.0
    %4034 = vmatpush1.msra.mxu0 0.0
    %4035 = vmatprep.subr.mxu0 0.0
    %4036 = vmatpush1.msra.mxu0 0.0
    %4037 = vmatprep.subr.mxu0 0.0
    %4038 = vmatpush1.msra.mxu0 0.0
    %4039 = vmatprep.subr.mxu0 0.0
    %4040 = vmatpush1.msra.mxu0 0.0
    %4041 = vmatprep.subr.mxu0 0.0
    %4042 = vmatpush1.msra.mxu0 0.0
    %4043 = vmatprep.subr.mxu0 0.0
    %4044 = vmatpush1.msra.mxu0 0.0
    %4045 = vmatprep.subr.mxu0 0.0
    %4046 = vmatpush1.msra.mxu0 0.0
    %4047 = vmatprep.subr.mxu0 0.0
    %4048 = vmatpush1.msra.mxu0 0.0
    %4049 = vmatprep.subr.mxu0 0.0
    %4050 = vmatpush1.msra.mxu0 0.0
    %4051 = vmatprep.subr.mxu0 0.0
    %4052 = vmatpush1.msra.mxu0 0.0
    %4053 = vmatprep.subr.mxu0 0.0
    %4054 = vmatpush1.msra.mxu0 0.0
    %4055 = vmatprep.subr.mxu0 0.0
    %4056 = vmatpush1.msra.mxu0 0.0
    %4057 = vmatprep.subr.mxu0 0.0
    %4058 = vmatpush1.msra.mxu0 0.0
    %4059 = vmatprep.subr.mxu0 0.0
    %4060 = vmatpush1.msra.mxu0 0.0
    %4061 = vmatprep.subr.mxu0 0.0
    %4062 = vmatpush1.msra.mxu0 0.0
    %4063 = vmatprep.subr.mxu0 0.0
    %4064 = vmatpush1.msra.mxu0 0.0
    %4065 = vmatprep.subr.mxu0 0.0
    %4066 = vmatpush1.msra.mxu0 0.0
    %4067 = vmatprep.subr.mxu0 0.0
    %4068 = vmatpush1.msra.mxu0 0.0
    %4069 = vmatprep.subr.mxu0 0.0
    %4070 = vmatpush1.msra.mxu0 0.0
    %4071 = vmatprep.subr.mxu0 0.0
    %4072 = vmatpush1.msra.mxu0 0.0
    %4073 = vmatprep.subr.mxu0 0.0
    %4074 = vmatpush1.msra.mxu0 0.0
    %4075 = vmatprep.subr.mxu0 0.0
    %4076 = vmatpush1.msra.mxu0 0.0
    %4077 = vmatprep.subr.mxu0 0.0
    %4078 = vmatpush1.msra.mxu0 0.0
    %4079 = vmatprep.subr.mxu0 0.0
    %4080 = vmatpush1.msra.mxu0 0.0
    %4081 = vmatprep.subr.mxu0 0.0
    %4082 = vmatpush1.msra.mxu0 0.0
    %4083 = vmatprep.subr.mxu0 0.0
    %4084 = vmatpush1.msra.mxu0 0.0
    %4085 = vmatprep.subr.mxu0 0.0
    %4086 = vmatpush1.msra.mxu0 0.0
    %4087 = vmatprep.subr.mxu0 0.0
    %4088 = vmatpush1.msra.mxu0 0.0
    %4089 = vmatprep.mubr.f32.mxu0 0.0
    %4090 = vmatmul.mubr.f32.gmra.mrb[0].mxu0 %v4023
    %v4091 = vpop.f32.mrb[0].mxu0
    %v4092 = vadd.f32 0.0, %v4091
    %v4093 = vpop.f32.mrb[0].mxu0
    %4094 = vdwg.mxu0
    %v4096 = vsel %vm1096, %v3868, 0
    %4098 = vmatprep.subr.mxu0 0.0
    %4099 = vmatpush1.msra.mxu0 %v3947
    %4100 = vmatprep.subr.mxu0 0.0
    %4101 = vmatpush1.msra.mxu0 0.0
    %4102 = vmatprep.subr.mxu0 0.0
    %4103 = vmatpush1.msra.mxu0 0.0
    %4104 = vmatprep.subr.mxu0 0.0
    %4105 = vmatpush1.msra.mxu0 0.0
    %4106 = vmatprep.subr.mxu0 0.0
    %4107 = vmatpush1.msra.mxu0 0.0
    %4108 = vmatprep.subr.mxu0 0.0
    %4109 = vmatpush1.msra.mxu0 0.0
    %4110 = vmatprep.subr.mxu0 0.0
    %4111 = vmatpush1.msra.mxu0 0.0
    %4112 = vmatprep.subr.mxu0 0.0
    %4113 = vmatpush1.msra.mxu0 0.0
    %4114 = vmatprep.subr.mxu0 0.0
    %4115 = vmatpush1.msra.mxu0 0.0
    %4116 = vmatprep.subr.mxu0 0.0
    %4117 = vmatpush1.msra.mxu0 0.0
    %4118 = vmatprep.subr.mxu0 0.0
    %4119 = vmatpush1.msra.mxu0 0.0
    %4120 = vmatprep.subr.mxu0 0.0
    %4121 = vmatpush1.msra.mxu0 0.0
    %4122 = vmatprep.subr.mxu0 0.0
    %4123 = vmatpush1.msra.mxu0 0.0
    %4124 = vmatprep.subr.mxu0 0.0
    %4125 = vmatpush1.msra.mxu0 0.0
    %4126 = vmatprep.subr.mxu0 0.0
    %4127 = vmatpush1.msra.mxu0 0.0
    %4128 = vmatprep.subr.mxu0 0.0
    %4129 = vmatpush1.msra.mxu0 0.0
    %4130 = vmatprep.subr.mxu0 0.0
    %4131 = vmatpush1.msra.mxu0 0.0
    %4132 = vmatprep.subr.mxu0 0.0
    %4133 = vmatpush1.msra.mxu0 0.0
    %4134 = vmatprep.subr.mxu0 0.0
    %4135 = vmatpush1.msra.mxu0 0.0
    %4136 = vmatprep.subr.mxu0 0.0
    %4137 = vmatpush1.msra.mxu0 0.0
    %4138 = vmatprep.subr.mxu0 0.0
    %4139 = vmatpush1.msra.mxu0 0.0
    %4140 = vmatprep.subr.mxu0 0.0
    %4141 = vmatpush1.msra.mxu0 0.0
    %4142 = vmatprep.subr.mxu0 0.0
    %4143 = vmatpush1.msra.mxu0 0.0
    %4144 = vmatprep.subr.mxu0 0.0
    %4145 = vmatpush1.msra.mxu0 0.0
    %4146 = vmatprep.subr.mxu0 0.0
    %4147 = vmatpush1.msra.mxu0 0.0
    %4148 = vmatprep.subr.mxu0 0.0
    %4149 = vmatpush1.msra.mxu0 0.0
    %4150 = vmatprep.subr.mxu0 0.0
    %4151 = vmatpush1.msra.mxu0 0.0
    %4152 = vmatprep.subr.mxu0 0.0
    %4153 = vmatpush1.msra.mxu0 0.0
    %4154 = vmatprep.subr.mxu0 0.0
    %4155 = vmatpush1.msra.mxu0 0.0
    %4156 = vmatprep.subr.mxu0 0.0
    %4157 = vmatpush1.msra.mxu0 0.0
    %4158 = vmatprep.subr.mxu0 0.0
    %4159 = vmatpush1.msra.mxu0 0.0
    %4160 = vmatprep.subr.mxu0 0.0
    %4161 = vmatpush1.msra.mxu0 0.0
    %4162 = vmatprep.mubr.f32.mxu0 0.0
    %4163 = vmatmul.mubr.f32.gmra.mrb[0].mxu0 %v4096
    %v4164 = vpop.f32.mrb[0].mxu0
    %v4165 = vadd.f32 0.0, %v4164
    %v4166 = vpop.f32.mrb[0].mxu0
    %4167 = vdwg.mxu0
    %v4169 = vsel %vm1096, %v3941, 0
    %4171 = vmatprep.subr.mxu0 0.0
    %4172 = vmatpush1.msra.mxu0 %v3948
    %4173 = vmatprep.subr.mxu0 0.0
    %4174 = vmatpush1.msra.mxu0 0.0
    %4175 = vmatprep.subr.mxu0 0.0
    %4176 = vmatpush1.msra.mxu0 0.0
    %4177 = vmatprep.subr.mxu0 0.0
    %4178 = vmatpush1.msra.mxu0 0.0
    %4179 = vmatprep.subr.mxu0 0.0
    %4180 = vmatpush1.msra.mxu0 0.0
    %4181 = vmatprep.subr.mxu0 0.0
    %4182 = vmatpush1.msra.mxu0 0.0
    %4183 = vmatprep.subr.mxu0 0.0
    %4184 = vmatpush1.msra.mxu0 0.0
    %4185 = vmatprep.subr.mxu0 0.0
    %4186 = vmatpush1.msra.mxu0 0.0
    %4187 = vmatprep.subr.mxu0 0.0
    %4188 = vmatpush1.msra.mxu0 0.0
    %4189 = vmatprep.subr.mxu0 0.0
    %4190 = vmatpush1.msra.mxu0 0.0
    %4191 = vmatprep.subr.mxu0 0.0
    %4192 = vmatpush1.msra.mxu0 0.0
    %4193 = vmatprep.subr.mxu0 0.0
    %4194 = vmatpush1.msra.mxu0 0.0
    %4195 = vmatprep.subr.mxu0 0.0
    %4196 = vmatpush1.msra.mxu0 0.0
    %4197 = vmatprep.subr.mxu0 0.0
    %4198 = vmatpush1.msra.mxu0 0.0
    %4199 = vmatprep.subr.mxu0 0.0
    %4200 = vmatpush1.msra.mxu0 0.0
    %4201 = vmatprep.subr.mxu0 0.0
    %4202 = vmatpush1.msra.mxu0 0.0
    %4203 = vmatprep.subr.mxu0 0.0
    %4204 = vmatpush1.msra.mxu0 0.0
    %4205 = vmatprep.subr.mxu0 0.0
    %4206 = vmatpush1.msra.mxu0 0.0
    %4207 = vmatprep.subr.mxu0 0.0
    %4208 = vmatpush1.msra.mxu0 0.0
    %4209 = vmatprep.subr.mxu0 0.0
    %4210 = vmatpush1.msra.mxu0 0.0
    %4211 = vmatprep.subr.mxu0 0.0
    %4212 = vmatpush1.msra.mxu0 0.0
    %4213 = vmatprep.subr.mxu0 0.0
    %4214 = vmatpush1.msra.mxu0 0.0
    %4215 = vmatprep.subr.mxu0 0.0
    %4216 = vmatpush1.msra.mxu0 0.0
    %4217 = vmatprep.subr.mxu0 0.0
    %4218 = vmatpush1.msra.mxu0 0.0
    %4219 = vmatprep.subr.mxu0 0.0
    %4220 = vmatpush1.msra.mxu0 0.0
    %4221 = vmatprep.subr.mxu0 0.0
    %4222 = vmatpush1.msra.mxu0 0.0
    %4223 = vmatprep.subr.mxu0 0.0
    %4224 = vmatpush1.msra.mxu0 0.0
    %4225 = vmatprep.subr.mxu0 0.0
    %4226 = vmatpush1.msra.mxu0 0.0
    %4227 = vmatprep.subr.mxu0 0.0
    %4228 = vmatpush1.msra.mxu0 0.0
    %4229 = vmatprep.subr.mxu0 0.0
    %4230 = vmatpush1.msra.mxu0 0.0
    %4231 = vmatprep.subr.mxu0 0.0
    %4232 = vmatpush1.msra.mxu0 0.0
    %4233 = vmatprep.subr.mxu0 0.0
    %4234 = vmatpush1.msra.mxu0 0.0
    %4235 = vmatprep.mubr.f32.mxu0 0.0
    %4236 = vmatmul.mubr.f32.gmra.mrb[0].mxu0 %v4169
    %v4237 = vpop.f32.mrb[0].mxu0
    %v4238 = vadd.f32 0.0, %v4237
    %v4239 = vpop.f32.mrb[0].mxu0
    %4240 = vdwg.mxu0
    %v4241 = vsel %vm71, %v4019, 0.0
    %v4242 = vsel %vm71, %v4092, 0.0
    %v4243 = vadd.f32 %v4241, %v4242
    %v4244 = vsel %vm71, %v4165, 0.0
    %v4245 = vadd.f32 %v4243, %v4244
    %v4246 = vsel %vm71, %v4238, 0.0
    %v4247 = vadd.f32 %v4245, %v4246
    %v4248 = vadd.f32 %v2264, %v4247
    %v4249 = vlaneseq
    %v4250 = vshrl.u32 %v4249, 7
    %v4251 = vsub.s32 4, %v4250
    %v4252 = vrot.slane %v2266, %v4251
    %v4253 = vadd.f32 %v4248, %v4252
    %v4254 = vsel %vm71, %v4253, 0.0
    %4255 = vadd.xlane.f32.xlu0 %v4254
    %v4256 = vpop.xlane.xlu0 %4255
    %v4257 = vmul.f32 %v4256, %v75
    %v4258 = vsub.f32 %v4253, %v4257
    %v4259 = vmul.f32 %v4258, %v4258
    %v4260 = vsel %vm71, %v4259, 0.0
    %4261 = vadd.xlane.f32.xlu0 %v4260
    %v4262 = vpop.xlane.xlu0 %4261
    %v4263 = vmul.f32 %v4262, %v75
    %v4264 = vadd.f32 %v4263, 1e-05
    %v4265 = vrsqrt.pop %v4264
    %v4266 = vmul.f32 %v4258, %v4265
    %v4267 = vlaneseq
    %v4268 = vshrl.u32 %v4267, 7
    %v4269 = vsub.s32 2, %v4268
    %v4270 = vrot.slane %v2266, %v4269
    %v4271 = vmul.f32 %v4266, %v4270
    %v4272 = vlaneseq
    %v4273 = vshrl.u32 %v4272, 7
    %v4274 = vsub.s32 3, %v4273
    %v4275 = vrot.slane %v2266, %v4274
    %v4276 = vadd.f32 %v4271, %v4275
    %s4277 = scalar_lea.vmem %s8, 32
    %v4278 = vld [vmem:[%s4277] sm:$0xff]
    %v4279 = vld [vmem:[%s4277 + $0x8] sm:$0xff]
    %v4280 = vld [vmem:[%s4277 + $0x10] sm:$0xff]
    %v4281 = vld [vmem:[%s4277 + $0x18] sm:$0xff]
    %s4282 = scalar_lea.vmem %s5, 1
    %v4283 = vld [vmem:[%s4282] sm:$0x1]
    %v4285 = vlaneseq
    %v4286 = vshrl.u32 %v4285, 7
    %v4287 = vsub.s32 0, %v4286
    %v4288 = vrot.slane %v4283, %v4287
    %v4291 = vsel %vm71, %v4276, 0
    %4293 = vmatprep.subr.mxu0 0.0
    %4294 = vmatpush1.msra.mxu0 %v4278
    %4295 = vmatprep.subr.mxu0 0.0
    %4296 = vmatpush1.msra.mxu0 %v4279
    %4297 = vmatprep.subr.mxu0 0.0
    %4298 = vmatpush1.msra.mxu0 %v4280
    %4299 = vmatprep.subr.mxu0 0.0
    %4300 = vmatpush1.msra.mxu0 %v4281
    %4301 = vmatprep.subr.mxu0 0.0
    %4302 = vmatpush1.msra.mxu0 0.0
    %4303 = vmatprep.subr.mxu0 0.0
    %4304 = vmatpush1.msra.mxu0 0.0
    %4305 = vmatprep.subr.mxu0 0.0
    %4306 = vmatpush1.msra.mxu0 0.0
    %4307 = vmatprep.subr.mxu0 0.0
    %4308 = vmatpush1.msra.mxu0 0.0
    %4309 = vmatprep.subr.mxu0 0.0
    %4310 = vmatpush1.msra.mxu0 0.0
    %4311 = vmatprep.subr.mxu0 0.0
    %4312 = vmatpush1.msra.mxu0 0.0
    %4313 = vmatprep.subr.mxu0 0.0
    %4314 = vmatpush1.msra.mxu0 0.0
    %4315 = vmatprep.subr.mxu0 0.0
    %4316 = vmatpush1.msra.mxu0 0.0
    %4317 = vmatprep.subr.mxu0 0.0
    %4318 = vmatpush1.msra.mxu0 0.0
    %4319 = vmatprep.subr.mxu0 0.0
    %4320 = vmatpush1.msra.mxu0 0.0
    %4321 = vmatprep.subr.mxu0 0.0
    %4322 = vmatpush1.msra.mxu0 0.0
    %4323 = vmatprep.subr.mxu0 0.0
    %4324 = vmatpush1.msra.mxu0 0.0
    %4325 = vmatprep.subr.mxu0 0.0
    %4326 = vmatpush1.msra.mxu0 0.0
    %4327 = vmatprep.subr.mxu0 0.0
    %4328 = vmatpush1.msra.mxu0 0.0
    %4329 = vmatprep.subr.mxu0 0.0
    %4330 = vmatpush1.msra.mxu0 0.0
    %4331 = vmatprep.subr.mxu0 0.0
    %4332 = vmatpush1.msra.mxu0 0.0
    %4333 = vmatprep.subr.mxu0 0.0
    %4334 = vmatpush1.msra.mxu0 0.0
    %4335 = vmatprep.subr.mxu0 0.0
    %4336 = vmatpush1.msra.mxu0 0.0
    %4337 = vmatprep.subr.mxu0 0.0
    %4338 = vmatpush1.msra.mxu0 0.0
    %4339 = vmatprep.subr.mxu0 0.0
    %4340 = vmatpush1.msra.mxu0 0.0
    %4341 = vmatprep.subr.mxu0 0.0
    %4342 = vmatpush1.msra.mxu0 0.0
    %4343 = vmatprep.subr.mxu0 0.0
    %4344 = vmatpush1.msra.mxu0 0.0
    %4345 = vmatprep.subr.mxu0 0.0
    %4346 = vmatpush1.msra.mxu0 0.0
    %4347 = vmatprep.subr.mxu0 0.0
    %4348 = vmatpush1.msra.mxu0 0.0
    %4349 = vmatprep.subr.mxu0 0.0
    %4350 = vmatpush1.msra.mxu0 0.0
    %4351 = vmatprep.subr.mxu0 0.0
    %4352 = vmatpush1.msra.mxu0 0.0
    %4353 = vmatprep.subr.mxu0 0.0
    %4354 = vmatpush1.msra.mxu0 0.0
    %4355 = vmatprep.subr.mxu0 0.0
    %4356 = vmatpush1.msra.mxu0 0.0
    %4357 = vmatprep.mubr.f32.mxu0 0.0
    %4358 = vmatmul.mubr.f32.gmra.mrb[0].mxu0 %v4291
    %v4359 = vpop.f32.mrb[0].mxu0
    %v4360 = vadd.f32 %v4288, %v4359
    %v4361 = vpop.f32.mrb[0].mxu0
    %4362 = vdwg.mxu0
    %v4363 = vmul.f32 %v4360, 1.702
    %v4364 = vxor.u32 %v4363, 2147483648
    %v4365 = vmul.f32 %v4364, 1.442695
    %v4366 = vpow.pop %v4365
    %v4367 = vadd.f32 %v4366, 1.0
    %v4368 = vrcp.pop %v4367
    %v4369 = vmul.f32 1.0, %v4368
    %v4370 = vmul.f32 %v4360, %v4369
    %s4371 = scalar_lea.vmem %s9, 128
    %v4372 = vld [vmem:[%s4371] sm:$0xff]
    %v4373 = vld [vmem:[%s4371 + $0x8] sm:$0xff]
    %v4374 = vld [vmem:[%s4371 + $0x10] sm:$0xff]
    %v4375 = vld [vmem:[%s4371 + $0x18] sm:$0xff]
    %v4376 = vld [vmem:[%s4371 + $0x20] sm:$0xff]
    %v4377 = vld [vmem:[%s4371 + $0x28] sm:$0xff]
    %v4378 = vld [vmem:[%s4371 + $0x30] sm:$0xff]
    %v4379 = vld [vmem:[%s4371 + $0x38] sm:$0xff]
    %v4380 = vld [vmem:[%s4371 + $0x40] sm:$0xff]
    %v4381 = vld [vmem:[%s4371 + $0x48] sm:$0xff]
    %v4382 = vld [vmem:[%s4371 + $0x50] sm:$0xff]
    %v4383 = vld [vmem:[%s4371 + $0x58] sm:$0xff]
    %v4384 = vld [vmem:[%s4371 + $0x60] sm:$0xff]
    %v4385 = vld [vmem:[%s4371 + $0x68] sm:$0xff]
    %v4386 = vld [vmem:[%s4371 + $0x70] sm:$0xff]
    %v4387 = vld [vmem:[%s4371 + $0x78] sm:$0xff]
    %4388 = vmatprep.subr.mxu0 0.0
    %4389 = vmatpush1.msra.mxu0 %v4372
    %4390 = vmatprep.subr.mxu0 0.0
    %4391 = vmatpush1.msra.mxu0 %v4373
    %4392 = vmatprep.subr.mxu0 0.0
    %4393 = vmatpush1.msra.mxu0 %v4374
    %4394 = vmatprep.subr.mxu0 0.0
    %4395 = vmatpush1.msra.mxu0 %v4375
    %4396 = vmatprep.subr.mxu0 0.0
    %4397 = vmatpush1.msra.mxu0 %v4376
    %4398 = vmatprep.subr.mxu0 0.0
    %4399 = vmatpush1.msra.mxu0 %v4377
    %4400 = vmatprep.subr.mxu0 0.0
    %4401 = vmatpush1.msra.mxu0 %v4378
    %4402 = vmatprep.subr.mxu0 0.0
    %4403 = vmatpush1.msra.mxu0 %v4379
    %4404 = vmatprep.subr.mxu0 0.0
    %4405 = vmatpush1.msra.mxu0 %v4380
    %4406 = vmatprep.subr.mxu0 0.0
    %4407 = vmatpush1.msra.mxu0 %v4381
    %4408 = vmatprep.subr.mxu0 0.0
    %4409 = vmatpush1.msra.mxu0 %v4382
    %4410 = vmatprep.subr.mxu0 0.0
    %4411 = vmatpush1.msra.mxu0 %v4383
    %4412 = vmatprep.subr.mxu0 0.0
    %4413 = vmatpush1.msra.mxu0 %v4384
    %4414 = vmatprep.subr.mxu0 0.0
    %4415 = vmatpush1.msra.mxu0 %v4385
    %4416 = vmatprep.subr.mxu0 0.0
    %4417 = vmatpush1.msra.mxu0 %v4386
    %4418 = vmatprep.subr.mxu0 0.0
    %4419 = vmatpush1.msra.mxu0 %v4387
    %4420 = vmatprep.subr.mxu0 0.0
    %4421 = vmatpush1.msra.mxu0 0.0
    %4422 = vmatprep.subr.mxu0 0.0
    %4423 = vmatpush1.msra.mxu0 0.0
    %4424 = vmatprep.subr.mxu0 0.0
    %4425 = vmatpush1.msra.mxu0 0.0
    %4426 = vmatprep.subr.mxu0 0.0
    %4427 = vmatpush1.msra.mxu0 0.0
    %4428 = vmatprep.subr.mxu0 0.0
    %4429 = vmatpush1.msra.mxu0 0.0
    %4430 = vmatprep.subr.mxu0 0.0
    %4431 = vmatpush1.msra.mxu0 0.0
    %4432 = vmatprep.subr.mxu0 0.0
    %4433 = vmatpush1.msra.mxu0 0.0
    %4434 = vmatprep.subr.mxu0 0.0
    %4435 = vmatpush1.msra.mxu0 0.0
    %4436 = vmatprep.subr.mxu0 0.0
    %4437 = vmatpush1.msra.mxu0 0.0
    %4438 = vmatprep.subr.mxu0 0.0
    %4439 = vmatpush1.msra.mxu0 0.0
    %4440 = vmatprep.subr.mxu0 0.0
    %4441 = vmatpush1.msra.mxu0 0.0
    %4442 = vmatprep.subr.mxu0 0.0
    %4443 = vmatpush1.msra.mxu0 0.0
    %4444 = vmatprep.subr.mxu0 0.0
    %4445 = vmatpush1.msra.mxu0 0.0
    %4446 = vmatprep.subr.mxu0 0.0
    %4447 = vmatpush1.msra.mxu0 0.0
    %4448 = vmatprep.subr.mxu0 0.0
    %4449 = vmatpush1.msra.mxu0 0.0
    %4450 = vmatprep.subr.mxu0 0.0
    %4451 = vmatpush1.msra.mxu0 0.0
    %4452 = vmatprep.mubr.f32.mxu0 0.0
    %4453 = vmatmul.mubr.f32.gmra.mrb[0].mxu0 %v4370
    %v4454 = vpop.f32.mrb[0].mxu0
    %v4455 = vadd.f32 0.0, %v4454
    %v4456 = vpop.f32.mrb[0].mxu0
    %4457 = vdwg.mxu0
    %v4458 = vadd.f32 %v4253, %v4455
    %v4459 = vlaneseq
    %v4460 = vshrl.u32 %v4459, 7
    %v4461 = vsub.s32 5, %v4460
    %v4462 = vrot.slane %v2266, %v4461
    %v4463 = vadd.f32 %v4458, %v4462
    %4464 = vst.msk [vmem:[#allocation2] sm:$0xff] %vm71, %v4463
    %s4465 = sld [smem:[#allocation3]]
    %s4466 = scalar_lea.vmem [#allocation2], %s4465
    %v4467 = vld [vmem:[%s4466] sm:$0x1]
    %vm4468 = vcmask 253952
    %v4469 = vsel %vm4468, %v4467, 0.0
    %4470 = vadd.xlane.f32.xlu0 %v4469
    %v4471 = vpop.xlane.xlu0 %4470
    %v4472 = vmul.f32 %v4471, %v75
    %v4473 = vsub.f32 %v4467, %v4472
    %v4474 = vmul.f32 %v4473, %v4473
    %v4475 = vsel %vm4468, %v4474, 0.0
    %4476 = vadd.xlane.f32.xlu0 %v4475
    %v4477 = vpop.xlane.xlu0 %4476
    %v4478 = vmul.f32 %v4477, %v75
    %v4479 = vadd.f32 %v4478, 1e-05
    %v4480 = vrsqrt.pop %v4479
    %v4481 = vmul.f32 %v4473, %v4480
    %v4482 = vmul.f32 %v4481, %v62
    %v4483 = vadd.f32 %v4482, %v63
    %v4485 = vsel %vm71, %v4483, 0
    %4487 = vmatprep.subr.mxu0 0.0
    %4488 = vmatpush1.msra.mxu0 %v64
    %4489 = vmatprep.subr.mxu0 0.0
    %4490 = vmatpush1.msra.mxu0 %v65
    %4491 = vmatprep.subr.mxu0 0.0
    %4492 = vmatpush1.msra.mxu0 %v66
    %4493 = vmatprep.subr.mxu0 0.0
    %4494 = vmatpush1.msra.mxu0 %v67
    %4495 = vmatprep.subr.mxu0 0.0
    %4496 = vmatpush1.msra.mxu0 0.0
    %4497 = vmatprep.subr.mxu0 0.0
    %4498 = vmatpush1.msra.mxu0 0.0
    %4499 = vmatprep.subr.mxu0 0.0
    %4500 = vmatpush1.msra.mxu0 0.0
    %4501 = vmatprep.subr.mxu0 0.0
    %4502 = vmatpush1.msra.mxu0 0.0
    %4503 = vmatprep.subr.mxu0 0.0
    %4504 = vmatpush1.msra.mxu0 0.0
    %4505 = vmatprep.subr.mxu0 0.0
    %4506 = vmatpush1.msra.mxu0 0.0
    %4507 = vmatprep.subr.mxu0 0.0
    %4508 = vmatpush1.msra.mxu0 0.0
    %4509 = vmatprep.subr.mxu0 0.0
    %4510 = vmatpush1.msra.mxu0 0.0
    %4511 = vmatprep.subr.mxu0 0.0
    %4512 = vmatpush1.msra.mxu0 0.0
    %4513 = vmatprep.subr.mxu0 0.0
    %4514 = vmatpush1.msra.mxu0 0.0
    %4515 = vmatprep.subr.mxu0 0.0
    %4516 = vmatpush1.msra.mxu0 0.0
    %4517 = vmatprep.subr.mxu0 0.0
    %4518 = vmatpush1.msra.mxu0 0.0
    %4519 = vmatprep.subr.mxu0 0.0
    %4520 = vmatpush1.msra.mxu0 0.0
    %4521 = vmatprep.subr.mxu0 0.0
    %4522 = vmatpush1.msra.mxu0 0.0
    %4523 = vmatprep.subr.mxu0 0.0
    %4524 = vmatpush1.msra.mxu0 0.0
    %4525 = vmatprep.subr.mxu0 0.0
    %4526 = vmatpush1.msra.mxu0 0.0
    %4527 = vmatprep.subr.mxu0 0.0
    %4528 = vmatpush1.msra.mxu0 0.0
    %4529 = vmatprep.subr.mxu0 0.0
    %4530 = vmatpush1.msra.mxu0 0.0
    %4531 = vmatprep.subr.mxu0 0.0
    %4532 = vmatpush1.msra.mxu0 0.0
    %4533 = vmatprep.subr.mxu0 0.0
    %4534 = vmatpush1.msra.mxu0 0.0
    %4535 = vmatprep.subr.mxu0 0.0
    %4536 = vmatpush1.msra.mxu0 0.0
    %4537 = vmatprep.subr.mxu0 0.0
    %4538 = vmatpush1.msra.mxu0 0.0
    %4539 = vmatprep.subr.mxu0 0.0
    %4540 = vmatpush1.msra.mxu0 0.0
    %4541 = vmatprep.subr.mxu0 0.0
    %4542 = vmatpush1.msra.mxu0 0.0
    %4543 = vmatprep.subr.mxu0 0.0
    %4544 = vmatpush1.msra.mxu0 0.0
    %4545 = vmatprep.subr.mxu0 0.0
    %4546 = vmatpush1.msra.mxu0 0.0
    %4547 = vmatprep.subr.mxu0 0.0
    %4548 = vmatpush1.msra.mxu0 0.0
    %4549 = vmatprep.subr.mxu0 0.0
    %4550 = vmatpush1.msra.mxu0 0.0
    %4551 = vmatprep.mubr.f32.mxu0 0.0
    %4552 = vmatmul.mubr.f32.gmra.mrb[0].mxu0 %v4485
    %v4553 = vpop.f32.mrb[0].mxu0
    %v4554 = vadd.f32 0.0, %v4553
    %v4555 = vpop.f32.mrb[0].mxu0
    %4556 = vdwg.mxu0
    %vm4557 = vcmask 122880
    %4558 = vst.msk [vmem:[#allocation6] sm:$0x1] %vm4557, %v4554
    %s4559 = scalar_lea.vmem %s1, 8
    %v4560 = vld [vmem:[%s4559] sm:$0xff]
    %v4561 = vadd.f32 %v4560, %v61
    %v4562 = vld [vmem:[%s3] sm:$0x3f]
    %v4563 = vsel %vm71, %v4561, 0.0
    %4564 = vadd.xlane.f32.xlu0 %v4563
    %v4565 = vpop.xlane.xlu0 %4564
    %v4566 = vmul.f32 %v4565, %v75
    %v4567 = vsub.f32 %v4561, %v4566
    %v4568 = vmul.f32 %v4567, %v4567
    %v4569 = vsel %vm71, %v4568, 0.0
    %4570 = vadd.xlane.f32.xlu0 %v4569
    %v4571 = vpop.xlane.xlu0 %4570
    %v4572 = vmul.f32 %v4571, %v75
    %v4573 = vadd.f32 %v4572, 1e-05
    %v4574 = vrsqrt.pop %v4573
    %v4575 = vmul.f32 %v4567, %v4574
    %v4576 = vlaneseq
    %v4577 = vshrl.u32 %v4576, 7
    %v4578 = vsub.s32 0, %v4577
    %v4579 = vrot.slane %v4562, %v4578
    %v4580 = vmul.f32 %v4575, %v4579
    %v4581 = vlaneseq
    %v4582 = vshrl.u32 %v4581, 7
    %v4583 = vsub.s32 1, %v4582
    %v4584 = vrot.slane %v4562, %v4583
    %v4585 = vadd.f32 %v4580, %v4584
    %v4586 = vld [vmem:[%s6] sm:$0xff]
    %v4587 = vld [vmem:[%s6 + $0x8] sm:$0xff]
    %v4588 = vld [vmem:[%s6 + $0x10] sm:$0xff]
    %v4589 = vld [vmem:[%s6 + $0x18] sm:$0xff]
    %v4591 = vsel %vm71, %v4585, 0
    %4593 = vmatprep.subr.mxu0 0.0
    %4594 = vmatpush1.msra.mxu0 %v4586
    %4595 = vmatprep.subr.mxu0 0.0
    %4596 = vmatpush1.msra.mxu0 %v4587
    %4597 = vmatprep.subr.mxu0 0.0
    %4598 = vmatpush1.msra.mxu0 %v4588
    %4599 = vmatprep.subr.mxu0 0.0
    %4600 = vmatpush1.msra.mxu0 %v4589
    %4601 = vmatprep.subr.mxu0 0.0
    %4602 = vmatpush1.msra.mxu0 0.0
    %4603 = vmatprep.subr.mxu0 0.0
    %4604 = vmatpush1.msra.mxu0 0.0
    %4605 = vmatprep.subr.mxu0 0.0
    %4606 = vmatpush1.msra.mxu0 0.0
    %4607 = vmatprep.subr.mxu0 0.0
    %4608 = vmatpush1.msra.mxu0 0.0
    %4609 = vmatprep.subr.mxu0 0.0
    %4610 = vmatpush1.msra.mxu0 0.0
    %4611 = vmatprep.subr.mxu0 0.0
    %4612 = vmatpush1.msra.mxu0 0.0
    %4613 = vmatprep.subr.mxu0 0.0
    %4614 = vmatpush1.msra.mxu0 0.0
    %4615 = vmatprep.subr.mxu0 0.0
    %4616 = vmatpush1.msra.mxu0 0.0
    %4617 = vmatprep.subr.mxu0 0.0
    %4618 = vmatpush1.msra.mxu0 0.0
    %4619 = vmatprep.subr.mxu0 0.0
    %4620 = vmatpush1.msra.mxu0 0.0
    %4621 = vmatprep.subr.mxu0 0.0
    %4622 = vmatpush1.msra.mxu0 0.0
    %4623 = vmatprep.subr.mxu0 0.0
    %4624 = vmatpush1.msra.mxu0 0.0
    %4625 = vmatprep.subr.mxu0 0.0
    %4626 = vmatpush1.msra.mxu0 0.0
    %4627 = vmatprep.subr.mxu0 0.0
    %4628 = vmatpush1.msra.mxu0 0.0
    %4629 = vmatprep.subr.mxu0 0.0
    %4630 = vmatpush1.msra.mxu0 0.0
    %4631 = vmatprep.subr.mxu0 0.0
    %4632 = vmatpush1.msra.mxu0 0.0
    %4633 = vmatprep.subr.mxu0 0.0
    %4634 = vmatpush1.msra.mxu0 0.0
    %4635 = vmatprep.subr.mxu0 0.0
    %4636 = vmatpush1.msra.mxu0 0.0
    %4637 = vmatprep.subr.mxu0 0.0
    %4638 = vmatpush1.msra.mxu0 0.0
    %4639 = vmatprep.subr.mxu0 0.0
    %4640 = vmatpush1.msra.mxu0 0.0
    %4641 = vmatprep.subr.mxu0 0.0
    %4642 = vmatpush1.msra.mxu0 0.0
    %4643 = vmatprep.subr.mxu0 0.0
    %4644 = vmatpush1.msra.mxu0 0.0
    %4645 = vmatprep.subr.mxu0 0.0
    %4646 = vmatpush1.msra.mxu0 0.0
    %4647 = vmatprep.subr.mxu0 0.0
    %4648 = vmatpush1.msra.mxu0 0.0
    %4649 = vmatprep.subr.mxu0 0.0
    %4650 = vmatpush1.msra.mxu0 0.0
    %4651 = vmatprep.subr.mxu0 0.0
    %4652 = vmatpush1.msra.mxu0 0.0
    %4653 = vmatprep.subr.mxu0 0.0
    %4654 = vmatpush1.msra.mxu0 0.0
    %4655 = vmatprep.subr.mxu0 0.0
    %4656 = vmatpush1.msra.mxu0 0.0
    %4657 = vmatprep.mubr.f32.mxu0 0.0
    %4658 = vmatmul.mubr.f32.gmra.mrb[0].mxu0 %v4591
    %v4659 = vpop.f32.mrb[0].mxu0
    %v4660 = vadd.f32 0.0, %v4659
    %v4661 = vpop.f32.mrb[0].mxu0
    %4662 = vdwg.mxu0
    %v4663 = vld [vmem:[%s173] sm:$0xff]
    %v4664 = vld [vmem:[%s173 + $0x8] sm:$0xff]
    %v4665 = vld [vmem:[%s173 + $0x10] sm:$0xff]
    %v4666 = vld [vmem:[%s173 + $0x18] sm:$0xff]
    %4667 = vmatprep.subr.mxu0 0.0
    %4668 = vmatpush1.msra.mxu0 %v4663
    %4669 = vmatprep.subr.mxu0 0.0
    %4670 = vmatpush1.msra.mxu0 %v4664
    %4671 = vmatprep.subr.mxu0 0.0
    %4672 = vmatpush1.msra.mxu0 %v4665
    %4673 = vmatprep.subr.mxu0 0.0
    %4674 = vmatpush1.msra.mxu0 %v4666
    %4675 = vmatprep.subr.mxu0 0.0
    %4676 = vmatpush1.msra.mxu0 0.0
    %4677 = vmatprep.subr.mxu0 0.0
    %4678 = vmatpush1.msra.mxu0 0.0
    %4679 = vmatprep.subr.mxu0 0.0
    %4680 = vmatpush1.msra.mxu0 0.0
    %4681 = vmatprep.subr.mxu0 0.0
    %4682 = vmatpush1.msra.mxu0 0.0
    %4683 = vmatprep.subr.mxu0 0.0
    %4684 = vmatpush1.msra.mxu0 0.0
    %4685 = vmatprep.subr.mxu0 0.0
    %4686 = vmatpush1.msra.mxu0 0.0
    %4687 = vmatprep.subr.mxu0 0.0
    %4688 = vmatpush1.msra.mxu0 0.0
    %4689 = vmatprep.subr.mxu0 0.0
    %4690 = vmatpush1.msra.mxu0 0.0
    %4691 = vmatprep.subr.mxu0 0.0
    %4692 = vmatpush1.msra.mxu0 0.0
    %4693 = vmatprep.subr.mxu0 0.0
    %4694 = vmatpush1.msra.mxu0 0.0
    %4695 = vmatprep.subr.mxu0 0.0
    %4696 = vmatpush1.msra.mxu0 0.0
    %4697 = vmatprep.subr.mxu0 0.0
    %4698 = vmatpush1.msra.mxu0 0.0
    %4699 = vmatprep.subr.mxu0 0.0
    %4700 = vmatpush1.msra.mxu0 0.0
    %4701 = vmatprep.subr.mxu0 0.0
    %4702 = vmatpush1.msra.mxu0 0.0
    %4703 = vmatprep.subr.mxu0 0.0
    %4704 = vmatpush1.msra.mxu0 0.0
    %4705 = vmatprep.subr.mxu0 0.0
    %4706 = vmatpush1.msra.mxu0 0.0
    %4707 = vmatprep.subr.mxu0 0.0
    %4708 = vmatpush1.msra.mxu0 0.0
    %4709 = vmatprep.subr.mxu0 0.0
    %4710 = vmatpush1.msra.mxu0 0.0
    %4711 = vmatprep.subr.mxu0 0.0
    %4712 = vmatpush1.msra.mxu0 0.0
    %4713 = vmatprep.subr.mxu0 0.0
    %4714 = vmatpush1.msra.mxu0 0.0
    %4715 = vmatprep.subr.mxu0 0.0
    %4716 = vmatpush1.msra.mxu0 0.0
    %4717 = vmatprep.subr.mxu0 0.0
    %4718 = vmatpush1.msra.mxu0 0.0
    %4719 = vmatprep.subr.mxu0 0.0
    %4720 = vmatpush1.msra.mxu0 0.0
    %4721 = vmatprep.subr.mxu0 0.0
    %4722 = vmatpush1.msra.mxu0 0.0
    %4723 = vmatprep.subr.mxu0 0.0
    %4724 = vmatpush1.msra.mxu0 0.0
    %4725 = vmatprep.subr.mxu0 0.0
    %4726 = vmatpush1.msra.mxu0 0.0
    %4727 = vmatprep.subr.mxu0 0.0
    %4728 = vmatpush1.msra.mxu0 0.0
    %4729 = vmatprep.subr.mxu0 0.0
    %4730 = vmatpush1.msra.mxu0 0.0
    %4731 = vmatprep.mubr.f32.mxu0 0.0
    %4732 = vmatmul.mubr.f32.gmra.mrb[0].mxu0 %v4591
    %v4733 = vpop.f32.mrb[0].mxu0
    %v4734 = vadd.f32 0.0, %v4733
    %v4735 = vpop.f32.mrb[0].mxu0
    %4736 = vdwg.mxu0
    %v4737 = vld [vmem:[%s248] sm:$0xff]
    %v4738 = vld [vmem:[%s248 + $0x8] sm:$0xff]
    %v4739 = vld [vmem:[%s248 + $0x10] sm:$0xff]
    %v4740 = vld [vmem:[%s248 + $0x18] sm:$0xff]
    %4741 = vmatprep.subr.mxu0 0.0
    %4742 = vmatpush1.msra.mxu0 %v4737
    %4743 = vmatprep.subr.mxu0 0.0
    %4744 = vmatpush1.msra.mxu0 %v4738
    %4745 = vmatprep.subr.mxu0 0.0
    %4746 = vmatpush1.msra.mxu0 %v4739
    %4747 = vmatprep.subr.mxu0 0.0
    %4748 = vmatpush1.msra.mxu0 %v4740
    %4749 = vmatprep.subr.mxu0 0.0
    %4750 = vmatpush1.msra.mxu0 0.0
    %4751 = vmatprep.subr.mxu0 0.0
    %4752 = vmatpush1.msra.mxu0 0.0
    %4753 = vmatprep.subr.mxu0 0.0
    %4754 = vmatpush1.msra.mxu0 0.0
    %4755 = vmatprep.subr.mxu0 0.0
    %4756 = vmatpush1.msra.mxu0 0.0
    %4757 = vmatprep.subr.mxu0 0.0
    %4758 = vmatpush1.msra.mxu0 0.0
    %4759 = vmatprep.subr.mxu0 0.0
    %4760 = vmatpush1.msra.mxu0 0.0
    %4761 = vmatprep.subr.mxu0 0.0
    %4762 = vmatpush1.msra.mxu0 0.0
    %4763 = vmatprep.subr.mxu0 0.0
    %4764 = vmatpush1.msra.mxu0 0.0
    %4765 = vmatprep.subr.mxu0 0.0
    %4766 = vmatpush1.msra.mxu0 0.0
    %4767 = vmatprep.subr.mxu0 0.0
    %4768 = vmatpush1.msra.mxu0 0.0
    %4769 = vmatprep.subr.mxu0 0.0
    %4770 = vmatpush1.msra.mxu0 0.0
    %4771 = vmatprep.subr.mxu0 0.0
    %4772 = vmatpush1.msra.mxu0 0.0
    %4773 = vmatprep.subr.mxu0 0.0
    %4774 = vmatpush1.msra.mxu0 0.0
    %4775 = vmatprep.subr.mxu0 0.0
    %4776 = vmatpush1.msra.mxu0 0.0
    %4777 = vmatprep.subr.mxu0 0.0
    %4778 = vmatpush1.msra.mxu0 0.0
    %4779 = vmatprep.subr.mxu0 0.0
    %4780 = vmatpush1.msra.mxu0 0.0
    %4781 = vmatprep.subr.mxu0 0.0
    %4782 = vmatpush1.msra.mxu0 0.0
    %4783 = vmatprep.subr.mxu0 0.0
    %4784 = vmatpush1.msra.mxu0 0.0
    %4785 = vmatprep.subr.mxu0 0.0
    %4786 = vmatpush1.msra.mxu0 0.0
    %4787 = vmatprep.subr.mxu0 0.0
    %4788 = vmatpush1.msra.mxu0 0.0
    %4789 = vmatprep.subr.mxu0 0.0
    %4790 = vmatpush1.msra.mxu0 0.0
    %4791 = vmatprep.subr.mxu0 0.0
    %4792 = vmatpush1.msra.mxu0 0.0
    %4793 = vmatprep.subr.mxu0 0.0
    %4794 = vmatpush1.msra.mxu0 0.0
    %4795 = vmatprep.subr.mxu0 0.0
    %4796 = vmatpush1.msra.mxu0 0.0
    %4797 = vmatprep.subr.mxu0 0.0
    %4798 = vmatpush1.msra.mxu0 0.0
    %4799 = vmatprep.subr.mxu0 0.0
    %4800 = vmatpush1.msra.mxu0 0.0
    %4801 = vmatprep.subr.mxu0 0.0
    %4802 = vmatpush1.msra.mxu0 0.0
    %4803 = vmatprep.subr.mxu0 0.0
    %4804 = vmatpush1.msra.mxu0 0.0
    %4805 = vmatprep.mubr.f32.mxu0 0.0
    %4806 = vmatmul.mubr.f32.gmra.mrb[0].mxu0 %v4591
    %v4807 = vpop.f32.mrb[0].mxu0
    %v4808 = vadd.f32 0.0, %v4807
    %v4809 = vpop.f32.mrb[0].mxu0
    %4810 = vdwg.mxu0
    %v4811 = vld [vmem:[%s323] sm:$0xff]
    %v4812 = vld [vmem:[%s323 + $0x8] sm:$0xff]
    %v4813 = vld [vmem:[%s323 + $0x10] sm:$0xff]
    %v4814 = vld [vmem:[%s323 + $0x18] sm:$0xff]
    %4815 = vmatprep.subr.mxu0 0.0
    %4816 = vmatpush1.msra.mxu0 %v4811
    %4817 = vmatprep.subr.mxu0 0.0
    %4818 = vmatpush1.msra.mxu0 %v4812
    %4819 = vmatprep.subr.mxu0 0.0
    %4820 = vmatpush1.msra.mxu0 %v4813
    %4821 = vmatprep.subr.mxu0 0.0
    %4822 = vmatpush1.msra.mxu0 %v4814
    %4823 = vmatprep.subr.mxu0 0.0
    %4824 = vmatpush1.msra.mxu0 0.0
    %4825 = vmatprep.subr.mxu0 0.0
    %4826 = vmatpush1.msra.mxu0 0.0
    %4827 = vmatprep.subr.mxu0 0.0
    %4828 = vmatpush1.msra.mxu0 0.0
    %4829 = vmatprep.subr.mxu0 0.0
    %4830 = vmatpush1.msra.mxu0 0.0
    %4831 = vmatprep.subr.mxu0 0.0
    %4832 = vmatpush1.msra.mxu0 0.0
    %4833 = vmatprep.subr.mxu0 0.0
    %4834 = vmatpush1.msra.mxu0 0.0
    %4835 = vmatprep.subr.mxu0 0.0
    %4836 = vmatpush1.msra.mxu0 0.0
    %4837 = vmatprep.subr.mxu0 0.0
    %4838 = vmatpush1.msra.mxu0 0.0
    %4839 = vmatprep.subr.mxu0 0.0
    %4840 = vmatpush1.msra.mxu0 0.0
    %4841 = vmatprep.subr.mxu0 0.0
    %4842 = vmatpush1.msra.mxu0 0.0
    %4843 = vmatprep.subr.mxu0 0.0
    %4844 = vmatpush1.msra.mxu0 0.0
    %4845 = vmatprep.subr.mxu0 0.0
    %4846 = vmatpush1.msra.mxu0 0.0
    %4847 = vmatprep.subr.mxu0 0.0
    %4848 = vmatpush1.msra.mxu0 0.0
    %4849 = vmatprep.subr.mxu0 0.0
    %4850 = vmatpush1.msra.mxu0 0.0
    %4851 = vmatprep.subr.mxu0 0.0
    %4852 = vmatpush1.msra.mxu0 0.0
    %4853 = vmatprep.subr.mxu0 0.0
    %4854 = vmatpush1.msra.mxu0 0.0
    %4855 = vmatprep.subr.mxu0 0.0
    %4856 = vmatpush1.msra.mxu0 0.0
    %4857 = vmatprep.subr.mxu0 0.0
    %4858 = vmatpush1.msra.mxu0 0.0
    %4859 = vmatprep.subr.mxu0 0.0
    %4860 = vmatpush1.msra.mxu0 0.0
    %4861 = vmatprep.subr.mxu0 0.0
    %4862 = vmatpush1.msra.mxu0 0.0
    %4863 = vmatprep.subr.mxu0 0.0
    %4864 = vmatpush1.msra.mxu0 0.0
    %4865 = vmatprep.subr.mxu0 0.0
    %4866 = vmatpush1.msra.mxu0 0.0
    %4867 = vmatprep.subr.mxu0 0.0
    %4868 = vmatpush1.msra.mxu0 0.0
    %4869 = vmatprep.subr.mxu0 0.0
    %4870 = vmatpush1.msra.mxu0 0.0
    %4871 = vmatprep.subr.mxu0 0.0
    %4872 = vmatpush1.msra.mxu0 0.0
    %4873 = vmatprep.subr.mxu0 0.0
    %4874 = vmatpush1.msra.mxu0 0.0
    %4875 = vmatprep.subr.mxu0 0.0
    %4876 = vmatpush1.msra.mxu0 0.0
    %4877 = vmatprep.subr.mxu0 0.0
    %4878 = vmatpush1.msra.mxu0 0.0
    %4879 = vmatprep.mubr.f32.mxu0 0.0
    %4880 = vmatmul.mubr.f32.gmra.mrb[0].mxu0 %v4591
    %v4881 = vpop.f32.mrb[0].mxu0
    %v4882 = vadd.f32 0.0, %v4881
    %v4883 = vpop.f32.mrb[0].mxu0
    %4884 = vdwg.mxu0
    %v4885 = vld [vmem:[%s4] sm:$0x1]
    %v4886 = vld [vmem:[%s4 + $0x1] sm:$0x1]
    %v4887 = vld [vmem:[%s4 + $0x2] sm:$0x1]
    %v4888 = vld [vmem:[%s4 + $0x3] sm:$0x1]
    %v4893 = vlaneseq
    %v4894 = vshrl.u32 %v4893, 7
    %v4895 = vsub.s32 0, %v4894
    %v4896 = vrot.slane %v4885, %v4895
    %v4897 = vlaneseq
    %v4898 = vshrl.u32 %v4897, 7
    %v4899 = vsub.s32 0, %v4898
    %v4900 = vrot.slane %v4886, %v4899
    %v4901 = vlaneseq
    %v4902 = vshrl.u32 %v4901, 7
    %v4903 = vsub.s32 0, %v4902
    %v4904 = vrot.slane %v4887, %v4903
    %v4905 = vlaneseq
    %v4906 = vshrl.u32 %v4905, 7
    %v4907 = vsub.s32 0, %v4906
    %v4908 = vrot.slane %v4888, %v4907
    %v4913 = vadd.f32 %v4660, %v4896
    %v4914 = vadd.f32 %v4734, %v4900
    %v4915 = vadd.f32 %v4808, %v4904
    %v4916 = vadd.f32 %v4882, %v4908
    %v4917 = vld [vmem:[%s430] sm:$0xff]
    %v4918 = vld [vmem:[%s430 + $0x8] sm:$0xff]
    %v4919 = vld [vmem:[%s430 + $0x10] sm:$0xff]
    %v4920 = vld [vmem:[%s430 + $0x18] sm:$0xff]
    %4921 = vmatprep.subr.mxu0 0.0
    %4922 = vmatpush1.msra.mxu0 %v4917
    %4923 = vmatprep.subr.mxu0 0.0
    %4924 = vmatpush1.msra.mxu0 %v4918
    %4925 = vmatprep.subr.mxu0 0.0
    %4926 = vmatpush1.msra.mxu0 %v4919
    %4927 = vmatprep.subr.mxu0 0.0
    %4928 = vmatpush1.msra.mxu0 %v4920
    %4929 = vmatprep.subr.mxu0 0.0
    %4930 = vmatpush1.msra.mxu0 0.0
    %4931 = vmatprep.subr.mxu0 0.0
    %4932 = vmatpush1.msra.mxu0 0.0
    %4933 = vmatprep.subr.mxu0 0.0
    %4934 = vmatpush1.msra.mxu0 0.0
    %4935 = vmatprep.subr.mxu0 0.0
    %4936 = vmatpush1.msra.mxu0 0.0
    %4937 = vmatprep.subr.mxu0 0.0
    %4938 = vmatpush1.msra.mxu0 0.0
    %4939 = vmatprep.subr.mxu0 0.0
    %4940 = vmatpush1.msra.mxu0 0.0
    %4941 = vmatprep.subr.mxu0 0.0
    %4942 = vmatpush1.msra.mxu0 0.0
    %4943 = vmatprep.subr.mxu0 0.0
    %4944 = vmatpush1.msra.mxu0 0.0
    %4945 = vmatprep.subr.mxu0 0.0
    %4946 = vmatpush1.msra.mxu0 0.0
    %4947 = vmatprep.subr.mxu0 0.0
    %4948 = vmatpush1.msra.mxu0 0.0
    %4949 = vmatprep.subr.mxu0 0.0
    %4950 = vmatpush1.msra.mxu0 0.0
    %4951 = vmatprep.subr.mxu0 0.0
    %4952 = vmatpush1.msra.mxu0 0.0
    %4953 = vmatprep.subr.mxu0 0.0
    %4954 = vmatpush1.msra.mxu0 0.0
    %4955 = vmatprep.subr.mxu0 0.0
    %4956 = vmatpush1.msra.mxu0 0.0
    %4957 = vmatprep.subr.mxu0 0.0
    %4958 = vmatpush1.msra.mxu0 0.0
    %4959 = vmatprep.subr.mxu0 0.0
    %4960 = vmatpush1.msra.mxu0 0.0
    %4961 = vmatprep.subr.mxu0 0.0
    %4962 = vmatpush1.msra.mxu0 0.0
    %4963 = vmatprep.subr.mxu0 0.0
    %4964 = vmatpush1.msra.mxu0 0.0
    %4965 = vmatprep.subr.mxu0 0.0
    %4966 = vmatpush1.msra.mxu0 0.0
    %4967 = vmatprep.subr.mxu0 0.0
    %4968 = vmatpush1.msra.mxu0 0.0
    %4969 = vmatprep.subr.mxu0 0.0
    %4970 = vmatpush1.msra.mxu0 0.0
    %4971 = vmatprep.subr.mxu0 0.0
    %4972 = vmatpush1.msra.mxu0 0.0
    %4973 = vmatprep.subr.mxu0 0.0
    %4974 = vmatpush1.msra.mxu0 0.0
    %4975 = vmatprep.subr.mxu0 0.0
    %4976 = vmatpush1.msra.mxu0 0.0
    %4977 = vmatprep.subr.mxu0 0.0
    %4978 = vmatpush1.msra.mxu0 0.0
    %4979 = vmatprep.subr.mxu0 0.0
    %4980 = vmatpush1.msra.mxu0 0.0
    %4981 = vmatprep.subr.mxu0 0.0
    %4982 = vmatpush1.msra.mxu0 0.0
    %4983 = vmatprep.subr.mxu0 0.0
    %4984 = vmatpush1.msra.mxu0 0.0
    %4985 = vmatprep.mubr.f32.mxu0 0.0
    %4986 = vmatmul.mubr.f32.gmra.mrb[0].mxu0 %v4591
    %v4987 = vpop.f32.mrb[0].mxu0
    %v4988 = vadd.f32 0.0, %v4987
    %v4989 = vpop.f32.mrb[0].mxu0
    %4990 = vdwg.mxu0
    %v4991 = vld [vmem:[%s505] sm:$0xff]
    %v4992 = vld [vmem:[%s505 + $0x8] sm:$0xff]
    %v4993 = vld [vmem:[%s505 + $0x10] sm:$0xff]
    %v4994 = vld [vmem:[%s505 + $0x18] sm:$0xff]
    %4995 = vmatprep.subr.mxu0 0.0
    %4996 = vmatpush1.msra.mxu0 %v4991
    %4997 = vmatprep.subr.mxu0 0.0
    %4998 = vmatpush1.msra.mxu0 %v4992
    %4999 = vmatprep.subr.mxu0 0.0
    %5000 = vmatpush1.msra.mxu0 %v4993
    %5001 = vmatprep.subr.mxu0 0.0
    %5002 = vmatpush1.msra.mxu0 %v4994
    %5003 = vmatprep.subr.mxu0 0.0
    %5004 = vmatpush1.msra.mxu0 0.0
    %5005 = vmatprep.subr.mxu0 0.0
    %5006 = vmatpush1.msra.mxu0 0.0
    %5007 = vmatprep.subr.mxu0 0.0
    %5008 = vmatpush1.msra.mxu0 0.0
    %5009 = vmatprep.subr.mxu0 0.0
    %5010 = vmatpush1.msra.mxu0 0.0
    %5011 = vmatprep.subr.mxu0 0.0
    %5012 = vmatpush1.msra.mxu0 0.0
    %5013 = vmatprep.subr.mxu0 0.0
    %5014 = vmatpush1.msra.mxu0 0.0
    %5015 = vmatprep.subr.mxu0 0.0
    %5016 = vmatpush1.msra.mxu0 0.0
    %5017 = vmatprep.subr.mxu0 0.0
    %5018 = vmatpush1.msra.mxu0 0.0
    %5019 = vmatprep.subr.mxu0 0.0
    %5020 = vmatpush1.msra.mxu0 0.0
    %5021 = vmatprep.subr.mxu0 0.0
    %5022 = vmatpush1.msra.mxu0 0.0
    %5023 = vmatprep.subr.mxu0 0.0
    %5024 = vmatpush1.msra.mxu0 0.0
    %5025 = vmatprep.subr.mxu0 0.0
    %5026 = vmatpush1.msra.mxu0 0.0
    %5027 = vmatprep.subr.mxu0 0.0
    %5028 = vmatpush1.msra.mxu0 0.0
    %5029 = vmatprep.subr.mxu0 0.0
    %5030 = vmatpush1.msra.mxu0 0.0
    %5031 = vmatprep.subr.mxu0 0.0
    %5032 = vmatpush1.msra.mxu0 0.0
    %5033 = vmatprep.subr.mxu0 0.0
    %5034 = vmatpush1.msra.mxu0 0.0
    %5035 = vmatprep.subr.mxu0 0.0
    %5036 = vmatpush1.msra.mxu0 0.0
    %5037 = vmatprep.subr.mxu0 0.0
    %5038 = vmatpush1.msra.mxu0 0.0
    %5039 = vmatprep.subr.mxu0 0.0
    %5040 = vmatpush1.msra.mxu0 0.0
    %5041 = vmatprep.subr.mxu0 0.0
    %5042 = vmatpush1.msra.mxu0 0.0
    %5043 = vmatprep.subr.mxu0 0.0
    %5044 = vmatpush1.msra.mxu0 0.0
    %5045 = vmatprep.subr.mxu0 0.0
    %5046 = vmatpush1.msra.mxu0 0.0
    %5047 = vmatprep.subr.mxu0 0.0
    %5048 = vmatpush1.msra.mxu0 0.0
    %5049 = vmatprep.subr.mxu0 0.0
    %5050 = vmatpush1.msra.mxu0 0.0
    %5051 = vmatprep.subr.mxu0 0.0
    %5052 = vmatpush1.msra.mxu0 0.0
    %5053 = vmatprep.subr.mxu0 0.0
    %5054 = vmatpush1.msra.mxu0 0.0
    %5055 = vmatprep.subr.mxu0 0.0
    %5056 = vmatpush1.msra.mxu0 0.0
    %5057 = vmatprep.subr.mxu0 0.0
    %5058 = vmatpush1.msra.mxu0 0.0
    %5059 = vmatprep.mubr.f32.mxu0 0.0
    %5060 = vmatmul.mubr.f32.gmra.mrb[0].mxu0 %v4591
    %v5061 = vpop.f32.mrb[0].mxu0
    %v5062 = vadd.f32 0.0, %v5061
    %v5063 = vpop.f32.mrb[0].mxu0
    %5064 = vdwg.mxu0
    %v5065 = vld [vmem:[%s580] sm:$0xff]
    %v5066 = vld [vmem:[%s580 + $0x8] sm:$0xff]
    %v5067 = vld [vmem:[%s580 + $0x10] sm:$0xff]
    %v5068 = vld [vmem:[%s580 + $0x18] sm:$0xff]
    %5069 = vmatprep.subr.mxu0 0.0
    %5070 = vmatpush1.msra.mxu0 %v5065
    %5071 = vmatprep.subr.mxu0 0.0
    %5072 = vmatpush1.msra.mxu0 %v5066
    %5073 = vmatprep.subr.mxu0 0.0
    %5074 = vmatpush1.msra.mxu0 %v5067
    %5075 = vmatprep.subr.mxu0 0.0
    %5076 = vmatpush1.msra.mxu0 %v5068
    %5077 = vmatprep.subr.mxu0 0.0
    %5078 = vmatpush1.msra.mxu0 0.0
    %5079 = vmatprep.subr.mxu0 0.0
    %5080 = vmatpush1.msra.mxu0 0.0
    %5081 = vmatprep.subr.mxu0 0.0
    %5082 = vmatpush1.msra.mxu0 0.0
    %5083 = vmatprep.subr.mxu0 0.0
    %5084 = vmatpush1.msra.mxu0 0.0
    %5085 = vmatprep.subr.mxu0 0.0
    %5086 = vmatpush1.msra.mxu0 0.0
    %5087 = vmatprep.subr.mxu0 0.0
    %5088 = vmatpush1.msra.mxu0 0.0
    %5089 = vmatprep.subr.mxu0 0.0
    %5090 = vmatpush1.msra.mxu0 0.0
    %5091 = vmatprep.subr.mxu0 0.0
    %5092 = vmatpush1.msra.mxu0 0.0
    %5093 = vmatprep.subr.mxu0 0.0
    %5094 = vmatpush1.msra.mxu0 0.0
    %5095 = vmatprep.subr.mxu0 0.0
    %5096 = vmatpush1.msra.mxu0 0.0
    %5097 = vmatprep.subr.mxu0 0.0
    %5098 = vmatpush1.msra.mxu0 0.0
    %5099 = vmatprep.subr.mxu0 0.0
    %5100 = vmatpush1.msra.mxu0 0.0
    %5101 = vmatprep.subr.mxu0 0.0
    %5102 = vmatpush1.msra.mxu0 0.0
    %5103 = vmatprep.subr.mxu0 0.0
    %5104 = vmatpush1.msra.mxu0 0.0
    %5105 = vmatprep.subr.mxu0 0.0
    %5106 = vmatpush1.msra.mxu0 0.0
    %5107 = vmatprep.subr.mxu0 0.0
    %5108 = vmatpush1.msra.mxu0 0.0
    %5109 = vmatprep.subr.mxu0 0.0
    %5110 = vmatpush1.msra.mxu0 0.0
    %5111 = vmatprep.subr.mxu0 0.0
    %5112 = vmatpush1.msra.mxu0 0.0
    %5113 = vmatprep.subr.mxu0 0.0
    %5114 = vmatpush1.msra.mxu0 0.0
    %5115 = vmatprep.subr.mxu0 0.0
    %5116 = vmatpush1.msra.mxu0 0.0
    %5117 = vmatprep.subr.mxu0 0.0
    %5118 = vmatpush1.msra.mxu0 0.0
    %5119 = vmatprep.subr.mxu0 0.0
    %5120 = vmatpush1.msra.mxu0 0.0
    %5121 = vmatprep.subr.mxu0 0.0
    %5122 = vmatpush1.msra.mxu0 0.0
    %5123 = vmatprep.subr.mxu0 0.0
    %5124 = vmatpush1.msra.mxu0 0.0
    %5125 = vmatprep.subr.mxu0 0.0
    %5126 = vmatpush1.msra.mxu0 0.0
    %5127 = vmatprep.subr.mxu0 0.0
    %5128 = vmatpush1.msra.mxu0 0.0
    %5129 = vmatprep.subr.mxu0 0.0
    %5130 = vmatpush1.msra.mxu0 0.0
    %5131 = vmatprep.subr.mxu0 0.0
    %5132 = vmatpush1.msra.mxu0 0.0
    %5133 = vmatprep.mubr.f32.mxu0 0.0
    %5134 = vmatmul.mubr.f32.gmra.mrb[0].mxu0 %v4591
    %v5135 = vpop.f32.mrb[0].mxu0
    %v5136 = vadd.f32 0.0, %v5135
    %v5137 = vpop.f32.mrb[0].mxu0
    %5138 = vdwg.mxu0
    %v5139 = vld [vmem:[%s655] sm:$0xff]
    %v5140 = vld [vmem:[%s655 + $0x8] sm:$0xff]
    %v5141 = vld [vmem:[%s655 + $0x10] sm:$0xff]
    %v5142 = vld [vmem:[%s655 + $0x18] sm:$0xff]
    %5143 = vmatprep.subr.mxu0 0.0
    %5144 = vmatpush1.msra.mxu0 %v5139
    %5145 = vmatprep.subr.mxu0 0.0
    %5146 = vmatpush1.msra.mxu0 %v5140
    %5147 = vmatprep.subr.mxu0 0.0
    %5148 = vmatpush1.msra.mxu0 %v5141
    %5149 = vmatprep.subr.mxu0 0.0
    %5150 = vmatpush1.msra.mxu0 %v5142
    %5151 = vmatprep.subr.mxu0 0.0
    %5152 = vmatpush1.msra.mxu0 0.0
    %5153 = vmatprep.subr.mxu0 0.0
    %5154 = vmatpush1.msra.mxu0 0.0
    %5155 = vmatprep.subr.mxu0 0.0
    %5156 = vmatpush1.msra.mxu0 0.0
    %5157 = vmatprep.subr.mxu0 0.0
    %5158 = vmatpush1.msra.mxu0 0.0
    %5159 = vmatprep.subr.mxu0 0.0
    %5160 = vmatpush1.msra.mxu0 0.0
    %5161 = vmatprep.subr.mxu0 0.0
    %5162 = vmatpush1.msra.mxu0 0.0
    %5163 = vmatprep.subr.mxu0 0.0
    %5164 = vmatpush1.msra.mxu0 0.0
    %5165 = vmatprep.subr.mxu0 0.0
    %5166 = vmatpush1.msra.mxu0 0.0
    %5167 = vmatprep.subr.mxu0 0.0
    %5168 = vmatpush1.msra.mxu0 0.0
    %5169 = vmatprep.subr.mxu0 0.0
    %5170 = vmatpush1.msra.mxu0 0.0
    %5171 = vmatprep.subr.mxu0 0.0
    %5172 = vmatpush1.msra.mxu0 0.0
    %5173 = vmatprep.subr.mxu0 0.0
    %5174 = vmatpush1.msra.mxu0 0.0
    %5175 = vmatprep.subr.mxu0 0.0
    %5176 = vmatpush1.msra.mxu0 0.0
    %5177 = vmatprep.subr.mxu0 0.0
    %5178 = vmatpush1.msra.mxu0 0.0
    %5179 = vmatprep.subr.mxu0 0.0
    %5180 = vmatpush1.msra.mxu0 0.0
    %5181 = vmatprep.subr.mxu0 0.0
    %5182 = vmatpush1.msra.mxu0 0.0
    %5183 = vmatprep.subr.mxu0 0.0
    %5184 = vmatpush1.msra.mxu0 0.0
    %5185 = vmatprep.subr.mxu0 0.0
    %5186 = vmatpush1.msra.mxu0 0.0
    %5187 = vmatprep.subr.mxu0 0.0
    %5188 = vmatpush1.msra.mxu0 0.0
    %5189 = vmatprep.subr.mxu0 0.0
    %5190 = vmatpush1.msra.mxu0 0.0
    %5191 = vmatprep.subr.mxu0 0.0
    %5192 = vmatpush1.msra.mxu0 0.0
    %5193 = vmatprep.subr.mxu0 0.0
    %5194 = vmatpush1.msra.mxu0 0.0
    %5195 = vmatprep.subr.mxu0 0.0
    %5196 = vmatpush1.msra.mxu0 0.0
    %5197 = vmatprep.subr.mxu0 0.0
    %5198 = vmatpush1.msra.mxu0 0.0
    %5199 = vmatprep.subr.mxu0 0.0
    %5200 = vmatpush1.msra.mxu0 0.0
    %5201 = vmatprep.subr.mxu0 0.0
    %5202 = vmatpush1.msra.mxu0 0.0
    %5203 = vmatprep.subr.mxu0 0.0
    %5204 = vmatpush1.msra.mxu0 0.0
    %5205 = vmatprep.subr.mxu0 0.0
    %5206 = vmatpush1.msra.mxu0 0.0
    %5207 = vmatprep.mubr.f32.mxu0 0.0
    %5208 = vmatmul.mubr.f32.gmra.mrb[0].mxu0 %v4591
    %v5209 = vpop.f32.mrb[0].mxu0
    %v5210 = vadd.f32 0.0, %v5209
    %v5211 = vpop.f32.mrb[0].mxu0
    %5212 = vdwg.mxu0
    %v5213 = vld [vmem:[%s730] sm:$0x1]
    %v5214 = vld [vmem:[%s730 + $0x1] sm:$0x1]
    %v5215 = vld [vmem:[%s730 + $0x2] sm:$0x1]
    %v5216 = vld [vmem:[%s730 + $0x3] sm:$0x1]
    %v5221 = vlaneseq
    %v5222 = vshrl.u32 %v5221, 7
    %v5223 = vsub.s32 0, %v5222
    %v5224 = vrot.slane %v5213, %v5223
    %v5225 = vlaneseq
    %v5226 = vshrl.u32 %v5225, 7
    %v5227 = vsub.s32 0, %v5226
    %v5228 = vrot.slane %v5214, %v5227
    %v5229 = vlaneseq
    %v5230 = vshrl.u32 %v5229, 7
    %v5231 = vsub.s32 0, %v5230
    %v5232 = vrot.slane %v5215, %v5231
    %v5233 = vlaneseq
    %v5234 = vshrl.u32 %v5233, 7
    %v5235 = vsub.s32 0, %v5234
    %v5236 = vrot.slane %v5216, %v5235
    %v5241 = vadd.f32 %v4988, %v5224
    %v5242 = vadd.f32 %v5062, %v5228
    %v5243 = vadd.f32 %v5136, %v5232
    %v5244 = vadd.f32 %v5210, %v5236
    %v5245 = vld [vmem:[%s763] sm:$0xff]
    %v5246 = vld [vmem:[%s763 + $0x8] sm:$0xff]
    %v5247 = vld [vmem:[%s763 + $0x10] sm:$0xff]
    %v5248 = vld [vmem:[%s763 + $0x18] sm:$0xff]
    %5249 = vmatprep.subr.mxu0 0.0
    %5250 = vmatpush1.msra.mxu0 %v5245
    %5251 = vmatprep.subr.mxu0 0.0
    %5252 = vmatpush1.msra.mxu0 %v5246
    %5253 = vmatprep.subr.mxu0 0.0
    %5254 = vmatpush1.msra.mxu0 %v5247
    %5255 = vmatprep.subr.mxu0 0.0
    %5256 = vmatpush1.msra.mxu0 %v5248
    %5257 = vmatprep.subr.mxu0 0.0
    %5258 = vmatpush1.msra.mxu0 0.0
    %5259 = vmatprep.subr.mxu0 0.0
    %5260 = vmatpush1.msra.mxu0 0.0
    %5261 = vmatprep.subr.mxu0 0.0
    %5262 = vmatpush1.msra.mxu0 0.0
    %5263 = vmatprep.subr.mxu0 0.0
    %5264 = vmatpush1.msra.mxu0 0.0
    %5265 = vmatprep.subr.mxu0 0.0
    %5266 = vmatpush1.msra.mxu0 0.0
    %5267 = vmatprep.subr.mxu0 0.0
    %5268 = vmatpush1.msra.mxu0 0.0
    %5269 = vmatprep.subr.mxu0 0.0
    %5270 = vmatpush1.msra.mxu0 0.0
    %5271 = vmatprep.subr.mxu0 0.0
    %5272 = vmatpush1.msra.mxu0 0.0
    %5273 = vmatprep.subr.mxu0 0.0
    %5274 = vmatpush1.msra.mxu0 0.0
    %5275 = vmatprep.subr.mxu0 0.0
    %5276 = vmatpush1.msra.mxu0 0.0
    %5277 = vmatprep.subr.mxu0 0.0
    %5278 = vmatpush1.msra.mxu0 0.0
    %5279 = vmatprep.subr.mxu0 0.0
    %5280 = vmatpush1.msra.mxu0 0.0
    %5281 = vmatprep.subr.mxu0 0.0
    %5282 = vmatpush1.msra.mxu0 0.0
    %5283 = vmatprep.subr.mxu0 0.0
    %5284 = vmatpush1.msra.mxu0 0.0
    %5285 = vmatprep.subr.mxu0 0.0
    %5286 = vmatpush1.msra.mxu0 0.0
    %5287 = vmatprep.subr.mxu0 0.0
    %5288 = vmatpush1.msra.mxu0 0.0
    %5289 = vmatprep.subr.mxu0 0.0
    %5290 = vmatpush1.msra.mxu0 0.0
    %5291 = vmatprep.subr.mxu0 0.0
    %5292 = vmatpush1.msra.mxu0 0.0
    %5293 = vmatprep.subr.mxu0 0.0
    %5294 = vmatpush1.msra.mxu0 0.0
    %5295 = vmatprep.subr.mxu0 0.0
    %5296 = vmatpush1.msra.mxu0 0.0
    %5297 = vmatprep.subr.mxu0 0.0
    %5298 = vmatpush1.msra.mxu0 0.0
    %5299 = vmatprep.subr.mxu0 0.0
    %5300 = vmatpush1.msra.mxu0 0.0
    %5301 = vmatprep.subr.mxu0 0.0
    %5302 = vmatpush1.msra.mxu0 0.0
    %5303 = vmatprep.subr.mxu0 0.0
    %5304 = vmatpush1.msra.mxu0 0.0
    %5305 = vmatprep.subr.mxu0 0.0
    %5306 = vmatpush1.msra.mxu0 0.0
    %5307 = vmatprep.subr.mxu0 0.0
    %5308 = vmatpush1.msra.mxu0 0.0
    %5309 = vmatprep.subr.mxu0 0.0
    %5310 = vmatpush1.msra.mxu0 0.0
    %5311 = vmatprep.subr.mxu0 0.0
    %5312 = vmatpush1.msra.mxu0 0.0
    %5313 = vmatprep.mubr.f32.mxu0 0.0
    %5314 = vmatmul.mubr.f32.gmra.mrb[0].mxu0 %v4591
    %v5315 = vpop.f32.mrb[0].mxu0
    %v5316 = vadd.f32 0.0, %v5315
    %v5317 = vpop.f32.mrb[0].mxu0
    %5318 = vdwg.mxu0
    %v5319 = vld [vmem:[%s838] sm:$0xff]
    %v5320 = vld [vmem:[%s838 + $0x8] sm:$0xff]
    %v5321 = vld [vmem:[%s838 + $0x10] sm:$0xff]
    %v5322 = vld [vmem:[%s838 + $0x18] sm:$0xff]
    %5323 = vmatprep.subr.mxu0 0.0
    %5324 = vmatpush1.msra.mxu0 %v5319
    %5325 = vmatprep.subr.mxu0 0.0
    %5326 = vmatpush1.msra.mxu0 %v5320
    %5327 = vmatprep.subr.mxu0 0.0
    %5328 = vmatpush1.msra.mxu0 %v5321
    %5329 = vmatprep.subr.mxu0 0.0
    %5330 = vmatpush1.msra.mxu0 %v5322
    %5331 = vmatprep.subr.mxu0 0.0
    %5332 = vmatpush1.msra.mxu0 0.0
    %5333 = vmatprep.subr.mxu0 0.0
    %5334 = vmatpush1.msra.mxu0 0.0
    %5335 = vmatprep.subr.mxu0 0.0
    %5336 = vmatpush1.msra.mxu0 0.0
    %5337 = vmatprep.subr.mxu0 0.0
    %5338 = vmatpush1.msra.mxu0 0.0
    %5339 = vmatprep.subr.mxu0 0.0
    %5340 = vmatpush1.msra.mxu0 0.0
    %5341 = vmatprep.subr.mxu0 0.0
    %5342 = vmatpush1.msra.mxu0 0.0
    %5343 = vmatprep.subr.mxu0 0.0
    %5344 = vmatpush1.msra.mxu0 0.0
    %5345 = vmatprep.subr.mxu0 0.0
    %5346 = vmatpush1.msra.mxu0 0.0
    %5347 = vmatprep.subr.mxu0 0.0
    %5348 = vmatpush1.msra.mxu0 0.0
    %5349 = vmatprep.subr.mxu0 0.0
    %5350 = vmatpush1.msra.mxu0 0.0
    %5351 = vmatprep.subr.mxu0 0.0
    %5352 = vmatpush1.msra.mxu0 0.0
    %5353 = vmatprep.subr.mxu0 0.0
    %5354 = vmatpush1.msra.mxu0 0.0
    %5355 = vmatprep.subr.mxu0 0.0
    %5356 = vmatpush1.msra.mxu0 0.0
    %5357 = vmatprep.subr.mxu0 0.0
    %5358 = vmatpush1.msra.mxu0 0.0
    %5359 = vmatprep.subr.mxu0 0.0
    %5360 = vmatpush1.msra.mxu0 0.0
    %5361 = vmatprep.subr.mxu0 0.0
    %5362 = vmatpush1.msra.mxu0 0.0
    %5363 = vmatprep.subr.mxu0 0.0
    %5364 = vmatpush1.msra.mxu0 0.0
    %5365 = vmatprep.subr.mxu0 0.0
    %5366 = vmatpush1.msra.mxu0 0.0
    %5367 = vmatprep.subr.mxu0 0.0
    %5368 = vmatpush1.msra.mxu0 0.0
    %5369 = vmatprep.subr.mxu0 0.0
    %5370 = vmatpush1.msra.mxu0 0.0
    %5371 = vmatprep.subr.mxu0 0.0
    %5372 = vmatpush1.msra.mxu0 0.0
    %5373 = vmatprep.subr.mxu0 0.0
    %5374 = vmatpush1.msra.mxu0 0.0
    %5375 = vmatprep.subr.mxu0 0.0
    %5376 = vmatpush1.msra.mxu0 0.0
    %5377 = vmatprep.subr.mxu0 0.0
    %5378 = vmatpush1.msra.mxu0 0.0
    %5379 = vmatprep.subr.mxu0 0.0
    %5380 = vmatpush1.msra.mxu0 0.0
    %5381 = vmatprep.subr.mxu0 0.0
    %5382 = vmatpush1.msra.mxu0 0.0
    %5383 = vmatprep.subr.mxu0 0.0
    %5384 = vmatpush1.msra.mxu0 0.0
    %5385 = vmatprep.subr.mxu0 0.0
    %5386 = vmatpush1.msra.mxu0 0.0
    %5387 = vmatprep.mubr.f32.mxu0 0.0
    %5388 = vmatmul.mubr.f32.gmra.mrb[0].mxu0 %v4591
    %v5389 = vpop.f32.mrb[0].mxu0
    %v5390 = vadd.f32 0.0, %v5389
    %v5391 = vpop.f32.mrb[0].mxu0
    %5392 = vdwg.mxu0
    %v5393 = vld [vmem:[%s913] sm:$0xff]
    %v5394 = vld [vmem:[%s913 + $0x8] sm:$0xff]
    %v5395 = vld [vmem:[%s913 + $0x10] sm:$0xff]
    %v5396 = vld [vmem:[%s913 + $0x18] sm:$0xff]
    %5397 = vmatprep.subr.mxu0 0.0
    %5398 = vmatpush1.msra.mxu0 %v5393
    %5399 = vmatprep.subr.mxu0 0.0
    %5400 = vmatpush1.msra.mxu0 %v5394
    %5401 = vmatprep.subr.mxu0 0.0
    %5402 = vmatpush1.msra.mxu0 %v5395
    %5403 = vmatprep.subr.mxu0 0.0
    %5404 = vmatpush1.msra.mxu0 %v5396
    %5405 = vmatprep.subr.mxu0 0.0
    %5406 = vmatpush1.msra.mxu0 0.0
    %5407 = vmatprep.subr.mxu0 0.0
    %5408 = vmatpush1.msra.mxu0 0.0
    %5409 = vmatprep.subr.mxu0 0.0
    %5410 = vmatpush1.msra.mxu0 0.0
    %5411 = vmatprep.subr.mxu0 0.0
    %5412 = vmatpush1.msra.mxu0 0.0
    %5413 = vmatprep.subr.mxu0 0.0
    %5414 = vmatpush1.msra.mxu0 0.0
    %5415 = vmatprep.subr.mxu0 0.0
    %5416 = vmatpush1.msra.mxu0 0.0
    %5417 = vmatprep.subr.mxu0 0.0
    %5418 = vmatpush1.msra.mxu0 0.0
    %5419 = vmatprep.subr.mxu0 0.0
    %5420 = vmatpush1.msra.mxu0 0.0
    %5421 = vmatprep.subr.mxu0 0.0
    %5422 = vmatpush1.msra.mxu0 0.0
    %5423 = vmatprep.subr.mxu0 0.0
    %5424 = vmatpush1.msra.mxu0 0.0
    %5425 = vmatprep.subr.mxu0 0.0
    %5426 = vmatpush1.msra.mxu0 0.0
    %5427 = vmatprep.subr.mxu0 0.0
    %5428 = vmatpush1.msra.mxu0 0.0
    %5429 = vmatprep.subr.mxu0 0.0
    %5430 = vmatpush1.msra.mxu0 0.0
    %5431 = vmatprep.subr.mxu0 0.0
    %5432 = vmatpush1.msra.mxu0 0.0
    %5433 = vmatprep.subr.mxu0 0.0
    %5434 = vmatpush1.msra.mxu0 0.0
    %5435 = vmatprep.subr.mxu0 0.0
    %5436 = vmatpush1.msra.mxu0 0.0
    %5437 = vmatprep.subr.mxu0 0.0
    %5438 = vmatpush1.msra.mxu0 0.0
    %5439 = vmatprep.subr.mxu0 0.0
    %5440 = vmatpush1.msra.mxu0 0.0
    %5441 = vmatprep.subr.mxu0 0.0
    %5442 = vmatpush1.msra.mxu0 0.0
    %5443 = vmatprep.subr.mxu0 0.0
    %5444 = vmatpush1.msra.mxu0 0.0
    %5445 = vmatprep.subr.mxu0 0.0
    %5446 = vmatpush1.msra.mxu0 0.0
    %5447 = vmatprep.subr.mxu0 0.0
    %5448 = vmatpush1.msra.mxu0 0.0
    %5449 = vmatprep.subr.mxu0 0.0
    %5450 = vmatpush1.msra.mxu0 0.0
    %5451 = vmatprep.subr.mxu0 0.0
    %5452 = vmatpush1.msra.mxu0 0.0
    %5453 = vmatprep.subr.mxu0 0.0
    %5454 = vmatpush1.msra.mxu0 0.0
    %5455 = vmatprep.subr.mxu0 0.0
    %5456 = vmatpush1.msra.mxu0 0.0
    %5457 = vmatprep.subr.mxu0 0.0
    %5458 = vmatpush1.msra.mxu0 0.0
    %5459 = vmatprep.subr.mxu0 0.0
    %5460 = vmatpush1.msra.mxu0 0.0
    %5461 = vmatprep.mubr.f32.mxu0 0.0
    %5462 = vmatmul.mubr.f32.gmra.mrb[0].mxu0 %v4591
    %v5463 = vpop.f32.mrb[0].mxu0
    %v5464 = vadd.f32 0.0, %v5463
    %v5465 = vpop.f32.mrb[0].mxu0
    %5466 = vdwg.mxu0
    %v5467 = vld [vmem:[%s988] sm:$0xff]
    %v5468 = vld [vmem:[%s988 + $0x8] sm:$0xff]
    %v5469 = vld [vmem:[%s988 + $0x10] sm:$0xff]
    %v5470 = vld [vmem:[%s988 + $0x18] sm:$0xff]
    %5471 = vmatprep.subr.mxu0 0.0
    %5472 = vmatpush1.msra.mxu0 %v5467
    %5473 = vmatprep.subr.mxu0 0.0
    %5474 = vmatpush1.msra.mxu0 %v5468
    %5475 = vmatprep.subr.mxu0 0.0
    %5476 = vmatpush1.msra.mxu0 %v5469
    %5477 = vmatprep.subr.mxu0 0.0
    %5478 = vmatpush1.msra.mxu0 %v5470
    %5479 = vmatprep.subr.mxu0 0.0
    %5480 = vmatpush1.msra.mxu0 0.0
    %5481 = vmatprep.subr.mxu0 0.0
    %5482 = vmatpush1.msra.mxu0 0.0
    %5483 = vmatprep.subr.mxu0 0.0
    %5484 = vmatpush1.msra.mxu0 0.0
    %5485 = vmatprep.subr.mxu0 0.0
    %5486 = vmatpush1.msra.mxu0 0.0
    %5487 = vmatprep.subr.mxu0 0.0
    %5488 = vmatpush1.msra.mxu0 0.0
    %5489 = vmatprep.subr.mxu0 0.0
    %5490 = vmatpush1.msra.mxu0 0.0
    %5491 = vmatprep.subr.mxu0 0.0
    %5492 = vmatpush1.msra.mxu0 0.0
    %5493 = vmatprep.subr.mxu0 0.0
    %5494 = vmatpush1.msra.mxu0 0.0
    %5495 = vmatprep.subr.mxu0 0.0
    %5496 = vmatpush1.msra.mxu0 0.0
    %5497 = vmatprep.subr.mxu0 0.0
    %5498 = vmatpush1.msra.mxu0 0.0
    %5499 = vmatprep.subr.mxu0 0.0
    %5500 = vmatpush1.msra.mxu0 0.0
    %5501 = vmatprep.subr.mxu0 0.0
    %5502 = vmatpush1.msra.mxu0 0.0
    %5503 = vmatprep.subr.mxu0 0.0
    %5504 = vmatpush1.msra.mxu0 0.0
    %5505 = vmatprep.subr.mxu0 0.0
    %5506 = vmatpush1.msra.mxu0 0.0
    %5507 = vmatprep.subr.mxu0 0.0
    %5508 = vmatpush1.msra.mxu0 0.0
    %5509 = vmatprep.subr.mxu0 0.0
    %5510 = vmatpush1.msra.mxu0 0.0
    %5511 = vmatprep.subr.mxu0 0.0
    %5512 = vmatpush1.msra.mxu0 0.0
    %5513 = vmatprep.subr.mxu0 0.0
    %5514 = vmatpush1.msra.mxu0 0.0
    %5515 = vmatprep.subr.mxu0 0.0
    %5516 = vmatpush1.msra.mxu0 0.0
    %5517 = vmatprep.subr.mxu0 0.0
    %5518 = vmatpush1.msra.mxu0 0.0
    %5519 = vmatprep.subr.mxu0 0.0
    %5520 = vmatpush1.msra.mxu0 0.0
    %5521 = vmatprep.subr.mxu0 0.0
    %5522 = vmatpush1.msra.mxu0 0.0
    %5523 = vmatprep.subr.mxu0 0.0
    %5524 = vmatpush1.msra.mxu0 0.0
    %5525 = vmatprep.subr.mxu0 0.0
    %5526 = vmatpush1.msra.mxu0 0.0
    %5527 = vmatprep.subr.mxu0 0.0
    %5528 = vmatpush1.msra.mxu0 0.0
    %5529 = vmatprep.subr.mxu0 0.0
    %5530 = vmatpush1.msra.mxu0 0.0
    %5531 = vmatprep.subr.mxu0 0.0
    %5532 = vmatpush1.msra.mxu0 0.0
    %5533 = vmatprep.subr.mxu0 0.0
    %5534 = vmatpush1.msra.mxu0 0.0
    %5535 = vmatprep.mubr.f32.mxu0 0.0
    %5536 = vmatmul.mubr.f32.gmra.mrb[0].mxu0 %v4591
    %v5537 = vpop.f32.mrb[0].mxu0
    %v5538 = vadd.f32 0.0, %v5537
    %v5539 = vpop.f32.mrb[0].mxu0
    %5540 = vdwg.mxu0
    %v5541 = vld [vmem:[%s1063] sm:$0x1]
    %v5542 = vld [vmem:[%s1063 + $0x1] sm:$0x1]
    %v5543 = vld [vmem:[%s1063 + $0x2] sm:$0x1]
    %v5544 = vld [vmem:[%s1063 + $0x3] sm:$0x1]
    %v5549 = vlaneseq
    %v5550 = vshrl.u32 %v5549, 7
    %v5551 = vsub.s32 0, %v5550
    %v5552 = vrot.slane %v5541, %v5551
    %v5553 = vlaneseq
    %v5554 = vshrl.u32 %v5553, 7
    %v5555 = vsub.s32 0, %v5554
    %v5556 = vrot.slane %v5542, %v5555
    %v5557 = vlaneseq
    %v5558 = vshrl.u32 %v5557, 7
    %v5559 = vsub.s32 0, %v5558
    %v5560 = vrot.slane %v5543, %v5559
    %v5561 = vlaneseq
    %v5562 = vshrl.u32 %v5561, 7
    %v5563 = vsub.s32 0, %v5562
    %v5564 = vrot.slane %v5544, %v5563
    %v5569 = vadd.f32 %v5316, %v5552
    %v5570 = vadd.f32 %v5390, %v5556
    %v5571 = vadd.f32 %v5464, %v5560
    %v5572 = vadd.f32 %v5538, %v5564
    %v5574 = vsel %vm1096, %v4913, 0
    %v5577 = vsel %vm1096, %v5241, 0
    %5579 = vmatprep.subr.mxu0 0.0
    %5580 = vmatpush1.xpose.msra.mxu0 %v5577
    %5581 = vmatprep.subr.mxu0 0.0
    %5582 = vmatpush1.xpose.msra.mxu0 0.0
    %5583 = vmatprep.subr.mxu0 0.0
    %5584 = vmatpush1.xpose.msra.mxu0 0.0
    %5585 = vmatprep.subr.mxu0 0.0
    %5586 = vmatpush1.xpose.msra.mxu0 0.0
    %5587 = vmatprep.subr.mxu0 0.0
    %5588 = vmatpush1.xpose.msra.mxu0 0.0
    %5589 = vmatprep.subr.mxu0 0.0
    %5590 = vmatpush1.xpose.msra.mxu0 0.0
    %5591 = vmatprep.subr.mxu0 0.0
    %5592 = vmatpush1.xpose.msra.mxu0 0.0
    %5593 = vmatprep.subr.mxu0 0.0
    %5594 = vmatpush1.xpose.msra.mxu0 0.0
    %5595 = vmatprep.subr.mxu0 0.0
    %5596 = vmatpush1.xpose.msra.mxu0 0.0
    %5597 = vmatprep.subr.mxu0 0.0
    %5598 = vmatpush1.xpose.msra.mxu0 0.0
    %5599 = vmatprep.subr.mxu0 0.0
    %5600 = vmatpush1.xpose.msra.mxu0 0.0
    %5601 = vmatprep.subr.mxu0 0.0
    %5602 = vmatpush1.xpose.msra.mxu0 0.0
    %5603 = vmatprep.subr.mxu0 0.0
    %5604 = vmatpush1.xpose.msra.mxu0 0.0
    %5605 = vmatprep.subr.mxu0 0.0
    %5606 = vmatpush1.xpose.msra.mxu0 0.0
    %5607 = vmatprep.subr.mxu0 0.0
    %5608 = vmatpush1.xpose.msra.mxu0 0.0
    %5609 = vmatprep.subr.mxu0 0.0
    %5610 = vmatpush1.xpose.msra.mxu0 0.0
    %5611 = vmatprep.subr.mxu0 0.0
    %5612 = vmatpush1.xpose.msra.mxu0 0.0
    %5613 = vmatprep.subr.mxu0 0.0
    %5614 = vmatpush1.xpose.msra.mxu0 0.0
    %5615 = vmatprep.subr.mxu0 0.0
    %5616 = vmatpush1.xpose.msra.mxu0 0.0
    %5617 = vmatprep.subr.mxu0 0.0
    %5618 = vmatpush1.xpose.msra.mxu0 0.0
    %5619 = vmatprep.subr.mxu0 0.0
    %5620 = vmatpush1.xpose.msra.mxu0 0.0
    %5621 = vmatprep.subr.mxu0 0.0
    %5622 = vmatpush1.xpose.msra.mxu0 0.0
    %5623 = vmatprep.subr.mxu0 0.0
    %5624 = vmatpush1.xpose.msra.mxu0 0.0
    %5625 = vmatprep.subr.mxu0 0.0
    %5626 = vmatpush1.xpose.msra.mxu0 0.0
    %5627 = vmatprep.subr.mxu0 0.0
    %5628 = vmatpush1.xpose.msra.mxu0 0.0
    %5629 = vmatprep.subr.mxu0 0.0
    %5630 = vmatpush1.xpose.msra.mxu0 0.0
    %5631 = vmatprep.subr.mxu0 0.0
    %5632 = vmatpush1.xpose.msra.mxu0 0.0
    %5633 = vmatprep.subr.mxu0 0.0
    %5634 = vmatpush1.xpose.msra.mxu0 0.0
    %5635 = vmatprep.subr.mxu0 0.0
    %5636 = vmatpush1.xpose.msra.mxu0 0.0
    %5637 = vmatprep.subr.mxu0 0.0
    %5638 = vmatpush1.xpose.msra.mxu0 0.0
    %5639 = vmatprep.subr.mxu0 0.0
    %5640 = vmatpush1.xpose.msra.mxu0 0.0
    %5641 = vmatprep.subr.mxu0 0.0
    %5642 = vmatpush1.xpose.msra.mxu0 0.0
    %5643 = vmatprep.mubr.f32.mxu0 0.0
    %5644 = vmatmul.mubr.f32.gmra.mrb[0].mxu0 %v5574
    %v5645 = vpop.f32.mrb[0].mxu0
    %v5646 = vadd.f32 %v60, %v5645
    %v5647 = vpop.f32.mrb[0].mxu0
    %5648 = vdwg.mxu0
    %v5650 = vsel %vm1096, %v4914, 0
    %v5653 = vsel %vm1096, %v5242, 0
    %5655 = vmatprep.subr.mxu0 0.0
    %5656 = vmatpush1.xpose.msra.mxu0 %v5653
    %5657 = vmatprep.subr.mxu0 0.0
    %5658 = vmatpush1.xpose.msra.mxu0 0.0
    %5659 = vmatprep.subr.mxu0 0.0
    %5660 = vmatpush1.xpose.msra.mxu0 0.0
    %5661 = vmatprep.subr.mxu0 0.0
    %5662 = vmatpush1.xpose.msra.mxu0 0.0
    %5663 = vmatprep.subr.mxu0 0.0
    %5664 = vmatpush1.xpose.msra.mxu0 0.0
    %5665 = vmatprep.subr.mxu0 0.0
    %5666 = vmatpush1.xpose.msra.mxu0 0.0
    %5667 = vmatprep.subr.mxu0 0.0
    %5668 = vmatpush1.xpose.msra.mxu0 0.0
    %5669 = vmatprep.subr.mxu0 0.0
    %5670 = vmatpush1.xpose.msra.mxu0 0.0
    %5671 = vmatprep.subr.mxu0 0.0
    %5672 = vmatpush1.xpose.msra.mxu0 0.0
    %5673 = vmatprep.subr.mxu0 0.0
    %5674 = vmatpush1.xpose.msra.mxu0 0.0
    %5675 = vmatprep.subr.mxu0 0.0
    %5676 = vmatpush1.xpose.msra.mxu0 0.0
    %5677 = vmatprep.subr.mxu0 0.0
    %5678 = vmatpush1.xpose.msra.mxu0 0.0
    %5679 = vmatprep.subr.mxu0 0.0
    %5680 = vmatpush1.xpose.msra.mxu0 0.0
    %5681 = vmatprep.subr.mxu0 0.0
    %5682 = vmatpush1.xpose.msra.mxu0 0.0
    %5683 = vmatprep.subr.mxu0 0.0
    %5684 = vmatpush1.xpose.msra.mxu0 0.0
    %5685 = vmatprep.subr.mxu0 0.0
    %5686 = vmatpush1.xpose.msra.mxu0 0.0
    %5687 = vmatprep.subr.mxu0 0.0
    %5688 = vmatpush1.xpose.msra.mxu0 0.0
    %5689 = vmatprep.subr.mxu0 0.0
    %5690 = vmatpush1.xpose.msra.mxu0 0.0
    %5691 = vmatprep.subr.mxu0 0.0
    %5692 = vmatpush1.xpose.msra.mxu0 0.0
    %5693 = vmatprep.subr.mxu0 0.0
    %5694 = vmatpush1.xpose.msra.mxu0 0.0
    %5695 = vmatprep.subr.mxu0 0.0
    %5696 = vmatpush1.xpose.msra.mxu0 0.0
    %5697 = vmatprep.subr.mxu0 0.0
    %5698 = vmatpush1.xpose.msra.mxu0 0.0
    %5699 = vmatprep.subr.mxu0 0.0
    %5700 = vmatpush1.xpose.msra.mxu0 0.0
    %5701 = vmatprep.subr.mxu0 0.0
    %5702 = vmatpush1.xpose.msra.mxu0 0.0
    %5703 = vmatprep.subr.mxu0 0.0
    %5704 = vmatpush1.xpose.msra.mxu0 0.0
    %5705 = vmatprep.subr.mxu0 0.0
    %5706 = vmatpush1.xpose.msra.mxu0 0.0
    %5707 = vmatprep.subr.mxu0 0.0
    %5708 = vmatpush1.xpose.msra.mxu0 0.0
    %5709 = vmatprep.subr.mxu0 0.0
    %5710 = vmatpush1.xpose.msra.mxu0 0.0
    %5711 = vmatprep.subr.mxu0 0.0
    %5712 = vmatpush1.xpose.msra.mxu0 0.0
    %5713 = vmatprep.subr.mxu0 0.0
    %5714 = vmatpush1.xpose.msra.mxu0 0.0
    %5715 = vmatprep.subr.mxu0 0.0
    %5716 = vmatpush1.xpose.msra.mxu0 0.0
    %5717 = vmatprep.subr.mxu0 0.0
    %5718 = vmatpush1.xpose.msra.mxu0 0.0
    %5719 = vmatprep.mubr.f32.mxu0 0.0
    %5720 = vmatmul.mubr.f32.gmra.mrb[0].mxu0 %v5650
    %v5721 = vpop.f32.mrb[0].mxu0
    %v5722 = vadd.f32 %v60, %v5721
    %v5723 = vpop.f32.mrb[0].mxu0
    %5724 = vdwg.mxu0
    %v5726 = vsel %vm1096, %v4915, 0
    %v5729 = vsel %vm1096, %v5243, 0
    %5731 = vmatprep.subr.mxu0 0.0
    %5732 = vmatpush1.xpose.msra.mxu0 %v5729
    %5733 = vmatprep.subr.mxu0 0.0
    %5734 = vmatpush1.xpose.msra.mxu0 0.0
    %5735 = vmatprep.subr.mxu0 0.0
    %5736 = vmatpush1.xpose.msra.mxu0 0.0
    %5737 = vmatprep.subr.mxu0 0.0
    %5738 = vmatpush1.xpose.msra.mxu0 0.0
    %5739 = vmatprep.subr.mxu0 0.0
    %5740 = vmatpush1.xpose.msra.mxu0 0.0
    %5741 = vmatprep.subr.mxu0 0.0
    %5742 = vmatpush1.xpose.msra.mxu0 0.0
    %5743 = vmatprep.subr.mxu0 0.0
    %5744 = vmatpush1.xpose.msra.mxu0 0.0
    %5745 = vmatprep.subr.mxu0 0.0
    %5746 = vmatpush1.xpose.msra.mxu0 0.0
    %5747 = vmatprep.subr.mxu0 0.0
    %5748 = vmatpush1.xpose.msra.mxu0 0.0
    %5749 = vmatprep.subr.mxu0 0.0
    %5750 = vmatpush1.xpose.msra.mxu0 0.0
    %5751 = vmatprep.subr.mxu0 0.0
    %5752 = vmatpush1.xpose.msra.mxu0 0.0
    %5753 = vmatprep.subr.mxu0 0.0
    %5754 = vmatpush1.xpose.msra.mxu0 0.0
    %5755 = vmatprep.subr.mxu0 0.0
    %5756 = vmatpush1.xpose.msra.mxu0 0.0
    %5757 = vmatprep.subr.mxu0 0.0
    %5758 = vmatpush1.xpose.msra.mxu0 0.0
    %5759 = vmatprep.subr.mxu0 0.0
    %5760 = vmatpush1.xpose.msra.mxu0 0.0
    %5761 = vmatprep.subr.mxu0 0.0
    %5762 = vmatpush1.xpose.msra.mxu0 0.0
    %5763 = vmatprep.subr.mxu0 0.0
    %5764 = vmatpush1.xpose.msra.mxu0 0.0
    %5765 = vmatprep.subr.mxu0 0.0
    %5766 = vmatpush1.xpose.msra.mxu0 0.0
    %5767 = vmatprep.subr.mxu0 0.0
    %5768 = vmatpush1.xpose.msra.mxu0 0.0
    %5769 = vmatprep.subr.mxu0 0.0
    %5770 = vmatpush1.xpose.msra.mxu0 0.0
    %5771 = vmatprep.subr.mxu0 0.0
    %5772 = vmatpush1.xpose.msra.mxu0 0.0
    %5773 = vmatprep.subr.mxu0 0.0
    %5774 = vmatpush1.xpose.msra.mxu0 0.0
    %5775 = vmatprep.subr.mxu0 0.0
    %5776 = vmatpush1.xpose.msra.mxu0 0.0
    %5777 = vmatprep.subr.mxu0 0.0
    %5778 = vmatpush1.xpose.msra.mxu0 0.0
    %5779 = vmatprep.subr.mxu0 0.0
    %5780 = vmatpush1.xpose.msra.mxu0 0.0
    %5781 = vmatprep.subr.mxu0 0.0
    %5782 = vmatpush1.xpose.msra.mxu0 0.0
    %5783 = vmatprep.subr.mxu0 0.0
    %5784 = vmatpush1.xpose.msra.mxu0 0.0
    %5785 = vmatprep.subr.mxu0 0.0
    %5786 = vmatpush1.xpose.msra.mxu0 0.0
    %5787 = vmatprep.subr.mxu0 0.0
    %5788 = vmatpush1.xpose.msra.mxu0 0.0
    %5789 = vmatprep.subr.mxu0 0.0
    %5790 = vmatpush1.xpose.msra.mxu0 0.0
    %5791 = vmatprep.subr.mxu0 0.0
    %5792 = vmatpush1.xpose.msra.mxu0 0.0
    %5793 = vmatprep.subr.mxu0 0.0
    %5794 = vmatpush1.xpose.msra.mxu0 0.0
    %5795 = vmatprep.mubr.f32.mxu0 0.0
    %5796 = vmatmul.mubr.f32.gmra.mrb[0].mxu0 %v5726
    %v5797 = vpop.f32.mrb[0].mxu0
    %v5798 = vadd.f32 %v60, %v5797
    %v5799 = vpop.f32.mrb[0].mxu0
    %5800 = vdwg.mxu0
    %v5802 = vsel %vm1096, %v4916, 0
    %v5805 = vsel %vm1096, %v5244, 0
    %5807 = vmatprep.subr.mxu0 0.0
    %5808 = vmatpush1.xpose.msra.mxu0 %v5805
    %5809 = vmatprep.subr.mxu0 0.0
    %5810 = vmatpush1.xpose.msra.mxu0 0.0
    %5811 = vmatprep.subr.mxu0 0.0
    %5812 = vmatpush1.xpose.msra.mxu0 0.0
    %5813 = vmatprep.subr.mxu0 0.0
    %5814 = vmatpush1.xpose.msra.mxu0 0.0
    %5815 = vmatprep.subr.mxu0 0.0
    %5816 = vmatpush1.xpose.msra.mxu0 0.0
    %5817 = vmatprep.subr.mxu0 0.0
    %5818 = vmatpush1.xpose.msra.mxu0 0.0
    %5819 = vmatprep.subr.mxu0 0.0
    %5820 = vmatpush1.xpose.msra.mxu0 0.0
    %5821 = vmatprep.subr.mxu0 0.0
    %5822 = vmatpush1.xpose.msra.mxu0 0.0
    %5823 = vmatprep.subr.mxu0 0.0
    %5824 = vmatpush1.xpose.msra.mxu0 0.0
    %5825 = vmatprep.subr.mxu0 0.0
    %5826 = vmatpush1.xpose.msra.mxu0 0.0
    %5827 = vmatprep.subr.mxu0 0.0
    %5828 = vmatpush1.xpose.msra.mxu0 0.0
    %5829 = vmatprep.subr.mxu0 0.0
    %5830 = vmatpush1.xpose.msra.mxu0 0.0
    %5831 = vmatprep.subr.mxu0 0.0
    %5832 = vmatpush1.xpose.msra.mxu0 0.0
    %5833 = vmatprep.subr.mxu0 0.0
    %5834 = vmatpush1.xpose.msra.mxu0 0.0
    %5835 = vmatprep.subr.mxu0 0.0
    %5836 = vmatpush1.xpose.msra.mxu0 0.0
    %5837 = vmatprep.subr.mxu0 0.0
    %5838 = vmatpush1.xpose.msra.mxu0 0.0
    %5839 = vmatprep.subr.mxu0 0.0
    %5840 = vmatpush1.xpose.msra.mxu0 0.0
    %5841 = vmatprep.subr.mxu0 0.0
    %5842 = vmatpush1.xpose.msra.mxu0 0.0
    %5843 = vmatprep.subr.mxu0 0.0
    %5844 = vmatpush1.xpose.msra.mxu0 0.0
    %5845 = vmatprep.subr.mxu0 0.0
    %5846 = vmatpush1.xpose.msra.mxu0 0.0
    %5847 = vmatprep.subr.mxu0 0.0
    %5848 = vmatpush1.xpose.msra.mxu0 0.0
    %5849 = vmatprep.subr.mxu0 0.0
    %5850 = vmatpush1.xpose.msra.mxu0 0.0
    %5851 = vmatprep.subr.mxu0 0.0
    %5852 = vmatpush1.xpose.msra.mxu0 0.0
    %5853 = vmatprep.subr.mxu0 0.0
    %5854 = vmatpush1.xpose.msra.mxu0 0.0
    %5855 = vmatprep.subr.mxu0 0.0
    %5856 = vmatpush1.xpose.msra.mxu0 0.0
    %5857 = vmatprep.subr.mxu0 0.0
    %5858 = vmatpush1.xpose.msra.mxu0 0.0
    %5859 = vmatprep.subr.mxu0 0.0
    %5860 = vmatpush1.xpose.msra.mxu0 0.0
    %5861 = vmatprep.subr.mxu0 0.0
    %5862 = vmatpush1.xpose.msra.mxu0 0.0
    %5863 = vmatprep.subr.mxu0 0.0
    %5864 = vmatpush1.xpose.msra.mxu0 0.0
    %5865 = vmatprep.subr.mxu0 0.0
    %5866 = vmatpush1.xpose.msra.mxu0 0.0
    %5867 = vmatprep.subr.mxu0 0.0
    %5868 = vmatpush1.xpose.msra.mxu0 0.0
    %5869 = vmatprep.subr.mxu0 0.0
    %5870 = vmatpush1.xpose.msra.mxu0 0.0
    %5871 = vmatprep.mubr.f32.mxu0 0.0
    %5872 = vmatmul.mubr.f32.gmra.mrb[0].mxu0 %v5802
    %v5873 = vpop.f32.mrb[0].mxu0
    %v5874 = vadd.f32 %v60, %v5873
    %v5875 = vpop.f32.mrb[0].mxu0
    %5876 = vdwg.mxu0
    %v5877 = vsel %vm1096, %v5646, -inf
    %5878 = vmax.xlane.f32.xlu0 %v5877
    %v5879 = vpop.xlane.xlu0 %5878
    %v5880 = vsel %vm1096, %v5722, -inf
    %5881 = vmax.xlane.f32.xlu0 %v5880
    %v5882 = vpop.xlane.xlu0 %5881
    %v5883 = vsel %vm1096, %v5798, -inf
    %5884 = vmax.xlane.f32.xlu0 %v5883
    %v5885 = vpop.xlane.xlu0 %5884
    %v5886 = vsel %vm1096, %v5874, -inf
    %5887 = vmax.xlane.f32.xlu0 %v5886
    %v5888 = vpop.xlane.xlu0 %5887
    %v5889 = vsub.f32 %v5646, %v5879
    %v5890 = vsub.f32 %v5722, %v5882
    %v5891 = vsub.f32 %v5798, %v5885
    %v5892 = vsub.f32 %v5874, %v5888
    %v5893 = vmul.f32 %v5889, 1.442695
    %v5894 = vpow.pop %v5893
    %v5895 = vmul.f32 %v5890, 1.442695
    %v5896 = vpow.pop %v5895
    %v5897 = vmul.f32 %v5891, 1.442695
    %v5898 = vpow.pop %v5897
    %v5899 = vmul.f32 %v5892, 1.442695
    %v5900 = vpow.pop %v5899
    %v5901 = vsel %vm1096, %v5894, 0.0
    %5902 = vadd.xlane.f32.xlu0 %v5901
    %v5903 = vpop.xlane.xlu0 %5902
    %v5904 = vsel %vm1096, %v5896, 0.0
    %5905 = vadd.xlane.f32.xlu0 %v5904
    %v5906 = vpop.xlane.xlu0 %5905
    %v5907 = vsel %vm1096, %v5898, 0.0
    %5908 = vadd.xlane.f32.xlu0 %v5907
    %v5909 = vpop.xlane.xlu0 %5908
    %v5910 = vsel %vm1096, %v5900, 0.0
    %5911 = vadd.xlane.f32.xlu0 %v5910
    %v5912 = vpop.xlane.xlu0 %5911
    %v5913 = vrcp.pop %v5903
    %v5914 = vrcp.pop %v5906
    %v5915 = vrcp.pop %v5909
    %v5916 = vrcp.pop %v5912
    %v5917 = vmul.f32 %v5903, %v5913
    %v5918 = vmul.f32 %v5906, %v5914
    %v5919 = vmul.f32 %v5909, %v5915
    %v5920 = vmul.f32 %v5912, %v5916
    %v5921 = vsub.f32 2.0, %v5917
    %v5922 = vsub.f32 2.0, %v5918
    %v5923 = vsub.f32 2.0, %v5919
    %v5924 = vsub.f32 2.0, %v5920
    %v5925 = vmul.f32 %v5913, %v5921
    %v5926 = vmul.f32 %v5914, %v5922
    %v5927 = vmul.f32 %v5915, %v5923
    %v5928 = vmul.f32 %v5916, %v5924
    %v5929 = vmul.f32 %v5894, %v5925
    %v5930 = vmul.f32 %v5896, %v5926
    %v5931 = vmul.f32 %v5898, %v5927
    %v5932 = vmul.f32 %v5900, %v5928
    %v5934 = vsel %vm1096, %v5929, 0
    %5936 = vmatprep.subr.mxu0 0.0
    %5937 = vmatpush1.msra.mxu0 %v5569
    %5938 = vmatprep.subr.mxu0 0.0
    %5939 = vmatpush1.msra.mxu0 0.0
    %5940 = vmatprep.subr.mxu0 0.0
    %5941 = vmatpush1.msra.mxu0 0.0
    %5942 = vmatprep.subr.mxu0 0.0
    %5943 = vmatpush1.msra.mxu0 0.0
    %5944 = vmatprep.subr.mxu0 0.0
    %5945 = vmatpush1.msra.mxu0 0.0
    %5946 = vmatprep.subr.mxu0 0.0
    %5947 = vmatpush1.msra.mxu0 0.0
    %5948 = vmatprep.subr.mxu0 0.0
    %5949 = vmatpush1.msra.mxu0 0.0
    %5950 = vmatprep.subr.mxu0 0.0
    %5951 = vmatpush1.msra.mxu0 0.0
    %5952 = vmatprep.subr.mxu0 0.0
    %5953 = vmatpush1.msra.mxu0 0.0
    %5954 = vmatprep.subr.mxu0 0.0
    %5955 = vmatpush1.msra.mxu0 0.0
    %5956 = vmatprep.subr.mxu0 0.0
    %5957 = vmatpush1.msra.mxu0 0.0
    %5958 = vmatprep.subr.mxu0 0.0
    %5959 = vmatpush1.msra.mxu0 0.0
    %5960 = vmatprep.subr.mxu0 0.0
    %5961 = vmatpush1.msra.mxu0 0.0
    %5962 = vmatprep.subr.mxu0 0.0
    %5963 = vmatpush1.msra.mxu0 0.0
    %5964 = vmatprep.subr.mxu0 0.0
    %5965 = vmatpush1.msra.mxu0 0.0
    %5966 = vmatprep.subr.mxu0 0.0
    %5967 = vmatpush1.msra.mxu0 0.0
    %5968 = vmatprep.subr.mxu0 0.0
    %5969 = vmatpush1.msra.mxu0 0.0
    %5970 = vmatprep.subr.mxu0 0.0
    %5971 = vmatpush1.msra.mxu0 0.0
    %5972 = vmatprep.subr.mxu0 0.0
    %5973 = vmatpush1.msra.mxu0 0.0
    %5974 = vmatprep.subr.mxu0 0.0
    %5975 = vmatpush1.msra.mxu0 0.0
    %5976 = vmatprep.subr.mxu0 0.0
    %5977 = vmatpush1.msra.mxu0 0.0
    %5978 = vmatprep.subr.mxu0 0.0
    %5979 = vmatpush1.msra.mxu0 0.0
    %5980 = vmatprep.subr.mxu0 0.0
    %5981 = vmatpush1.msra.mxu0 0.0
    %5982 = vmatprep.subr.mxu0 0.0
    %5983 = vmatpush1.msra.mxu0 0.0
    %5984 = vmatprep.subr.mxu0 0.0
    %5985 = vmatpush1.msra.mxu0 0.0
    %5986 = vmatprep.subr.mxu0 0.0
    %5987 = vmatpush1.msra.mxu0 0.0
    %5988 = vmatprep.subr.mxu0 0.0
    %5989 = vmatpush1.msra.mxu0 0.0
    %5990 = vmatprep.subr.mxu0 0.0
    %5991 = vmatpush1.msra.mxu0 0.0
    %5992 = vmatprep.subr.mxu0 0.0
    %5993 = vmatpush1.msra.mxu0 0.0
    %5994 = vmatprep.subr.mxu0 0.0
    %5995 = vmatpush1.msra.mxu0 0.0
    %5996 = vmatprep.subr.mxu0 0.0
    %5997 = vmatpush1.msra.mxu0 0.0
    %5998 = vmatprep.subr.mxu0 0.0
    %5999 = vmatpush1.msra.mxu0 0.0
    %6000 = vmatprep.mubr.f32.mxu0 0.0
    %6001 = vmatmul.mubr.f32.gmra.mrb[0].mxu0 %v5934
    %v6002 = vpop.f32.mrb[0].mxu0
    %v6003 = vadd.f32 0.0, %v6002
    %v6004 = vpop.f32.mrb[0].mxu0
    %6005 = vdwg.mxu0
    %v6007 = vsel %vm1096, %v5930, 0
    %6009 = vmatprep.subr.mxu0 0.0
    %6010 = vmatpush1.msra.mxu0 %v5570
    %6011 = vmatprep.subr.mxu0 0.0
    %6012 = vmatpush1.msra.mxu0 0.0
    %6013 = vmatprep.subr.mxu0 0.0
    %6014 = vmatpush1.msra.mxu0 0.0
    %6015 = vmatprep.subr.mxu0 0.0
    %6016 = vmatpush1.msra.mxu0 0.0
    %6017 = vmatprep.subr.mxu0 0.0
    %6018 = vmatpush1.msra.mxu0 0.0
    %6019 = vmatprep.subr.mxu0 0.0
    %6020 = vmatpush1.msra.mxu0 0.0
    %6021 = vmatprep.subr.mxu0 0.0
    %6022 = vmatpush1.msra.mxu0 0.0
    %6023 = vmatprep.subr.mxu0 0.0
    %6024 = vmatpush1.msra.mxu0 0.0
    %6025 = vmatprep.subr.mxu0 0.0
    %6026 = vmatpush1.msra.mxu0 0.0
    %6027 = vmatprep.subr.mxu0 0.0
    %6028 = vmatpush1.msra.mxu0 0.0
    %6029 = vmatprep.subr.mxu0 0.0
    %6030 = vmatpush1.msra.mxu0 0.0
    %6031 = vmatprep.subr.mxu0 0.0
    %6032 = vmatpush1.msra.mxu0 0.0
    %6033 = vmatprep.subr.mxu0 0.0
    %6034 = vmatpush1.msra.mxu0 0.0
    %6035 = vmatprep.subr.mxu0 0.0
    %6036 = vmatpush1.msra.mxu0 0.0
    %6037 = vmatprep.subr.mxu0 0.0
    %6038 = vmatpush1.msra.mxu0 0.0
    %6039 = vmatprep.subr.mxu0 0.0
    %6040 = vmatpush1.msra.mxu0 0.0
    %6041 = vmatprep.subr.mxu0 0.0
    %6042 = vmatpush1.msra.mxu0 0.0
    %6043 = vmatprep.subr.mxu0 0.0
    %6044 = vmatpush1.msra.mxu0 0.0
    %6045 = vmatprep.subr.mxu0 0.0
    %6046 = vmatpush1.msra.mxu0 0.0
    %6047 = vmatprep.subr.mxu0 0.0
    %6048 = vmatpush1.msra.mxu0 0.0
    %6049 = vmatprep.subr.mxu0 0.0
    %6050 = vmatpush1.msra.mxu0 0.0
    %6051 = vmatprep.subr.mxu0 0.0
    %6052 = vmatpush1.msra.mxu0 0.0
    %6053 = vmatprep.subr.mxu0 0.0
    %6054 = vmatpush1.msra.mxu0 0.0
    %6055 = vmatprep.subr.mxu0 0.0
    %6056 = vmatpush1.msra.mxu0 0.0
    %6057 = vmatprep.subr.mxu0 0.0
    %6058 = vmatpush1.msra.mxu0 0.0
    %6059 = vmatprep.subr.mxu0 0.0
    %6060 = vmatpush1.msra.mxu0 0.0
    %6061 = vmatprep.subr.mxu0 0.0
    %6062 = vmatpush1.msra.mxu0 0.0
    %6063 = vmatprep.subr.mxu0 0.0
    %6064 = vmatpush1.msra.mxu0 0.0
    %6065 = vmatprep.subr.mxu0 0.0
    %6066 = vmatpush1.msra.mxu0 0.0
    %6067 = vmatprep.subr.mxu0 0.0
    %6068 = vmatpush1.msra.mxu0 0.0
    %6069 = vmatprep.subr.mxu0 0.0
    %6070 = vmatpush1.msra.mxu0 0.0
    %6071 = vmatprep.subr.mxu0 0.0
    %6072 = vmatpush1.msra.mxu0 0.0
    %6073 = vmatprep.mubr.f32.mxu0 0.0
    %6074 = vmatmul.mubr.f32.gmra.mrb[0].mxu0 %v6007
    %v6075 = vpop.f32.mrb[0].mxu0
    %v6076 = vadd.f32 0.0, %v6075
    %v6077 = vpop.f32.mrb[0].mxu0
    %6078 = vdwg.mxu0
    %v6080 = vsel %vm1096, %v5931, 0
    %6082 = vmatprep.subr.mxu0 0.0
    %6083 = vmatpush1.msra.mxu0 %v5571
    %6084 = vmatprep.subr.mxu0 0.0
    %6085 = vmatpush1.msra.mxu0 0.0
    %6086 = vmatprep.subr.mxu0 0.0
    %6087 = vmatpush1.msra.mxu0 0.0
    %6088 = vmatprep.subr.mxu0 0.0
    %6089 = vmatpush1.msra.mxu0 0.0
    %6090 = vmatprep.subr.mxu0 0.0
    %6091 = vmatpush1.msra.mxu0 0.0
    %6092 = vmatprep.subr.mxu0 0.0
    %6093 = vmatpush1.msra.mxu0 0.0
    %6094 = vmatprep.subr.mxu0 0.0
    %6095 = vmatpush1.msra.mxu0 0.0
    %6096 = vmatprep.subr.mxu0 0.0
    %6097 = vmatpush1.msra.mxu0 0.0
    %6098 = vmatprep.subr.mxu0 0.0
    %6099 = vmatpush1.msra.mxu0 0.0
    %6100 = vmatprep.subr.mxu0 0.0
    %6101 = vmatpush1.msra.mxu0 0.0
    %6102 = vmatprep.subr.mxu0 0.0
    %6103 = vmatpush1.msra.mxu0 0.0
    %6104 = vmatprep.subr.mxu0 0.0
    %6105 = vmatpush1.msra.mxu0 0.0
    %6106 = vmatprep.subr.mxu0 0.0
    %6107 = vmatpush1.msra.mxu0 0.0
    %6108 = vmatprep.subr.mxu0 0.0
    %6109 = vmatpush1.msra.mxu0 0.0
    %6110 = vmatprep.subr.mxu0 0.0
    %6111 = vmatpush1.msra.mxu0 0.0
    %6112 = vmatprep.subr.mxu0 0.0
    %6113 = vmatpush1.msra.mxu0 0.0
    %6114 = vmatprep.subr.mxu0 0.0
    %6115 = vmatpush1.msra.mxu0 0.0
    %6116 = vmatprep.subr.mxu0 0.0
    %6117 = vmatpush1.msra.mxu0 0.0
    %6118 = vmatprep.subr.mxu0 0.0
    %6119 = vmatpush1.msra.mxu0 0.0
    %6120 = vmatprep.subr.mxu0 0.0
    %6121 = vmatpush1.msra.mxu0 0.0
    %6122 = vmatprep.subr.mxu0 0.0
    %6123 = vmatpush1.msra.mxu0 0.0
    %6124 = vmatprep.subr.mxu0 0.0
    %6125 = vmatpush1.msra.mxu0 0.0
    %6126 = vmatprep.subr.mxu0 0.0
    %6127 = vmatpush1.msra.mxu0 0.0
    %6128 = vmatprep.subr.mxu0 0.0
    %6129 = vmatpush1.msra.mxu0 0.0
    %6130 = vmatprep.subr.mxu0 0.0
    %6131 = vmatpush1.msra.mxu0 0.0
    %6132 = vmatprep.subr.mxu0 0.0
    %6133 = vmatpush1.msra.mxu0 0.0
    %6134 = vmatprep.subr.mxu0 0.0
    %6135 = vmatpush1.msra.mxu0 0.0
    %6136 = vmatprep.subr.mxu0 0.0
    %6137 = vmatpush1.msra.mxu0 0.0
    %6138 = vmatprep.subr.mxu0 0.0
    %6139 = vmatpush1.msra.mxu0 0.0
    %6140 = vmatprep.subr.mxu0 0.0
    %6141 = vmatpush1.msra.mxu0 0.0
    %6142 = vmatprep.subr.mxu0 0.0
    %6143 = vmatpush1.msra.mxu0 0.0
    %6144 = vmatprep.subr.mxu0 0.0
    %6145 = vmatpush1.msra.mxu0 0.0
    %6146 = vmatprep.mubr.f32.mxu0 0.0
    %6147 = vmatmul.mubr.f32.gmra.mrb[0].mxu0 %v6080
    %v6148 = vpop.f32.mrb[0].mxu0
    %v6149 = vadd.f32 0.0, %v6148
    %v6150 = vpop.f32.mrb[0].mxu0
    %6151 = vdwg.mxu0
    %v6153 = vsel %vm1096, %v5932, 0
    %6155 = vmatprep.subr.mxu0 0.0
    %6156 = vmatpush1.msra.mxu0 %v5572
    %6157 = vmatprep.subr.mxu0 0.0
    %6158 = vmatpush1.msra.mxu0 0.0
    %6159 = vmatprep.subr.mxu0 0.0
    %6160 = vmatpush1.msra.mxu0 0.0
    %6161 = vmatprep.subr.mxu0 0.0
    %6162 = vmatpush1.msra.mxu0 0.0
    %6163 = vmatprep.subr.mxu0 0.0
    %6164 = vmatpush1.msra.mxu0 0.0
    %6165 = vmatprep.subr.mxu0 0.0
    %6166 = vmatpush1.msra.mxu0 0.0
    %6167 = vmatprep.subr.mxu0 0.0
    %6168 = vmatpush1.msra.mxu0 0.0
    %6169 = vmatprep.subr.mxu0 0.0
    %6170 = vmatpush1.msra.mxu0 0.0
    %6171 = vmatprep.subr.mxu0 0.0
    %6172 = vmatpush1.msra.mxu0 0.0
    %6173 = vmatprep.subr.mxu0 0.0
    %6174 = vmatpush1.msra.mxu0 0.0
    %6175 = vmatprep.subr.mxu0 0.0
    %6176 = vmatpush1.msra.mxu0 0.0
    %6177 = vmatprep.subr.mxu0 0.0
    %6178 = vmatpush1.msra.mxu0 0.0
    %6179 = vmatprep.subr.mxu0 0.0
    %6180 = vmatpush1.msra.mxu0 0.0
    %6181 = vmatprep.subr.mxu0 0.0
    %6182 = vmatpush1.msra.mxu0 0.0
    %6183 = vmatprep.subr.mxu0 0.0
    %6184 = vmatpush1.msra.mxu0 0.0
    %6185 = vmatprep.subr.mxu0 0.0
    %6186 = vmatpush1.msra.mxu0 0.0
    %6187 = vmatprep.subr.mxu0 0.0
    %6188 = vmatpush1.msra.mxu0 0.0
    %6189 = vmatprep.subr.mxu0 0.0
    %6190 = vmatpush1.msra.mxu0 0.0
    %6191 = vmatprep.subr.mxu0 0.0
    %6192 = vmatpush1.msra.mxu0 0.0
    %6193 = vmatprep.subr.mxu0 0.0
    %6194 = vmatpush1.msra.mxu0 0.0
    %6195 = vmatprep.subr.mxu0 0.0
    %6196 = vmatpush1.msra.mxu0 0.0
    %6197 = vmatprep.subr.mxu0 0.0
    %6198 = vmatpush1.msra.mxu0 0.0
    %6199 = vmatprep.subr.mxu0 0.0
    %6200 = vmatpush1.msra.mxu0 0.0
    %6201 = vmatprep.subr.mxu0 0.0
    %6202 = vmatpush1.msra.mxu0 0.0
    %6203 = vmatprep.subr.mxu0 0.0
    %6204 = vmatpush1.msra.mxu0 0.0
    %6205 = vmatprep.subr.mxu0 0.0
    %6206 = vmatpush1.msra.mxu0 0.0
    %6207 = vmatprep.subr.mxu0 0.0
    %6208 = vmatpush1.msra.mxu0 0.0
    %6209 = vmatprep.subr.mxu0 0.0
    %6210 = vmatpush1.msra.mxu0 0.0
    %6211 = vmatprep.subr.mxu0 0.0
    %6212 = vmatpush1.msra.mxu0 0.0
    %6213 = vmatprep.subr.mxu0 0.0
    %6214 = vmatpush1.msra.mxu0 0.0
    %6215 = vmatprep.subr.mxu0 0.0
    %6216 = vmatpush1.msra.mxu0 0.0
    %6217 = vmatprep.subr.mxu0 0.0
    %6218 = vmatpush1.msra.mxu0 0.0
    %6219 = vmatprep.mubr.f32.mxu0 0.0
    %6220 = vmatmul.mubr.f32.gmra.mrb[0].mxu0 %v6153
    %v6221 = vpop.f32.mrb[0].mxu0
    %v6222 = vadd.f32 0.0, %v6221
    %v6223 = vpop.f32.mrb[0].mxu0
    %6224 = vdwg.mxu0
    %v6225 = vld [vmem:[%s7] sm:$0xff]
    %v6226 = vld [vmem:[%s7 + $0x8] sm:$0xff]
    %v6227 = vld [vmem:[%s7 + $0x10] sm:$0xff]
    %v6228 = vld [vmem:[%s7 + $0x18] sm:$0xff]
    %v6230 = vsel %vm1096, %v6003, 0
    %6232 = vmatprep.subr.mxu0 0.0
    %6233 = vmatpush1.msra.mxu0 %v6225
    %6234 = vmatprep.subr.mxu0 0.0
    %6235 = vmatpush1.msra.mxu0 0.0
    %6236 = vmatprep.subr.mxu0 0.0
    %6237 = vmatpush1.msra.mxu0 0.0
    %6238 = vmatprep.subr.mxu0 0.0
    %6239 = vmatpush1.msra.mxu0 0.0
    %6240 = vmatprep.subr.mxu0 0.0
    %6241 = vmatpush1.msra.mxu0 0.0
    %6242 = vmatprep.subr.mxu0 0.0
    %6243 = vmatpush1.msra.mxu0 0.0
    %6244 = vmatprep.subr.mxu0 0.0
    %6245 = vmatpush1.msra.mxu0 0.0
    %6246 = vmatprep.subr.mxu0 0.0
    %6247 = vmatpush1.msra.mxu0 0.0
    %6248 = vmatprep.subr.mxu0 0.0
    %6249 = vmatpush1.msra.mxu0 0.0
    %6250 = vmatprep.subr.mxu0 0.0
    %6251 = vmatpush1.msra.mxu0 0.0
    %6252 = vmatprep.subr.mxu0 0.0
    %6253 = vmatpush1.msra.mxu0 0.0
    %6254 = vmatprep.subr.mxu0 0.0
    %6255 = vmatpush1.msra.mxu0 0.0
    %6256 = vmatprep.subr.mxu0 0.0
    %6257 = vmatpush1.msra.mxu0 0.0
    %6258 = vmatprep.subr.mxu0 0.0
    %6259 = vmatpush1.msra.mxu0 0.0
    %6260 = vmatprep.subr.mxu0 0.0
    %6261 = vmatpush1.msra.mxu0 0.0
    %6262 = vmatprep.subr.mxu0 0.0
    %6263 = vmatpush1.msra.mxu0 0.0
    %6264 = vmatprep.subr.mxu0 0.0
    %6265 = vmatpush1.msra.mxu0 0.0
    %6266 = vmatprep.subr.mxu0 0.0
    %6267 = vmatpush1.msra.mxu0 0.0
    %6268 = vmatprep.subr.mxu0 0.0
    %6269 = vmatpush1.msra.mxu0 0.0
    %6270 = vmatprep.subr.mxu0 0.0
    %6271 = vmatpush1.msra.mxu0 0.0
    %6272 = vmatprep.subr.mxu0 0.0
    %6273 = vmatpush1.msra.mxu0 0.0
    %6274 = vmatprep.subr.mxu0 0.0
    %6275 = vmatpush1.msra.mxu0 0.0
    %6276 = vmatprep.subr.mxu0 0.0
    %6277 = vmatpush1.msra.mxu0 0.0
    %6278 = vmatprep.subr.mxu0 0.0
    %6279 = vmatpush1.msra.mxu0 0.0
    %6280 = vmatprep.subr.mxu0 0.0
    %6281 = vmatpush1.msra.mxu0 0.0
    %6282 = vmatprep.subr.mxu0 0.0
    %6283 = vmatpush1.msra.mxu0 0.0
    %6284 = vmatprep.subr.mxu0 0.0
    %6285 = vmatpush1.msra.mxu0 0.0
    %6286 = vmatprep.subr.mxu0 0.0
    %6287 = vmatpush1.msra.mxu0 0.0
    %6288 = vmatprep.subr.mxu0 0.0
    %6289 = vmatpush1.msra.mxu0 0.0
    %6290 = vmatprep.subr.mxu0 0.0
    %6291 = vmatpush1.msra.mxu0 0.0
    %6292 = vmatprep.subr.mxu0 0.0
    %6293 = vmatpush1.msra.mxu0 0.0
    %6294 = vmatprep.subr.mxu0 0.0
    %6295 = vmatpush1.msra.mxu0 0.0
    %6296 = vmatprep.mubr.f32.mxu0 0.0
    %6297 = vmatmul.mubr.f32.gmra.mrb[0].mxu0 %v6230
    %v6298 = vpop.f32.mrb[0].mxu0
    %v6299 = vadd.f32 0.0, %v6298
    %v6300 = vpop.f32.mrb[0].mxu0
    %6301 = vdwg.mxu0
    %v6303 = vsel %vm1096, %v6076, 0
    %6305 = vmatprep.subr.mxu0 0.0
    %6306 = vmatpush1.msra.mxu0 %v6226
    %6307 = vmatprep.subr.mxu0 0.0
    %6308 = vmatpush1.msra.mxu0 0.0
    %6309 = vmatprep.subr.mxu0 0.0
    %6310 = vmatpush1.msra.mxu0 0.0
    %6311 = vmatprep.subr.mxu0 0.0
    %6312 = vmatpush1.msra.mxu0 0.0
    %6313 = vmatprep.subr.mxu0 0.0
    %6314 = vmatpush1.msra.mxu0 0.0
    %6315 = vmatprep.subr.mxu0 0.0
    %6316 = vmatpush1.msra.mxu0 0.0
    %6317 = vmatprep.subr.mxu0 0.0
    %6318 = vmatpush1.msra.mxu0 0.0
    %6319 = vmatprep.subr.mxu0 0.0
    %6320 = vmatpush1.msra.mxu0 0.0
    %6321 = vmatprep.subr.mxu0 0.0
    %6322 = vmatpush1.msra.mxu0 0.0
    %6323 = vmatprep.subr.mxu0 0.0
    %6324 = vmatpush1.msra.mxu0 0.0
    %6325 = vmatprep.subr.mxu0 0.0
    %6326 = vmatpush1.msra.mxu0 0.0
    %6327 = vmatprep.subr.mxu0 0.0
    %6328 = vmatpush1.msra.mxu0 0.0
    %6329 = vmatprep.subr.mxu0 0.0
    %6330 = vmatpush1.msra.mxu0 0.0
    %6331 = vmatprep.subr.mxu0 0.0
    %6332 = vmatpush1.msra.mxu0 0.0
    %6333 = vmatprep.subr.mxu0 0.0
    %6334 = vmatpush1.msra.mxu0 0.0
    %6335 = vmatprep.subr.mxu0 0.0
    %6336 = vmatpush1.msra.mxu0 0.0
    %6337 = vmatprep.subr.mxu0 0.0
    %6338 = vmatpush1.msra.mxu0 0.0
    %6339 = vmatprep.subr.mxu0 0.0
    %6340 = vmatpush1.msra.mxu0 0.0
    %6341 = vmatprep.subr.mxu0 0.0
    %6342 = vmatpush1.msra.mxu0 0.0
    %6343 = vmatprep.subr.mxu0 0.0
    %6344 = vmatpush1.msra.mxu0 0.0
    %6345 = vmatprep.subr.mxu0 0.0
    %6346 = vmatpush1.msra.mxu0 0.0
    %6347 = vmatprep.subr.mxu0 0.0
    %6348 = vmatpush1.msra.mxu0 0.0
    %6349 = vmatprep.subr.mxu0 0.0
    %6350 = vmatpush1.msra.mxu0 0.0
    %6351 = vmatprep.subr.mxu0 0.0
    %6352 = vmatpush1.msra.mxu0 0.0
    %6353 = vmatprep.subr.mxu0 0.0
    %6354 = vmatpush1.msra.mxu0 0.0
    %6355 = vmatprep.subr.mxu0 0.0
    %6356 = vmatpush1.msra.mxu0 0.0
    %6357 = vmatprep.subr.mxu0 0.0
    %6358 = vmatpush1.msra.mxu0 0.0
    %6359 = vmatprep.subr.mxu0 0.0
    %6360 = vmatpush1.msra.mxu0 0.0
    %6361 = vmatprep.subr.mxu0 0.0
    %6362 = vmatpush1.msra.mxu0 0.0
    %6363 = vmatprep.subr.mxu0 0.0
    %6364 = vmatpush1.msra.mxu0 0.0
    %6365 = vmatprep.subr.mxu0 0.0
    %6366 = vmatpush1.msra.mxu0 0.0
    %6367 = vmatprep.subr.mxu0 0.0
    %6368 = vmatpush1.msra.mxu0 0.0
    %6369 = vmatprep.mubr.f32.mxu0 0.0
    %6370 = vmatmul.mubr.f32.gmra.mrb[0].mxu0 %v6303
    %v6371 = vpop.f32.mrb[0].mxu0
    %v6372 = vadd.f32 0.0, %v6371
    %v6373 = vpop.f32.mrb[0].mxu0
    %6374 = vdwg.mxu0
    %v6376 = vsel %vm1096, %v6149, 0
    %6378 = vmatprep.subr.mxu0 0.0
    %6379 = vmatpush1.msra.mxu0 %v6227
    %6380 = vmatprep.subr.mxu0 0.0
    %6381 = vmatpush1.msra.mxu0 0.0
    %6382 = vmatprep.subr.mxu0 0.0
    %6383 = vmatpush1.msra.mxu0 0.0
    %6384 = vmatprep.subr.mxu0 0.0
    %6385 = vmatpush1.msra.mxu0 0.0
    %6386 = vmatprep.subr.mxu0 0.0
    %6387 = vmatpush1.msra.mxu0 0.0
    %6388 = vmatprep.subr.mxu0 0.0
    %6389 = vmatpush1.msra.mxu0 0.0
    %6390 = vmatprep.subr.mxu0 0.0
    %6391 = vmatpush1.msra.mxu0 0.0
    %6392 = vmatprep.subr.mxu0 0.0
    %6393 = vmatpush1.msra.mxu0 0.0
    %6394 = vmatprep.subr.mxu0 0.0
    %6395 = vmatpush1.msra.mxu0 0.0
    %6396 = vmatprep.subr.mxu0 0.0
    %6397 = vmatpush1.msra.mxu0 0.0
    %6398 = vmatprep.subr.mxu0 0.0
    %6399 = vmatpush1.msra.mxu0 0.0
    %6400 = vmatprep.subr.mxu0 0.0
    %6401 = vmatpush1.msra.mxu0 0.0
    %6402 = vmatprep.subr.mxu0 0.0
    %6403 = vmatpush1.msra.mxu0 0.0
    %6404 = vmatprep.subr.mxu0 0.0
    %6405 = vmatpush1.msra.mxu0 0.0
    %6406 = vmatprep.subr.mxu0 0.0
    %6407 = vmatpush1.msra.mxu0 0.0
    %6408 = vmatprep.subr.mxu0 0.0
    %6409 = vmatpush1.msra.mxu0 0.0
    %6410 = vmatprep.subr.mxu0 0.0
    %6411 = vmatpush1.msra.mxu0 0.0
    %6412 = vmatprep.subr.mxu0 0.0
    %6413 = vmatpush1.msra.mxu0 0.0
    %6414 = vmatprep.subr.mxu0 0.0
    %6415 = vmatpush1.msra.mxu0 0.0
    %6416 = vmatprep.subr.mxu0 0.0
    %6417 = vmatpush1.msra.mxu0 0.0
    %6418 = vmatprep.subr.mxu0 0.0
    %6419 = vmatpush1.msra.mxu0 0.0
    %6420 = vmatprep.subr.mxu0 0.0
    %6421 = vmatpush1.msra.mxu0 0.0
    %6422 = vmatprep.subr.mxu0 0.0
    %6423 = vmatpush1.msra.mxu0 0.0
    %6424 = vmatprep.subr.mxu0 0.0
    %6425 = vmatpush1.msra.mxu0 0.0
    %6426 = vmatprep.subr.mxu0 0.0
    %6427 = vmatpush1.msra.mxu0 0.0
    %6428 = vmatprep.subr.mxu0 0.0
    %6429 = vmatpush1.msra.mxu0 0.0
    %6430 = vmatprep.subr.mxu0 0.0
    %6431 = vmatpush1.msra.mxu0 0.0
    %6432 = vmatprep.subr.mxu0 0.0
    %6433 = vmatpush1.msra.mxu0 0.0
    %6434 = vmatprep.subr.mxu0 0.0
    %6435 = vmatpush1.msra.mxu0 0.0
    %6436 = vmatprep.subr.mxu0 0.0
    %6437 = vmatpush1.msra.mxu0 0.0
    %6438 = vmatprep.subr.mxu0 0.0
    %6439 = vmatpush1.msra.mxu0 0.0
    %6440 = vmatprep.subr.mxu0 0.0
    %6441 = vmatpush1.msra.mxu0 0.0
    %6442 = vmatprep.mubr.f32.mxu0 0.0
    %6443 = vmatmul.mubr.f32.gmra.mrb[0].mxu0 %v6376
    %v6444 = vpop.f32.mrb[0].mxu0
    %v6445 = vadd.f32 0.0, %v6444
    %v6446 = vpop.f32.mrb[0].mxu0
    %6447 = vdwg.mxu0
    %v6449 = vsel %vm1096, %v6222, 0
    %6451 = vmatprep.subr.mxu0 0.0
    %6452 = vmatpush1.msra.mxu0 %v6228
    %6453 = vmatprep.subr.mxu0 0.0
    %6454 = vmatpush1.msra.mxu0 0.0
    %6455 = vmatprep.subr.mxu0 0.0
    %6456 = vmatpush1.msra.mxu0 0.0
    %6457 = vmatprep.subr.mxu0 0.0
    %6458 = vmatpush1.msra.mxu0 0.0
    %6459 = vmatprep.subr.mxu0 0.0
    %6460 = vmatpush1.msra.mxu0 0.0
    %6461 = vmatprep.subr.mxu0 0.0
    %6462 = vmatpush1.msra.mxu0 0.0
    %6463 = vmatprep.subr.mxu0 0.0
    %6464 = vmatpush1.msra.mxu0 0.0
    %6465 = vmatprep.subr.mxu0 0.0
    %6466 = vmatpush1.msra.mxu0 0.0
    %6467 = vmatprep.subr.mxu0 0.0
    %6468 = vmatpush1.msra.mxu0 0.0
    %6469 = vmatprep.subr.mxu0 0.0
    %6470 = vmatpush1.msra.mxu0 0.0
    %6471 = vmatprep.subr.mxu0 0.0
    %6472 = vmatpush1.msra.mxu0 0.0
    %6473 = vmatprep.subr.mxu0 0.0
    %6474 = vmatpush1.msra.mxu0 0.0
    %6475 = vmatprep.subr.mxu0 0.0
    %6476 = vmatpush1.msra.mxu0 0.0
    %6477 = vmatprep.subr.mxu0 0.0
    %6478 = vmatpush1.msra.mxu0 0.0
    %6479 = vmatprep.subr.mxu0 0.0
    %6480 = vmatpush1.msra.mxu0 0.0
    %6481 = vmatprep.subr.mxu0 0.0
    %6482 = vmatpush1.msra.mxu0 0.0
    %6483 = vmatprep.subr.mxu0 0.0
    %6484 = vmatpush1.msra.mxu0 0.0
    %6485 = vmatprep.subr.mxu0 0.0
    %6486 = vmatpush1.msra.mxu0 0.0
    %6487 = vmatprep.subr.mxu0 0.0
    %6488 = vmatpush1.msra.mxu0 0.0
    %6489 = vmatprep.subr.mxu0 0.0
    %6490 = vmatpush1.msra.mxu0 0.0
    %6491 = vmatprep.subr.mxu0 0.0
    %6492 = vmatpush1.msra.mxu0 0.0
    %6493 = vmatprep.subr.mxu0 0.0
    %6494 = vmatpush1.msra.mxu0 0.0
    %6495 = vmatprep.subr.mxu0 0.0
    %6496 = vmatpush1.msra.mxu0 0.0
    %6497 = vmatprep.subr.mxu0 0.0
    %6498 = vmatpush1.msra.mxu0 0.0
    %6499 = vmatprep.subr.mxu0 0.0
    %6500 = vmatpush1.msra.mxu0 0.0
    %6501 = vmatprep.subr.mxu0 0.0
    %6502 = vmatpush1.msra.mxu0 0.0
    %6503 = vmatprep.subr.mxu0 0.0
    %6504 = vmatpush1.msra.mxu0 0.0
    %6505 = vmatprep.subr.mxu0 0.0
    %6506 = vmatpush1.msra.mxu0 0.0
    %6507 = vmatprep.subr.mxu0 0.0
    %6508 = vmatpush1.msra.mxu0 0.0
    %6509 = vmatprep.subr.mxu0 0.0
    %6510 = vmatpush1.msra.mxu0 0.0
    %6511 = vmatprep.subr.mxu0 0.0
    %6512 = vmatpush1.msra.mxu0 0.0
    %6513 = vmatprep.subr.mxu0 0.0
    %6514 = vmatpush1.msra.mxu0 0.0
    %6515 = vmatprep.mubr.f32.mxu0 0.0
    %6516 = vmatmul.mubr.f32.gmra.mrb[0].mxu0 %v6449
    %v6517 = vpop.f32.mrb[0].mxu0
    %v6518 = vadd.f32 0.0, %v6517
    %v6519 = vpop.f32.mrb[0].mxu0
    %6520 = vdwg.mxu0
    %v6521 = vsel %vm71, %v6299, 0.0
    %v6522 = vsel %vm71, %v6372, 0.0
    %v6523 = vadd.f32 %v6521, %v6522
    %v6524 = vsel %vm71, %v6445, 0.0
    %v6525 = vadd.f32 %v6523, %v6524
    %v6526 = vsel %vm71, %v6518, 0.0
    %v6527 = vadd.f32 %v6525, %v6526
    %v6528 = vadd.f32 %v4561, %v6527
    %v6529 = vlaneseq
    %v6530 = vshrl.u32 %v6529, 7
    %v6531 = vsub.s32 4, %v6530
    %v6532 = vrot.slane %v4562, %v6531
    %v6533 = vadd.f32 %v6528, %v6532
    %v6534 = vsel %vm71, %v6533, 0.0
    %6535 = vadd.xlane.f32.xlu0 %v6534
    %v6536 = vpop.xlane.xlu0 %6535
    %v6537 = vmul.f32 %v6536, %v75
    %v6538 = vsub.f32 %v6533, %v6537
    %v6539 = vmul.f32 %v6538, %v6538
    %v6540 = vsel %vm71, %v6539, 0.0
    %6541 = vadd.xlane.f32.xlu0 %v6540
    %v6542 = vpop.xlane.xlu0 %6541
    %v6543 = vmul.f32 %v6542, %v75
    %v6544 = vadd.f32 %v6543, 1e-05
    %v6545 = vrsqrt.pop %v6544
    %v6546 = vmul.f32 %v6538, %v6545
    %v6547 = vlaneseq
    %v6548 = vshrl.u32 %v6547, 7
    %v6549 = vsub.s32 2, %v6548
    %v6550 = vrot.slane %v4562, %v6549
    %v6551 = vmul.f32 %v6546, %v6550
    %v6552 = vlaneseq
    %v6553 = vshrl.u32 %v6552, 7
    %v6554 = vsub.s32 3, %v6553
    %v6555 = vrot.slane %v4562, %v6554
    %v6556 = vadd.f32 %v6551, %v6555
    %v6557 = vld [vmem:[%s8] sm:$0xff]
    %v6558 = vld [vmem:[%s8 + $0x8] sm:$0xff]
    %v6559 = vld [vmem:[%s8 + $0x10] sm:$0xff]
    %v6560 = vld [vmem:[%s8 + $0x18] sm:$0xff]
    %v6561 = vld [vmem:[%s5] sm:$0x1]
    %v6563 = vlaneseq
    %v6564 = vshrl.u32 %v6563, 7
    %v6565 = vsub.s32 0, %v6564
    %v6566 = vrot.slane %v6561, %v6565
    %v6569 = vsel %vm71, %v6556, 0
    %6571 = vmatprep.subr.mxu0 0.0
    %6572 = vmatpush1.msra.mxu0 %v6557
    %6573 = vmatprep.subr.mxu0 0.0
    %6574 = vmatpush1.msra.mxu0 %v6558
    %6575 = vmatprep.subr.mxu0 0.0
    %6576 = vmatpush1.msra.mxu0 %v6559
    %6577 = vmatprep.subr.mxu0 0.0
    %6578 = vmatpush1.msra.mxu0 %v6560
    %6579 = vmatprep.subr.mxu0 0.0
    %6580 = vmatpush1.msra.mxu0 0.0
    %6581 = vmatprep.subr.mxu0 0.0
    %6582 = vmatpush1.msra.mxu0 0.0
    %6583 = vmatprep.subr.mxu0 0.0
    %6584 = vmatpush1.msra.mxu0 0.0
    %6585 = vmatprep.subr.mxu0 0.0
    %6586 = vmatpush1.msra.mxu0 0.0
    %6587 = vmatprep.subr.mxu0 0.0
    %6588 = vmatpush1.msra.mxu0 0.0
    %6589 = vmatprep.subr.mxu0 0.0
    %6590 = vmatpush1.msra.mxu0 0.0
    %6591 = vmatprep.subr.mxu0 0.0
    %6592 = vmatpush1.msra.mxu0 0.0
    %6593 = vmatprep.subr.mxu0 0.0
    %6594 = vmatpush1.msra.mxu0 0.0
    %6595 = vmatprep.subr.mxu0 0.0
    %6596 = vmatpush1.msra.mxu0 0.0
    %6597 = vmatprep.subr.mxu0 0.0
    %6598 = vmatpush1.msra.mxu0 0.0
    %6599 = vmatprep.subr.mxu0 0.0
    %6600 = vmatpush1.msra.mxu0 0.0
    %6601 = vmatprep.subr.mxu0 0.0
    %6602 = vmatpush1.msra.mxu0 0.0
    %6603 = vmatprep.subr.mxu0 0.0
    %6604 = vmatpush1.msra.mxu0 0.0
    %6605 = vmatprep.subr.mxu0 0.0
    %6606 = vmatpush1.msra.mxu0 0.0
    %6607 = vmatprep.subr.mxu0 0.0
    %6608 = vmatpush1.msra.mxu0 0.0
    %6609 = vmatprep.subr.mxu0 0.0
    %6610 = vmatpush1.msra.mxu0 0.0
    %6611 = vmatprep.subr.mxu0 0.0
    %6612 = vmatpush1.msra.mxu0 0.0
    %6613 = vmatprep.subr.mxu0 0.0
    %6614 = vmatpush1.msra.mxu0 0.0
    %6615 = vmatprep.subr.mxu0 0.0
    %6616 = vmatpush1.msra.mxu0 0.0
    %6617 = vmatprep.subr.mxu0 0.0
    %6618 = vmatpush1.msra.mxu0 0.0
    %6619 = vmatprep.subr.mxu0 0.0
    %6620 = vmatpush1.msra.mxu0 0.0
    %6621 = vmatprep.subr.mxu0 0.0
    %6622 = vmatpush1.msra.mxu0 0.0
    %6623 = vmatprep.subr.mxu0 0.0
    %6624 = vmatpush1.msra.mxu0 0.0
    %6625 = vmatprep.subr.mxu0 0.0
    %6626 = vmatpush1.msra.mxu0 0.0
    %6627 = vmatprep.subr.mxu0 0.0
    %6628 = vmatpush1.msra.mxu0 0.0
    %6629 = vmatprep.subr.mxu0 0.0
    %6630 = vmatpush1.msra.mxu0 0.0
    %6631 = vmatprep.subr.mxu0 0.0
    %6632 = vmatpush1.msra.mxu0 0.0
    %6633 = vmatprep.subr.mxu0 0.0
    %6634 = vmatpush1.msra.mxu0 0.0
    %6635 = vmatprep.mubr.f32.mxu0 0.0
    %6636 = vmatmul.mubr.f32.gmra.mrb[0].mxu0 %v6569
    %v6637 = vpop.f32.mrb[0].mxu0
    %v6638 = vadd.f32 %v6566, %v6637
    %v6639 = vpop.f32.mrb[0].mxu0
    %6640 = vdwg.mxu0
    %v6641 = vmul.f32 %v6638, 1.702
    %v6642 = vxor.u32 %v6641, 2147483648
    %v6643 = vmul.f32 %v6642, 1.442695
    %v6644 = vpow.pop %v6643
    %v6645 = vadd.f32 %v6644, 1.0
    %v6646 = vrcp.pop %v6645
    %v6647 = vmul.f32 1.0, %v6646
    %v6648 = vmul.f32 %v6638, %v6647
    %v6649 = vld [vmem:[%s9] sm:$0xff]
    %v6650 = vld [vmem:[%s9 + $0x8] sm:$0xff]
    %v6651 = vld [vmem:[%s9 + $0x10] sm:$0xff]
    %v6652 = vld [vmem:[%s9 + $0x18] sm:$0xff]
    %v6653 = vld [vmem:[%s9 + $0x20] sm:$0xff]
    %v6654 = vld [vmem:[%s9 + $0x28] sm:$0xff]
    %v6655 = vld [vmem:[%s9 + $0x30] sm:$0xff]
    %v6656 = vld [vmem:[%s9 + $0x38] sm:$0xff]
    %v6657 = vld [vmem:[%s9 + $0x40] sm:$0xff]
    %v6658 = vld [vmem:[%s9 + $0x48] sm:$0xff]
    %v6659 = vld [vmem:[%s9 + $0x50] sm:$0xff]
    %v6660 = vld [vmem:[%s9 + $0x58] sm:$0xff]
    %v6661 = vld [vmem:[%s9 + $0x60] sm:$0xff]
    %v6662 = vld [vmem:[%s9 + $0x68] sm:$0xff]
    %v6663 = vld [vmem:[%s9 + $0x70] sm:$0xff]
    %v6664 = vld [vmem:[%s9 + $0x78] sm:$0xff]
    %6665 = vmatprep.subr.mxu0 0.0
    %6666 = vmatpush1.msra.mxu0 %v6649
    %6667 = vmatprep.subr.mxu0 0.0
    %6668 = vmatpush1.msra.mxu0 %v6650
    %6669 = vmatprep.subr.mxu0 0.0
    %6670 = vmatpush1.msra.mxu0 %v6651
    %6671 = vmatprep.subr.mxu0 0.0
    %6672 = vmatpush1.msra.mxu0 %v6652
    %6673 = vmatprep.subr.mxu0 0.0
    %6674 = vmatpush1.msra.mxu0 %v6653
    %6675 = vmatprep.subr.mxu0 0.0
    %6676 = vmatpush1.msra.mxu0 %v6654
    %6677 = vmatprep.subr.mxu0 0.0
    %6678 = vmatpush1.msra.mxu0 %v6655
    %6679 = vmatprep.subr.mxu0 0.0
    %6680 = vmatpush1.msra.mxu0 %v6656
    %6681 = vmatprep.subr.mxu0 0.0
    %6682 = vmatpush1.msra.mxu0 %v6657
    %6683 = vmatprep.subr.mxu0 0.0
    %6684 = vmatpush1.msra.mxu0 %v6658
    %6685 = vmatprep.subr.mxu0 0.0
    %6686 = vmatpush1.msra.mxu0 %v6659
    %6687 = vmatprep.subr.mxu0 0.0
    %6688 = vmatpush1.msra.mxu0 %v6660
    %6689 = vmatprep.subr.mxu0 0.0
    %6690 = vmatpush1.msra.mxu0 %v6661
    %6691 = vmatprep.subr.mxu0 0.0
    %6692 = vmatpush1.msra.mxu0 %v6662
    %6693 = vmatprep.subr.mxu0 0.0
    %6694 = vmatpush1.msra.mxu0 %v6663
    %6695 = vmatprep.subr.mxu0 0.0
    %6696 = vmatpush1.msra.mxu0 %v6664
    %6697 = vmatprep.subr.mxu0 0.0
    %6698 = vmatpush1.msra.mxu0 0.0
    %6699 = vmatprep.subr.mxu0 0.0
    %6700 = vmatpush1.msra.mxu0 0.0
    %6701 = vmatprep.subr.mxu0 0.0
    %6702 = vmatpush1.msra.mxu0 0.0
    %6703 = vmatprep.subr.mxu0 0.0
    %6704 = vmatpush1.msra.mxu0 0.0
    %6705 = vmatprep.subr.mxu0 0.0
    %6706 = vmatpush1.msra.mxu0 0.0
    %6707 = vmatprep.subr.mxu0 0.0
    %6708 = vmatpush1.msra.mxu0 0.0
    %6709 = vmatprep.subr.mxu0 0.0
    %6710 = vmatpush1.msra.mxu0 0.0
    %6711 = vmatprep.subr.mxu0 0.0
    %6712 = vmatpush1.msra.mxu0 0.0
    %6713 = vmatprep.subr.mxu0 0.0
    %6714 = vmatpush1.msra.mxu0 0.0
    %6715 = vmatprep.subr.mxu0 0.0
    %6716 = vmatpush1.msra.mxu0 0.0
    %6717 = vmatprep.subr.mxu0 0.0
    %6718 = vmatpush1.msra.mxu0 0.0
    %6719 = vmatprep.subr.mxu0 0.0
    %6720 = vmatpush1.msra.mxu0 0.0
    %6721 = vmatprep.subr.mxu0 0.0
    %6722 = vmatpush1.msra.mxu0 0.0
    %6723 = vmatprep.subr.mxu0 0.0
    %6724 = vmatpush1.msra.mxu0 0.0
    %6725 = vmatprep.subr.mxu0 0.0
    %6726 = vmatpush1.msra.mxu0 0.0
    %6727 = vmatprep.subr.mxu0 0.0
    %6728 = vmatpush1.msra.mxu0 0.0
    %6729 = vmatprep.mubr.f32.mxu0 0.0
    %6730 = vmatmul.mubr.f32.gmra.mrb[0].mxu0 %v6648
    %v6731 = vpop.f32.mrb[0].mxu0
    %v6732 = vadd.f32 0.0, %v6731
    %v6733 = vpop.f32.mrb[0].mxu0
    %6734 = vdwg.mxu0
    %v6735 = vadd.f32 %v6533, %v6732
    %v6736 = vlaneseq
    %v6737 = vshrl.u32 %v6736, 7
    %v6738 = vsub.s32 5, %v6737
    %v6739 = vrot.slane %v4562, %v6738
    %v6740 = vadd.f32 %v6735, %v6739
    %v6741 = vld [vmem:[%s2265] sm:$0x3f]
    %v6742 = vsel %vm71, %v6740, 0.0
    %6743 = vadd.xlane.f32.xlu0 %v6742
    %v6744 = vpop.xlane.xlu0 %6743
    %v6745 = vmul.f32 %v6744, %v75
    %v6746 = vsub.f32 %v6740, %v6745
    %v6747 = vmul.f32 %v6746, %v6746
    %v6748 = vsel %vm71, %v6747, 0.0
    %6749 = vadd.xlane.f32.xlu0 %v6748
    %v6750 = vpop.xlane.xlu0 %6749
    %v6751 = vmul.f32 %v6750, %v75
    %v6752 = vadd.f32 %v6751, 1e-05
    %v6753 = vrsqrt.pop %v6752
    %v6754 = vmul.f32 %v6746, %v6753
    %v6755 = vlaneseq
    %v6756 = vshrl.u32 %v6755, 7
    %v6757 = vsub.s32 0, %v6756
    %v6758 = vrot.slane %v6741, %v6757
    %v6759 = vmul.f32 %v6754, %v6758
    %v6760 = vlaneseq
    %v6761 = vshrl.u32 %v6760, 7
    %v6762 = vsub.s32 1, %v6761
    %v6763 = vrot.slane %v6741, %v6762
    %v6764 = vadd.f32 %v6759, %v6763
    %v6765 = vld [vmem:[%s2290] sm:$0xff]
    %v6766 = vld [vmem:[%s2290 + $0x8] sm:$0xff]
    %v6767 = vld [vmem:[%s2290 + $0x10] sm:$0xff]
    %v6768 = vld [vmem:[%s2290 + $0x18] sm:$0xff]
    %v6770 = vsel %vm71, %v6764, 0
    %6772 = vmatprep.subr.mxu0 0.0
    %6773 = vmatpush1.msra.mxu0 %v6765
    %6774 = vmatprep.subr.mxu0 0.0
    %6775 = vmatpush1.msra.mxu0 %v6766
    %6776 = vmatprep.subr.mxu0 0.0
    %6777 = vmatpush1.msra.mxu0 %v6767
    %6778 = vmatprep.subr.mxu0 0.0
    %6779 = vmatpush1.msra.mxu0 %v6768
    %6780 = vmatprep.subr.mxu0 0.0
    %6781 = vmatpush1.msra.mxu0 0.0
    %6782 = vmatprep.subr.mxu0 0.0
    %6783 = vmatpush1.msra.mxu0 0.0
    %6784 = vmatprep.subr.mxu0 0.0
    %6785 = vmatpush1.msra.mxu0 0.0
    %6786 = vmatprep.subr.mxu0 0.0
    %6787 = vmatpush1.msra.mxu0 0.0
    %6788 = vmatprep.subr.mxu0 0.0
    %6789 = vmatpush1.msra.mxu0 0.0
    %6790 = vmatprep.subr.mxu0 0.0
    %6791 = vmatpush1.msra.mxu0 0.0
    %6792 = vmatprep.subr.mxu0 0.0
    %6793 = vmatpush1.msra.mxu0 0.0
    %6794 = vmatprep.subr.mxu0 0.0
    %6795 = vmatpush1.msra.mxu0 0.0
    %6796 = vmatprep.subr.mxu0 0.0
    %6797 = vmatpush1.msra.mxu0 0.0
    %6798 = vmatprep.subr.mxu0 0.0
    %6799 = vmatpush1.msra.mxu0 0.0
    %6800 = vmatprep.subr.mxu0 0.0
    %6801 = vmatpush1.msra.mxu0 0.0
    %6802 = vmatprep.subr.mxu0 0.0
    %6803 = vmatpush1.msra.mxu0 0.0
    %6804 = vmatprep.subr.mxu0 0.0
    %6805 = vmatpush1.msra.mxu0 0.0
    %6806 = vmatprep.subr.mxu0 0.0
    %6807 = vmatpush1.msra.mxu0 0.0
    %6808 = vmatprep.subr.mxu0 0.0
    %6809 = vmatpush1.msra.mxu0 0.0
    %6810 = vmatprep.subr.mxu0 0.0
    %6811 = vmatpush1.msra.mxu0 0.0
    %6812 = vmatprep.subr.mxu0 0.0
    %6813 = vmatpush1.msra.mxu0 0.0
    %6814 = vmatprep.subr.mxu0 0.0
    %6815 = vmatpush1.msra.mxu0 0.0
    %6816 = vmatprep.subr.mxu0 0.0
    %6817 = vmatpush1.msra.mxu0 0.0
    %6818 = vmatprep.subr.mxu0 0.0
    %6819 = vmatpush1.msra.mxu0 0.0
    %6820 = vmatprep.subr.mxu0 0.0
    %6821 = vmatpush1.msra.mxu0 0.0
    %6822 = vmatprep.subr.mxu0 0.0
    %6823 = vmatpush1.msra.mxu0 0.0
    %6824 = vmatprep.subr.mxu0 0.0
    %6825 = vmatpush1.msra.mxu0 0.0
    %6826 = vmatprep.subr.mxu0 0.0
    %6827 = vmatpush1.msra.mxu0 0.0
    %6828 = vmatprep.subr.mxu0 0.0
    %6829 = vmatpush1.msra.mxu0 0.0
    %6830 = vmatprep.subr.mxu0 0.0
    %6831 = vmatpush1.msra.mxu0 0.0
    %6832 = vmatprep.subr.mxu0 0.0
    %6833 = vmatpush1.msra.mxu0 0.0
    %6834 = vmatprep.subr.mxu0 0.0
    %6835 = vmatpush1.msra.mxu0 0.0
    %6836 = vmatprep.mubr.f32.mxu0 0.0
    %6837 = vmatmul.mubr.f32.gmra.mrb[0].mxu0 %v6770
    %v6838 = vpop.f32.mrb[0].mxu0
    %v6839 = vadd.f32 0.0, %v6838
    %v6840 = vpop.f32.mrb[0].mxu0
    %6841 = vdwg.mxu0
    %v6842 = vld [vmem:[%s2368] sm:$0xff]
    %v6843 = vld [vmem:[%s2368 + $0x8] sm:$0xff]
    %v6844 = vld [vmem:[%s2368 + $0x10] sm:$0xff]
    %v6845 = vld [vmem:[%s2368 + $0x18] sm:$0xff]
    %6846 = vmatprep.subr.mxu0 0.0
    %6847 = vmatpush1.msra.mxu0 %v6842
    %6848 = vmatprep.subr.mxu0 0.0
    %6849 = vmatpush1.msra.mxu0 %v6843
    %6850 = vmatprep.subr.mxu0 0.0
    %6851 = vmatpush1.msra.mxu0 %v6844
    %6852 = vmatprep.subr.mxu0 0.0
    %6853 = vmatpush1.msra.mxu0 %v6845
    %6854 = vmatprep.subr.mxu0 0.0
    %6855 = vmatpush1.msra.mxu0 0.0
    %6856 = vmatprep.subr.mxu0 0.0
    %6857 = vmatpush1.msra.mxu0 0.0
    %6858 = vmatprep.subr.mxu0 0.0
    %6859 = vmatpush1.msra.mxu0 0.0
    %6860 = vmatprep.subr.mxu0 0.0
    %6861 = vmatpush1.msra.mxu0 0.0
    %6862 = vmatprep.subr.mxu0 0.0
    %6863 = vmatpush1.msra.mxu0 0.0
    %6864 = vmatprep.subr.mxu0 0.0
    %6865 = vmatpush1.msra.mxu0 0.0
    %6866 = vmatprep.subr.mxu0 0.0
    %6867 = vmatpush1.msra.mxu0 0.0
    %6868 = vmatprep.subr.mxu0 0.0
    %6869 = vmatpush1.msra.mxu0 0.0
    %6870 = vmatprep.subr.mxu0 0.0
    %6871 = vmatpush1.msra.mxu0 0.0
    %6872 = vmatprep.subr.mxu0 0.0
    %6873 = vmatpush1.msra.mxu0 0.0
    %6874 = vmatprep.subr.mxu0 0.0
    %6875 = vmatpush1.msra.mxu0 0.0
    %6876 = vmatprep.subr.mxu0 0.0
    %6877 = vmatpush1.msra.mxu0 0.0
    %6878 = vmatprep.subr.mxu0 0.0
    %6879 = vmatpush1.msra.mxu0 0.0
    %6880 = vmatprep.subr.mxu0 0.0
    %6881 = vmatpush1.msra.mxu0 0.0
    %6882 = vmatprep.subr.mxu0 0.0
    %6883 = vmatpush1.msra.mxu0 0.0
    %6884 = vmatprep.subr.mxu0 0.0
    %6885 = vmatpush1.msra.mxu0 0.0
    %6886 = vmatprep.subr.mxu0 0.0
    %6887 = vmatpush1.msra.mxu0 0.0
    %6888 = vmatprep.subr.mxu0 0.0
    %6889 = vmatpush1.msra.mxu0 0.0
    %6890 = vmatprep.subr.mxu0 0.0
    %6891 = vmatpush1.msra.mxu0 0.0
    %6892 = vmatprep.subr.mxu0 0.0
    %6893 = vmatpush1.msra.mxu0 0.0
    %6894 = vmatprep.subr.mxu0 0.0
    %6895 = vmatpush1.msra.mxu0 0.0
    %6896 = vmatprep.subr.mxu0 0.0
    %6897 = vmatpush1.msra.mxu0 0.0
    %6898 = vmatprep.subr.mxu0 0.0
    %6899 = vmatpush1.msra.mxu0 0.0
    %6900 = vmatprep.subr.mxu0 0.0
    %6901 = vmatpush1.msra.mxu0 0.0
    %6902 = vmatprep.subr.mxu0 0.0
    %6903 = vmatpush1.msra.mxu0 0.0
    %6904 = vmatprep.subr.mxu0 0.0
    %6905 = vmatpush1.msra.mxu0 0.0
    %6906 = vmatprep.subr.mxu0 0.0
    %6907 = vmatpush1.msra.mxu0 0.0
    %6908 = vmatprep.subr.mxu0 0.0
    %6909 = vmatpush1.msra.mxu0 0.0
    %6910 = vmatprep.mubr.f32.mxu0 0.0
    %6911 = vmatmul.mubr.f32.gmra.mrb[0].mxu0 %v6770
    %v6912 = vpop.f32.mrb[0].mxu0
    %v6913 = vadd.f32 0.0, %v6912
    %v6914 = vpop.f32.mrb[0].mxu0
    %6915 = vdwg.mxu0
    %v6916 = vld [vmem:[%s2443] sm:$0xff]
    %v6917 = vld [vmem:[%s2443 + $0x8] sm:$0xff]
    %v6918 = vld [vmem:[%s2443 + $0x10] sm:$0xff]
    %v6919 = vld [vmem:[%s2443 + $0x18] sm:$0xff]
    %6920 = vmatprep.subr.mxu0 0.0
    %6921 = vmatpush1.msra.mxu0 %v6916
    %6922 = vmatprep.subr.mxu0 0.0
    %6923 = vmatpush1.msra.mxu0 %v6917
    %6924 = vmatprep.subr.mxu0 0.0
    %6925 = vmatpush1.msra.mxu0 %v6918
    %6926 = vmatprep.subr.mxu0 0.0
    %6927 = vmatpush1.msra.mxu0 %v6919
    %6928 = vmatprep.subr.mxu0 0.0
    %6929 = vmatpush1.msra.mxu0 0.0
    %6930 = vmatprep.subr.mxu0 0.0
    %6931 = vmatpush1.msra.mxu0 0.0
    %6932 = vmatprep.subr.mxu0 0.0
    %6933 = vmatpush1.msra.mxu0 0.0
    %6934 = vmatprep.subr.mxu0 0.0
    %6935 = vmatpush1.msra.mxu0 0.0
    %6936 = vmatprep.subr.mxu0 0.0
    %6937 = vmatpush1.msra.mxu0 0.0
    %6938 = vmatprep.subr.mxu0 0.0
    %6939 = vmatpush1.msra.mxu0 0.0
    %6940 = vmatprep.subr.mxu0 0.0
    %6941 = vmatpush1.msra.mxu0 0.0
    %6942 = vmatprep.subr.mxu0 0.0
    %6943 = vmatpush1.msra.mxu0 0.0
    %6944 = vmatprep.subr.mxu0 0.0
    %6945 = vmatpush1.msra.mxu0 0.0
    %6946 = vmatprep.subr.mxu0 0.0
    %6947 = vmatpush1.msra.mxu0 0.0
    %6948 = vmatprep.subr.mxu0 0.0
    %6949 = vmatpush1.msra.mxu0 0.0
    %6950 = vmatprep.subr.mxu0 0.0
    %6951 = vmatpush1.msra.mxu0 0.0
    %6952 = vmatprep.subr.mxu0 0.0
    %6953 = vmatpush1.msra.mxu0 0.0
    %6954 = vmatprep.subr.mxu0 0.0
    %6955 = vmatpush1.msra.mxu0 0.0
    %6956 = vmatprep.subr.mxu0 0.0
    %6957 = vmatpush1.msra.mxu0 0.0
    %6958 = vmatprep.subr.mxu0 0.0
    %6959 = vmatpush1.msra.mxu0 0.0
    %6960 = vmatprep.subr.mxu0 0.0
    %6961 = vmatpush1.msra.mxu0 0.0
    %6962 = vmatprep.subr.mxu0 0.0
    %6963 = vmatpush1.msra.mxu0 0.0
    %6964 = vmatprep.subr.mxu0 0.0
    %6965 = vmatpush1.msra.mxu0 0.0
    %6966 = vmatprep.subr.mxu0 0.0
    %6967 = vmatpush1.msra.mxu0 0.0
    %6968 = vmatprep.subr.mxu0 0.0
    %6969 = vmatpush1.msra.mxu0 0.0
    %6970 = vmatprep.subr.mxu0 0.0
    %6971 = vmatpush1.msra.mxu0 0.0
    %6972 = vmatprep.subr.mxu0 0.0
    %6973 = vmatpush1.msra.mxu0 0.0
    %6974 = vmatprep.subr.mxu0 0.0
    %6975 = vmatpush1.msra.mxu0 0.0
    %6976 = vmatprep.subr.mxu0 0.0
    %6977 = vmatpush1.msra.mxu0 0.0
    %6978 = vmatprep.subr.mxu0 0.0
    %6979 = vmatpush1.msra.mxu0 0.0
    %6980 = vmatprep.subr.mxu0 0.0
    %6981 = vmatpush1.msra.mxu0 0.0
    %6982 = vmatprep.subr.mxu0 0.0
    %6983 = vmatpush1.msra.mxu0 0.0
    %6984 = vmatprep.mubr.f32.mxu0 0.0
    %6985 = vmatmul.mubr.f32.gmra.mrb[0].mxu0 %v6770
    %v6986 = vpop.f32.mrb[0].mxu0
    %v6987 = vadd.f32 0.0, %v6986
    %v6988 = vpop.f32.mrb[0].mxu0
    %6989 = vdwg.mxu0
    %v6990 = vld [vmem:[%s2518] sm:$0xff]
    %v6991 = vld [vmem:[%s2518 + $0x8] sm:$0xff]
    %v6992 = vld [vmem:[%s2518 + $0x10] sm:$0xff]
    %v6993 = vld [vmem:[%s2518 + $0x18] sm:$0xff]
    %6994 = vmatprep.subr.mxu0 0.0
    %6995 = vmatpush1.msra.mxu0 %v6990
    %6996 = vmatprep.subr.mxu0 0.0
    %6997 = vmatpush1.msra.mxu0 %v6991
    %6998 = vmatprep.subr.mxu0 0.0
    %6999 = vmatpush1.msra.mxu0 %v6992
    %7000 = vmatprep.subr.mxu0 0.0
    %7001 = vmatpush1.msra.mxu0 %v6993
    %7002 = vmatprep.subr.mxu0 0.0
    %7003 = vmatpush1.msra.mxu0 0.0
    %7004 = vmatprep.subr.mxu0 0.0
    %7005 = vmatpush1.msra.mxu0 0.0
    %7006 = vmatprep.subr.mxu0 0.0
    %7007 = vmatpush1.msra.mxu0 0.0
    %7008 = vmatprep.subr.mxu0 0.0
    %7009 = vmatpush1.msra.mxu0 0.0
    %7010 = vmatprep.subr.mxu0 0.0
    %7011 = vmatpush1.msra.mxu0 0.0
    %7012 = vmatprep.subr.mxu0 0.0
    %7013 = vmatpush1.msra.mxu0 0.0
    %7014 = vmatprep.subr.mxu0 0.0
    %7015 = vmatpush1.msra.mxu0 0.0
    %7016 = vmatprep.subr.mxu0 0.0
    %7017 = vmatpush1.msra.mxu0 0.0
    %7018 = vmatprep.subr.mxu0 0.0
    %7019 = vmatpush1.msra.mxu0 0.0
    %7020 = vmatprep.subr.mxu0 0.0
    %7021 = vmatpush1.msra.mxu0 0.0
    %7022 = vmatprep.subr.mxu0 0.0
    %7023 = vmatpush1.msra.mxu0 0.0
    %7024 = vmatprep.subr.mxu0 0.0
    %7025 = vmatpush1.msra.mxu0 0.0
    %7026 = vmatprep.subr.mxu0 0.0
    %7027 = vmatpush1.msra.mxu0 0.0
    %7028 = vmatprep.subr.mxu0 0.0
    %7029 = vmatpush1.msra.mxu0 0.0
    %7030 = vmatprep.subr.mxu0 0.0
    %7031 = vmatpush1.msra.mxu0 0.0
    %7032 = vmatprep.subr.mxu0 0.0
    %7033 = vmatpush1.msra.mxu0 0.0
    %7034 = vmatprep.subr.mxu0 0.0
    %7035 = vmatpush1.msra.mxu0 0.0
    %7036 = vmatprep.subr.mxu0 0.0
    %7037 = vmatpush1.msra.mxu0 0.0
    %7038 = vmatprep.subr.mxu0 0.0
    %7039 = vmatpush1.msra.mxu0 0.0
    %7040 = vmatprep.subr.mxu0 0.0
    %7041 = vmatpush1.msra.mxu0 0.0
    %7042 = vmatprep.subr.mxu0 0.0
    %7043 = vmatpush1.msra.mxu0 0.0
    %7044 = vmatprep.subr.mxu0 0.0
    %7045 = vmatpush1.msra.mxu0 0.0
    %7046 = vmatprep.subr.mxu0 0.0
    %7047 = vmatpush1.msra.mxu0 0.0
    %7048 = vmatprep.subr.mxu0 0.0
    %7049 = vmatpush1.msra.mxu0 0.0
    %7050 = vmatprep.subr.mxu0 0.0
    %7051 = vmatpush1.msra.mxu0 0.0
    %7052 = vmatprep.subr.mxu0 0.0
    %7053 = vmatpush1.msra.mxu0 0.0
    %7054 = vmatprep.subr.mxu0 0.0
    %7055 = vmatpush1.msra.mxu0 0.0
    %7056 = vmatprep.subr.mxu0 0.0
    %7057 = vmatpush1.msra.mxu0 0.0
    %7058 = vmatprep.mubr.f32.mxu0 0.0
    %7059 = vmatmul.mubr.f32.gmra.mrb[0].mxu0 %v6770
    %v7060 = vpop.f32.mrb[0].mxu0
    %v7061 = vadd.f32 0.0, %v7060
    %v7062 = vpop.f32.mrb[0].mxu0
    %7063 = vdwg.mxu0
    %v7064 = vld [vmem:[%s2593] sm:$0x1]
    %v7065 = vld [vmem:[%s2593 + $0x1] sm:$0x1]
    %v7066 = vld [vmem:[%s2593 + $0x2] sm:$0x1]
    %v7067 = vld [vmem:[%s2593 + $0x3] sm:$0x1]
    %v7072 = vlaneseq
    %v7073 = vshrl.u32 %v7072, 7
    %v7074 = vsub.s32 0, %v7073
    %v7075 = vrot.slane %v7064, %v7074
    %v7076 = vlaneseq
    %v7077 = vshrl.u32 %v7076, 7
    %v7078 = vsub.s32 0, %v7077
    %v7079 = vrot.slane %v7065, %v7078
    %v7080 = vlaneseq
    %v7081 = vshrl.u32 %v7080, 7
    %v7082 = vsub.s32 0, %v7081
    %v7083 = vrot.slane %v7066, %v7082
    %v7084 = vlaneseq
    %v7085 = vshrl.u32 %v7084, 7
    %v7086 = vsub.s32 0, %v7085
    %v7087 = vrot.slane %v7067, %v7086
    %v7092 = vadd.f32 %v6839, %v7075
    %v7093 = vadd.f32 %v6913, %v7079
    %v7094 = vadd.f32 %v6987, %v7083
    %v7095 = vadd.f32 %v7061, %v7087
    %v7096 = vld [vmem:[%s2626] sm:$0xff]
    %v7097 = vld [vmem:[%s2626 + $0x8] sm:$0xff]
    %v7098 = vld [vmem:[%s2626 + $0x10] sm:$0xff]
    %v7099 = vld [vmem:[%s2626 + $0x18] sm:$0xff]
    %7100 = vmatprep.subr.mxu0 0.0
    %7101 = vmatpush1.msra.mxu0 %v7096
    %7102 = vmatprep.subr.mxu0 0.0
    %7103 = vmatpush1.msra.mxu0 %v7097
    %7104 = vmatprep.subr.mxu0 0.0
    %7105 = vmatpush1.msra.mxu0 %v7098
    %7106 = vmatprep.subr.mxu0 0.0
    %7107 = vmatpush1.msra.mxu0 %v7099
    %7108 = vmatprep.subr.mxu0 0.0
    %7109 = vmatpush1.msra.mxu0 0.0
    %7110 = vmatprep.subr.mxu0 0.0
    %7111 = vmatpush1.msra.mxu0 0.0
    %7112 = vmatprep.subr.mxu0 0.0
    %7113 = vmatpush1.msra.mxu0 0.0
    %7114 = vmatprep.subr.mxu0 0.0
    %7115 = vmatpush1.msra.mxu0 0.0
    %7116 = vmatprep.subr.mxu0 0.0
    %7117 = vmatpush1.msra.mxu0 0.0
    %7118 = vmatprep.subr.mxu0 0.0
    %7119 = vmatpush1.msra.mxu0 0.0
    %7120 = vmatprep.subr.mxu0 0.0
    %7121 = vmatpush1.msra.mxu0 0.0
    %7122 = vmatprep.subr.mxu0 0.0
    %7123 = vmatpush1.msra.mxu0 0.0
    %7124 = vmatprep.subr.mxu0 0.0
    %7125 = vmatpush1.msra.mxu0 0.0
    %7126 = vmatprep.subr.mxu0 0.0
    %7127 = vmatpush1.msra.mxu0 0.0
    %7128 = vmatprep.subr.mxu0 0.0
    %7129 = vmatpush1.msra.mxu0 0.0
    %7130 = vmatprep.subr.mxu0 0.0
    %7131 = vmatpush1.msra.mxu0 0.0
    %7132 = vmatprep.subr.mxu0 0.0
    %7133 = vmatpush1.msra.mxu0 0.0
    %7134 = vmatprep.subr.mxu0 0.0
    %7135 = vmatpush1.msra.mxu0 0.0
    %7136 = vmatprep.subr.mxu0 0.0
    %7137 = vmatpush1.msra.mxu0 0.0
    %7138 = vmatprep.subr.mxu0 0.0
    %7139 = vmatpush1.msra.mxu0 0.0
    %7140 = vmatprep.subr.mxu0 0.0
    %7141 = vmatpush1.msra.mxu0 0.0
    %7142 = vmatprep.subr.mxu0 0.0
    %7143 = vmatpush1.msra.mxu0 0.0
    %7144 = vmatprep.subr.mxu0 0.0
    %7145 = vmatpush1.msra.mxu0 0.0
    %7146 = vmatprep.subr.mxu0 0.0
    %7147 = vmatpush1.msra.mxu0 0.0
    %7148 = vmatprep.subr.mxu0 0.0
    %7149 = vmatpush1.msra.mxu0 0.0
    %7150 = vmatprep.subr.mxu0 0.0
    %7151 = vmatpush1.msra.mxu0 0.0
    %7152 = vmatprep.subr.mxu0 0.0
    %7153 = vmatpush1.msra.mxu0 0.0
    %7154 = vmatprep.subr.mxu0 0.0
    %7155 = vmatpush1.msra.mxu0 0.0
    %7156 = vmatprep.subr.mxu0 0.0
    %7157 = vmatpush1.msra.mxu0 0.0
    %7158 = vmatprep.subr.mxu0 0.0
    %7159 = vmatpush1.msra.mxu0 0.0
    %7160 = vmatprep.subr.mxu0 0.0
    %7161 = vmatpush1.msra.mxu0 0.0
    %7162 = vmatprep.subr.mxu0 0.0
    %7163 = vmatpush1.msra.mxu0 0.0
    %7164 = vmatprep.mubr.f32.mxu0 0.0
    %7165 = vmatmul.mubr.f32.gmra.mrb[0].mxu0 %v6770
    %v7166 = vpop.f32.mrb[0].mxu0
    %v7167 = vadd.f32 0.0, %v7166
    %v7168 = vpop.f32.mrb[0].mxu0
    %7169 = vdwg.mxu0
    %v7170 = vld [vmem:[%s2701] sm:$0xff]
    %v7171 = vld [vmem:[%s2701 + $0x8] sm:$0xff]
    %v7172 = vld [vmem:[%s2701 + $0x10] sm:$0xff]
    %v7173 = vld [vmem:[%s2701 + $0x18] sm:$0xff]
    %7174 = vmatprep.subr.mxu0 0.0
    %7175 = vmatpush1.msra.mxu0 %v7170
    %7176 = vmatprep.subr.mxu0 0.0
    %7177 = vmatpush1.msra.mxu0 %v7171
    %7178 = vmatprep.subr.mxu0 0.0
    %7179 = vmatpush1.msra.mxu0 %v7172
    %7180 = vmatprep.subr.mxu0 0.0
    %7181 = vmatpush1.msra.mxu0 %v7173
    %7182 = vmatprep.subr.mxu0 0.0
    %7183 = vmatpush1.msra.mxu0 0.0
    %7184 = vmatprep.subr.mxu0 0.0
    %7185 = vmatpush1.msra.mxu0 0.0
    %7186 = vmatprep.subr.mxu0 0.0
    %7187 = vmatpush1.msra.mxu0 0.0
    %7188 = vmatprep.subr.mxu0 0.0
    %7189 = vmatpush1.msra.mxu0 0.0
    %7190 = vmatprep.subr.mxu0 0.0
    %7191 = vmatpush1.msra.mxu0 0.0
    %7192 = vmatprep.subr.mxu0 0.0
    %7193 = vmatpush1.msra.mxu0 0.0
    %7194 = vmatprep.subr.mxu0 0.0
    %7195 = vmatpush1.msra.mxu0 0.0
    %7196 = vmatprep.subr.mxu0 0.0
    %7197 = vmatpush1.msra.mxu0 0.0
    %7198 = vmatprep.subr.mxu0 0.0
    %7199 = vmatpush1.msra.mxu0 0.0
    %7200 = vmatprep.subr.mxu0 0.0
    %7201 = vmatpush1.msra.mxu0 0.0
    %7202 = vmatprep.subr.mxu0 0.0
    %7203 = vmatpush1.msra.mxu0 0.0
    %7204 = vmatprep.subr.mxu0 0.0
    %7205 = vmatpush1.msra.mxu0 0.0
    %7206 = vmatprep.subr.mxu0 0.0
    %7207 = vmatpush1.msra.mxu0 0.0
    %7208 = vmatprep.subr.mxu0 0.0
    %7209 = vmatpush1.msra.mxu0 0.0
    %7210 = vmatprep.subr.mxu0 0.0
    %7211 = vmatpush1.msra.mxu0 0.0
    %7212 = vmatprep.subr.mxu0 0.0
    %7213 = vmatpush1.msra.mxu0 0.0
    %7214 = vmatprep.subr.mxu0 0.0
    %7215 = vmatpush1.msra.mxu0 0.0
    %7216 = vmatprep.subr.mxu0 0.0
    %7217 = vmatpush1.msra.mxu0 0.0
    %7218 = vmatprep.subr.mxu0 0.0
    %7219 = vmatpush1.msra.mxu0 0.0
    %7220 = vmatprep.subr.mxu0 0.0
    %7221 = vmatpush1.msra.mxu0 0.0
    %7222 = vmatprep.subr.mxu0 0.0
    %7223 = vmatpush1.msra.mxu0 0.0
    %7224 = vmatprep.subr.mxu0 0.0
    %7225 = vmatpush1.msra.mxu0 0.0
    %7226 = vmatprep.subr.mxu0 0.0
    %7227 = vmatpush1.msra.mxu0 0.0
    %7228 = vmatprep.subr.mxu0 0.0
    %7229 = vmatpush1.msra.mxu0 0.0
    %7230 = vmatprep.subr.mxu0 0.0
    %7231 = vmatpush1.msra.mxu0 0.0
    %7232 = vmatprep.subr.mxu0 0.0
    %7233 = vmatpush1.msra.mxu0 0.0
    %7234 = vmatprep.subr.mxu0 0.0
    %7235 = vmatpush1.msra.mxu0 0.0
    %7236 = vmatprep.subr.mxu0 0.0
    %7237 = vmatpush1.msra.mxu0 0.0
    %7238 = vmatprep.mubr.f32.mxu0 0.0
    %7239 = vmatmul.mubr.f32.gmra.mrb[0].mxu0 %v6770
    %v7240 = vpop.f32.mrb[0].mxu0
    %v7241 = vadd.f32 0.0, %v7240
    %v7242 = vpop.f32.mrb[0].mxu0
    %7243 = vdwg.mxu0
    %v7244 = vld [vmem:[%s2776] sm:$0xff]
    %v7245 = vld [vmem:[%s2776 + $0x8] sm:$0xff]
    %v7246 = vld [vmem:[%s2776 + $0x10] sm:$0xff]
    %v7247 = vld [vmem:[%s2776 + $0x18] sm:$0xff]
    %7248 = vmatprep.subr.mxu0 0.0
    %7249 = vmatpush1.msra.mxu0 %v7244
    %7250 = vmatprep.subr.mxu0 0.0
    %7251 = vmatpush1.msra.mxu0 %v7245
    %7252 = vmatprep.subr.mxu0 0.0
    %7253 = vmatpush1.msra.mxu0 %v7246
    %7254 = vmatprep.subr.mxu0 0.0
    %7255 = vmatpush1.msra.mxu0 %v7247
    %7256 = vmatprep.subr.mxu0 0.0
    %7257 = vmatpush1.msra.mxu0 0.0
    %7258 = vmatprep.subr.mxu0 0.0
    %7259 = vmatpush1.msra.mxu0 0.0
    %7260 = vmatprep.subr.mxu0 0.0
    %7261 = vmatpush1.msra.mxu0 0.0
    %7262 = vmatprep.subr.mxu0 0.0
    %7263 = vmatpush1.msra.mxu0 0.0
    %7264 = vmatprep.subr.mxu0 0.0
    %7265 = vmatpush1.msra.mxu0 0.0
    %7266 = vmatprep.subr.mxu0 0.0
    %7267 = vmatpush1.msra.mxu0 0.0
    %7268 = vmatprep.subr.mxu0 0.0
    %7269 = vmatpush1.msra.mxu0 0.0
    %7270 = vmatprep.subr.mxu0 0.0
    %7271 = vmatpush1.msra.mxu0 0.0
    %7272 = vmatprep.subr.mxu0 0.0
    %7273 = vmatpush1.msra.mxu0 0.0
    %7274 = vmatprep.subr.mxu0 0.0
    %7275 = vmatpush1.msra.mxu0 0.0
    %7276 = vmatprep.subr.mxu0 0.0
    %7277 = vmatpush1.msra.mxu0 0.0
    %7278 = vmatprep.subr.mxu0 0.0
    %7279 = vmatpush1.msra.mxu0 0.0
    %7280 = vmatprep.subr.mxu0 0.0
    %7281 = vmatpush1.msra.mxu0 0.0
    %7282 = vmatprep.subr.mxu0 0.0
    %7283 = vmatpush1.msra.mxu0 0.0
    %7284 = vmatprep.subr.mxu0 0.0
    %7285 = vmatpush1.msra.mxu0 0.0
    %7286 = vmatprep.subr.mxu0 0.0
    %7287 = vmatpush1.msra.mxu0 0.0
    %7288 = vmatprep.subr.mxu0 0.0
    %7289 = vmatpush1.msra.mxu0 0.0
    %7290 = vmatprep.subr.mxu0 0.0
    %7291 = vmatpush1.msra.mxu0 0.0
    %7292 = vmatprep.subr.mxu0 0.0
    %7293 = vmatpush1.msra.mxu0 0.0
    %7294 = vmatprep.subr.mxu0 0.0
    %7295 = vmatpush1.msra.mxu0 0.0
    %7296 = vmatprep.subr.mxu0 0.0
    %7297 = vmatpush1.msra.mxu0 0.0
    %7298 = vmatprep.subr.mxu0 0.0
    %7299 = vmatpush1.msra.mxu0 0.0
    %7300 = vmatprep.subr.mxu0 0.0
    %7301 = vmatpush1.msra.mxu0 0.0
    %7302 = vmatprep.subr.mxu0 0.0
    %7303 = vmatpush1.msra.mxu0 0.0
    %7304 = vmatprep.subr.mxu0 0.0
    %7305 = vmatpush1.msra.mxu0 0.0
    %7306 = vmatprep.subr.mxu0 0.0
    %7307 = vmatpush1.msra.mxu0 0.0
    %7308 = vmatprep.subr.mxu0 0.0
    %7309 = vmatpush1.msra.mxu0 0.0
    %7310 = vmatprep.subr.mxu0 0.0
    %7311 = vmatpush1.msra.mxu0 0.0
    %7312 = vmatprep.mubr.f32.mxu0 0.0
    %7313 = vmatmul.mubr.f32.gmra.mrb[0].mxu0 %v6770
    %v7314 = vpop.f32.mrb[0].mxu0
    %v7315 = vadd.f32 0.0, %v7314
    %v7316 = vpop.f32.mrb[0].mxu0
    %7317 = vdwg.mxu0
    %v7318 = vld [vmem:[%s2851] sm:$0xff]
    %v7319 = vld [vmem:[%s2851 + $0x8] sm:$0xff]
    %v7320 = vld [vmem:[%s2851 + $0x10] sm:$0xff]
    %v7321 = vld [vmem:[%s2851 + $0x18] sm:$0xff]
    %7322 = vmatprep.subr.mxu0 0.0
    %7323 = vmatpush1.msra.mxu0 %v7318
    %7324 = vmatprep.subr.mxu0 0.0
    %7325 = vmatpush1.msra.mxu0 %v7319
    %7326 = vmatprep.subr.mxu0 0.0
    %7327 = vmatpush1.msra.mxu0 %v7320
    %7328 = vmatprep.subr.mxu0 0.0
    %7329 = vmatpush1.msra.mxu0 %v7321
    %7330 = vmatprep.subr.mxu0 0.0
    %7331 = vmatpush1.msra.mxu0 0.0
    %7332 = vmatprep.subr.mxu0 0.0
    %7333 = vmatpush1.msra.mxu0 0.0
    %7334 = vmatprep.subr.mxu0 0.0
    %7335 = vmatpush1.msra.mxu0 0.0
    %7336 = vmatprep.subr.mxu0 0.0
    %7337 = vmatpush1.msra.mxu0 0.0
    %7338 = vmatprep.subr.mxu0 0.0
    %7339 = vmatpush1.msra.mxu0 0.0
    %7340 = vmatprep.subr.mxu0 0.0
    %7341 = vmatpush1.msra.mxu0 0.0
    %7342 = vmatprep.subr.mxu0 0.0
    %7343 = vmatpush1.msra.mxu0 0.0
    %7344 = vmatprep.subr.mxu0 0.0
    %7345 = vmatpush1.msra.mxu0 0.0
    %7346 = vmatprep.subr.mxu0 0.0
    %7347 = vmatpush1.msra.mxu0 0.0
    %7348 = vmatprep.subr.mxu0 0.0
    %7349 = vmatpush1.msra.mxu0 0.0
    %7350 = vmatprep.subr.mxu0 0.0
    %7351 = vmatpush1.msra.mxu0 0.0
    %7352 = vmatprep.subr.mxu0 0.0
    %7353 = vmatpush1.msra.mxu0 0.0
    %7354 = vmatprep.subr.mxu0 0.0
    %7355 = vmatpush1.msra.mxu0 0.0
    %7356 = vmatprep.subr.mxu0 0.0
    %7357 = vmatpush1.msra.mxu0 0.0
    %7358 = vmatprep.subr.mxu0 0.0
    %7359 = vmatpush1.msra.mxu0 0.0
    %7360 = vmatprep.subr.mxu0 0.0
    %7361 = vmatpush1.msra.mxu0 0.0
    %7362 = vmatprep.subr.mxu0 0.0
    %7363 = vmatpush1.msra.mxu0 0.0
    %7364 = vmatprep.subr.mxu0 0.0
    %7365 = vmatpush1.msra.mxu0 0.0
    %7366 = vmatprep.subr.mxu0 0.0
    %7367 = vmatpush1.msra.mxu0 0.0
    %7368 = vmatprep.subr.mxu0 0.0
    %7369 = vmatpush1.msra.mxu0 0.0
    %7370 = vmatprep.subr.mxu0 0.0
    %7371 = vmatpush1.msra.mxu0 0.0
    %7372 = vmatprep.subr.mxu0 0.0
    %7373 = vmatpush1.msra.mxu0 0.0
    %7374 = vmatprep.subr.mxu0 0.0
    %7375 = vmatpush1.msra.mxu0 0.0
    %7376 = vmatprep.subr.mxu0 0.0
    %7377 = vmatpush1.msra.mxu0 0.0
    %7378 = vmatprep.subr.mxu0 0.0
    %7379 = vmatpush1.msra.mxu0 0.0
    %7380 = vmatprep.subr.mxu0 0.0
    %7381 = vmatpush1.msra.mxu0 0.0
    %7382 = vmatprep.subr.mxu0 0.0
    %7383 = vmatpush1.msra.mxu0 0.0
    %7384 = vmatprep.subr.mxu0 0.0
    %7385 = vmatpush1.msra.mxu0 0.0
    %7386 = vmatprep.mubr.f32.mxu0 0.0
    %7387 = vmatmul.mubr.f32.gmra.mrb[0].mxu0 %v6770
    %v7388 = vpop.f32.mrb[0].mxu0
    %v7389 = vadd.f32 0.0, %v7388
    %v7390 = vpop.f32.mrb[0].mxu0
    %7391 = vdwg.mxu0
    %v7392 = vld [vmem:[%s2926] sm:$0x1]
    %v7393 = vld [vmem:[%s2926 + $0x1] sm:$0x1]
    %v7394 = vld [vmem:[%s2926 + $0x2] sm:$0x1]
    %v7395 = vld [vmem:[%s2926 + $0x3] sm:$0x1]
    %v7400 = vlaneseq
    %v7401 = vshrl.u32 %v7400, 7
    %v7402 = vsub.s32 0, %v7401
    %v7403 = vrot.slane %v7392, %v7402
    %v7404 = vlaneseq
    %v7405 = vshrl.u32 %v7404, 7
    %v7406 = vsub.s32 0, %v7405
    %v7407 = vrot.slane %v7393, %v7406
    %v7408 = vlaneseq
    %v7409 = vshrl.u32 %v7408, 7
    %v7410 = vsub.s32 0, %v7409
    %v7411 = vrot.slane %v7394, %v7410
    %v7412 = vlaneseq
    %v7413 = vshrl.u32 %v7412, 7
    %v7414 = vsub.s32 0, %v7413
    %v7415 = vrot.slane %v7395, %v7414
    %v7420 = vadd.f32 %v7167, %v7403
    %v7421 = vadd.f32 %v7241, %v7407
    %v7422 = vadd.f32 %v7315, %v7411
    %v7423 = vadd.f32 %v7389, %v7415
    %v7424 = vld [vmem:[%s2959] sm:$0xff]
    %v7425 = vld [vmem:[%s2959 + $0x8] sm:$0xff]
    %v7426 = vld [vmem:[%s2959 + $0x10] sm:$0xff]
    %v7427 = vld [vmem:[%s2959 + $0x18] sm:$0xff]
    %7428 = vmatprep.subr.mxu0 0.0
    %7429 = vmatpush1.msra.mxu0 %v7424
    %7430 = vmatprep.subr.mxu0 0.0
    %7431 = vmatpush1.msra.mxu0 %v7425
    %7432 = vmatprep.subr.mxu0 0.0
    %7433 = vmatpush1.msra.mxu0 %v7426
    %7434 = vmatprep.subr.mxu0 0.0
    %7435 = vmatpush1.msra.mxu0 %v7427
    %7436 = vmatprep.subr.mxu0 0.0
    %7437 = vmatpush1.msra.mxu0 0.0
    %7438 = vmatprep.subr.mxu0 0.0
    %7439 = vmatpush1.msra.mxu0 0.0
    %7440 = vmatprep.subr.mxu0 0.0
    %7441 = vmatpush1.msra.mxu0 0.0
    %7442 = vmatprep.subr.mxu0 0.0
    %7443 = vmatpush1.msra.mxu0 0.0
    %7444 = vmatprep.subr.mxu0 0.0
    %7445 = vmatpush1.msra.mxu0 0.0
    %7446 = vmatprep.subr.mxu0 0.0
    %7447 = vmatpush1.msra.mxu0 0.0
    %7448 = vmatprep.subr.mxu0 0.0
    %7449 = vmatpush1.msra.mxu0 0.0
    %7450 = vmatprep.subr.mxu0 0.0
    %7451 = vmatpush1.msra.mxu0 0.0
    %7452 = vmatprep.subr.mxu0 0.0
    %7453 = vmatpush1.msra.mxu0 0.0
    %7454 = vmatprep.subr.mxu0 0.0
    %7455 = vmatpush1.msra.mxu0 0.0
    %7456 = vmatprep.subr.mxu0 0.0
    %7457 = vmatpush1.msra.mxu0 0.0
    %7458 = vmatprep.subr.mxu0 0.0
    %7459 = vmatpush1.msra.mxu0 0.0
    %7460 = vmatprep.subr.mxu0 0.0
    %7461 = vmatpush1.msra.mxu0 0.0
    %7462 = vmatprep.subr.mxu0 0.0
    %7463 = vmatpush1.msra.mxu0 0.0
    %7464 = vmatprep.subr.mxu0 0.0
    %7465 = vmatpush1.msra.mxu0 0.0
    %7466 = vmatprep.subr.mxu0 0.0
    %7467 = vmatpush1.msra.mxu0 0.0
    %7468 = vmatprep.subr.mxu0 0.0
    %7469 = vmatpush1.msra.mxu0 0.0
    %7470 = vmatprep.subr.mxu0 0.0
    %7471 = vmatpush1.msra.mxu0 0.0
    %7472 = vmatprep.subr.mxu0 0.0
    %7473 = vmatpush1.msra.mxu0 0.0
    %7474 = vmatprep.subr.mxu0 0.0
    %7475 = vmatpush1.msra.mxu0 0.0
    %7476 = vmatprep.subr.mxu0 0.0
    %7477 = vmatpush1.msra.mxu0 0.0
    %7478 = vmatprep.subr.mxu0 0.0
    %7479 = vmatpush1.msra.mxu0 0.0
    %7480 = vmatprep.subr.mxu0 0.0
    %7481 = vmatpush1.msra.mxu0 0.0
    %7482 = vmatprep.subr.mxu0 0.0
    %7483 = vmatpush1.msra.mxu0 0.0
    %7484 = vmatprep.subr.mxu0 0.0
    %7485 = vmatpush1.msra.mxu0 0.0
    %7486 = vmatprep.subr.mxu0 0.0
    %7487 = vmatpush1.msra.mxu0 0.0
    %7488 = vmatprep.subr.mxu0 0.0
    %7489 = vmatpush1.msra.mxu0 0.0
    %7490 = vmatprep.subr.mxu0 0.0
    %7491 = vmatpush1.msra.mxu0 0.0
    %7492 = vmatprep.mubr.f32.mxu0 0.0
    %7493 = vmatmul.mubr.f32.gmra.mrb[0].mxu0 %v6770
    %v7494 = vpop.f32.mrb[0].mxu0
    %v7495 = vadd.f32 0.0, %v7494
    %v7496 = vpop.f32.mrb[0].mxu0
    %7497 = vdwg.mxu0
    %v7498 = vld [vmem:[%s3034] sm:$0xff]
    %v7499 = vld [vmem:[%s3034 + $0x8] sm:$0xff]
    %v7500 = vld [vmem:[%s3034 + $0x10] sm:$0xff]
    %v7501 = vld [vmem:[%s3034 + $0x18] sm:$0xff]
    %7502 = vmatprep.subr.mxu0 0.0
    %7503 = vmatpush1.msra.mxu0 %v7498
    %7504 = vmatprep.subr.mxu0 0.0
    %7505 = vmatpush1.msra.mxu0 %v7499
    %7506 = vmatprep.subr.mxu0 0.0
    %7507 = vmatpush1.msra.mxu0 %v7500
    %7508 = vmatprep.subr.mxu0 0.0
    %7509 = vmatpush1.msra.mxu0 %v7501
    %7510 = vmatprep.subr.mxu0 0.0
    %7511 = vmatpush1.msra.mxu0 0.0
    %7512 = vmatprep.subr.mxu0 0.0
    %7513 = vmatpush1.msra.mxu0 0.0
    %7514 = vmatprep.subr.mxu0 0.0
    %7515 = vmatpush1.msra.mxu0 0.0
    %7516 = vmatprep.subr.mxu0 0.0
    %7517 = vmatpush1.msra.mxu0 0.0
    %7518 = vmatprep.subr.mxu0 0.0
    %7519 = vmatpush1.msra.mxu0 0.0
    %7520 = vmatprep.subr.mxu0 0.0
    %7521 = vmatpush1.msra.mxu0 0.0
    %7522 = vmatprep.subr.mxu0 0.0
    %7523 = vmatpush1.msra.mxu0 0.0
    %7524 = vmatprep.subr.mxu0 0.0
    %7525 = vmatpush1.msra.mxu0 0.0
    %7526 = vmatprep.subr.mxu0 0.0
    %7527 = vmatpush1.msra.mxu0 0.0
    %7528 = vmatprep.subr.mxu0 0.0
    %7529 = vmatpush1.msra.mxu0 0.0
    %7530 = vmatprep.subr.mxu0 0.0
    %7531 = vmatpush1.msra.mxu0 0.0
    %7532 = vmatprep.subr.mxu0 0.0
    %7533 = vmatpush1.msra.mxu0 0.0
    %7534 = vmatprep.subr.mxu0 0.0
    %7535 = vmatpush1.msra.mxu0 0.0
    %7536 = vmatprep.subr.mxu0 0.0
    %7537 = vmatpush1.msra.mxu0 0.0
    %7538 = vmatprep.subr.mxu0 0.0
    %7539 = vmatpush1.msra.mxu0 0.0
    %7540 = vmatprep.subr.mxu0 0.0
    %7541 = vmatpush1.msra.mxu0 0.0
    %7542 = vmatprep.subr.mxu0 0.0
    %7543 = vmatpush1.msra.mxu0 0.0
    %7544 = vmatprep.subr.mxu0 0.0
    %7545 = vmatpush1.msra.mxu0 0.0
    %7546 = vmatprep.subr.mxu0 0.0
    %7547 = vmatpush1.msra.mxu0 0.0
    %7548 = vmatprep.subr.mxu0 0.0
    %7549 = vmatpush1.msra.mxu0 0.0
    %7550 = vmatprep.subr.mxu0 0.0
    %7551 = vmatpush1.msra.mxu0 0.0
    %7552 = vmatprep.subr.mxu0 0.0
    %7553 = vmatpush1.msra.mxu0 0.0
    %7554 = vmatprep.subr.mxu0 0.0
    %7555 = vmatpush1.msra.mxu0 0.0
    %7556 = vmatprep.subr.mxu0 0.0
    %7557 = vmatpush1.msra.mxu0 0.0
    %7558 = vmatprep.subr.mxu0 0.0
    %7559 = vmatpush1.msra.mxu0 0.0
    %7560 = vmatprep.subr.mxu0 0.0
    %7561 = vmatpush1.msra.mxu0 0.0
    %7562 = vmatprep.subr.mxu0 0.0
    %7563 = vmatpush1.msra.mxu0 0.0
    %7564 = vmatprep.subr.mxu0 0.0
    %7565 = vmatpush1.msra.mxu0 0.0
    %7566 = vmatprep.mubr.f32.mxu0 0.0
    %7567 = vmatmul.mubr.f32.gmra.mrb[0].mxu0 %v6770
    %v7568 = vpop.f32.mrb[0].mxu0
    %v7569 = vadd.f32 0.0, %v7568
    %v7570 = vpop.f32.mrb[0].mxu0
    %7571 = vdwg.mxu0
    %v7572 = vld [vmem:[%s3109] sm:$0xff]
    %v7573 = vld [vmem:[%s3109 + $0x8] sm:$0xff]
    %v7574 = vld [vmem:[%s3109 + $0x10] sm:$0xff]
    %v7575 = vld [vmem:[%s3109 + $0x18] sm:$0xff]
    %7576 = vmatprep.subr.mxu0 0.0
    %7577 = vmatpush1.msra.mxu0 %v7572
    %7578 = vmatprep.subr.mxu0 0.0
    %7579 = vmatpush1.msra.mxu0 %v7573
    %7580 = vmatprep.subr.mxu0 0.0
    %7581 = vmatpush1.msra.mxu0 %v7574
    %7582 = vmatprep.subr.mxu0 0.0
    %7583 = vmatpush1.msra.mxu0 %v7575
    %7584 = vmatprep.subr.mxu0 0.0
    %7585 = vmatpush1.msra.mxu0 0.0
    %7586 = vmatprep.subr.mxu0 0.0
    %7587 = vmatpush1.msra.mxu0 0.0
    %7588 = vmatprep.subr.mxu0 0.0
    %7589 = vmatpush1.msra.mxu0 0.0
    %7590 = vmatprep.subr.mxu0 0.0
    %7591 = vmatpush1.msra.mxu0 0.0
    %7592 = vmatprep.subr.mxu0 0.0
    %7593 = vmatpush1.msra.mxu0 0.0
    %7594 = vmatprep.subr.mxu0 0.0
    %7595 = vmatpush1.msra.mxu0 0.0
    %7596 = vmatprep.subr.mxu0 0.0
    %7597 = vmatpush1.msra.mxu0 0.0
    %7598 = vmatprep.subr.mxu0 0.0
    %7599 = vmatpush1.msra.mxu0 0.0
    %7600 = vmatprep.subr.mxu0 0.0
    %7601 = vmatpush1.msra.mxu0 0.0
    %7602 = vmatprep.subr.mxu0 0.0
    %7603 = vmatpush1.msra.mxu0 0.0
    %7604 = vmatprep.subr.mxu0 0.0
    %7605 = vmatpush1.msra.mxu0 0.0
    %7606 = vmatprep.subr.mxu0 0.0
    %7607 = vmatpush1.msra.mxu0 0.0
    %7608 = vmatprep.subr.mxu0 0.0
    %7609 = vmatpush1.msra.mxu0 0.0
    %7610 = vmatprep.subr.mxu0 0.0
    %7611 = vmatpush1.msra.mxu0 0.0
    %7612 = vmatprep.subr.mxu0 0.0
    %7613 = vmatpush1.msra.mxu0 0.0
    %7614 = vmatprep.subr.mxu0 0.0
    %7615 = vmatpush1.msra.mxu0 0.0
    %7616 = vmatprep.subr.mxu0 0.0
    %7617 = vmatpush1.msra.mxu0 0.0
    %7618 = vmatprep.subr.mxu0 0.0
    %7619 = vmatpush1.msra.mxu0 0.0
    %7620 = vmatprep.subr.mxu0 0.0
    %7621 = vmatpush1.msra.mxu0 0.0
    %7622 = vmatprep.subr.mxu0 0.0
    %7623 = vmatpush1.msra.mxu0 0.0
    %7624 = vmatprep.subr.mxu0 0.0
    %7625 = vmatpush1.msra.mxu0 0.0
    %7626 = vmatprep.subr.mxu0 0.0
    %7627 = vmatpush1.msra.mxu0 0.0
    %7628 = vmatprep.subr.mxu0 0.0
    %7629 = vmatpush1.msra.mxu0 0.0
    %7630 = vmatprep.subr.mxu0 0.0
    %7631 = vmatpush1.msra.mxu0 0.0
    %7632 = vmatprep.subr.mxu0 0.0
    %7633 = vmatpush1.msra.mxu0 0.0
    %7634 = vmatprep.subr.mxu0 0.0
    %7635 = vmatpush1.msra.mxu0 0.0
    %7636 = vmatprep.subr.mxu0 0.0
    %7637 = vmatpush1.msra.mxu0 0.0
    %7638 = vmatprep.subr.mxu0 0.0
    %7639 = vmatpush1.msra.mxu0 0.0
    %7640 = vmatprep.mubr.f32.mxu0 0.0
    %7641 = vmatmul.mubr.f32.gmra.mrb[0].mxu0 %v6770
    %v7642 = vpop.f32.mrb[0].mxu0
    %v7643 = vadd.f32 0.0, %v7642
    %v7644 = vpop.f32.mrb[0].mxu0
    %7645 = vdwg.mxu0
    %v7646 = vld [vmem:[%s3184] sm:$0xff]
    %v7647 = vld [vmem:[%s3184 + $0x8] sm:$0xff]
    %v7648 = vld [vmem:[%s3184 + $0x10] sm:$0xff]
    %v7649 = vld [vmem:[%s3184 + $0x18] sm:$0xff]
    %7650 = vmatprep.subr.mxu0 0.0
    %7651 = vmatpush1.msra.mxu0 %v7646
    %7652 = vmatprep.subr.mxu0 0.0
    %7653 = vmatpush1.msra.mxu0 %v7647
    %7654 = vmatprep.subr.mxu0 0.0
    %7655 = vmatpush1.msra.mxu0 %v7648
    %7656 = vmatprep.subr.mxu0 0.0
    %7657 = vmatpush1.msra.mxu0 %v7649
    %7658 = vmatprep.subr.mxu0 0.0
    %7659 = vmatpush1.msra.mxu0 0.0
    %7660 = vmatprep.subr.mxu0 0.0
    %7661 = vmatpush1.msra.mxu0 0.0
    %7662 = vmatprep.subr.mxu0 0.0
    %7663 = vmatpush1.msra.mxu0 0.0
    %7664 = vmatprep.subr.mxu0 0.0
    %7665 = vmatpush1.msra.mxu0 0.0
    %7666 = vmatprep.subr.mxu0 0.0
    %7667 = vmatpush1.msra.mxu0 0.0
    %7668 = vmatprep.subr.mxu0 0.0
    %7669 = vmatpush1.msra.mxu0 0.0
    %7670 = vmatprep.subr.mxu0 0.0
    %7671 = vmatpush1.msra.mxu0 0.0
    %7672 = vmatprep.subr.mxu0 0.0
    %7673 = vmatpush1.msra.mxu0 0.0
    %7674 = vmatprep.subr.mxu0 0.0
    %7675 = vmatpush1.msra.mxu0 0.0
    %7676 = vmatprep.subr.mxu0 0.0
    %7677 = vmatpush1.msra.mxu0 0.0
    %7678 = vmatprep.subr.mxu0 0.0
    %7679 = vmatpush1.msra.mxu0 0.0
    %7680 = vmatprep.subr.mxu0 0.0
    %7681 = vmatpush1.msra.mxu0 0.0
    %7682 = vmatprep.subr.mxu0 0.0
    %7683 = vmatpush1.msra.mxu0 0.0
    %7684 = vmatprep.subr.mxu0 0.0
    %7685 = vmatpush1.msra.mxu0 0.0
    %7686 = vmatprep.subr.mxu0 0.0
    %7687 = vmatpush1.msra.mxu0 0.0
    %7688 = vmatprep.subr.mxu0 0.0
    %7689 = vmatpush1.msra.mxu0 0.0
    %7690 = vmatprep.subr.mxu0 0.0
    %7691 = vmatpush1.msra.mxu0 0.0
    %7692 = vmatprep.subr.mxu0 0.0
    %7693 = vmatpush1.msra.mxu0 0.0
    %7694 = vmatprep.subr.mxu0 0.0
    %7695 = vmatpush1.msra.mxu0 0.0
    %7696 = vmatprep.subr.mxu0 0.0
    %7697 = vmatpush1.msra.mxu0 0.0
    %7698 = vmatprep.subr.mxu0 0.0
    %7699 = vmatpush1.msra.mxu0 0.0
    %7700 = vmatprep.subr.mxu0 0.0
    %7701 = vmatpush1.msra.mxu0 0.0
    %7702 = vmatprep.subr.mxu0 0.0
    %7703 = vmatpush1.msra.mxu0 0.0
    %7704 = vmatprep.subr.mxu0 0.0
    %7705 = vmatpush1.msra.mxu0 0.0
    %7706 = vmatprep.subr.mxu0 0.0
    %7707 = vmatpush1.msra.mxu0 0.0
    %7708 = vmatprep.subr.mxu0 0.0
    %7709 = vmatpush1.msra.mxu0 0.0
    %7710 = vmatprep.subr.mxu0 0.0
    %7711 = vmatpush1.msra.mxu0 0.0
    %7712 = vmatprep.subr.mxu0 0.0
    %7713 = vmatpush1.msra.mxu0 0.0
    %7714 = vmatprep.mubr.f32.mxu0 0.0
    %7715 = vmatmul.mubr.f32.gmra.mrb[0].mxu0 %v6770
    %v7716 = vpop.f32.mrb[0].mxu0
    %v7717 = vadd.f32 0.0, %v7716
    %v7718 = vpop.f32.mrb[0].mxu0
    %7719 = vdwg.mxu0
    %v7720 = vld [vmem:[%s3259] sm:$0x1]
    %v7721 = vld [vmem:[%s3259 + $0x1] sm:$0x1]
    %v7722 = vld [vmem:[%s3259 + $0x2] sm:$0x1]
    %v7723 = vld [vmem:[%s3259 + $0x3] sm:$0x1]
    %v7728 = vlaneseq
    %v7729 = vshrl.u32 %v7728, 7
    %v7730 = vsub.s32 0, %v7729
    %v7731 = vrot.slane %v7720, %v7730
    %v7732 = vlaneseq
    %v7733 = vshrl.u32 %v7732, 7
    %v7734 = vsub.s32 0, %v7733
    %v7735 = vrot.slane %v7721, %v7734
    %v7736 = vlaneseq
    %v7737 = vshrl.u32 %v7736, 7
    %v7738 = vsub.s32 0, %v7737
    %v7739 = vrot.slane %v7722, %v7738
    %v7740 = vlaneseq
    %v7741 = vshrl.u32 %v7740, 7
    %v7742 = vsub.s32 0, %v7741
    %v7743 = vrot.slane %v7723, %v7742
    %v7748 = vadd.f32 %v7495, %v7731
    %v7749 = vadd.f32 %v7569, %v7735
    %v7750 = vadd.f32 %v7643, %v7739
    %v7751 = vadd.f32 %v7717, %v7743
    %v7753 = vsel %vm1096, %v7092, 0
    %v7756 = vsel %vm1096, %v7420, 0
    %7758 = vmatprep.subr.mxu0 0.0
    %7759 = vmatpush1.xpose.msra.mxu0 %v7756
    %7760 = vmatprep.subr.mxu0 0.0
    %7761 = vmatpush1.xpose.msra.mxu0 0.0
    %7762 = vmatprep.subr.mxu0 0.0
    %7763 = vmatpush1.xpose.msra.mxu0 0.0
    %7764 = vmatprep.subr.mxu0 0.0
    %7765 = vmatpush1.xpose.msra.mxu0 0.0
    %7766 = vmatprep.subr.mxu0 0.0
    %7767 = vmatpush1.xpose.msra.mxu0 0.0
    %7768 = vmatprep.subr.mxu0 0.0
    %7769 = vmatpush1.xpose.msra.mxu0 0.0
    %7770 = vmatprep.subr.mxu0 0.0
    %7771 = vmatpush1.xpose.msra.mxu0 0.0
    %7772 = vmatprep.subr.mxu0 0.0
    %7773 = vmatpush1.xpose.msra.mxu0 0.0
    %7774 = vmatprep.subr.mxu0 0.0
    %7775 = vmatpush1.xpose.msra.mxu0 0.0
    %7776 = vmatprep.subr.mxu0 0.0
    %7777 = vmatpush1.xpose.msra.mxu0 0.0
    %7778 = vmatprep.subr.mxu0 0.0
    %7779 = vmatpush1.xpose.msra.mxu0 0.0
    %7780 = vmatprep.subr.mxu0 0.0
    %7781 = vmatpush1.xpose.msra.mxu0 0.0
    %7782 = vmatprep.subr.mxu0 0.0
    %7783 = vmatpush1.xpose.msra.mxu0 0.0
    %7784 = vmatprep.subr.mxu0 0.0
    %7785 = vmatpush1.xpose.msra.mxu0 0.0
    %7786 = vmatprep.subr.mxu0 0.0
    %7787 = vmatpush1.xpose.msra.mxu0 0.0
    %7788 = vmatprep.subr.mxu0 0.0
    %7789 = vmatpush1.xpose.msra.mxu0 0.0
    %7790 = vmatprep.subr.mxu0 0.0
    %7791 = vmatpush1.xpose.msra.mxu0 0.0
    %7792 = vmatprep.subr.mxu0 0.0
    %7793 = vmatpush1.xpose.msra.mxu0 0.0
    %7794 = vmatprep.subr.mxu0 0.0
    %7795 = vmatpush1.xpose.msra.mxu0 0.0
    %7796 = vmatprep.subr.mxu0 0.0
    %7797 = vmatpush1.xpose.msra.mxu0 0.0
    %7798 = vmatprep.subr.mxu0 0.0
    %7799 = vmatpush1.xpose.msra.mxu0 0.0
    %7800 = vmatprep.subr.mxu0 0.0
    %7801 = vmatpush1.xpose.msra.mxu0 0.0
    %7802 = vmatprep.subr.mxu0 0.0
    %7803 = vmatpush1.xpose.msra.mxu0 0.0
    %7804 = vmatprep.subr.mxu0 0.0
    %7805 = vmatpush1.xpose.msra.mxu0 0.0
    %7806 = vmatprep.subr.mxu0 0.0
    %7807 = vmatpush1.xpose.msra.mxu0 0.0
    %7808 = vmatprep.subr.mxu0 0.0
    %7809 = vmatpush1.xpose.msra.mxu0 0.0
    %7810 = vmatprep.subr.mxu0 0.0
    %7811 = vmatpush1.xpose.msra.mxu0 0.0
    %7812 = vmatprep.subr.mxu0 0.0
    %7813 = vmatpush1.xpose.msra.mxu0 0.0
    %7814 = vmatprep.subr.mxu0 0.0
    %7815 = vmatpush1.xpose.msra.mxu0 0.0
    %7816 = vmatprep.subr.mxu0 0.0
    %7817 = vmatpush1.xpose.msra.mxu0 0.0
    %7818 = vmatprep.subr.mxu0 0.0
    %7819 = vmatpush1.xpose.msra.mxu0 0.0
    %7820 = vmatprep.subr.mxu0 0.0
    %7821 = vmatpush1.xpose.msra.mxu0 0.0
    %7822 = vmatprep.mubr.f32.mxu0 0.0
    %7823 = vmatmul.mubr.f32.gmra.mrb[0].mxu0 %v7753
    %v7824 = vpop.f32.mrb[0].mxu0
    %v7825 = vadd.f32 %v60, %v7824
    %v7826 = vpop.f32.mrb[0].mxu0
    %7827 = vdwg.mxu0
    %v7829 = vsel %vm1096, %v7093, 0
    %v7832 = vsel %vm1096, %v7421, 0
    %7834 = vmatprep.subr.mxu0 0.0
    %7835 = vmatpush1.xpose.msra.mxu0 %v7832
    %7836 = vmatprep.subr.mxu0 0.0
    %7837 = vmatpush1.xpose.msra.mxu0 0.0
    %7838 = vmatprep.subr.mxu0 0.0
    %7839 = vmatpush1.xpose.msra.mxu0 0.0
    %7840 = vmatprep.subr.mxu0 0.0
    %7841 = vmatpush1.xpose.msra.mxu0 0.0
    %7842 = vmatprep.subr.mxu0 0.0
    %7843 = vmatpush1.xpose.msra.mxu0 0.0
    %7844 = vmatprep.subr.mxu0 0.0
    %7845 = vmatpush1.xpose.msra.mxu0 0.0
    %7846 = vmatprep.subr.mxu0 0.0
    %7847 = vmatpush1.xpose.msra.mxu0 0.0
    %7848 = vmatprep.subr.mxu0 0.0
    %7849 = vmatpush1.xpose.msra.mxu0 0.0
    %7850 = vmatprep.subr.mxu0 0.0
    %7851 = vmatpush1.xpose.msra.mxu0 0.0
    %7852 = vmatprep.subr.mxu0 0.0
    %7853 = vmatpush1.xpose.msra.mxu0 0.0
    %7854 = vmatprep.subr.mxu0 0.0
    %7855 = vmatpush1.xpose.msra.mxu0 0.0
    %7856 = vmatprep.subr.mxu0 0.0
    %7857 = vmatpush1.xpose.msra.mxu0 0.0
    %7858 = vmatprep.subr.mxu0 0.0
    %7859 = vmatpush1.xpose.msra.mxu0 0.0
    %7860 = vmatprep.subr.mxu0 0.0
    %7861 = vmatpush1.xpose.msra.mxu0 0.0
    %7862 = vmatprep.subr.mxu0 0.0
    %7863 = vmatpush1.xpose.msra.mxu0 0.0
    %7864 = vmatprep.subr.mxu0 0.0
    %7865 = vmatpush1.xpose.msra.mxu0 0.0
    %7866 = vmatprep.subr.mxu0 0.0
    %7867 = vmatpush1.xpose.msra.mxu0 0.0
    %7868 = vmatprep.subr.mxu0 0.0
    %7869 = vmatpush1.xpose.msra.mxu0 0.0
    %7870 = vmatprep.subr.mxu0 0.0
    %7871 = vmatpush1.xpose.msra.mxu0 0.0
    %7872 = vmatprep.subr.mxu0 0.0
    %7873 = vmatpush1.xpose.msra.mxu0 0.0
    %7874 = vmatprep.subr.mxu0 0.0
    %7875 = vmatpush1.xpose.msra.mxu0 0.0
    %7876 = vmatprep.subr.mxu0 0.0
    %7877 = vmatpush1.xpose.msra.mxu0 0.0
    %7878 = vmatprep.subr.mxu0 0.0
    %7879 = vmatpush1.xpose.msra.mxu0 0.0
    %7880 = vmatprep.subr.mxu0 0.0
    %7881 = vmatpush1.xpose.msra.mxu0 0.0
    %7882 = vmatprep.subr.mxu0 0.0
    %7883 = vmatpush1.xpose.msra.mxu0 0.0
    %7884 = vmatprep.subr.mxu0 0.0
    %7885 = vmatpush1.xpose.msra.mxu0 0.0
    %7886 = vmatprep.subr.mxu0 0.0
    %7887 = vmatpush1.xpose.msra.mxu0 0.0
    %7888 = vmatprep.subr.mxu0 0.0
    %7889 = vmatpush1.xpose.msra.mxu0 0.0
    %7890 = vmatprep.subr.mxu0 0.0
    %7891 = vmatpush1.xpose.msra.mxu0 0.0
    %7892 = vmatprep.subr.mxu0 0.0
    %7893 = vmatpush1.xpose.msra.mxu0 0.0
    %7894 = vmatprep.subr.mxu0 0.0
    %7895 = vmatpush1.xpose.msra.mxu0 0.0
    %7896 = vmatprep.subr.mxu0 0.0
    %7897 = vmatpush1.xpose.msra.mxu0 0.0
    %7898 = vmatprep.mubr.f32.mxu0 0.0
    %7899 = vmatmul.mubr.f32.gmra.mrb[0].mxu0 %v7829
    %v7900 = vpop.f32.mrb[0].mxu0
    %v7901 = vadd.f32 %v60, %v7900
    %v7902 = vpop.f32.mrb[0].mxu0
    %7903 = vdwg.mxu0
    %v7905 = vsel %vm1096, %v7094, 0
    %v7908 = vsel %vm1096, %v7422, 0
    %7910 = vmatprep.subr.mxu0 0.0
    %7911 = vmatpush1.xpose.msra.mxu0 %v7908
    %7912 = vmatprep.subr.mxu0 0.0
    %7913 = vmatpush1.xpose.msra.mxu0 0.0
    %7914 = vmatprep.subr.mxu0 0.0
    %7915 = vmatpush1.xpose.msra.mxu0 0.0
    %7916 = vmatprep.subr.mxu0 0.0
    %7917 = vmatpush1.xpose.msra.mxu0 0.0
    %7918 = vmatprep.subr.mxu0 0.0
    %7919 = vmatpush1.xpose.msra.mxu0 0.0
    %7920 = vmatprep.subr.mxu0 0.0
    %7921 = vmatpush1.xpose.msra.mxu0 0.0
    %7922 = vmatprep.subr.mxu0 0.0
    %7923 = vmatpush1.xpose.msra.mxu0 0.0
    %7924 = vmatprep.subr.mxu0 0.0
    %7925 = vmatpush1.xpose.msra.mxu0 0.0
    %7926 = vmatprep.subr.mxu0 0.0
    %7927 = vmatpush1.xpose.msra.mxu0 0.0
    %7928 = vmatprep.subr.mxu0 0.0
    %7929 = vmatpush1.xpose.msra.mxu0 0.0
    %7930 = vmatprep.subr.mxu0 0.0
    %7931 = vmatpush1.xpose.msra.mxu0 0.0
    %7932 = vmatprep.subr.mxu0 0.0
    %7933 = vmatpush1.xpose.msra.mxu0 0.0
    %7934 = vmatprep.subr.mxu0 0.0
    %7935 = vmatpush1.xpose.msra.mxu0 0.0
    %7936 = vmatprep.subr.mxu0 0.0
    %7937 = vmatpush1.xpose.msra.mxu0 0.0
    %7938 = vmatprep.subr.mxu0 0.0
    %7939 = vmatpush1.xpose.msra.mxu0 0.0
    %7940 = vmatprep.subr.mxu0 0.0
    %7941 = vmatpush1.xpose.msra.mxu0 0.0
    %7942 = vmatprep.subr.mxu0 0.0
    %7943 = vmatpush1.xpose.msra.mxu0 0.0
    %7944 = vmatprep.subr.mxu0 0.0
    %7945 = vmatpush1.xpose.msra.mxu0 0.0
    %7946 = vmatprep.subr.mxu0 0.0
    %7947 = vmatpush1.xpose.msra.mxu0 0.0
    %7948 = vmatprep.subr.mxu0 0.0
    %7949 = vmatpush1.xpose.msra.mxu0 0.0
    %7950 = vmatprep.subr.mxu0 0.0
    %7951 = vmatpush1.xpose.msra.mxu0 0.0
    %7952 = vmatprep.subr.mxu0 0.0
    %7953 = vmatpush1.xpose.msra.mxu0 0.0
    %7954 = vmatprep.subr.mxu0 0.0
    %7955 = vmatpush1.xpose.msra.mxu0 0.0
    %7956 = vmatprep.subr.mxu0 0.0
    %7957 = vmatpush1.xpose.msra.mxu0 0.0
    %7958 = vmatprep.subr.mxu0 0.0
    %7959 = vmatpush1.xpose.msra.mxu0 0.0
    %7960 = vmatprep.subr.mxu0 0.0
    %7961 = vmatpush1.xpose.msra.mxu0 0.0
    %7962 = vmatprep.subr.mxu0 0.0
    %7963 = vmatpush1.xpose.msra.mxu0 0.0
    %7964 = vmatprep.subr.mxu0 0.0
    %7965 = vmatpush1.xpose.msra.mxu0 0.0
    %7966 = vmatprep.subr.mxu0 0.0
    %7967 = vmatpush1.xpose.msra.mxu0 0.0
    %7968 = vmatprep.subr.mxu0 0.0
    %7969 = vmatpush1.xpose.msra.mxu0 0.0
    %7970 = vmatprep.subr.mxu0 0.0
    %7971 = vmatpush1.xpose.msra.mxu0 0.0
    %7972 = vmatprep.subr.mxu0 0.0
    %7973 = vmatpush1.xpose.msra.mxu0 0.0
    %7974 = vmatprep.mubr.f32.mxu0 0.0
    %7975 = vmatmul.mubr.f32.gmra.mrb[0].mxu0 %v7905
    %v7976 = vpop.f32.mrb[0].mxu0
    %v7977 = vadd.f32 %v60, %v7976
    %v7978 = vpop.f32.mrb[0].mxu0
    %7979 = vdwg.mxu0
    %v7981 = vsel %vm1096, %v7095, 0
    %v7984 = vsel %vm1096, %v7423, 0
    %7986 = vmatprep.subr.mxu0 0.0
    %7987 = vmatpush1.xpose.msra.mxu0 %v7984
    %7988 = vmatprep.subr.mxu0 0.0
    %7989 = vmatpush1.xpose.msra.mxu0 0.0
    %7990 = vmatprep.subr.mxu0 0.0
    %7991 = vmatpush1.xpose.msra.mxu0 0.0
    %7992 = vmatprep.subr.mxu0 0.0
    %7993 = vmatpush1.xpose.msra.mxu0 0.0
    %7994 = vmatprep.subr.mxu0 0.0
    %7995 = vmatpush1.xpose.msra.mxu0 0.0
    %7996 = vmatprep.subr.mxu0 0.0
    %7997 = vmatpush1.xpose.msra.mxu0 0.0
    %7998 = vmatprep.subr.mxu0 0.0
    %7999 = vmatpush1.xpose.msra.mxu0 0.0
    %8000 = vmatprep.subr.mxu0 0.0
    %8001 = vmatpush1.xpose.msra.mxu0 0.0
    %8002 = vmatprep.subr.mxu0 0.0
    %8003 = vmatpush1.xpose.msra.mxu0 0.0
    %8004 = vmatprep.subr.mxu0 0.0
    %8005 = vmatpush1.xpose.msra.mxu0 0.0
    %8006 = vmatprep.subr.mxu0 0.0
    %8007 = vmatpush1.xpose.msra.mxu0 0.0
    %8008 = vmatprep.subr.mxu0 0.0
    %8009 = vmatpush1.xpose.msra.mxu0 0.0
    %8010 = vmatprep.subr.mxu0 0.0
    %8011 = vmatpush1.xpose.msra.mxu0 0.0
    %8012 = vmatprep.subr.mxu0 0.0
    %8013 = vmatpush1.xpose.msra.mxu0 0.0
    %8014 = vmatprep.subr.mxu0 0.0
    %8015 = vmatpush1.xpose.msra.mxu0 0.0
    %8016 = vmatprep.subr.mxu0 0.0
    %8017 = vmatpush1.xpose.msra.mxu0 0.0
    %8018 = vmatprep.subr.mxu0 0.0
    %8019 = vmatpush1.xpose.msra.mxu0 0.0
    %8020 = vmatprep.subr.mxu0 0.0
    %8021 = vmatpush1.xpose.msra.mxu0 0.0
    %8022 = vmatprep.subr.mxu0 0.0
    %8023 = vmatpush1.xpose.msra.mxu0 0.0
    %8024 = vmatprep.subr.mxu0 0.0
    %8025 = vmatpush1.xpose.msra.mxu0 0.0
    %8026 = vmatprep.subr.mxu0 0.0
    %8027 = vmatpush1.xpose.msra.mxu0 0.0
    %8028 = vmatprep.subr.mxu0 0.0
    %8029 = vmatpush1.xpose.msra.mxu0 0.0
    %8030 = vmatprep.subr.mxu0 0.0
    %8031 = vmatpush1.xpose.msra.mxu0 0.0
    %8032 = vmatprep.subr.mxu0 0.0
    %8033 = vmatpush1.xpose.msra.mxu0 0.0
    %8034 = vmatprep.subr.mxu0 0.0
    %8035 = vmatpush1.xpose.msra.mxu0 0.0
    %8036 = vmatprep.subr.mxu0 0.0
    %8037 = vmatpush1.xpose.msra.mxu0 0.0
    %8038 = vmatprep.subr.mxu0 0.0
    %8039 = vmatpush1.xpose.msra.mxu0 0.0
    %8040 = vmatprep.subr.mxu0 0.0
    %8041 = vmatpush1.xpose.msra.mxu0 0.0
    %8042 = vmatprep.subr.mxu0 0.0
    %8043 = vmatpush1.xpose.msra.mxu0 0.0
    %8044 = vmatprep.subr.mxu0 0.0
    %8045 = vmatpush1.xpose.msra.mxu0 0.0
    %8046 = vmatprep.subr.mxu0 0.0
    %8047 = vmatpush1.xpose.msra.mxu0 0.0
    %8048 = vmatprep.subr.mxu0 0.0
    %8049 = vmatpush1.xpose.msra.mxu0 0.0
    %8050 = vmatprep.mubr.f32.mxu0 0.0
    %8051 = vmatmul.mubr.f32.gmra.mrb[0].mxu0 %v7981
    %v8052 = vpop.f32.mrb[0].mxu0
    %v8053 = vadd.f32 %v60, %v8052
    %v8054 = vpop.f32.mrb[0].mxu0
    %8055 = vdwg.mxu0
    %v8056 = vsel %vm1096, %v7825, -inf
    %8057 = vmax.xlane.f32.xlu0 %v8056
    %v8058 = vpop.xlane.xlu0 %8057
    %v8059 = vsel %vm1096, %v7901, -inf
    %8060 = vmax.xlane.f32.xlu0 %v8059
    %v8061 = vpop.xlane.xlu0 %8060
    %v8062 = vsel %vm1096, %v7977, -inf
    %8063 = vmax.xlane.f32.xlu0 %v8062
    %v8064 = vpop.xlane.xlu0 %8063
    %v8065 = vsel %vm1096, %v8053, -inf
    %8066 = vmax.xlane.f32.xlu0 %v8065
    %v8067 = vpop.xlane.xlu0 %8066
    %v8068 = vsub.f32 %v7825, %v8058
    %v8069 = vsub.f32 %v7901, %v8061
    %v8070 = vsub.f32 %v7977, %v8064
    %v8071 = vsub.f32 %v8053, %v8067
    %v8072 = vmul.f32 %v8068, 1.442695
    %v8073 = vpow.pop %v8072
    %v8074 = vmul.f32 %v8069, 1.442695
    %v8075 = vpow.pop %v8074
    %v8076 = vmul.f32 %v8070, 1.442695
    %v8077 = vpow.pop %v8076
    %v8078 = vmul.f32 %v8071, 1.442695
    %v8079 = vpow.pop %v8078
    %v8080 = vsel %vm1096, %v8073, 0.0
    %8081 = vadd.xlane.f32.xlu0 %v8080
    %v8082 = vpop.xlane.xlu0 %8081
    %v8083 = vsel %vm1096, %v8075, 0.0
    %8084 = vadd.xlane.f32.xlu0 %v8083
    %v8085 = vpop.xlane.xlu0 %8084
    %v8086 = vsel %vm1096, %v8077, 0.0
    %8087 = vadd.xlane.f32.xlu0 %v8086
    %v8088 = vpop.xlane.xlu0 %8087
    %v8089 = vsel %vm1096, %v8079, 0.0
    %8090 = vadd.xlane.f32.xlu0 %v8089
    %v8091 = vpop.xlane.xlu0 %8090
    %v8092 = vrcp.pop %v8082
    %v8093 = vrcp.pop %v8085
    %v8094 = vrcp.pop %v8088
    %v8095 = vrcp.pop %v8091
    %v8096 = vmul.f32 %v8082, %v8092
    %v8097 = vmul.f32 %v8085, %v8093
    %v8098 = vmul.f32 %v8088, %v8094
    %v8099 = vmul.f32 %v8091, %v8095
    %v8100 = vsub.f32 2.0, %v8096
    %v8101 = vsub.f32 2.0, %v8097
    %v8102 = vsub.f32 2.0, %v8098
    %v8103 = vsub.f32 2.0, %v8099
    %v8104 = vmul.f32 %v8092, %v8100
    %v8105 = vmul.f32 %v8093, %v8101
    %v8106 = vmul.f32 %v8094, %v8102
    %v8107 = vmul.f32 %v8095, %v8103
    %v8108 = vmul.f32 %v8073, %v8104
    %v8109 = vmul.f32 %v8075, %v8105
    %v8110 = vmul.f32 %v8077, %v8106
    %v8111 = vmul.f32 %v8079, %v8107
    %v8113 = vsel %vm1096, %v8108, 0
    %8115 = vmatprep.subr.mxu0 0.0
    %8116 = vmatpush1.msra.mxu0 %v7748
    %8117 = vmatprep.subr.mxu0 0.0
    %8118 = vmatpush1.msra.mxu0 0.0
    %8119 = vmatprep.subr.mxu0 0.0
    %8120 = vmatpush1.msra.mxu0 0.0
    %8121 = vmatprep.subr.mxu0 0.0
    %8122 = vmatpush1.msra.mxu0 0.0
    %8123 = vmatprep.subr.mxu0 0.0
    %8124 = vmatpush1.msra.mxu0 0.0
    %8125 = vmatprep.subr.mxu0 0.0
    %8126 = vmatpush1.msra.mxu0 0.0
    %8127 = vmatprep.subr.mxu0 0.0
    %8128 = vmatpush1.msra.mxu0 0.0
    %8129 = vmatprep.subr.mxu0 0.0
    %8130 = vmatpush1.msra.mxu0 0.0
    %8131 = vmatprep.subr.mxu0 0.0
    %8132 = vmatpush1.msra.mxu0 0.0
    %8133 = vmatprep.subr.mxu0 0.0
    %8134 = vmatpush1.msra.mxu0 0.0
    %8135 = vmatprep.subr.mxu0 0.0
    %8136 = vmatpush1.msra.mxu0 0.0
    %8137 = vmatprep.subr.mxu0 0.0
    %8138 = vmatpush1.msra.mxu0 0.0
    %8139 = vmatprep.subr.mxu0 0.0
    %8140 = vmatpush1.msra.mxu0 0.0
    %8141 = vmatprep.subr.mxu0 0.0
    %8142 = vmatpush1.msra.mxu0 0.0
    %8143 = vmatprep.subr.mxu0 0.0
    %8144 = vmatpush1.msra.mxu0 0.0
    %8145 = vmatprep.subr.mxu0 0.0
    %8146 = vmatpush1.msra.mxu0 0.0
    %8147 = vmatprep.subr.mxu0 0.0
    %8148 = vmatpush1.msra.mxu0 0.0
    %8149 = vmatprep.subr.mxu0 0.0
    %8150 = vmatpush1.msra.mxu0 0.0
    %8151 = vmatprep.subr.mxu0 0.0
    %8152 = vmatpush1.msra.mxu0 0.0
    %8153 = vmatprep.subr.mxu0 0.0
    %8154 = vmatpush1.msra.mxu0 0.0
    %8155 = vmatprep.subr.mxu0 0.0
    %8156 = vmatpush1.msra.mxu0 0.0
    %8157 = vmatprep.subr.mxu0 0.0
    %8158 = vmatpush1.msra.mxu0 0.0
    %8159 = vmatprep.subr.mxu0 0.0
    %8160 = vmatpush1.msra.mxu0 0.0
    %8161 = vmatprep.subr.mxu0 0.0
    %8162 = vmatpush1.msra.mxu0 0.0
    %8163 = vmatprep.subr.mxu0 0.0
    %8164 = vmatpush1.msra.mxu0 0.0
    %8165 = vmatprep.subr.mxu0 0.0
    %8166 = vmatpush1.msra.mxu0 0.0
    %8167 = vmatprep.subr.mxu0 0.0
    %8168 = vmatpush1.msra.mxu0 0.0
    %8169 = vmatprep.subr.mxu0 0.0
    %8170 = vmatpush1.msra.mxu0 0.0
    %8171 = vmatprep.subr.mxu0 0.0
    %8172 = vmatpush1.msra.mxu0 0.0
    %8173 = vmatprep.subr.mxu0 0.0
    %8174 = vmatpush1.msra.mxu0 0.0
    %8175 = vmatprep.subr.mxu0 0.0
    %8176 = vmatpush1.msra.mxu0 0.0
    %8177 = vmatprep.subr.mxu0 0.0
    %8178 = vmatpush1.msra.mxu0 0.0
    %8179 = vmatprep.mubr.f32.mxu0 0.0
    %8180 = vmatmul.mubr.f32.gmra.mrb[0].mxu0 %v8113
    %v8181 = vpop.f32.mrb[0].mxu0
    %v8182 = vadd.f32 0.0, %v8181
    %v8183 = vpop.f32.mrb[0].mxu0
    %8184 = vdwg.mxu0
    %v8186 = vsel %vm1096, %v8109, 0
    %8188 = vmatprep.subr.mxu0 0.0
    %8189 = vmatpush1.msra.mxu0 %v7749
    %8190 = vmatprep.subr.mxu0 0.0
    %8191 = vmatpush1.msra.mxu0 0.0
    %8192 = vmatprep.subr.mxu0 0.0
    %8193 = vmatpush1.msra.mxu0 0.0
    %8194 = vmatprep.subr.mxu0 0.0
    %8195 = vmatpush1.msra.mxu0 0.0
    %8196 = vmatprep.subr.mxu0 0.0
    %8197 = vmatpush1.msra.mxu0 0.0
    %8198 = vmatprep.subr.mxu0 0.0
    %8199 = vmatpush1.msra.mxu0 0.0
    %8200 = vmatprep.subr.mxu0 0.0
    %8201 = vmatpush1.msra.mxu0 0.0
    %8202 = vmatprep.subr.mxu0 0.0
    %8203 = vmatpush1.msra.mxu0 0.0
    %8204 = vmatprep.subr.mxu0 0.0
    %8205 = vmatpush1.msra.mxu0 0.0
    %8206 = vmatprep.subr.mxu0 0.0
    %8207 = vmatpush1.msra.mxu0 0.0
    %8208 = vmatprep.subr.mxu0 0.0
    %8209 = vmatpush1.msra.mxu0 0.0
    %8210 = vmatprep.subr.mxu0 0.0
    %8211 = vmatpush1.msra.mxu0 0.0
    %8212 = vmatprep.subr.mxu0 0.0
    %8213 = vmatpush1.msra.mxu0 0.0
    %8214 = vmatprep.subr.mxu0 0.0
    %8215 = vmatpush1.msra.mxu0 0.0
    %8216 = vmatprep.subr.mxu0 0.0
    %8217 = vmatpush1.msra.mxu0 0.0
    %8218 = vmatprep.subr.mxu0 0.0
    %8219 = vmatpush1.msra.mxu0 0.0
    %8220 = vmatprep.subr.mxu0 0.0
    %8221 = vmatpush1.msra.mxu0 0.0
    %8222 = vmatprep.subr.mxu0 0.0
    %8223 = vmatpush1.msra.mxu0 0.0
    %8224 = vmatprep.subr.mxu0 0.0
    %8225 = vmatpush1.msra.mxu0 0.0
    %8226 = vmatprep.subr.mxu0 0.0
    %8227 = vmatpush1.msra.mxu0 0.0
    %8228 = vmatprep.subr.mxu0 0.0
    %8229 = vmatpush1.msra.mxu0 0.0
    %8230 = vmatprep.subr.mxu0 0.0
    %8231 = vmatpush1.msra.mxu0 0.0
    %8232 = vmatprep.subr.mxu0 0.0
    %8233 = vmatpush1.msra.mxu0 0.0
    %8234 = vmatprep.subr.mxu0 0.0
    %8235 = vmatpush1.msra.mxu0 0.0
    %8236 = vmatprep.subr.mxu0 0.0
    %8237 = vmatpush1.msra.mxu0 0.0
    %8238 = vmatprep.subr.mxu0 0.0
    %8239 = vmatpush1.msra.mxu0 0.0
    %8240 = vmatprep.subr.mxu0 0.0
    %8241 = vmatpush1.msra.mxu0 0.0
    %8242 = vmatprep.subr.mxu0 0.0
    %8243 = vmatpush1.msra.mxu0 0.0
    %8244 = vmatprep.subr.mxu0 0.0
    %8245 = vmatpush1.msra.mxu0 0.0
    %8246 = vmatprep.subr.mxu0 0.0
    %8247 = vmatpush1.msra.mxu0 0.0
    %8248 = vmatprep.subr.mxu0 0.0
    %8249 = vmatpush1.msra.mxu0 0.0
    %8250 = vmatprep.subr.mxu0 0.0
    %8251 = vmatpush1.msra.mxu0 0.0
    %8252 = vmatprep.mubr.f32.mxu0 0.0
    %8253 = vmatmul.mubr.f32.gmra.mrb[0].mxu0 %v8186
    %v8254 = vpop.f32.mrb[0].mxu0
    %v8255 = vadd.f32 0.0, %v8254
    %v8256 = vpop.f32.mrb[0].mxu0
    %8257 = vdwg.mxu0
    %v8259 = vsel %vm1096, %v8110, 0
    %8261 = vmatprep.subr.mxu0 0.0
    %8262 = vmatpush1.msra.mxu0 %v7750
    %8263 = vmatprep.subr.mxu0 0.0
    %8264 = vmatpush1.msra.mxu0 0.0
    %8265 = vmatprep.subr.mxu0 0.0
    %8266 = vmatpush1.msra.mxu0 0.0
    %8267 = vmatprep.subr.mxu0 0.0
    %8268 = vmatpush1.msra.mxu0 0.0
    %8269 = vmatprep.subr.mxu0 0.0
    %8270 = vmatpush1.msra.mxu0 0.0
    %8271 = vmatprep.subr.mxu0 0.0
    %8272 = vmatpush1.msra.mxu0 0.0
    %8273 = vmatprep.subr.mxu0 0.0
    %8274 = vmatpush1.msra.mxu0 0.0
    %8275 = vmatprep.subr.mxu0 0.0
    %8276 = vmatpush1.msra.mxu0 0.0
    %8277 = vmatprep.subr.mxu0 0.0
    %8278 = vmatpush1.msra.mxu0 0.0
    %8279 = vmatprep.subr.mxu0 0.0
    %8280 = vmatpush1.msra.mxu0 0.0
    %8281 = vmatprep.subr.mxu0 0.0
    %8282 = vmatpush1.msra.mxu0 0.0
    %8283 = vmatprep.subr.mxu0 0.0
    %8284 = vmatpush1.msra.mxu0 0.0
    %8285 = vmatprep.subr.mxu0 0.0
    %8286 = vmatpush1.msra.mxu0 0.0
    %8287 = vmatprep.subr.mxu0 0.0
    %8288 = vmatpush1.msra.mxu0 0.0
    %8289 = vmatprep.subr.mxu0 0.0
    %8290 = vmatpush1.msra.mxu0 0.0
    %8291 = vmatprep.subr.mxu0 0.0
    %8292 = vmatpush1.msra.mxu0 0.0
    %8293 = vmatprep.subr.mxu0 0.0
    %8294 = vmatpush1.msra.mxu0 0.0
    %8295 = vmatprep.subr.mxu0 0.0
    %8296 = vmatpush1.msra.mxu0 0.0
    %8297 = vmatprep.subr.mxu0 0.0
    %8298 = vmatpush1.msra.mxu0 0.0
    %8299 = vmatprep.subr.mxu0 0.0
    %8300 = vmatpush1.msra.mxu0 0.0
    %8301 = vmatprep.subr.mxu0 0.0
    %8302 = vmatpush1.msra.mxu0 0.0
    %8303 = vmatprep.subr.mxu0 0.0
    %8304 = vmatpush1.msra.mxu0 0.0
    %8305 = vmatprep.subr.mxu0 0.0
    %8306 = vmatpush1.msra.mxu0 0.0
    %8307 = vmatprep.subr.mxu0 0.0
    %8308 = vmatpush1.msra.mxu0 0.0
    %8309 = vmatprep.subr.mxu0 0.0
    %8310 = vmatpush1.msra.mxu0 0.0
    %8311 = vmatprep.subr.mxu0 0.0
    %8312 = vmatpush1.msra.mxu0 0.0
    %8313 = vmatprep.subr.mxu0 0.0
    %8314 = vmatpush1.msra.mxu0 0.0
    %8315 = vmatprep.subr.mxu0 0.0
    %8316 = vmatpush1.msra.mxu0 0.0
    %8317 = vmatprep.subr.mxu0 0.0
    %8318 = vmatpush1.msra.mxu0 0.0
    %8319 = vmatprep.subr.mxu0 0.0
    %8320 = vmatpush1.msra.mxu0 0.0
    %8321 = vmatprep.subr.mxu0 0.0
    %8322 = vmatpush1.msra.mxu0 0.0
    %8323 = vmatprep.subr.mxu0 0.0
    %8324 = vmatpush1.msra.mxu0 0.0
    %8325 = vmatprep.mubr.f32.mxu0 0.0
    %8326 = vmatmul.mubr.f32.gmra.mrb[0].mxu0 %v8259
    %v8327 = vpop.f32.mrb[0].mxu0
    %v8328 = vadd.f32 0.0, %v8327
    %v8329 = vpop.f32.mrb[0].mxu0
    %8330 = vdwg.mxu0
    %v8332 = vsel %vm1096, %v8111, 0
    %8334 = vmatprep.subr.mxu0 0.0
    %8335 = vmatpush1.msra.mxu0 %v7751
    %8336 = vmatprep.subr.mxu0 0.0
    %8337 = vmatpush1.msra.mxu0 0.0
    %8338 = vmatprep.subr.mxu0 0.0
    %8339 = vmatpush1.msra.mxu0 0.0
    %8340 = vmatprep.subr.mxu0 0.0
    %8341 = vmatpush1.msra.mxu0 0.0
    %8342 = vmatprep.subr.mxu0 0.0
    %8343 = vmatpush1.msra.mxu0 0.0
    %8344 = vmatprep.subr.mxu0 0.0
    %8345 = vmatpush1.msra.mxu0 0.0
    %8346 = vmatprep.subr.mxu0 0.0
    %8347 = vmatpush1.msra.mxu0 0.0
    %8348 = vmatprep.subr.mxu0 0.0
    %8349 = vmatpush1.msra.mxu0 0.0
    %8350 = vmatprep.subr.mxu0 0.0
    %8351 = vmatpush1.msra.mxu0 0.0
    %8352 = vmatprep.subr.mxu0 0.0
    %8353 = vmatpush1.msra.mxu0 0.0
    %8354 = vmatprep.subr.mxu0 0.0
    %8355 = vmatpush1.msra.mxu0 0.0
    %8356 = vmatprep.subr.mxu0 0.0
    %8357 = vmatpush1.msra.mxu0 0.0
    %8358 = vmatprep.subr.mxu0 0.0
    %8359 = vmatpush1.msra.mxu0 0.0
    %8360 = vmatprep.subr.mxu0 0.0
    %8361 = vmatpush1.msra.mxu0 0.0
    %8362 = vmatprep.subr.mxu0 0.0
    %8363 = vmatpush1.msra.mxu0 0.0
    %8364 = vmatprep.subr.mxu0 0.0
    %8365 = vmatpush1.msra.mxu0 0.0
    %8366 = vmatprep.subr.mxu0 0.0
    %8367 = vmatpush1.msra.mxu0 0.0
    %8368 = vmatprep.subr.mxu0 0.0
    %8369 = vmatpush1.msra.mxu0 0.0
    %8370 = vmatprep.subr.mxu0 0.0
    %8371 = vmatpush1.msra.mxu0 0.0
    %8372 = vmatprep.subr.mxu0 0.0
    %8373 = vmatpush1.msra.mxu0 0.0
    %8374 = vmatprep.subr.mxu0 0.0
    %8375 = vmatpush1.msra.mxu0 0.0
    %8376 = vmatprep.subr.mxu0 0.0
    %8377 = vmatpush1.msra.mxu0 0.0
    %8378 = vmatprep.subr.mxu0 0.0
    %8379 = vmatpush1.msra.mxu0 0.0
    %8380 = vmatprep.subr.mxu0 0.0
    %8381 = vmatpush1.msra.mxu0 0.0
    %8382 = vmatprep.subr.mxu0 0.0
    %8383 = vmatpush1.msra.mxu0 0.0
    %8384 = vmatprep.subr.mxu0 0.0
    %8385 = vmatpush1.msra.mxu0 0.0
    %8386 = vmatprep.subr.mxu0 0.0
    %8387 = vmatpush1.msra.mxu0 0.0
    %8388 = vmatprep.subr.mxu0 0.0
    %8389 = vmatpush1.msra.mxu0 0.0
    %8390 = vmatprep.subr.mxu0 0.0
    %8391 = vmatpush1.msra.mxu0 0.0
    %8392 = vmatprep.subr.mxu0 0.0
    %8393 = vmatpush1.msra.mxu0 0.0
    %8394 = vmatprep.subr.mxu0 0.0
    %8395 = vmatpush1.msra.mxu0 0.0
    %8396 = vmatprep.subr.mxu0 0.0
    %8397 = vmatpush1.msra.mxu0 0.0
    %8398 = vmatprep.mubr.f32.mxu0 0.0
    %8399 = vmatmul.mubr.f32.gmra.mrb[0].mxu0 %v8332
    %v8400 = vpop.f32.mrb[0].mxu0
    %v8401 = vadd.f32 0.0, %v8400
    %v8402 = vpop.f32.mrb[0].mxu0
    %8403 = vdwg.mxu0
    %v8404 = vld [vmem:[%s3944] sm:$0xff]
    %v8405 = vld [vmem:[%s3944 + $0x8] sm:$0xff]
    %v8406 = vld [vmem:[%s3944 + $0x10] sm:$0xff]
    %v8407 = vld [vmem:[%s3944 + $0x18] sm:$0xff]
    %v8409 = vsel %vm1096, %v8182, 0
    %8411 = vmatprep.subr.mxu0 0.0
    %8412 = vmatpush1.msra.mxu0 %v8404
    %8413 = vmatprep.subr.mxu0 0.0
    %8414 = vmatpush1.msra.mxu0 0.0
    %8415 = vmatprep.subr.mxu0 0.0
    %8416 = vmatpush1.msra.mxu0 0.0
    %8417 = vmatprep.subr.mxu0 0.0
    %8418 = vmatpush1.msra.mxu0 0.0
    %8419 = vmatprep.subr.mxu0 0.0
    %8420 = vmatpush1.msra.mxu0 0.0
    %8421 = vmatprep.subr.mxu0 0.0
    %8422 = vmatpush1.msra.mxu0 0.0
    %8423 = vmatprep.subr.mxu0 0.0
    %8424 = vmatpush1.msra.mxu0 0.0
    %8425 = vmatprep.subr.mxu0 0.0
    %8426 = vmatpush1.msra.mxu0 0.0
    %8427 = vmatprep.subr.mxu0 0.0
    %8428 = vmatpush1.msra.mxu0 0.0
    %8429 = vmatprep.subr.mxu0 0.0
    %8430 = vmatpush1.msra.mxu0 0.0
    %8431 = vmatprep.subr.mxu0 0.0
    %8432 = vmatpush1.msra.mxu0 0.0
    %8433 = vmatprep.subr.mxu0 0.0
    %8434 = vmatpush1.msra.mxu0 0.0
    %8435 = vmatprep.subr.mxu0 0.0
    %8436 = vmatpush1.msra.mxu0 0.0
    %8437 = vmatprep.subr.mxu0 0.0
    %8438 = vmatpush1.msra.mxu0 0.0
    %8439 = vmatprep.subr.mxu0 0.0
    %8440 = vmatpush1.msra.mxu0 0.0
    %8441 = vmatprep.subr.mxu0 0.0
    %8442 = vmatpush1.msra.mxu0 0.0
    %8443 = vmatprep.subr.mxu0 0.0
    %8444 = vmatpush1.msra.mxu0 0.0
    %8445 = vmatprep.subr.mxu0 0.0
    %8446 = vmatpush1.msra.mxu0 0.0
    %8447 = vmatprep.subr.mxu0 0.0
    %8448 = vmatpush1.msra.mxu0 0.0
    %8449 = vmatprep.subr.mxu0 0.0
    %8450 = vmatpush1.msra.mxu0 0.0
    %8451 = vmatprep.subr.mxu0 0.0
    %8452 = vmatpush1.msra.mxu0 0.0
    %8453 = vmatprep.subr.mxu0 0.0
    %8454 = vmatpush1.msra.mxu0 0.0
    %8455 = vmatprep.subr.mxu0 0.0
    %8456 = vmatpush1.msra.mxu0 0.0
    %8457 = vmatprep.subr.mxu0 0.0
    %8458 = vmatpush1.msra.mxu0 0.0
    %8459 = vmatprep.subr.mxu0 0.0
    %8460 = vmatpush1.msra.mxu0 0.0
    %8461 = vmatprep.subr.mxu0 0.0
    %8462 = vmatpush1.msra.mxu0 0.0
    %8463 = vmatprep.subr.mxu0 0.0
    %8464 = vmatpush1.msra.mxu0 0.0
    %8465 = vmatprep.subr.mxu0 0.0
    %8466 = vmatpush1.msra.mxu0 0.0
    %8467 = vmatprep.subr.mxu0 0.0
    %8468 = vmatpush1.msra.mxu0 0.0
    %8469 = vmatprep.subr.mxu0 0.0
    %8470 = vmatpush1.msra.mxu0 0.0
    %8471 = vmatprep.subr.mxu0 0.0
    %8472 = vmatpush1.msra.mxu0 0.0
    %8473 = vmatprep.subr.mxu0 0.0
    %8474 = vmatpush1.msra.mxu0 0.0
    %8475 = vmatprep.mubr.f32.mxu0 0.0
    %8476 = vmatmul.mubr.f32.gmra.mrb[0].mxu0 %v8409
    %v8477 = vpop.f32.mrb[0].mxu0
    %v8478 = vadd.f32 0.0, %v8477
    %v8479 = vpop.f32.mrb[0].mxu0
    %8480 = vdwg.mxu0
    %v8482 = vsel %vm1096, %v8255, 0
    %8484 = vmatprep.subr.mxu0 0.0
    %8485 = vmatpush1.msra.mxu0 %v8405
    %8486 = vmatprep.subr.mxu0 0.0
    %8487 = vmatpush1.msra.mxu0 0.0
    %8488 = vmatprep.subr.mxu0 0.0
    %8489 = vmatpush1.msra.mxu0 0.0
    %8490 = vmatprep.subr.mxu0 0.0
    %8491 = vmatpush1.msra.mxu0 0.0
    %8492 = vmatprep.subr.mxu0 0.0
    %8493 = vmatpush1.msra.mxu0 0.0
    %8494 = vmatprep.subr.mxu0 0.0
    %8495 = vmatpush1.msra.mxu0 0.0
    %8496 = vmatprep.subr.mxu0 0.0
    %8497 = vmatpush1.msra.mxu0 0.0
    %8498 = vmatprep.subr.mxu0 0.0
    %8499 = vmatpush1.msra.mxu0 0.0
    %8500 = vmatprep.subr.mxu0 0.0
    %8501 = vmatpush1.msra.mxu0 0.0
    %8502 = vmatprep.subr.mxu0 0.0
    %8503 = vmatpush1.msra.mxu0 0.0
    %8504 = vmatprep.subr.mxu0 0.0
    %8505 = vmatpush1.msra.mxu0 0.0
    %8506 = vmatprep.subr.mxu0 0.0
    %8507 = vmatpush1.msra.mxu0 0.0
    %8508 = vmatprep.subr.mxu0 0.0
    %8509 = vmatpush1.msra.mxu0 0.0
    %8510 = vmatprep.subr.mxu0 0.0
    %8511 = vmatpush1.msra.mxu0 0.0
    %8512 = vmatprep.subr.mxu0 0.0
    %8513 = vmatpush1.msra.mxu0 0.0
    %8514 = vmatprep.subr.mxu0 0.0
    %8515 = vmatpush1.msra.mxu0 0.0
    %8516 = vmatprep.subr.mxu0 0.0
    %8517 = vmatpush1.msra.mxu0 0.0
    %8518 = vmatprep.subr.mxu0 0.0
    %8519 = vmatpush1.msra.mxu0 0.0
    %8520 = vmatprep.subr.mxu0 0.0
    %8521 = vmatpush1.msra.mxu0 0.0
    %8522 = vmatprep.subr.mxu0 0.0
    %8523 = vmatpush1.msra.mxu0 0.0
    %8524 = vmatprep.subr.mxu0 0.0
    %8525 = vmatpush1.msra.mxu0 0.0
    %8526 = vmatprep.subr.mxu0 0.0
    %8527 = vmatpush1.msra.mxu0 0.0
    %8528 = vmatprep.subr.mxu0 0.0
    %8529 = vmatpush1.msra.mxu0 0.0
    %8530 = vmatprep.subr.mxu0 0.0
    %8531 = vmatpush1.msra.mxu0 0.0
    %8532 = vmatprep.subr.mxu0 0.0
    %8533 = vmatpush1.msra.mxu0 0.0
    %8534 = vmatprep.subr.mxu0 0.0
    %8535 = vmatpush1.msra.mxu0 0.0
    %8536 = vmatprep.subr.mxu0 0.0
    %8537 = vmatpush1.msra.mxu0 0.0
    %8538 = vmatprep.subr.mxu0 0.0
    %8539 = vmatpush1.msra.mxu0 0.0
    %8540 = vmatprep.subr.mxu0 0.0
    %8541 = vmatpush1.msra.mxu0 0.0
    %8542 = vmatprep.subr.mxu0 0.0
    %8543 = vmatpush1.msra.mxu0 0.0
    %8544 = vmatprep.subr.mxu0 0.0
    %8545 = vmatpush1.msra.mxu0 0.0
    %8546 = vmatprep.subr.mxu0 0.0
    %8547 = vmatpush1.msra.mxu0 0.0
    %8548 = vmatprep.mubr.f32.mxu0 0.0
    %8549 = vmatmul.mubr.f32.gmra.mrb[0].mxu0 %v8482
    %v8550 = vpop.f32.mrb[0].mxu0
    %v8551 = vadd.f32 0.0, %v8550
    %v8552 = vpop.f32.mrb[0].mxu0
    %8553 = vdwg.mxu0
    %v8555 = vsel %vm1096, %v8328, 0
    %8557 = vmatprep.subr.mxu0 0.0
    %8558 = vmatpush1.msra.mxu0 %v8406
    %8559 = vmatprep.subr.mxu0 0.0
    %8560 = vmatpush1.msra.mxu0 0.0
    %8561 = vmatprep.subr.mxu0 0.0
    %8562 = vmatpush1.msra.mxu0 0.0
    %8563 = vmatprep.subr.mxu0 0.0
    %8564 = vmatpush1.msra.mxu0 0.0
    %8565 = vmatprep.subr.mxu0 0.0
    %8566 = vmatpush1.msra.mxu0 0.0
    %8567 = vmatprep.subr.mxu0 0.0
    %8568 = vmatpush1.msra.mxu0 0.0
    %8569 = vmatprep.subr.mxu0 0.0
    %8570 = vmatpush1.msra.mxu0 0.0
    %8571 = vmatprep.subr.mxu0 0.0
    %8572 = vmatpush1.msra.mxu0 0.0
    %8573 = vmatprep.subr.mxu0 0.0
    %8574 = vmatpush1.msra.mxu0 0.0
    %8575 = vmatprep.subr.mxu0 0.0
    %8576 = vmatpush1.msra.mxu0 0.0
    %8577 = vmatprep.subr.mxu0 0.0
    %8578 = vmatpush1.msra.mxu0 0.0
    %8579 = vmatprep.subr.mxu0 0.0
    %8580 = vmatpush1.msra.mxu0 0.0
    %8581 = vmatprep.subr.mxu0 0.0
    %8582 = vmatpush1.msra.mxu0 0.0
    %8583 = vmatprep.subr.mxu0 0.0
    %8584 = vmatpush1.msra.mxu0 0.0
    %8585 = vmatprep.subr.mxu0 0.0
    %8586 = vmatpush1.msra.mxu0 0.0
    %8587 = vmatprep.subr.mxu0 0.0
    %8588 = vmatpush1.msra.mxu0 0.0
    %8589 = vmatprep.subr.mxu0 0.0
    %8590 = vmatpush1.msra.mxu0 0.0
    %8591 = vmatprep.subr.mxu0 0.0
    %8592 = vmatpush1.msra.mxu0 0.0
    %8593 = vmatprep.subr.mxu0 0.0
    %8594 = vmatpush1.msra.mxu0 0.0
    %8595 = vmatprep.subr.mxu0 0.0
    %8596 = vmatpush1.msra.mxu0 0.0
    %8597 = vmatprep.subr.mxu0 0.0
    %8598 = vmatpush1.msra.mxu0 0.0
    %8599 = vmatprep.subr.mxu0 0.0
    %8600 = vmatpush1.msra.mxu0 0.0
    %8601 = vmatprep.subr.mxu0 0.0
    %8602 = vmatpush1.msra.mxu0 0.0
    %8603 = vmatprep.subr.mxu0 0.0
    %8604 = vmatpush1.msra.mxu0 0.0
    %8605 = vmatprep.subr.mxu0 0.0
    %8606 = vmatpush1.msra.mxu0 0.0
    %8607 = vmatprep.subr.mxu0 0.0
    %8608 = vmatpush1.msra.mxu0 0.0
    %8609 = vmatprep.subr.mxu0 0.0
    %8610 = vmatpush1.msra.mxu0 0.0
    %8611 = vmatprep.subr.mxu0 0.0
    %8612 = vmatpush1.msra.mxu0 0.0
    %8613 = vmatprep.subr.mxu0 0.0
    %8614 = vmatpush1.msra.mxu0 0.0
    %8615 = vmatprep.subr.mxu0 0.0
    %8616 = vmatpush1.msra.mxu0 0.0
    %8617 = vmatprep.subr.mxu0 0.0
    %8618 = vmatpush1.msra.mxu0 0.0
    %8619 = vmatprep.subr.mxu0 0.0
    %8620 = vmatpush1.msra.mxu0 0.0
    %8621 = vmatprep.mubr.f32.mxu0 0.0
    %8622 = vmatmul.mubr.f32.gmra.mrb[0].mxu0 %v8555
    %v8623 = vpop.f32.mrb[0].mxu0
    %v8624 = vadd.f32 0.0, %v8623
    %v8625 = vpop.f32.mrb[0].mxu0
    %8626 = vdwg.mxu0
    %v8628 = vsel %vm1096, %v8401, 0
    %8630 = vmatprep.subr.mxu0 0.0
    %8631 = vmatpush1.msra.mxu0 %v8407
    %8632 = vmatprep.subr.mxu0 0.0
    %8633 = vmatpush1.msra.mxu0 0.0
    %8634 = vmatprep.subr.mxu0 0.0
    %8635 = vmatpush1.msra.mxu0 0.0
    %8636 = vmatprep.subr.mxu0 0.0
    %8637 = vmatpush1.msra.mxu0 0.0
    %8638 = vmatprep.subr.mxu0 0.0
    %8639 = vmatpush1.msra.mxu0 0.0
    %8640 = vmatprep.subr.mxu0 0.0
    %8641 = vmatpush1.msra.mxu0 0.0
    %8642 = vmatprep.subr.mxu0 0.0
    %8643 = vmatpush1.msra.mxu0 0.0
    %8644 = vmatprep.subr.mxu0 0.0
    %8645 = vmatpush1.msra.mxu0 0.0
    %8646 = vmatprep.subr.mxu0 0.0
    %8647 = vmatpush1.msra.mxu0 0.0
    %8648 = vmatprep.subr.mxu0 0.0
    %8649 = vmatpush1.msra.mxu0 0.0
    %8650 = vmatprep.subr.mxu0 0.0
    %8651 = vmatpush1.msra.mxu0 0.0
    %8652 = vmatprep.subr.mxu0 0.0
    %8653 = vmatpush1.msra.mxu0 0.0
    %8654 = vmatprep.subr.mxu0 0.0
    %8655 = vmatpush1.msra.mxu0 0.0
    %8656 = vmatprep.subr.mxu0 0.0
    %8657 = vmatpush1.msra.mxu0 0.0
    %8658 = vmatprep.subr.mxu0 0.0
    %8659 = vmatpush1.msra.mxu0 0.0
    %8660 = vmatprep.subr.mxu0 0.0
    %8661 = vmatpush1.msra.mxu0 0.0
    %8662 = vmatprep.subr.mxu0 0.0
    %8663 = vmatpush1.msra.mxu0 0.0
    %8664 = vmatprep.subr.mxu0 0.0
    %8665 = vmatpush1.msra.mxu0 0.0
    %8666 = vmatprep.subr.mxu0 0.0
    %8667 = vmatpush1.msra.mxu0 0.0
    %8668 = vmatprep.subr.mxu0 0.0
    %8669 = vmatpush1.msra.mxu0 0.0
    %8670 = vmatprep.subr.mxu0 0.0
    %8671 = vmatpush1.msra.mxu0 0.0
    %8672 = vmatprep.subr.mxu0 0.0
    %8673 = vmatpush1.msra.mxu0 0.0
    %8674 = vmatprep.subr.mxu0 0.0
    %8675 = vmatpush1.msra.mxu0 0.0
    %8676 = vmatprep.subr.mxu0 0.0
    %8677 = vmatpush1.msra.mxu0 0.0
    %8678 = vmatprep.subr.mxu0 0.0
    %8679 = vmatpush1.msra.mxu0 0.0
    %8680 = vmatprep.subr.mxu0 0.0
    %8681 = vmatpush1.msra.mxu0 0.0
    %8682 = vmatprep.subr.mxu0 0.0
    %8683 = vmatpush1.msra.mxu0 0.0
    %8684 = vmatprep.subr.mxu0 0.0
    %8685 = vmatpush1.msra.mxu0 0.0
    %8686 = vmatprep.subr.mxu0 0.0
    %8687 = vmatpush1.msra.mxu0 0.0
    %8688 = vmatprep.subr.mxu0 0.0
    %8689 = vmatpush1.msra.mxu0 0.0
    %8690 = vmatprep.subr.mxu0 0.0
    %8691 = vmatpush1.msra.mxu0 0.0
    %8692 = vmatprep.subr.mxu0 0.0
    %8693 = vmatpush1.msra.mxu0 0.0
    %8694 = vmatprep.mubr.f32.mxu0 0.0
    %8695 = vmatmul.mubr.f32.gmra.mrb[0].mxu0 %v8628
    %v8696 = vpop.f32.mrb[0].mxu0
    %v8697 = vadd.f32 0.0, %v8696
    %v8698 = vpop.f32.mrb[0].mxu0
    %8699 = vdwg.mxu0
    %v8700 = vsel %vm71, %v8478, 0.0
    %v8701 = vsel %vm71, %v8551, 0.0
    %v8702 = vadd.f32 %v8700, %v8701
    %v8703 = vsel %vm71, %v8624, 0.0
    %v8704 = vadd.f32 %v8702, %v8703
    %v8705 = vsel %vm71, %v8697, 0.0
    %v8706 = vadd.f32 %v8704, %v8705
    %v8707 = vadd.f32 %v6740, %v8706
    %v8708 = vlaneseq
    %v8709 = vshrl.u32 %v8708, 7
    %v8710 = vsub.s32 4, %v8709
    %v8711 = vrot.slane %v6741, %v8710
    %v8712 = vadd.f32 %v8707, %v8711
    %v8713 = vsel %vm71, %v8712, 0.0
    %8714 = vadd.xlane.f32.xlu0 %v8713
    %v8715 = vpop.xlane.xlu0 %8714
    %v8716 = vmul.f32 %v8715, %v75
    %v8717 = vsub.f32 %v8712, %v8716
    %v8718 = vmul.f32 %v8717, %v8717
    %v8719 = vsel %vm71, %v8718, 0.0
    %8720 = vadd.xlane.f32.xlu0 %v8719
    %v8721 = vpop.xlane.xlu0 %8720
    %v8722 = vmul.f32 %v8721, %v75
    %v8723 = vadd.f32 %v8722, 1e-05
    %v8724 = vrsqrt.pop %v8723
    %v8725 = vmul.f32 %v8717, %v8724
    %v8726 = vlaneseq
    %v8727 = vshrl.u32 %v8726, 7
    %v8728 = vsub.s32 2, %v8727
    %v8729 = vrot.slane %v6741, %v8728
    %v8730 = vmul.f32 %v8725, %v8729
    %v8731 = vlaneseq
    %v8732 = vshrl.u32 %v8731, 7
    %v8733 = vsub.s32 3, %v8732
    %v8734 = vrot.slane %v6741, %v8733
    %v8735 = vadd.f32 %v8730, %v8734
    %v8736 = vld [vmem:[%s4277] sm:$0xff]
    %v8737 = vld [vmem:[%s4277 + $0x8] sm:$0xff]
    %v8738 = vld [vmem:[%s4277 + $0x10] sm:$0xff]
    %v8739 = vld [vmem:[%s4277 + $0x18] sm:$0xff]
    %v8740 = vld [vmem:[%s4282] sm:$0x1]
    %v8742 = vlaneseq
    %v8743 = vshrl.u32 %v8742, 7
    %v8744 = vsub.s32 0, %v8743
    %v8745 = vrot.slane %v8740, %v8744
    %v8748 = vsel %vm71, %v8735, 0
    %8750 = vmatprep.subr.mxu0 0.0
    %8751 = vmatpush1.msra.mxu0 %v8736
    %8752 = vmatprep.subr.mxu0 0.0
    %8753 = vmatpush1.msra.mxu0 %v8737
    %8754 = vmatprep.subr.mxu0 0.0
    %8755 = vmatpush1.msra.mxu0 %v8738
    %8756 = vmatprep.subr.mxu0 0.0
    %8757 = vmatpush1.msra.mxu0 %v8739
    %8758 = vmatprep.subr.mxu0 0.0
    %8759 = vmatpush1.msra.mxu0 0.0
    %8760 = vmatprep.subr.mxu0 0.0
    %8761 = vmatpush1.msra.mxu0 0.0
    %8762 = vmatprep.subr.mxu0 0.0
    %8763 = vmatpush1.msra.mxu0 0.0
    %8764 = vmatprep.subr.mxu0 0.0
    %8765 = vmatpush1.msra.mxu0 0.0
    %8766 = vmatprep.subr.mxu0 0.0
    %8767 = vmatpush1.msra.mxu0 0.0
    %8768 = vmatprep.subr.mxu0 0.0
    %8769 = vmatpush1.msra.mxu0 0.0
    %8770 = vmatprep.subr.mxu0 0.0
    %8771 = vmatpush1.msra.mxu0 0.0
    %8772 = vmatprep.subr.mxu0 0.0
    %8773 = vmatpush1.msra.mxu0 0.0
    %8774 = vmatprep.subr.mxu0 0.0
    %8775 = vmatpush1.msra.mxu0 0.0
    %8776 = vmatprep.subr.mxu0 0.0
    %8777 = vmatpush1.msra.mxu0 0.0
    %8778 = vmatprep.subr.mxu0 0.0
    %8779 = vmatpush1.msra.mxu0 0.0
    %8780 = vmatprep.subr.mxu0 0.0
    %8781 = vmatpush1.msra.mxu0 0.0
    %8782 = vmatprep.subr.mxu0 0.0
    %8783 = vmatpush1.msra.mxu0 0.0
    %8784 = vmatprep.subr.mxu0 0.0
    %8785 = vmatpush1.msra.mxu0 0.0
    %8786 = vmatprep.subr.mxu0 0.0
    %8787 = vmatpush1.msra.mxu0 0.0
    %8788 = vmatprep.subr.mxu0 0.0
    %8789 = vmatpush1.msra.mxu0 0.0
    %8790 = vmatprep.subr.mxu0 0.0
    %8791 = vmatpush1.msra.mxu0 0.0
    %8792 = vmatprep.subr.mxu0 0.0
    %8793 = vmatpush1.msra.mxu0 0.0
    %8794 = vmatprep.subr.mxu0 0.0
    %8795 = vmatpush1.msra.mxu0 0.0
    %8796 = vmatprep.subr.mxu0 0.0
    %8797 = vmatpush1.msra.mxu0 0.0
    %8798 = vmatprep.subr.mxu0 0.0
    %8799 = vmatpush1.msra.mxu0 0.0
    %8800 = vmatprep.subr.mxu0 0.0
    %8801 = vmatpush1.msra.mxu0 0.0
    %8802 = vmatprep.subr.mxu0 0.0
    %8803 = vmatpush1.msra.mxu0 0.0
    %8804 = vmatprep.subr.mxu0 0.0
    %8805 = vmatpush1.msra.mxu0 0.0
    %8806 = vmatprep.subr.mxu0 0.0
    %8807 = vmatpush1.msra.mxu0 0.0
    %8808 = vmatprep.subr.mxu0 0.0
    %8809 = vmatpush1.msra.mxu0 0.0
    %8810 = vmatprep.subr.mxu0 0.0
    %8811 = vmatpush1.msra.mxu0 0.0
    %8812 = vmatprep.subr.mxu0 0.0
    %8813 = vmatpush1.msra.mxu0 0.0
    %8814 = vmatprep.mubr.f32.mxu0 0.0
    %8815 = vmatmul.mubr.f32.gmra.mrb[0].mxu0 %v8748
    %v8816 = vpop.f32.mrb[0].mxu0
    %v8817 = vadd.f32 %v8745, %v8816
    %v8818 = vpop.f32.mrb[0].mxu0
    %8819 = vdwg.mxu0
    %v8820 = vmul.f32 %v8817, 1.702
    %v8821 = vxor.u32 %v8820, 2147483648
    %v8822 = vmul.f32 %v8821, 1.442695
    %v8823 = vpow.pop %v8822
    %v8824 = vadd.f32 %v8823, 1.0
    %v8825 = vrcp.pop %v8824
    %v8826 = vmul.f32 1.0, %v8825
    %v8827 = vmul.f32 %v8817, %v8826
    %v8828 = vld [vmem:[%s4371] sm:$0xff]
    %v8829 = vld [vmem:[%s4371 + $0x8] sm:$0xff]
    %v8830 = vld [vmem:[%s4371 + $0x10] sm:$0xff]
    %v8831 = vld [vmem:[%s4371 + $0x18] sm:$0xff]
    %v8832 = vld [vmem:[%s4371 + $0x20] sm:$0xff]
    %v8833 = vld [vmem:[%s4371 + $0x28] sm:$0xff]
    %v8834 = vld [vmem:[%s4371 + $0x30] sm:$0xff]
    %v8835 = vld [vmem:[%s4371 + $0x38] sm:$0xff]
    %v8836 = vld [vmem:[%s4371 + $0x40] sm:$0xff]
    %v8837 = vld [vmem:[%s4371 + $0x48] sm:$0xff]
    %v8838 = vld [vmem:[%s4371 + $0x50] sm:$0xff]
    %v8839 = vld [vmem:[%s4371 + $0x58] sm:$0xff]
    %v8840 = vld [vmem:[%s4371 + $0x60] sm:$0xff]
    %v8841 = vld [vmem:[%s4371 + $0x68] sm:$0xff]
    %v8842 = vld [vmem:[%s4371 + $0x70] sm:$0xff]
    %v8843 = vld [vmem:[%s4371 + $0x78] sm:$0xff]
    %8844 = vmatprep.subr.mxu0 0.0
    %8845 = vmatpush1.msra.mxu0 %v8828
    %8846 = vmatprep.subr.mxu0 0.0
    %8847 = vmatpush1.msra.mxu0 %v8829
    %8848 = vmatprep.subr.mxu0 0.0
    %8849 = vmatpush1.msra.mxu0 %v8830
    %8850 = vmatprep.subr.mxu0 0.0
    %8851 = vmatpush1.msra.mxu0 %v8831
    %8852 = vmatprep.subr.mxu0 0.0
    %8853 = vmatpush1.msra.mxu0 %v8832
    %8854 = vmatprep.subr.mxu0 0.0
    %8855 = vmatpush1.msra.mxu0 %v8833
    %8856 = vmatprep.subr.mxu0 0.0
    %8857 = vmatpush1.msra.mxu0 %v8834
    %8858 = vmatprep.subr.mxu0 0.0
    %8859 = vmatpush1.msra.mxu0 %v8835
    %8860 = vmatprep.subr.mxu0 0.0
    %8861 = vmatpush1.msra.mxu0 %v8836
    %8862 = vmatprep.subr.mxu0 0.0
    %8863 = vmatpush1.msra.mxu0 %v8837
    %8864 = vmatprep.subr.mxu0 0.0
    %8865 = vmatpush1.msra.mxu0 %v8838
    %8866 = vmatprep.subr.mxu0 0.0
    %8867 = vmatpush1.msra.mxu0 %v8839
    %8868 = vmatprep.subr.mxu0 0.0
    %8869 = vmatpush1.msra.mxu0 %v8840
    %8870 = vmatprep.subr.mxu0 0.0
    %8871 = vmatpush1.msra.mxu0 %v8841
    %8872 = vmatprep.subr.mxu0 0.0
    %8873 = vmatpush1.msra.mxu0 %v8842
    %8874 = vmatprep.subr.mxu0 0.0
    %8875 = vmatpush1.msra.mxu0 %v8843
    %8876 = vmatprep.subr.mxu0 0.0
    %8877 = vmatpush1.msra.mxu0 0.0
    %8878 = vmatprep.subr.mxu0 0.0
    %8879 = vmatpush1.msra.mxu0 0.0
    %8880 = vmatprep.subr.mxu0 0.0
    %8881 = vmatpush1.msra.mxu0 0.0
    %8882 = vmatprep.subr.mxu0 0.0
    %8883 = vmatpush1.msra.mxu0 0.0
    %8884 = vmatprep.subr.mxu0 0.0
    %8885 = vmatpush1.msra.mxu0 0.0
    %8886 = vmatprep.subr.mxu0 0.0
    %8887 = vmatpush1.msra.mxu0 0.0
    %8888 = vmatprep.subr.mxu0 0.0
    %8889 = vmatpush1.msra.mxu0 0.0
    %8890 = vmatprep.subr.mxu0 0.0
    %8891 = vmatpush1.msra.mxu0 0.0
    %8892 = vmatprep.subr.mxu0 0.0
    %8893 = vmatpush1.msra.mxu0 0.0
    %8894 = vmatprep.subr.mxu0 0.0
    %8895 = vmatpush1.msra.mxu0 0.0
    %8896 = vmatprep.subr.mxu0 0.0
    %8897 = vmatpush1.msra.mxu0 0.0
    %8898 = vmatprep.subr.mxu0 0.0
    %8899 = vmatpush1.msra.mxu0 0.0
    %8900 = vmatprep.subr.mxu0 0.0
    %8901 = vmatpush1.msra.mxu0 0.0
    %8902 = vmatprep.subr.mxu0 0.0
    %8903 = vmatpush1.msra.mxu0 0.0
    %8904 = vmatprep.subr.mxu0 0.0
    %8905 = vmatpush1.msra.mxu0 0.0
    %8906 = vmatprep.subr.mxu0 0.0
    %8907 = vmatpush1.msra.mxu0 0.0
    %8908 = vmatprep.mubr.f32.mxu0 0.0
    %8909 = vmatmul.mubr.f32.gmra.mrb[0].mxu0 %v8827
    %v8910 = vpop.f32.mrb[0].mxu0
    %v8911 = vadd.f32 0.0, %v8910
    %v8912 = vpop.f32.mrb[0].mxu0
    %8913 = vdwg.mxu0
    %v8914 = vadd.f32 %v8712, %v8911
    %v8915 = vlaneseq
    %v8916 = vshrl.u32 %v8915, 7
    %v8917 = vsub.s32 5, %v8916
    %v8918 = vrot.slane %v6741, %v8917
    %v8919 = vadd.f32 %v8914, %v8918
    %8920 = vst.msk [vmem:[#allocation2] sm:$0xff] %vm71, %v8919
    %s8921 = sld [smem:[#allocation3 + $0x1]]
    %s8922 = scalar_lea.vmem [#allocation2], %s8921
    %v8923 = vld [vmem:[%s8922] sm:$0x1]
    %v8924 = vsel %vm4468, %v8923, 0.0
    %8925 = vadd.xlane.f32.xlu0 %v8924
    %v8926 = vpop.xlane.xlu0 %8925
    %v8927 = vmul.f32 %v8926, %v75
    %v8928 = vsub.f32 %v8923, %v8927
    %v8929 = vmul.f32 %v8928, %v8928
    %v8930 = vsel %vm4468, %v8929, 0.0
    %8931 = vadd.xlane.f32.xlu0 %v8930
    %v8932 = vpop.xlane.xlu0 %8931
    %v8933 = vmul.f32 %v8932, %v75
    %v8934 = vadd.f32 %v8933, 1e-05
    %v8935 = vrsqrt.pop %v8934
    %v8936 = vmul.f32 %v8928, %v8935
    %v8937 = vmul.f32 %v8936, %v62
    %v8938 = vadd.f32 %v8937, %v63
    %v8940 = vsel %vm71, %v8938, 0
    %8942 = vmatprep.subr.mxu0 0.0
    %8943 = vmatpush1.msra.mxu0 %v64
    %8944 = vmatprep.subr.mxu0 0.0
    %8945 = vmatpush1.msra.mxu0 %v65
    %8946 = vmatprep.subr.mxu0 0.0
    %8947 = vmatpush1.msra.mxu0 %v66
    %8948 = vmatprep.subr.mxu0 0.0
    %8949 = vmatpush1.msra.mxu0 %v67
    %8950 = vmatprep.subr.mxu0 0.0
    %8951 = vmatpush1.msra.mxu0 0.0
    %8952 = vmatprep.subr.mxu0 0.0
    %8953 = vmatpush1.msra.mxu0 0.0
    %8954 = vmatprep.subr.mxu0 0.0
    %8955 = vmatpush1.msra.mxu0 0.0
    %8956 = vmatprep.subr.mxu0 0.0
    %8957 = vmatpush1.msra.mxu0 0.0
    %8958 = vmatprep.subr.mxu0 0.0
    %8959 = vmatpush1.msra.mxu0 0.0
    %8960 = vmatprep.subr.mxu0 0.0
    %8961 = vmatpush1.msra.mxu0 0.0
    %8962 = vmatprep.subr.mxu0 0.0
    %8963 = vmatpush1.msra.mxu0 0.0
    %8964 = vmatprep.subr.mxu0 0.0
    %8965 = vmatpush1.msra.mxu0 0.0
    %8966 = vmatprep.subr.mxu0 0.0
    %8967 = vmatpush1.msra.mxu0 0.0
    %8968 = vmatprep.subr.mxu0 0.0
    %8969 = vmatpush1.msra.mxu0 0.0
    %8970 = vmatprep.subr.mxu0 0.0
    %8971 = vmatpush1.msra.mxu0 0.0
    %8972 = vmatprep.subr.mxu0 0.0
    %8973 = vmatpush1.msra.mxu0 0.0
    %8974 = vmatprep.subr.mxu0 0.0
    %8975 = vmatpush1.msra.mxu0 0.0
    %8976 = vmatprep.subr.mxu0 0.0
    %8977 = vmatpush1.msra.mxu0 0.0
    %8978 = vmatprep.subr.mxu0 0.0
    %8979 = vmatpush1.msra.mxu0 0.0
    %8980 = vmatprep.subr.mxu0 0.0
    %8981 = vmatpush1.msra.mxu0 0.0
    %8982 = vmatprep.subr.mxu0 0.0
    %8983 = vmatpush1.msra.mxu0 0.0
    %8984 = vmatprep.subr.mxu0 0.0
    %8985 = vmatpush1.msra.mxu0 0.0
    %8986 = vmatprep.subr.mxu0 0.0
    %8987 = vmatpush1.msra.mxu0 0.0
    %8988 = vmatprep.subr.mxu0 0.0
    %8989 = vmatpush1.msra.mxu0 0.0
    %8990 = vmatprep.subr.mxu0 0.0
    %8991 = vmatpush1.msra.mxu0 0.0
    %8992 = vmatprep.subr.mxu0 0.0
    %8993 = vmatpush1.msra.mxu0 0.0
    %8994 = vmatprep.subr.mxu0 0.0
    %8995 = vmatpush1.msra.mxu0 0.0
    %8996 = vmatprep.subr.mxu0 0.0
    %8997 = vmatpush1.msra.mxu0 0.0
    %8998 = vmatprep.subr.mxu0 0.0
    %8999 = vmatpush1.msra.mxu0 0.0
    %9000 = vmatprep.subr.mxu0 0.0
    %9001 = vmatpush1.msra.mxu0 0.0
    %9002 = vmatprep.subr.mxu0 0.0
    %9003 = vmatpush1.msra.mxu0 0.0
    %9004 = vmatprep.subr.mxu0 0.0
    %9005 = vmatpush1.msra.mxu0 0.0
    %9006 = vmatprep.mubr.f32.mxu0 0.0
    %9007 = vmatmul.mubr.f32.gmra.mrb[0].mxu0 %v8940
    %v9008 = vpop.f32.mrb[0].mxu0
    %v9009 = vadd.f32 0.0, %v9008
    %v9010 = vpop.f32.mrb[0].mxu0
    %9011 = vdwg.mxu0
    %9012 = vst.msk [vmem:[#allocation6 + $0x1] sm:$0x1] %vm4557, %v9009
    // Predicated region
    $region54: #{clip_text_forward.1} parent=1 // pred_check
      _
    $region55: #{clip_text_forward.1} parent=1 // pred_check_branch
      %9014 = sbr.rel (0) target = $region57
    $region56: #{clip_text_forward.1} parent=1 // pred_region
      %s9016 = ssub.s32 32, 32
      %9017 = vsyncadd [#allocation4], %s9016
      %s9019 = sshll.u32 [#allocation6], 4
      %s9020 = int_to_ptr.vmem [resolvable:$true] %s9019
      %9022 = dma.vmem_to_hbm [thread:$0]  %s9020, 32, %s12, [#allocation4]
    $region57: #{clip_text_forward.1} parent=1 // pred_fallthru
      _
    // Predicated region
    $region58: #{clip_text_forward.1} parent=1 // pred_check
      _
    $region59: #{clip_text_forward.1} parent=1 // pred_check_branch
      %9024 = sbr.rel (0) target = $region61
    $region60: #{clip_text_forward.1} parent=1 // pred_region
      %9025 = dma.done [#allocation4], 32
    $region61: #{clip_text_forward.1} parent=1 // pred_fallthru
      _
    %9026 = vsyncpa [#allocation4], 1
    %9027 = vsyncpa [#allocation5], 1

</llo_original>
